<compile_context>
chip_gen: v6e
topology: v6e:2x2x1
jax: 0.10.0
libtpu: 0.0.40
codegen_flags: <defaults>
</compile_context>

<pallas_src>
import math
import functools

import jax
import jax.numpy as jnp
from jax import lax
from jax.experimental import pallas as pl
from jax.experimental.pallas import tpu as pltpu

NEG_INF = -1e9            # finite stand-in for -inf additive masks
LN_EPS = 1e-5
VMEM_LIMIT = 32 * 1024 * 1024
MAX_LEN = 128             # positional-encoding table length


# ---------------------------------------------------------------------------
# in-kernel building blocks
# ---------------------------------------------------------------------------
def _layernorm(x, g, b):
    mu = jnp.mean(x, axis=-1, keepdims=True)
    var = jnp.mean((x - mu) * (x - mu), axis=-1, keepdims=True)
    return (x - mu) * lax.rsqrt(var + LN_EPS) * g + b


def _mha(x, mem, in_w, in_b, out_w, out_b, mask, *, B, Tq, Tk, H, self_attn):
    """Multi-head attention + residual.

    x : (B*Tq, E) f32 query-side activations (residual source)
    mem : (B*Tk, E) f32 key/value-side activations (== x for self-attention)
    mask: (B, Tq, Tk) f32 additive mask (attn_mask + key padding)
    """
    E = x.shape[-1]
    Dh = E // H
    xb = x.astype(jnp.bfloat16)
    if self_attn:
        qkv = jnp.dot(xb, in_w, preferred_element_type=jnp.float32) + in_b
        q, k, v = qkv[:, :E], qkv[:, E:2 * E], qkv[:, 2 * E:]
    else:
        mb = mem.astype(jnp.bfloat16)
        q = jnp.dot(xb, in_w[:, :E], preferred_element_type=jnp.float32) + in_b[:, :E]
        kv = jnp.dot(mb, in_w[:, E:], preferred_element_type=jnp.float32) + in_b[:, E:]
        k, v = kv[:, :E], kv[:, E:]

    # 1/sqrt(Dh) is pre-folded into the Q columns of in_w / in_b (init time).
    q3 = q.astype(jnp.bfloat16).reshape(B, Tq, E)
    k3 = k.astype(jnp.bfloat16).reshape(B, Tk, E)
    v3 = v.astype(jnp.bfloat16).reshape(B, Tk, E)

    heads = []
    for h in range(H):                      # static unroll, H is small
        sl = slice(h * Dh, (h + 1) * Dh)
        s = jnp.einsum('btd,bsd->bts', q3[:, :, sl], k3[:, :, sl],
                       preferred_element_type=jnp.float32) + mask
        s = s - jnp.max(s, axis=-1, keepdims=True)
        p = jnp.exp(s)
        p = p * pl.reciprocal(jnp.sum(p, axis=-1, keepdims=True), approx=True)
        heads.append(jnp.einsum('bts,bsd->btd', p.astype(jnp.bfloat16),
                                v3[:, :, sl], preferred_element_type=jnp.float32))
    attn = jnp.concatenate(heads, axis=-1).reshape(B * Tq, E)

    proj = jnp.dot(attn.astype(jnp.bfloat16), out_w,
                   preferred_element_type=jnp.float32) + out_b
    return x + proj


def _ffn(x, w1, b1, w2, b2):
    h = jnp.dot(x.astype(jnp.bfloat16), w1, preferred_element_type=jnp.float32) + b1
    h = jnp.maximum(h, 0.0)
    return x + jnp.dot(h.astype(jnp.bfloat16), w2,
                       preferred_element_type=jnp.float32) + b2


# ---------------------------------------------------------------------------
# fused stack kernels (grid iterates over layers; activation resident in VMEM)
# ---------------------------------------------------------------------------
def _encoder_stack_kernel(x_ref, mask_ref,
                          aw_ref, ab_ref, ow_ref, ob_ref, g1_ref, c1_ref,
                          w1_ref, d1_ref, w2_ref, d2_ref, g2_ref, c2_ref,
                          ng_ref, nb_ref,
                          o_ref, act_ref, *, B, S, H):
    l = pl.program_id(0)

    @pl.when(l == 0)
    def _():
        act_ref[...] = x_ref[...]

    x = act_ref[...]
    a = _mha(x, x, aw_ref[0], ab_ref[0], ow_ref[0], ob_ref[0], mask_ref[...],
             B=B, Tq=S, Tk=S, H=H, self_attn=True)
    x = _layernorm(a, g1_ref[0], c1_ref[0])
    f = _ffn(x, w1_ref[0], d1_ref[0], w2_ref[0], d2_ref[0])
    x = _layernorm(f, g2_ref[0], c2_ref[0])
    act_ref[...] = x

    @pl.when(l == pl.num_programs(0) - 1)
    def _():
        o_ref[...] = _layernorm(x, ng_ref[...], nb_ref[...])


def _decoder_stack_kernel(y_ref, mem_ref, smask_ref, cmask_ref,
                          saw_ref, sab_ref, sow_ref, sob_ref, g1_ref, c1_ref,
                          caw_ref, cab_ref, cow_ref, cob_ref, g2_ref, c2_ref,
                          w1_ref, d1_ref, w2_ref, d2_ref, g3_ref, c3_ref,
                          ng_ref, nb_ref, gw_ref, gb_ref,
                          o_ref, act_ref, *, B, T, S, H):
    l = pl.program_id(0)

    @pl.when(l == 0)
    def _():
        act_ref[...] = y_ref[...]

    y = act_ref[...]
    a = _mha(y, y, saw_ref[0], sab_ref[0], sow_ref[0], sob_ref[0], smask_ref[...],
             B=B, Tq=T, Tk=T, H=H, self_attn=True)
    y = _layernorm(a, g1_ref[0], c1_ref[0])
    c = _mha(y, mem_ref[...], caw_ref[0], cab_ref[0], cow_ref[0], cob_ref[0],
             cmask_ref[...], B=B, Tq=T, Tk=S, H=H, self_attn=False)
    y = _layernorm(c, g2_ref[0], c2_ref[0])
    f = _ffn(y, w1_ref[0], d1_ref[0], w2_ref[0], d2_ref[0])
    y = _layernorm(f, g3_ref[0], c3_ref[0])
    act_ref[...] = y

    # last layer: final decoder LayerNorm fused with the generator matmul
    @pl.when(l == pl.num_programs(0) - 1)
    def _():
        yn = _layernorm(y, ng_ref[...], nb_ref[...])
        o_ref[...] = jnp.dot(yn.astype(jnp.bfloat16), gw_ref[...],
                             preferred_element_type=jnp.float32) + gb_ref[...]


# ---------------------------------------------------------------------------
# pallas_call wrappers
# ---------------------------------------------------------------------------
def _per_layer_spec(shape):
    n = len(shape)
    return pl.BlockSpec((1,) + tuple(shape), lambda l: (l,) + (0,) * n)


def _shared_spec(shape):
    n = len(shape)
    return pl.BlockSpec(tuple(shape), lambda l: (0,) * n)


def _cparams():
    return pltpu.CompilerParams(dimension_semantics=("arbitrary",),
                                vmem_limit_bytes=VMEM_LIMIT)


def encoder_stack(x2d, mask, ep, norm_g, norm_b, *, B, S, H):
    R, E = x2d.shape
    L = ep['in_w'].shape[0]
    F = ep['w1'].shape[2]
    kern = functools.partial(_encoder_stack_kernel, B=B, S=S, H=H)
    return pl.pallas_call(
        kern,
        out_shape=jax.ShapeDtypeStruct((R, E), jnp.float32),
        grid=(L,),
        in_specs=[_shared_spec((R, E)), _shared_spec((B, S, S)),
                  _per_layer_spec((E, 3 * E)), _per_layer_spec((1, 3 * E)),
                  _per_layer_spec((E, E)), _per_layer_spec((1, E)),
                  _per_layer_spec((1, E)), _per_layer_spec((1, E)),
                  _per_layer_spec((E, F)), _per_layer_spec((1, F)),
                  _per_layer_spec((F, E)), _per_layer_spec((1, E)),
                  _per_layer_spec((1, E)), _per_layer_spec((1, E)),
                  _shared_spec((1, E)), _shared_spec((1, E))],
        out_specs=_shared_spec((R, E)),
        scratch_shapes=[pltpu.VMEM((R, E), jnp.float32)],
        compiler_params=_cparams(),
    )(x2d, mask,
      ep['in_w'], ep['in_b'], ep['out_w'], ep['out_b'], ep['ln1_g'], ep['ln1_b'],
      ep['w1'], ep['b1'], ep['w2'], ep['b2'], ep['ln2_g'], ep['ln2_b'],
      norm_g, norm_b)


def decoder_stack(y2d, memory, smask, cmask, dp, norm_g, norm_b, gen_w, gen_b,
                  *, B, T, S, H):
    R, E = y2d.shape
    C = memory.shape[0]
    L = dp['self_in_w'].shape[0]
    F = dp['w1'].shape[2]
    Vp = gen_w.shape[1]
    kern = functools.partial(_decoder_stack_kernel, B=B, T=T, S=S, H=H)
    return pl.pallas_call(
        kern,
        out_shape=jax.ShapeDtypeStruct((R, Vp), jnp.float32),
        grid=(L,),
        in_specs=[_shared_spec((R, E)), _shared_spec((C, E)),
                  _shared_spec((B, T, T)), _shared_spec((B, T, S)),
                  _per_layer_spec((E, 3 * E)), _per_layer_spec((1, 3 * E)),
                  _per_layer_spec((E, E)), _per_layer_spec((1, E)),
                  _per_layer_spec((1, E)), _per_layer_spec((1, E)),
                  _per_layer_spec((E, 3 * E)), _per_layer_spec((1, 3 * E)),
                  _per_layer_spec((E, E)), _per_layer_spec((1, E)),
                  _per_layer_spec((1, E)), _per_layer_spec((1, E)),
                  _per_layer_spec((E, F)), _per_layer_spec((1, F)),
                  _per_layer_spec((F, E)), _per_layer_spec((1, E)),
                  _per_layer_spec((1, E)), _per_layer_spec((1, E)),
                  _shared_spec((1, E)), _shared_spec((1, E)),
                  _shared_spec((E, Vp)), _shared_spec((1, Vp))],
        out_specs=_shared_spec((R, Vp)),
        scratch_shapes=[pltpu.VMEM((R, E), jnp.float32)],
        compiler_params=_cparams(),
    )(y2d, memory, smask, cmask,
      dp['self_in_w'], dp['self_in_b'], dp['self_out_w'], dp['self_out_b'],
      dp['ln1_g'], dp['ln1_b'],
      dp['cross_in_w'], dp['cross_in_b'], dp['cross_out_w'], dp['cross_out_b'],
      dp['ln2_g'], dp['ln2_b'],
      dp['w1'], dp['b1'], dp['w2'], dp['b2'], dp['ln3_g'], dp['ln3_b'],
      norm_g, norm_b, gen_w, gen_b)


# ---------------------------------------------------------------------------
# model forward (JAX glue: embedding gather, PE add, tiny additive masks)
# ---------------------------------------------------------------------------
def positional_encoding_table(max_len, emb_size):
    den = jnp.exp(-jnp.arange(0, emb_size, 2, dtype=jnp.float32)
                  * (math.log(10000.0) / emb_size))
    pos = jnp.arange(max_len, dtype=jnp.float32)[:, None]
    pe = jnp.zeros((max_len, emb_size), jnp.float32)
    pe = pe.at[:, 0::2].set(jnp.sin(pos * den))
    pe = pe.at[:, 1::2].set(jnp.cos(pos * den))
    return pe  # (max_len, E)


def _attn_mask_to_additive(m):
    # TODO(synk): -inf is clamped to a finite NEG_INF, so fully-masked query
    # rows yield a uniform distribution instead of PyTorch's NaN.
    if m.dtype == jnp.bool_:
        return jnp.where(m, jnp.float32(NEG_INF), jnp.float32(0.0))
    return jnp.maximum(m.astype(jnp.float32), jnp.float32(NEG_INF))


def seq2seq_transformer_forward(params, cfg, src, trg, src_mask, tgt_mask,
                                src_padding_mask, tgt_padding_mask,
                                memory_key_padding_mask):
    E, H = cfg['emb_size'], cfg['nhead']
    S, B = src.shape
    T, _ = trg.shape
    V = cfg['tgt_vocab_size']

    # TokenEmbedding (* sqrt(E)) + PositionalEncoding (gather/add stay in JAX)
    src_emb = jnp.take(params['src_emb'], src, axis=0) * math.sqrt(E) \
        + params['pe'][:S][:, None, :]                          # (S, B, E)
    tgt_emb = jnp.take(params['tgt_emb'], trg, axis=0) * math.sqrt(E) \
        + params['pe'][:T][:, None, :]                          # (T, B, E)

    # batch-major 2D activations (row = b*T + t)
    x = jnp.transpose(src_emb, (1, 0, 2)).reshape(B * S, E)
    y = jnp.transpose(tgt_emb, (1, 0, 2)).reshape(B * T, E)

    # tiny additive masks built once; resident in VMEM across all layers
    src_pad = jnp.where(src_padding_mask, NEG_INF, 0.0).astype(jnp.float32)   # (B,S)
    tgt_pad = jnp.where(tgt_padding_mask, NEG_INF, 0.0).astype(jnp.float32)   # (B,T)
    mem_pad = jnp.where(memory_key_padding_mask, NEG_INF, 0.0).astype(jnp.float32)
    enc_mask = _attn_mask_to_additive(src_mask)[None] + src_pad[:, None, :]   # (B,S,S)
    dec_smask = _attn_mask_to_additive(tgt_mask)[None] + tgt_pad[:, None, :]  # (B,T,T)
    dec_cmask = jnp.broadcast_to(mem_pad[:, None, :], (B, T, S))              # (B,T,S)

    memory = encoder_stack(x, enc_mask, params['enc'],
                           params['enc_norm_g'], params['enc_norm_b'],
                           B=B, S=S, H=H)
    logits_p = decoder_stack(y, memory, dec_smask, dec_cmask, params['dec'],
                             params['dec_norm_g'], params['dec_norm_b'],
                             params['gen_w'], params['gen_b'],
                             B=B, T=T, S=S, H=H)
    # back to PyTorch layout (T, B, V); drop the padded vocab lanes
    return jnp.transpose(logits_p.reshape(B, T, -1), (1, 0, 2))[:, :, :V]


# ---------------------------------------------------------------------------
# deterministic parameter initialization (layer-stacked; matmul weights bf16)
# ---------------------------------------------------------------------------
def init_params(key, cfg):
    E, F, H = cfg['emb_size'], cfg['dim_feedforward'], cfg['nhead']
    Le, Ld = cfg['num_encoder_layers'], cfg['num_decoder_layers']
    V = cfg['tgt_vocab_size']
    Vp = ((V + 255) // 256) * 256          # 256-lane padded vocab (v6e/v7x MXU)
    Dh = E // H
    q_scale = 1.0 / math.sqrt(Dh)
    keys = iter(jax.random.split(key, 64))

    def w(shape, scale=0.02):
        return jax.random.normal(next(keys), shape, jnp.float32) * scale

    def attn_params(L):
        in_w = w((L, E, 3 * E))
        in_w = in_w.at[:, :, :E].multiply(q_scale)   # fold 1/sqrt(Dh) into Q proj
        return dict(in_w=in_w.astype(jnp.bfloat16),
                    in_b=jnp.zeros((L, 1, 3 * E), jnp.float32),
                    out_w=w((L, E, E)).astype(jnp.bfloat16),
                    out_b=jnp.zeros((L, 1, E), jnp.float32))

    def ln_params(L):
        return jnp.ones((L, 1, E), jnp.float32), jnp.zeros((L, 1, E), jnp.float32)

    ea = attn_params(Le)
    enc = dict(in_w=ea['in_w'], in_b=ea['in_b'], out_w=ea['out_w'], out_b=ea['out_b'],
               w1=w((Le, E, F)).astype(jnp.bfloat16),
               b1=jnp.zeros((Le, 1, F), jnp.float32),
               w2=w((Le, F, E)).astype(jnp.bfloat16),
               b2=jnp.zeros((Le, 1, E), jnp.float32))
    enc['ln1_g'], enc['ln1_b'] = ln_params(Le)
    enc['ln2_g'], enc['ln2_b'] = ln_params(Le)

    ds, dc = attn_params(Ld), attn_params(Ld)
    dec = dict(self_in_w=ds['in_w'], self_in_b=ds['in_b'],
               self_out_w=ds['out_w'], self_out_b=ds['out_b'],
               cross_in_w=dc['in_w'], cross_in_b=dc['in_b'],
               cross_out_w=dc['out_w'], cross_out_b=dc['out_b'],
               w1=w((Ld, E, F)).astype(jnp.bfloat16),
               b1=jnp.zeros((Ld, 1, F), jnp.float32),
               w2=w((Ld, F, E)).astype(jnp.bfloat16),
               b2=jnp.zeros((Ld, 1, E), jnp.float32))
    dec['ln1_g'], dec['ln1_b'] = ln_params(Ld)
    dec['ln2_g'], dec['ln2_b'] = ln_params(Ld)
    dec['ln3_g'], dec['ln3_b'] = ln_params(Ld)

    gen_w = jnp.zeros((E, Vp), jnp.float32).at[:, :V].set(w((E, V)))

    return dict(
        src_emb=jax.random.normal(next(keys), (cfg['src_vocab_size'], E), jnp.float32),
        tgt_emb=jax.random.normal(next(keys), (cfg['tgt_vocab_size'], E), jnp.float32),
        pe=positional_encoding_table(MAX_LEN, E),
        enc=enc,
        enc_norm_g=jnp.ones((1, E), jnp.float32),
        enc_norm_b=jnp.zeros((1, E), jnp.float32),
        dec=dec,
        dec_norm_g=jnp.ones((1, E), jnp.float32),
        dec_norm_b=jnp.zeros((1, E), jnp.float32),
        gen_w=gen_w.astype(jnp.bfloat16),              # padded, lane-dense
        gen_b=jnp.zeros((1, Vp), jnp.float32),
    )


# ---------------------------------------------------------------------------
if __name__ == "__main__":
    cfg = dict(num_encoder_layers=2, num_decoder_layers=2, emb_size=32, nhead=4,
               src_vocab_size=48, tgt_vocab_size=40, dim_feedforward=64, dropout=0.1)

    key = jax.random.PRNGKey(0)
    kp, ks, kt = jax.random.split(key, 3)
    params = init_params(kp, cfg)

    S, T, B = 8, 8, 2
    src = jax.random.randint(ks, (S, B), 0, cfg['src_vocab_size'], jnp.int32)
    trg = jax.random.randint(kt, (T, B), 0, cfg['tgt_vocab_size'], jnp.int32)

    src_mask = jnp.zeros((S, S), jnp.float32)
    tgt_mask = jnp.where(jnp.triu(jnp.ones((T, T), bool), k=1),
                         -jnp.inf, 0.0).astype(jnp.float32)          # causal
    src_padding_mask = jnp.zeros((B, S), bool).at[1, S - 1].set(True)
    tgt_padding_mask = jnp.zeros((B, T), bool).at[1, T - 1].set(True)
    memory_key_padding_mask = src_padding_mask

    fwd = jax.jit(lambda p, *args: seq2seq_transformer_forward(p, cfg, *args))
    out = fwd(params, src, trg, src_mask, tgt_mask,
              src_padding_mask, tgt_padding_mask, memory_key_padding_mask)
    jax.block_until_ready(out)

    assert out.shape == (T, B, cfg['tgt_vocab_size'])
    assert bool(jnp.all(jnp.isfinite(out)))
    print("KERNEL_OK")
</pallas_src>

<mosaic_0001>
module attributes {stable_mosaic.version = 11 : i64} {
  func.func @_encoder_stack_kernel(%arg0: i32, %arg1: memref<16x32xf32, #tpu.memory_space<vmem>>, %arg2: memref<2x8x8xf32, #tpu.memory_space<vmem>>, %arg3: memref<1x32x96xbf16, #tpu.memory_space<vmem>>, %arg4: memref<1x1x96xf32, #tpu.memory_space<vmem>>, %arg5: memref<1x32x32xbf16, #tpu.memory_space<vmem>>, %arg6: memref<1x1x32xf32, #tpu.memory_space<vmem>>, %arg7: memref<1x1x32xf32, #tpu.memory_space<vmem>>, %arg8: memref<1x1x32xf32, #tpu.memory_space<vmem>>, %arg9: memref<1x32x64xbf16, #tpu.memory_space<vmem>>, %arg10: memref<1x1x64xf32, #tpu.memory_space<vmem>>, %arg11: memref<1x64x32xbf16, #tpu.memory_space<vmem>>, %arg12: memref<1x1x32xf32, #tpu.memory_space<vmem>>, %arg13: memref<1x1x32xf32, #tpu.memory_space<vmem>>, %arg14: memref<1x1x32xf32, #tpu.memory_space<vmem>>, %arg15: memref<1x32xf32, #tpu.memory_space<vmem>>, %arg16: memref<1x32xf32, #tpu.memory_space<vmem>>, %arg17: memref<16x32xf32, #tpu.memory_space<vmem>>, %arg18: memref<16x32xf32, #tpu.memory_space<vmem>>) attributes {dimension_semantics = [#tpu.dimension_semantics<arbitrary>], iteration_bounds = array<i64: 2>, scalar_prefetch = 0 : i64, scratch_operands = 1 : i64, tpu.core_type = #tpu.core_type<tc>, window_params = [{pipeline_mode = #tpu.pipeline_mode<synchronous>, transform_indices = @transform_0, window_bounds = array<i64: 16, 32>}, {pipeline_mode = #tpu.pipeline_mode<synchronous>, transform_indices = @transform_1, window_bounds = array<i64: 2, 8, 8>}, {transform_indices = @transform_2, window_bounds = array<i64: 1, 32, 96>}, {transform_indices = @transform_3, window_bounds = array<i64: 1, 1, 96>}, {transform_indices = @transform_4, window_bounds = array<i64: 1, 32, 32>}, {transform_indices = @transform_5, window_bounds = array<i64: 1, 1, 32>}, {transform_indices = @transform_6, window_bounds = array<i64: 1, 1, 32>}, {transform_indices = @transform_7, window_bounds = array<i64: 1, 1, 32>}, {transform_indices = @transform_8, window_bounds = array<i64: 1, 32, 64>}, {transform_indices = @transform_9, window_bounds = array<i64: 1, 1, 64>}, {transform_indices = @transform_10, window_bounds = array<i64: 1, 64, 32>}, {transform_indices = @transform_11, window_bounds = array<i64: 1, 1, 32>}, {transform_indices = @transform_12, window_bounds = array<i64: 1, 1, 32>}, {transform_indices = @transform_13, window_bounds = array<i64: 1, 1, 32>}, {pipeline_mode = #tpu.pipeline_mode<synchronous>, transform_indices = @transform_14, window_bounds = array<i64: 1, 32>}, {pipeline_mode = #tpu.pipeline_mode<synchronous>, transform_indices = @transform_15, window_bounds = array<i64: 1, 32>}, {pipeline_mode = #tpu.pipeline_mode<synchronous>, transform_indices = @transform_16, window_bounds = array<i64: 16, 32>}]} {
    %c0_i32 = arith.constant 0 : i32
    %0 = arith.cmpi eq, %arg0, %c0_i32 : i32
    %1 = arith.extui %0 : i1 to i32
    %c0_i32_0 = arith.constant 0 : i32
    %2 = arith.cmpi ne, %1, %c0_i32_0 : i32
    scf.if %2 {
      %c0_74 = arith.constant 0 : index
      %c0_75 = arith.constant 0 : index
      %180 = vector.load %arg1[%c0_74, %c0_75] : memref<16x32xf32, #tpu.memory_space<vmem>>, vector<16x32xf32>
      %c0_76 = arith.constant 0 : index
      %c0_77 = arith.constant 0 : index
      %181 = vector.load %arg18[%c0_76, %c0_77] : memref<16x32xf32, #tpu.memory_space<vmem>>, vector<16x32xf32>
      tpu.vector_store %arg18[%c0_76, %c0_77], %180 {strides = array<i32>} : memref<16x32xf32, #tpu.memory_space<vmem>>, vector<16x32xf32>,
    } else {
    }
    %c0 = arith.constant 0 : index
    %c0_1 = arith.constant 0 : index
    %3 = vector.load %arg18[%c0, %c0_1] : memref<16x32xf32, #tpu.memory_space<vmem>>, vector<16x32xf32>
    %c0_2 = arith.constant 0 : index
    %c0_3 = arith.constant 0 : index
    %c0_4 = arith.constant 0 : index
    %4 = vector.load %arg3[%c0_2, %c0_3, %c0_4] : memref<1x32x96xbf16, #tpu.memory_space<vmem>>, vector<1x32x96xbf16>
    %5 = vector.shape_cast %4 : vector<1x32x96xbf16> to vector<32x96xbf16>
    %c0_5 = arith.constant 0 : index
    %c0_6 = arith.constant 0 : index
    %c0_7 = arith.constant 0 : index
    %6 = vector.load %arg4[%c0_5, %c0_6, %c0_7] : memref<1x1x96xf32, #tpu.memory_space<vmem>>, vector<1x1x96xf32>
    %7 = vector.shape_cast %6 : vector<1x1x96xf32> to vector<1x96xf32>
    %c0_8 = arith.constant 0 : index
    %c0_9 = arith.constant 0 : index
    %c0_10 = arith.constant 0 : index
    %8 = vector.load %arg5[%c0_8, %c0_9, %c0_10] : memref<1x32x32xbf16, #tpu.memory_space<vmem>>, vector<1x32x32xbf16>
    %9 = vector.shape_cast %8 : vector<1x32x32xbf16> to vector<32x32xbf16>
    %c0_11 = arith.constant 0 : index
    %c0_12 = arith.constant 0 : index
    %c0_13 = arith.constant 0 : index
    %10 = vector.load %arg6[%c0_11, %c0_12, %c0_13] : memref<1x1x32xf32, #tpu.memory_space<vmem>>, vector<1x1x32xf32>
    %11 = vector.shape_cast %10 : vector<1x1x32xf32> to vector<1x32xf32>
    %c0_14 = arith.constant 0 : index
    %c0_15 = arith.constant 0 : index
    %c0_16 = arith.constant 0 : index
    %12 = vector.load %arg2[%c0_14, %c0_15, %c0_16] : memref<2x8x8xf32, #tpu.memory_space<vmem>>, vector<2x8x8xf32>
    %13 = arith.truncf %3 : vector<16x32xf32> to vector<16x32xbf16>
    %cst = arith.constant dense<0.000000e+00> : vector<16x96xf32>
    %14 = tpu.matmul %13, %5, %cst {dimension_numbers = #tpu.dot_dimension_numbers<[1], [0], [0], [1], [0, 0, 1, 1], [], []>} : vector<16x32xbf16>, vector<32x96xbf16>, vector<16x96xf32> -> vector<16x96xf32>
    %15 = vector.broadcast %7 : vector<1x96xf32> to vector<16x96xf32>
    %16 = arith.addf %14, %15 : vector<16x96xf32>
    %17 = vector.extract_strided_slice %16 {offsets = [0, 0], sizes = [16, 32], strides = [1, 1]} : vector<16x96xf32> to vector<16x32xf32>
    %18 = vector.extract_strided_slice %16 {offsets = [0, 32], sizes = [16, 32], strides = [1, 1]} : vector<16x96xf32> to vector<16x32xf32>
    %19 = vector.extract_strided_slice %16 {offsets = [0, 64], sizes = [16, 32], strides = [1, 1]} : vector<16x96xf32> to vector<16x32xf32>
    %20 = arith.truncf %17 : vector<16x32xf32> to vector<16x32xbf16>
    %21 = vector.shape_cast %20 : vector<16x32xbf16> to vector<2x8x32xbf16>
    %22 = arith.truncf %18 : vector<16x32xf32> to vector<16x32xbf16>
    %23 = vector.shape_cast %22 : vector<16x32xbf16> to vector<2x8x32xbf16>
    %24 = arith.truncf %19 : vector<16x32xf32> to vector<16x32xbf16>
    %25 = vector.shape_cast %24 : vector<16x32xbf16> to vector<2x8x32xbf16>
    %26 = vector.extract_strided_slice %21 {offsets = [0, 0, 0], sizes = [2, 8, 8], strides = [1, 1, 1]} : vector<2x8x32xbf16> to vector<2x8x8xbf16>
    %27 = vector.extract_strided_slice %23 {offsets = [0, 0, 0], sizes = [2, 8, 8], strides = [1, 1, 1]} : vector<2x8x32xbf16> to vector<2x8x8xbf16>
    "tpu.trace_start"() <{level = 10 : i32, message = "btd,bsd->bts"}> : () -> ()
    %cst_17 = arith.constant dense<0.000000e+00> : vector<2x8x8xf32>
    %28 = tpu.matmul %26, %27, %cst_17 {dimension_numbers = #tpu.dot_dimension_numbers<[2], [2], [1], [1], [0, 0, 0, 1, 1, 1], [0], [0]>} : vector<2x8x8xbf16>, vector<2x8x8xbf16>, vector<2x8x8xf32> -> vector<2x8x8xf32>
    "tpu.trace_stop"() : () -> ()
    %29 = arith.addf %28, %12 : vector<2x8x8xf32>
    %cst_18 = arith.constant dense<0xFF800000> : vector<2x8xf32>
    %30 = vector.multi_reduction <maximumf>, %29, %cst_18 [2] : vector<2x8x8xf32> to vector<2x8xf32>
    %31 = vector.shape_cast %30 : vector<2x8xf32> to vector<2x8x1xf32>
    %32 = vector.broadcast %31 : vector<2x8x1xf32> to vector<2x8x8xf32>
    %33 = arith.subf %29, %32 : vector<2x8x8xf32>
    %34 = math.exp %33 : vector<2x8x8xf32>
    %cst_19 = arith.constant dense<0.000000e+00> : vector<2x8xf32>
    %35 = vector.multi_reduction <add>, %34, %cst_19 [2] : vector<2x8x8xf32> to vector<2x8xf32>
    %36 = vector.shape_cast %35 : vector<2x8xf32> to vector<2x8x1xf32>
    %37 = tpu.reciprocal %36 {approx = true} : vector<2x8x1xf32> -> vector<2x8x1xf32>
    %38 = vector.broadcast %37 : vector<2x8x1xf32> to vector<2x8x8xf32>
    %39 = arith.mulf %34, %38 : vector<2x8x8xf32>
    %40 = arith.truncf %39 : vector<2x8x8xf32> to vector<2x8x8xbf16>
    %41 = vector.extract_strided_slice %25 {offsets = [0, 0, 0], sizes = [2, 8, 8], strides = [1, 1, 1]} : vector<2x8x32xbf16> to vector<2x8x8xbf16>
    "tpu.trace_start"() <{level = 10 : i32, message = "bts,bsd->btd"}> : () -> ()
    %cst_20 = arith.constant dense<0.000000e+00> : vector<2x8x8xf32>
    %42 = tpu.matmul %40, %41, %cst_20 {dimension_numbers = #tpu.dot_dimension_numbers<[2], [1], [1], [2], [0, 0, 0, 1, 1, 2], [0], [0]>} : vector<2x8x8xbf16>, vector<2x8x8xbf16>, vector<2x8x8xf32> -> vector<2x8x8xf32>
    "tpu.trace_stop"() : () -> ()
    %43 = vector.extract_strided_slice %21 {offsets = [0, 0, 8], sizes = [2, 8, 8], strides = [1, 1, 1]} : vector<2x8x32xbf16> to vector<2x8x8xbf16>
    %44 = vector.extract_strided_slice %23 {offsets = [0, 0, 8], sizes = [2, 8, 8], strides = [1, 1, 1]} : vector<2x8x32xbf16> to vector<2x8x8xbf16>
    "tpu.trace_start"() <{level = 10 : i32, message = "btd,bsd->bts"}> : () -> ()
    %cst_21 = arith.constant dense<0.000000e+00> : vector<2x8x8xf32>
    %45 = tpu.matmul %43, %44, %cst_21 {dimension_numbers = #tpu.dot_dimension_numbers<[2], [2], [1], [1], [0, 0, 0, 1, 1, 1], [0], [0]>} : vector<2x8x8xbf16>, vector<2x8x8xbf16>, vector<2x8x8xf32> -> vector<2x8x8xf32>
    "tpu.trace_stop"() : () -> ()
    %46 = arith.addf %45, %12 : vector<2x8x8xf32>
    %cst_22 = arith.constant dense<0xFF800000> : vector<2x8xf32>
    %47 = vector.multi_reduction <maximumf>, %46, %cst_22 [2] : vector<2x8x8xf32> to vector<2x8xf32>
    %48 = vector.shape_cast %47 : vector<2x8xf32> to vector<2x8x1xf32>
    %49 = vector.broadcast %48 : vector<2x8x1xf32> to vector<2x8x8xf32>
    %50 = arith.subf %46, %49 : vector<2x8x8xf32>
    %51 = math.exp %50 : vector<2x8x8xf32>
    %cst_23 = arith.constant dense<0.000000e+00> : vector<2x8xf32>
    %52 = vector.multi_reduction <add>, %51, %cst_23 [2] : vector<2x8x8xf32> to vector<2x8xf32>
    %53 = vector.shape_cast %52 : vector<2x8xf32> to vector<2x8x1xf32>
    %54 = tpu.reciprocal %53 {approx = true} : vector<2x8x1xf32> -> vector<2x8x1xf32>
    %55 = vector.broadcast %54 : vector<2x8x1xf32> to vector<2x8x8xf32>
    %56 = arith.mulf %51, %55 : vector<2x8x8xf32>
    %57 = arith.truncf %56 : vector<2x8x8xf32> to vector<2x8x8xbf16>
    %58 = vector.extract_strided_slice %25 {offsets = [0, 0, 8], sizes = [2, 8, 8], strides = [1, 1, 1]} : vector<2x8x32xbf16> to vector<2x8x8xbf16>
    "tpu.trace_start"() <{level = 10 : i32, message = "bts,bsd->btd"}> : () -> ()
    %cst_24 = arith.constant dense<0.000000e+00> : vector<2x8x8xf32>
    %59 = tpu.matmul %57, %58, %cst_24 {dimension_numbers = #tpu.dot_dimension_numbers<[2], [1], [1], [2], [0, 0, 0, 1, 1, 2], [0], [0]>} : vector<2x8x8xbf16>, vector<2x8x8xbf16>, vector<2x8x8xf32> -> vector<2x8x8xf32>
    "tpu.trace_stop"() : () -> ()
    %60 = vector.extract_strided_slice %21 {offsets = [0, 0, 16], sizes = [2, 8, 8], strides = [1, 1, 1]} : vector<2x8x32xbf16> to vector<2x8x8xbf16>
    %61 = vector.extract_strided_slice %23 {offsets = [0, 0, 16], sizes = [2, 8, 8], strides = [1, 1, 1]} : vector<2x8x32xbf16> to vector<2x8x8xbf16>
    "tpu.trace_start"() <{level = 10 : i32, message = "btd,bsd->bts"}> : () -> ()
    %cst_25 = arith.constant dense<0.000000e+00> : vector<2x8x8xf32>
    %62 = tpu.matmul %60, %61, %cst_25 {dimension_numbers = #tpu.dot_dimension_numbers<[2], [2], [1], [1], [0, 0, 0, 1, 1, 1], [0], [0]>} : vector<2x8x8xbf16>, vector<2x8x8xbf16>, vector<2x8x8xf32> -> vector<2x8x8xf32>
    "tpu.trace_stop"() : () -> ()
    %63 = arith.addf %62, %12 : vector<2x8x8xf32>
    %cst_26 = arith.constant dense<0xFF800000> : vector<2x8xf32>
    %64 = vector.multi_reduction <maximumf>, %63, %cst_26 [2] : vector<2x8x8xf32> to vector<2x8xf32>
    %65 = vector.shape_cast %64 : vector<2x8xf32> to vector<2x8x1xf32>
    %66 = vector.broadcast %65 : vector<2x8x1xf32> to vector<2x8x8xf32>
    %67 = arith.subf %63, %66 : vector<2x8x8xf32>
    %68 = math.exp %67 : vector<2x8x8xf32>
    %cst_27 = arith.constant dense<0.000000e+00> : vector<2x8xf32>
    %69 = vector.multi_reduction <add>, %68, %cst_27 [2] : vector<2x8x8xf32> to vector<2x8xf32>
    %70 = vector.shape_cast %69 : vector<2x8xf32> to vector<2x8x1xf32>
    %71 = tpu.reciprocal %70 {approx = true} : vector<2x8x1xf32> -> vector<2x8x1xf32>
    %72 = vector.broadcast %71 : vector<2x8x1xf32> to vector<2x8x8xf32>
    %73 = arith.mulf %68, %72 : vector<2x8x8xf32>
    %74 = arith.truncf %73 : vector<2x8x8xf32> to vector<2x8x8xbf16>
    %75 = vector.extract_strided_slice %25 {offsets = [0, 0, 16], sizes = [2, 8, 8], strides = [1, 1, 1]} : vector<2x8x32xbf16> to vector<2x8x8xbf16>
    "tpu.trace_start"() <{level = 10 : i32, message = "bts,bsd->btd"}> : () -> ()
    %cst_28 = arith.constant dense<0.000000e+00> : vector<2x8x8xf32>
    %76 = tpu.matmul %74, %75, %cst_28 {dimension_numbers = #tpu.dot_dimension_numbers<[2], [1], [1], [2], [0, 0, 0, 1, 1, 2], [0], [0]>} : vector<2x8x8xbf16>, vector<2x8x8xbf16>, vector<2x8x8xf32> -> vector<2x8x8xf32>
    "tpu.trace_stop"() : () -> ()
    %77 = vector.extract_strided_slice %21 {offsets = [0, 0, 24], sizes = [2, 8, 8], strides = [1, 1, 1]} : vector<2x8x32xbf16> to vector<2x8x8xbf16>
    %78 = vector.extract_strided_slice %23 {offsets = [0, 0, 24], sizes = [2, 8, 8], strides = [1, 1, 1]} : vector<2x8x32xbf16> to vector<2x8x8xbf16>
    "tpu.trace_start"() <{level = 10 : i32, message = "btd,bsd->bts"}> : () -> ()
    %cst_29 = arith.constant dense<0.000000e+00> : vector<2x8x8xf32>
    %79 = tpu.matmul %77, %78, %cst_29 {dimension_numbers = #tpu.dot_dimension_numbers<[2], [2], [1], [1], [0, 0, 0, 1, 1, 1], [0], [0]>} : vector<2x8x8xbf16>, vector<2x8x8xbf16>, vector<2x8x8xf32> -> vector<2x8x8xf32>
    "tpu.trace_stop"() : () -> ()
    %80 = arith.addf %79, %12 : vector<2x8x8xf32>
    %cst_30 = arith.constant dense<0xFF800000> : vector<2x8xf32>
    %81 = vector.multi_reduction <maximumf>, %80, %cst_30 [2] : vector<2x8x8xf32> to vector<2x8xf32>
    %82 = vector.shape_cast %81 : vector<2x8xf32> to vector<2x8x1xf32>
    %83 = vector.broadcast %82 : vector<2x8x1xf32> to vector<2x8x8xf32>
    %84 = arith.subf %80, %83 : vector<2x8x8xf32>
    %85 = math.exp %84 : vector<2x8x8xf32>
    %cst_31 = arith.constant dense<0.000000e+00> : vector<2x8xf32>
    %86 = vector.multi_reduction <add>, %85, %cst_31 [2] : vector<2x8x8xf32> to vector<2x8xf32>
    %87 = vector.shape_cast %86 : vector<2x8xf32> to vector<2x8x1xf32>
    %88 = tpu.reciprocal %87 {approx = true} : vector<2x8x1xf32> -> vector<2x8x1xf32>
    %89 = vector.broadcast %88 : vector<2x8x1xf32> to vector<2x8x8xf32>
    %90 = arith.mulf %85, %89 : vector<2x8x8xf32>
    %91 = arith.truncf %90 : vector<2x8x8xf32> to vector<2x8x8xbf16>
    %92 = vector.extract_strided_slice %25 {offsets = [0, 0, 24], sizes = [2, 8, 8], strides = [1, 1, 1]} : vector<2x8x32xbf16> to vector<2x8x8xbf16>
    "tpu.trace_start"() <{level = 10 : i32, message = "bts,bsd->btd"}> : () -> ()
    %cst_32 = arith.constant dense<0.000000e+00> : vector<2x8x8xf32>
    %93 = tpu.matmul %91, %92, %cst_32 {dimension_numbers = #tpu.dot_dimension_numbers<[2], [1], [1], [2], [0, 0, 0, 1, 1, 2], [0], [0]>} : vector<2x8x8xbf16>, vector<2x8x8xbf16>, vector<2x8x8xf32> -> vector<2x8x8xf32>
    "tpu.trace_stop"() : () -> ()
    %94 = tpu.concatenate %42, %59, %76, %93 in 2 : vector<2x8x8xf32>, vector<2x8x8xf32>, vector<2x8x8xf32>, vector<2x8x8xf32> -> vector<2x8x32xf32>
    %95 = vector.shape_cast %94 : vector<2x8x32xf32> to vector<16x32xf32>
    %96 = arith.truncf %95 : vector<16x32xf32> to vector<16x32xbf16>
    %cst_33 = arith.constant dense<0.000000e+00> : vector<16x32xf32>
    %97 = tpu.matmul %96, %9, %cst_33 {dimension_numbers = #tpu.dot_dimension_numbers<[1], [0], [0], [1], [0, 0, 1, 1], [], []>} : vector<16x32xbf16>, vector<32x32xbf16>, vector<16x32xf32> -> vector<16x32xf32>
    %98 = vector.broadcast %11 : vector<1x32xf32> to vector<16x32xf32>
    %99 = arith.addf %97, %98 : vector<16x32xf32>
    %100 = arith.addf %3, %99 : vector<16x32xf32>
    %c0_34 = arith.constant 0 : index
    %c0_35 = arith.constant 0 : index
    %c0_36 = arith.constant 0 : index
    %101 = vector.load %arg7[%c0_34, %c0_35, %c0_36] : memref<1x1x32xf32, #tpu.memory_space<vmem>>, vector<1x1x32xf32>
    %102 = vector.shape_cast %101 : vector<1x1x32xf32> to vector<1x32xf32>
    %c0_37 = arith.constant 0 : index
    %c0_38 = arith.constant 0 : index
    %c0_39 = arith.constant 0 : index
    %103 = vector.load %arg8[%c0_37, %c0_38, %c0_39] : memref<1x1x32xf32, #tpu.memory_space<vmem>>, vector<1x1x32xf32>
    %104 = vector.shape_cast %103 : vector<1x1x32xf32> to vector<1x32xf32>
    %cst_40 = arith.constant dense<0.000000e+00> : vector<16xf32>
    %105 = vector.multi_reduction <add>, %100, %cst_40 [1] : vector<16x32xf32> to vector<16xf32>
    %106 = vector.shape_cast %105 : vector<16xf32> to vector<16x1xf32>
    %cst_41 = arith.constant 3.200000e+01 : f32
    %107 = vector.broadcast %cst_41 : f32 to vector<16x1xf32>
    %108 = arith.divf %106, %107 : vector<16x1xf32>
    %109 = vector.broadcast %108 : vector<16x1xf32> to vector<16x32xf32>
    %110 = arith.subf %100, %109 : vector<16x32xf32>
    %111 = vector.broadcast %108 : vector<16x1xf32> to vector<16x32xf32>
    %112 = arith.subf %100, %111 : vector<16x32xf32>
    %113 = arith.mulf %110, %112 : vector<16x32xf32>
    %cst_42 = arith.constant dense<0.000000e+00> : vector<16xf32>
    %114 = vector.multi_reduction <add>, %113, %cst_42 [1] : vector<16x32xf32> to vector<16xf32>
    %115 = vector.shape_cast %114 : vector<16xf32> to vector<16x1xf32>
    %cst_43 = arith.constant 3.200000e+01 : f32
    %116 = vector.broadcast %cst_43 : f32 to vector<16x1xf32>
    %117 = arith.divf %115, %116 : vector<16x1xf32>
    %118 = vector.broadcast %108 : vector<16x1xf32> to vector<16x32xf32>
    %119 = arith.subf %100, %118 : vector<16x32xf32>
    %cst_44 = arith.constant 9.99999974E-6 : f32
    %120 = vector.broadcast %cst_44 : f32 to vector<16x1xf32>
    %121 = arith.addf %117, %120 : vector<16x1xf32>
    %122 = math.rsqrt %121 : vector<16x1xf32>
    %123 = vector.broadcast %122 : vector<16x1xf32> to vector<16x32xf32>
    %124 = arith.mulf %119, %123 : vector<16x32xf32>
    %125 = vector.broadcast %102 : vector<1x32xf32> to vector<16x32xf32>
    %126 = arith.mulf %124, %125 : vector<16x32xf32>
    %127 = vector.broadcast %104 : vector<1x32xf32> to vector<16x32xf32>
    %128 = arith.addf %126, %127 : vector<16x32xf32>
    %c0_45 = arith.constant 0 : index
    %c0_46 = arith.constant 0 : index
    %c0_47 = arith.constant 0 : index
    %129 = vector.load %arg9[%c0_45, %c0_46, %c0_47] : memref<1x32x64xbf16, #tpu.memory_space<vmem>>, vector<1x32x64xbf16>
    %130 = vector.shape_cast %129 : vector<1x32x64xbf16> to vector<32x64xbf16>
    %c0_48 = arith.constant 0 : index
    %c0_49 = arith.constant 0 : index
    %c0_50 = arith.constant 0 : index
    %131 = vector.load %arg10[%c0_48, %c0_49, %c0_50] : memref<1x1x64xf32, #tpu.memory_space<vmem>>, vector<1x1x64xf32>
    %132 = vector.shape_cast %131 : vector<1x1x64xf32> to vector<1x64xf32>
    %c0_51 = arith.constant 0 : index
    %c0_52 = arith.constant 0 : index
    %c0_53 = arith.constant 0 : index
    %133 = vector.load %arg11[%c0_51, %c0_52, %c0_53] : memref<1x64x32xbf16, #tpu.memory_space<vmem>>, vector<1x64x32xbf16>
    %134 = vector.shape_cast %133 : vector<1x64x32xbf16> to vector<64x32xbf16>
    %c0_54 = arith.constant 0 : index
    %c0_55 = arith.constant 0 : index
    %c0_56 = arith.constant 0 : index
    %135 = vector.load %arg12[%c0_54, %c0_55, %c0_56] : memref<1x1x32xf32, #tpu.memory_space<vmem>>, vector<1x1x32xf32>
    %136 = vector.shape_cast %135 : vector<1x1x32xf32> to vector<1x32xf32>
    %137 = arith.truncf %128 : vector<16x32xf32> to vector<16x32xbf16>
    %cst_57 = arith.constant dense<0.000000e+00> : vector<16x64xf32>
    %138 = tpu.matmul %137, %130, %cst_57 {dimension_numbers = #tpu.dot_dimension_numbers<[1], [0], [0], [1], [0, 0, 1, 1], [], []>} : vector<16x32xbf16>, vector<32x64xbf16>, vector<16x64xf32> -> vector<16x64xf32>
    %139 = vector.broadcast %132 : vector<1x64xf32> to vector<16x64xf32>
    %140 = arith.addf %138, %139 : vector<16x64xf32>
    %cst_58 = arith.constant 0.000000e+00 : f32
    %141 = vector.broadcast %cst_58 : f32 to vector<16x64xf32>
    %142 = arith.maximumf %140, %141 : vector<16x64xf32>
    %143 = arith.truncf %142 : vector<16x64xf32> to vector<16x64xbf16>
    %cst_59 = arith.constant dense<0.000000e+00> : vector<16x32xf32>
    %144 = tpu.matmul %143, %134, %cst_59 {dimension_numbers = #tpu.dot_dimension_numbers<[1], [0], [0], [1], [0, 0, 1, 1], [], []>} : vector<16x64xbf16>, vector<64x32xbf16>, vector<16x32xf32> -> vector<16x32xf32>
    %145 = arith.addf %128, %144 : vector<16x32xf32>
    %146 = vector.broadcast %136 : vector<1x32xf32> to vector<16x32xf32>
    %147 = arith.addf %145, %146 : vector<16x32xf32>
    %c0_60 = arith.constant 0 : index
    %c0_61 = arith.constant 0 : index
    %c0_62 = arith.constant 0 : index
    %148 = vector.load %arg13[%c0_60, %c0_61, %c0_62] : memref<1x1x32xf32, #tpu.memory_space<vmem>>, vector<1x1x32xf32>
    %149 = vector.shape_cast %148 : vector<1x1x32xf32> to vector<1x32xf32>
    %c0_63 = arith.constant 0 : index
    %c0_64 = arith.constant 0 : index
    %c0_65 = arith.constant 0 : index
    %150 = vector.load %arg14[%c0_63, %c0_64, %c0_65] : memref<1x1x32xf32, #tpu.memory_space<vmem>>, vector<1x1x32xf32>
    %151 = vector.shape_cast %150 : vector<1x1x32xf32> to vector<1x32xf32>
    %cst_66 = arith.constant dense<0.000000e+00> : vector<16xf32>
    %152 = vector.multi_reduction <add>, %147, %cst_66 [1] : vector<16x32xf32> to vector<16xf32>
    %153 = vector.shape_cast %152 : vector<16xf32> to vector<16x1xf32>
    %cst_67 = arith.constant 3.200000e+01 : f32
    %154 = vector.broadcast %cst_67 : f32 to vector<16x1xf32>
    %155 = arith.divf %153, %154 : vector<16x1xf32>
    %156 = vector.broadcast %155 : vector<16x1xf32> to vector<16x32xf32>
    %157 = arith.subf %147, %156 : vector<16x32xf32>
    %158 = vector.broadcast %155 : vector<16x1xf32> to vector<16x32xf32>
    %159 = arith.subf %147, %158 : vector<16x32xf32>
    %160 = arith.mulf %157, %159 : vector<16x32xf32>
    %cst_68 = arith.constant dense<0.000000e+00> : vector<16xf32>
    %161 = vector.multi_reduction <add>, %160, %cst_68 [1] : vector<16x32xf32> to vector<16xf32>
    %162 = vector.shape_cast %161 : vector<16xf32> to vector<16x1xf32>
    %cst_69 = arith.constant 3.200000e+01 : f32
    %163 = vector.broadcast %cst_69 : f32 to vector<16x1xf32>
    %164 = arith.divf %162, %163 : vector<16x1xf32>
    %165 = vector.broadcast %155 : vector<16x1xf32> to vector<16x32xf32>
    %166 = arith.subf %147, %165 : vector<16x32xf32>
    %cst_70 = arith.constant 9.99999974E-6 : f32
    %167 = vector.broadcast %cst_70 : f32 to vector<16x1xf32>
    %168 = arith.addf %164, %167 : vector<16x1xf32>
    %169 = math.rsqrt %168 : vector<16x1xf32>
    %170 = vector.broadcast %169 : vector<16x1xf32> to vector<16x32xf32>
    %171 = arith.mulf %166, %170 : vector<16x32xf32>
    %172 = vector.broadcast %149 : vector<1x32xf32> to vector<16x32xf32>
    %173 = arith.mulf %171, %172 : vector<16x32xf32>
    %174 = vector.broadcast %151 : vector<1x32xf32> to vector<16x32xf32>
    %175 = arith.addf %173, %174 : vector<16x32xf32>
    %c0_71 = arith.constant 0 : index
    %c0_72 = arith.constant 0 : index
    %176 = vector.load %arg18[%c0_71, %c0_72] : memref<16x32xf32, #tpu.memory_space<vmem>>, vector<16x32xf32>
    tpu.vector_store %arg18[%c0_71, %c0_72], %175 {strides = array<i32>} : memref<16x32xf32, #tpu.memory_space<vmem>>, vector<16x32xf32>,
    %c1_i32 = arith.constant 1 : i32
    %177 = arith.cmpi eq, %arg0, %c1_i32 : i32
    %178 = arith.extui %177 : i1 to i32
    %c0_i32_73 = arith.constant 0 : i32
    %179 = arith.cmpi ne, %178, %c0_i32_73 : i32
    scf.if %179 {
      %c0_74 = arith.constant 0 : index
      %c0_75 = arith.constant 0 : index
      %180 = vector.load %arg15[%c0_74, %c0_75] : memref<1x32xf32, #tpu.memory_space<vmem>>, vector<1x32xf32>
      %c0_76 = arith.constant 0 : index
      %c0_77 = arith.constant 0 : index
      %181 = vector.load %arg16[%c0_76, %c0_77] : memref<1x32xf32, #tpu.memory_space<vmem>>, vector<1x32xf32>
      %cst_78 = arith.constant dense<0.000000e+00> : vector<16xf32>
      %182 = vector.multi_reduction <add>, %175, %cst_78 [1] : vector<16x32xf32> to vector<16xf32>
      %183 = vector.shape_cast %182 : vector<16xf32> to vector<16x1xf32>
      %cst_79 = arith.constant 3.200000e+01 : f32
      %184 = vector.broadcast %cst_79 : f32 to vector<16x1xf32>
      %185 = arith.divf %183, %184 : vector<16x1xf32>
      %186 = vector.broadcast %185 : vector<16x1xf32> to vector<16x32xf32>
      %187 = arith.subf %175, %186 : vector<16x32xf32>
      %188 = vector.broadcast %185 : vector<16x1xf32> to vector<16x32xf32>
      %189 = arith.subf %175, %188 : vector<16x32xf32>
      %190 = arith.mulf %187, %189 : vector<16x32xf32>
      %cst_80 = arith.constant dense<0.000000e+00> : vector<16xf32>
      %191 = vector.multi_reduction <add>, %190, %cst_80 [1] : vector<16x32xf32> to vector<16xf32>
      %192 = vector.shape_cast %191 : vector<16xf32> to vector<16x1xf32>
      %cst_81 = arith.constant 3.200000e+01 : f32
      %193 = vector.broadcast %cst_81 : f32 to vector<16x1xf32>
      %194 = arith.divf %192, %193 : vector<16x1xf32>
      %195 = vector.broadcast %185 : vector<16x1xf32> to vector<16x32xf32>
      %196 = arith.subf %175, %195 : vector<16x32xf32>
      %cst_82 = arith.constant 9.99999974E-6 : f32
      %197 = vector.broadcast %cst_82 : f32 to vector<16x1xf32>
      %198 = arith.addf %194, %197 : vector<16x1xf32>
      %199 = math.rsqrt %198 : vector<16x1xf32>
      %200 = vector.broadcast %199 : vector<16x1xf32> to vector<16x32xf32>
      %201 = arith.mulf %196, %200 : vector<16x32xf32>
      %202 = vector.broadcast %180 : vector<1x32xf32> to vector<16x32xf32>
      %203 = arith.mulf %201, %202 : vector<16x32xf32>
      %204 = vector.broadcast %181 : vector<1x32xf32> to vector<16x32xf32>
      %205 = arith.addf %203, %204 : vector<16x32xf32>
      %c0_83 = arith.constant 0 : index
      %c0_84 = arith.constant 0 : index
      %206 = vector.load %arg17[%c0_83, %c0_84] : memref<16x32xf32, #tpu.memory_space<vmem>>, vector<16x32xf32>
      tpu.vector_store %arg17[%c0_83, %c0_84], %205 {strides = array<i32>} : memref<16x32xf32, #tpu.memory_space<vmem>>, vector<16x32xf32>,
    } else {
    }
    return
  }
  func.func @transform_0(%arg0: i32) -> (i32, i32) {
    %c0_i32 = arith.constant 0 : i32
    %c0_i32_0 = arith.constant 0 : i32
    %c0_i32_1 = arith.constant 0 : i32
    return %c0_i32, %c0_i32_0 : i32, i32
  }
  func.func @transform_1(%arg0: i32) -> (i32, i32, i32) {
    %c0_i32 = arith.constant 0 : i32
    %c0_i32_0 = arith.constant 0 : i32
    %c0_i32_1 = arith.constant 0 : i32
    %c0_i32_2 = arith.constant 0 : i32
    return %c0_i32, %c0_i32_0, %c0_i32_1 : i32, i32, i32
  }
  func.func @transform_2(%arg0: i32) -> (i32, i32, i32) {
    %c0_i32 = arith.constant 0 : i32
    %c0_i32_0 = arith.constant 0 : i32
    %c0_i32_1 = arith.constant 0 : i32
    return %arg0, %c0_i32, %c0_i32_0 : i32, i32, i32
  }
  func.func @transform_3(%arg0: i32) -> (i32, i32, i32) {
    %c0_i32 = arith.constant 0 : i32
    %c0_i32_0 = arith.constant 0 : i32
    %c0_i32_1 = arith.constant 0 : i32
    return %arg0, %c0_i32, %c0_i32_0 : i32, i32, i32
  }
  func.func @transform_4(%arg0: i32) -> (i32, i32, i32) {
    %c0_i32 = arith.constant 0 : i32
    %c0_i32_0 = arith.constant 0 : i32
    %c0_i32_1 = arith.constant 0 : i32
    return %arg0, %c0_i32, %c0_i32_0 : i32, i32, i32
  }
  func.func @transform_5(%arg0: i32) -> (i32, i32, i32) {
    %c0_i32 = arith.constant 0 : i32
    %c0_i32_0 = arith.constant 0 : i32
    %c0_i32_1 = arith.constant 0 : i32
    return %arg0, %c0_i32, %c0_i32_0 : i32, i32, i32
  }
  func.func @transform_6(%arg0: i32) -> (i32, i32, i32) {
    %c0_i32 = arith.constant 0 : i32
    %c0_i32_0 = arith.constant 0 : i32
    %c0_i32_1 = arith.constant 0 : i32
    return %arg0, %c0_i32, %c0_i32_0 : i32, i32, i32
  }
  func.func @transform_7(%arg0: i32) -> (i32, i32, i32) {
    %c0_i32 = arith.constant 0 : i32
    %c0_i32_0 = arith.constant 0 : i32
    %c0_i32_1 = arith.constant 0 : i32
    return %arg0, %c0_i32, %c0_i32_0 : i32, i32, i32
  }
  func.func @transform_8(%arg0: i32) -> (i32, i32, i32) {
    %c0_i32 = arith.constant 0 : i32
    %c0_i32_0 = arith.constant 0 : i32
    %c0_i32_1 = arith.constant 0 : i32
    return %arg0, %c0_i32, %c0_i32_0 : i32, i32, i32
  }
  func.func @transform_9(%arg0: i32) -> (i32, i32, i32) {
    %c0_i32 = arith.constant 0 : i32
    %c0_i32_0 = arith.constant 0 : i32
    %c0_i32_1 = arith.constant 0 : i32
    return %arg0, %c0_i32, %c0_i32_0 : i32, i32, i32
  }
  func.func @transform_10(%arg0: i32) -> (i32, i32, i32) {
    %c0_i32 = arith.constant 0 : i32
    %c0_i32_0 = arith.constant 0 : i32
    %c0_i32_1 = arith.constant 0 : i32
    return %arg0, %c0_i32, %c0_i32_0 : i32, i32, i32
  }
  func.func @transform_11(%arg0: i32) -> (i32, i32, i32) {
    %c0_i32 = arith.constant 0 : i32
    %c0_i32_0 = arith.constant 0 : i32
    %c0_i32_1 = arith.constant 0 : i32
    return %arg0, %c0_i32, %c0_i32_0 : i32, i32, i32
  }
  func.func @transform_12(%arg0: i32) -> (i32, i32, i32) {
    %c0_i32 = arith.constant 0 : i32
    %c0_i32_0 = arith.constant 0 : i32
    %c0_i32_1 = arith.constant 0 : i32
    return %arg0, %c0_i32, %c0_i32_0 : i32, i32, i32
  }
  func.func @transform_13(%arg0: i32) -> (i32, i32, i32) {
    %c0_i32 = arith.constant 0 : i32
    %c0_i32_0 = arith.constant 0 : i32
    %c0_i32_1 = arith.constant 0 : i32
    return %arg0, %c0_i32, %c0_i32_0 : i32, i32, i32
  }
  func.func @transform_14(%arg0: i32) -> (i32, i32) {
    %c0_i32 = arith.constant 0 : i32
    %c0_i32_0 = arith.constant 0 : i32
    %c0_i32_1 = arith.constant 0 : i32
    return %c0_i32, %c0_i32_0 : i32, i32
  }
  func.func @transform_15(%arg0: i32) -> (i32, i32) {
    %c0_i32 = arith.constant 0 : i32
    %c0_i32_0 = arith.constant 0 : i32
    %c0_i32_1 = arith.constant 0 : i32
    return %c0_i32, %c0_i32_0 : i32, i32
  }
  func.func @transform_16(%arg0: i32) -> (i32, i32) {
    %c0_i32 = arith.constant 0 : i32
    %c0_i32_0 = arith.constant 0 : i32
    %c0_i32_1 = arith.constant 0 : i32
    return %c0_i32, %c0_i32_0 : i32, i32
  }
}

module attributes {stable_mosaic.version = 11 : i64} {
  func.func @_decoder_stack_kernel(%arg0: i32, %arg1: memref<16x32xf32, #tpu.memory_space<vmem>>, %arg2: memref<16x32xf32, #tpu.memory_space<vmem>>, %arg3: memref<2x8x8xf32, #tpu.memory_space<vmem>>, %arg4: memref<2x8x8xf32, #tpu.memory_space<vmem>>, %arg5: memref<1x32x96xbf16, #tpu.memory_space<vmem>>, %arg6: memref<1x1x96xf32, #tpu.memory_space<vmem>>, %arg7: memref<1x32x32xbf16, #tpu.memory_space<vmem>>, %arg8: memref<1x1x32xf32, #tpu.memory_space<vmem>>, %arg9: memref<1x1x32xf32, #tpu.memory_space<vmem>>, %arg10: memref<1x1x32xf32, #tpu.memory_space<vmem>>, %arg11: memref<1x32x96xbf16, #tpu.memory_space<vmem>>, %arg12: memref<1x1x96xf32, #tpu.memory_space<vmem>>, %arg13: memref<1x32x32xbf16, #tpu.memory_space<vmem>>, %arg14: memref<1x1x32xf32, #tpu.memory_space<vmem>>, %arg15: memref<1x1x32xf32, #tpu.memory_space<vmem>>, %arg16: memref<1x1x32xf32, #tpu.memory_space<vmem>>, %arg17: memref<1x32x64xbf16, #tpu.memory_space<vmem>>, %arg18: memref<1x1x64xf32, #tpu.memory_space<vmem>>, %arg19: memref<1x64x32xbf16, #tpu.memory_space<vmem>>, %arg20: memref<1x1x32xf32, #tpu.memory_space<vmem>>, %arg21: memref<1x1x32xf32, #tpu.memory_space<vmem>>, %arg22: memref<1x1x32xf32, #tpu.memory_space<vmem>>, %arg23: memref<1x32xf32, #tpu.memory_space<vmem>>, %arg24: memref<1x32xf32, #tpu.memory_space<vmem>>, %arg25: memref<32x256xbf16, #tpu.memory_space<vmem>>, %arg26: memref<1x256xf32, #tpu.memory_space<vmem>>, %arg27: memref<16x256xf32, #tpu.memory_space<vmem>>, %arg28: memref<16x32xf32, #tpu.memory_space<vmem>>) attributes {dimension_semantics = [#tpu.dimension_semantics<arbitrary>], iteration_bounds = array<i64: 2>, scalar_prefetch = 0 : i64, scratch_operands = 1 : i64, tpu.core_type = #tpu.core_type<tc>, window_params = [{pipeline_mode = #tpu.pipeline_mode<synchronous>, transform_indices = @transform_0, window_bounds = array<i64: 16, 32>}, {pipeline_mode = #tpu.pipeline_mode<synchronous>, transform_indices = @transform_1, window_bounds = array<i64: 16, 32>}, {pipeline_mode = #tpu.pipeline_mode<synchronous>, transform_indices = @transform_2, window_bounds = array<i64: 2, 8, 8>}, {pipeline_mode = #tpu.pipeline_mode<synchronous>, transform_indices = @transform_3, window_bounds = array<i64: 2, 8, 8>}, {transform_indices = @transform_4, window_bounds = array<i64: 1, 32, 96>}, {transform_indices = @transform_5, window_bounds = array<i64: 1, 1, 96>}, {transform_indices = @transform_6, window_bounds = array<i64: 1, 32, 32>}, {transform_indices = @transform_7, window_bounds = array<i64: 1, 1, 32>}, {transform_indices = @transform_8, window_bounds = array<i64: 1, 1, 32>}, {transform_indices = @transform_9, window_bounds = array<i64: 1, 1, 32>}, {transform_indices = @transform_10, window_bounds = array<i64: 1, 32, 96>}, {transform_indices = @transform_11, window_bounds = array<i64: 1, 1, 96>}, {transform_indices = @transform_12, window_bounds = array<i64: 1, 32, 32>}, {transform_indices = @transform_13, window_bounds = array<i64: 1, 1, 32>}, {transform_indices = @transform_14, window_bounds = array<i64: 1, 1, 32>}, {transform_indices = @transform_15, window_bounds = array<i64: 1, 1, 32>}, {transform_indices = @transform_16, window_bounds = array<i64: 1, 32, 64>}, {transform_indices = @transform_17, window_bounds = array<i64: 1, 1, 64>}, {transform_indices = @transform_18, window_bounds = array<i64: 1, 64, 32>}, {transform_indices = @transform_19, window_bounds = array<i64: 1, 1, 32>}, {transform_indices = @transform_20, window_bounds = array<i64: 1, 1, 32>}, {transform_indices = @transform_21, window_bounds = array<i64: 1, 1, 32>}, {pipeline_mode = #tpu.pipeline_mode<synchronous>, transform_indices = @transform_22, window_bounds = array<i64: 1, 32>}, {pipeline_mode = #tpu.pipeline_mode<synchronous>, transform_indices = @transform_23, window_bounds = array<i64: 1, 32>}, {pipeline_mode = #tpu.pipeline_mode<synchronous>, transform_indices = @transform_24, window_bounds = array<i64: 32, 256>}, {pipeline_mode = #tpu.pipeline_mode<synchronous>, transform_indices = @transform_25, window_bounds = array<i64: 1, 256>}, {pipeline_mode = #tpu.pipeline_mode<synchronous>, transform_indices = @transform_26, window_bounds = array<i64: 16, 256>}]} {
    %c0_i32 = arith.constant 0 : i32
    %0 = arith.cmpi eq, %arg0, %c0_i32 : i32
    %1 = arith.extui %0 : i1 to i32
    %c0_i32_0 = arith.constant 0 : i32
    %2 = arith.cmpi ne, %1, %c0_i32_0 : i32
    scf.if %2 {
      %c0_121 = arith.constant 0 : index
      %c0_122 = arith.constant 0 : index
      %313 = vector.load %arg1[%c0_121, %c0_122] : memref<16x32xf32, #tpu.memory_space<vmem>>, vector<16x32xf32>
      %c0_123 = arith.constant 0 : index
      %c0_124 = arith.constant 0 : index
      %314 = vector.load %arg28[%c0_123, %c0_124] : memref<16x32xf32, #tpu.memory_space<vmem>>, vector<16x32xf32>
      tpu.vector_store %arg28[%c0_123, %c0_124], %313 {strides = array<i32>} : memref<16x32xf32, #tpu.memory_space<vmem>>, vector<16x32xf32>,
    } else {
    }
    %c0 = arith.constant 0 : index
    %c0_1 = arith.constant 0 : index
    %3 = vector.load %arg28[%c0, %c0_1] : memref<16x32xf32, #tpu.memory_space<vmem>>, vector<16x32xf32>
    %c0_2 = arith.constant 0 : index
    %c0_3 = arith.constant 0 : index
    %c0_4 = arith.constant 0 : index
    %4 = vector.load %arg5[%c0_2, %c0_3, %c0_4] : memref<1x32x96xbf16, #tpu.memory_space<vmem>>, vector<1x32x96xbf16>
    %5 = vector.shape_cast %4 : vector<1x32x96xbf16> to vector<32x96xbf16>
    %c0_5 = arith.constant 0 : index
    %c0_6 = arith.constant 0 : index
    %c0_7 = arith.constant 0 : index
    %6 = vector.load %arg6[%c0_5, %c0_6, %c0_7] : memref<1x1x96xf32, #tpu.memory_space<vmem>>, vector<1x1x96xf32>
    %7 = vector.shape_cast %6 : vector<1x1x96xf32> to vector<1x96xf32>
    %c0_8 = arith.constant 0 : index
    %c0_9 = arith.constant 0 : index
    %c0_10 = arith.constant 0 : index
    %8 = vector.load %arg7[%c0_8, %c0_9, %c0_10] : memref<1x32x32xbf16, #tpu.memory_space<vmem>>, vector<1x32x32xbf16>
    %9 = vector.shape_cast %8 : vector<1x32x32xbf16> to vector<32x32xbf16>
    %c0_11 = arith.constant 0 : index
    %c0_12 = arith.constant 0 : index
    %c0_13 = arith.constant 0 : index
    %10 = vector.load %arg8[%c0_11, %c0_12, %c0_13] : memref<1x1x32xf32, #tpu.memory_space<vmem>>, vector<1x1x32xf32>
    %11 = vector.shape_cast %10 : vector<1x1x32xf32> to vector<1x32xf32>
    %c0_14 = arith.constant 0 : index
    %c0_15 = arith.constant 0 : index
    %c0_16 = arith.constant 0 : index
    %12 = vector.load %arg3[%c0_14, %c0_15, %c0_16] : memref<2x8x8xf32, #tpu.memory_space<vmem>>, vector<2x8x8xf32>
    %13 = arith.truncf %3 : vector<16x32xf32> to vector<16x32xbf16>
    %cst = arith.constant dense<0.000000e+00> : vector<16x96xf32>
    %14 = tpu.matmul %13, %5, %cst {dimension_numbers = #tpu.dot_dimension_numbers<[1], [0], [0], [1], [0, 0, 1, 1], [], []>} : vector<16x32xbf16>, vector<32x96xbf16>, vector<16x96xf32> -> vector<16x96xf32>
    %15 = vector.broadcast %7 : vector<1x96xf32> to vector<16x96xf32>
    %16 = arith.addf %14, %15 : vector<16x96xf32>
    %17 = vector.extract_strided_slice %16 {offsets = [0, 0], sizes = [16, 32], strides = [1, 1]} : vector<16x96xf32> to vector<16x32xf32>
    %18 = vector.extract_strided_slice %16 {offsets = [0, 32], sizes = [16, 32], strides = [1, 1]} : vector<16x96xf32> to vector<16x32xf32>
    %19 = vector.extract_strided_slice %16 {offsets = [0, 64], sizes = [16, 32], strides = [1, 1]} : vector<16x96xf32> to vector<16x32xf32>
    %20 = arith.truncf %17 : vector<16x32xf32> to vector<16x32xbf16>
    %21 = vector.shape_cast %20 : vector<16x32xbf16> to vector<2x8x32xbf16>
    %22 = arith.truncf %18 : vector<16x32xf32> to vector<16x32xbf16>
    %23 = vector.shape_cast %22 : vector<16x32xbf16> to vector<2x8x32xbf16>
    %24 = arith.truncf %19 : vector<16x32xf32> to vector<16x32xbf16>
    %25 = vector.shape_cast %24 : vector<16x32xbf16> to vector<2x8x32xbf16>
    %26 = vector.extract_strided_slice %21 {offsets = [0, 0, 0], sizes = [2, 8, 8], strides = [1, 1, 1]} : vector<2x8x32xbf16> to vector<2x8x8xbf16>
    %27 = vector.extract_strided_slice %23 {offsets = [0, 0, 0], sizes = [2, 8, 8], strides = [1, 1, 1]} : vector<2x8x32xbf16> to vector<2x8x8xbf16>
    "tpu.trace_start"() <{level = 10 : i32, message = "btd,bsd->bts"}> : () -> ()
    %cst_17 = arith.constant dense<0.000000e+00> : vector<2x8x8xf32>
    %28 = tpu.matmul %26, %27, %cst_17 {dimension_numbers = #tpu.dot_dimension_numbers<[2], [2], [1], [1], [0, 0, 0, 1, 1, 1], [0], [0]>} : vector<2x8x8xbf16>, vector<2x8x8xbf16>, vector<2x8x8xf32> -> vector<2x8x8xf32>
    "tpu.trace_stop"() : () -> ()
    %29 = arith.addf %28, %12 : vector<2x8x8xf32>
    %cst_18 = arith.constant dense<0xFF800000> : vector<2x8xf32>
    %30 = vector.multi_reduction <maximumf>, %29, %cst_18 [2] : vector<2x8x8xf32> to vector<2x8xf32>
    %31 = vector.shape_cast %30 : vector<2x8xf32> to vector<2x8x1xf32>
    %32 = vector.broadcast %31 : vector<2x8x1xf32> to vector<2x8x8xf32>
    %33 = arith.subf %29, %32 : vector<2x8x8xf32>
    %34 = math.exp %33 : vector<2x8x8xf32>
    %cst_19 = arith.constant dense<0.000000e+00> : vector<2x8xf32>
    %35 = vector.multi_reduction <add>, %34, %cst_19 [2] : vector<2x8x8xf32> to vector<2x8xf32>
    %36 = vector.shape_cast %35 : vector<2x8xf32> to vector<2x8x1xf32>
    %37 = tpu.reciprocal %36 {approx = true} : vector<2x8x1xf32> -> vector<2x8x1xf32>
    %38 = vector.broadcast %37 : vector<2x8x1xf32> to vector<2x8x8xf32>
    %39 = arith.mulf %34, %38 : vector<2x8x8xf32>
    %40 = arith.truncf %39 : vector<2x8x8xf32> to vector<2x8x8xbf16>
    %41 = vector.extract_strided_slice %25 {offsets = [0, 0, 0], sizes = [2, 8, 8], strides = [1, 1, 1]} : vector<2x8x32xbf16> to vector<2x8x8xbf16>
    "tpu.trace_start"() <{level = 10 : i32, message = "bts,bsd->btd"}> : () -> ()
    %cst_20 = arith.constant dense<0.000000e+00> : vector<2x8x8xf32>
    %42 = tpu.matmul %40, %41, %cst_20 {dimension_numbers = #tpu.dot_dimension_numbers<[2], [1], [1], [2], [0, 0, 0, 1, 1, 2], [0], [0]>} : vector<2x8x8xbf16>, vector<2x8x8xbf16>, vector<2x8x8xf32> -> vector<2x8x8xf32>
    "tpu.trace_stop"() : () -> ()
    %43 = vector.extract_strided_slice %21 {offsets = [0, 0, 8], sizes = [2, 8, 8], strides = [1, 1, 1]} : vector<2x8x32xbf16> to vector<2x8x8xbf16>
    %44 = vector.extract_strided_slice %23 {offsets = [0, 0, 8], sizes = [2, 8, 8], strides = [1, 1, 1]} : vector<2x8x32xbf16> to vector<2x8x8xbf16>
    "tpu.trace_start"() <{level = 10 : i32, message = "btd,bsd->bts"}> : () -> ()
    %cst_21 = arith.constant dense<0.000000e+00> : vector<2x8x8xf32>
    %45 = tpu.matmul %43, %44, %cst_21 {dimension_numbers = #tpu.dot_dimension_numbers<[2], [2], [1], [1], [0, 0, 0, 1, 1, 1], [0], [0]>} : vector<2x8x8xbf16>, vector<2x8x8xbf16>, vector<2x8x8xf32> -> vector<2x8x8xf32>
    "tpu.trace_stop"() : () -> ()
    %46 = arith.addf %45, %12 : vector<2x8x8xf32>
    %cst_22 = arith.constant dense<0xFF800000> : vector<2x8xf32>
    %47 = vector.multi_reduction <maximumf>, %46, %cst_22 [2] : vector<2x8x8xf32> to vector<2x8xf32>
    %48 = vector.shape_cast %47 : vector<2x8xf32> to vector<2x8x1xf32>
    %49 = vector.broadcast %48 : vector<2x8x1xf32> to vector<2x8x8xf32>
    %50 = arith.subf %46, %49 : vector<2x8x8xf32>
    %51 = math.exp %50 : vector<2x8x8xf32>
    %cst_23 = arith.constant dense<0.000000e+00> : vector<2x8xf32>
    %52 = vector.multi_reduction <add>, %51, %cst_23 [2] : vector<2x8x8xf32> to vector<2x8xf32>
    %53 = vector.shape_cast %52 : vector<2x8xf32> to vector<2x8x1xf32>
    %54 = tpu.reciprocal %53 {approx = true} : vector<2x8x1xf32> -> vector<2x8x1xf32>
    %55 = vector.broadcast %54 : vector<2x8x1xf32> to vector<2x8x8xf32>
    %56 = arith.mulf %51, %55 : vector<2x8x8xf32>
    %57 = arith.truncf %56 : vector<2x8x8xf32> to vector<2x8x8xbf16>
    %58 = vector.extract_strided_slice %25 {offsets = [0, 0, 8], sizes = [2, 8, 8], strides = [1, 1, 1]} : vector<2x8x32xbf16> to vector<2x8x8xbf16>
    "tpu.trace_start"() <{level = 10 : i32, message = "bts,bsd->btd"}> : () -> ()
    %cst_24 = arith.constant dense<0.000000e+00> : vector<2x8x8xf32>
    %59 = tpu.matmul %57, %58, %cst_24 {dimension_numbers = #tpu.dot_dimension_numbers<[2], [1], [1], [2], [0, 0, 0, 1, 1, 2], [0], [0]>} : vector<2x8x8xbf16>, vector<2x8x8xbf16>, vector<2x8x8xf32> -> vector<2x8x8xf32>
    "tpu.trace_stop"() : () -> ()
    %60 = vector.extract_strided_slice %21 {offsets = [0, 0, 16], sizes = [2, 8, 8], strides = [1, 1, 1]} : vector<2x8x32xbf16> to vector<2x8x8xbf16>
    %61 = vector.extract_strided_slice %23 {offsets = [0, 0, 16], sizes = [2, 8, 8], strides = [1, 1, 1]} : vector<2x8x32xbf16> to vector<2x8x8xbf16>
    "tpu.trace_start"() <{level = 10 : i32, message = "btd,bsd->bts"}> : () -> ()
    %cst_25 = arith.constant dense<0.000000e+00> : vector<2x8x8xf32>
    %62 = tpu.matmul %60, %61, %cst_25 {dimension_numbers = #tpu.dot_dimension_numbers<[2], [2], [1], [1], [0, 0, 0, 1, 1, 1], [0], [0]>} : vector<2x8x8xbf16>, vector<2x8x8xbf16>, vector<2x8x8xf32> -> vector<2x8x8xf32>
    "tpu.trace_stop"() : () -> ()
    %63 = arith.addf %62, %12 : vector<2x8x8xf32>
    %cst_26 = arith.constant dense<0xFF800000> : vector<2x8xf32>
    %64 = vector.multi_reduction <maximumf>, %63, %cst_26 [2] : vector<2x8x8xf32> to vector<2x8xf32>
    %65 = vector.shape_cast %64 : vector<2x8xf32> to vector<2x8x1xf32>
    %66 = vector.broadcast %65 : vector<2x8x1xf32> to vector<2x8x8xf32>
    %67 = arith.subf %63, %66 : vector<2x8x8xf32>
    %68 = math.exp %67 : vector<2x8x8xf32>
    %cst_27 = arith.constant dense<0.000000e+00> : vector<2x8xf32>
    %69 = vector.multi_reduction <add>, %68, %cst_27 [2] : vector<2x8x8xf32> to vector<2x8xf32>
    %70 = vector.shape_cast %69 : vector<2x8xf32> to vector<2x8x1xf32>
    %71 = tpu.reciprocal %70 {approx = true} : vector<2x8x1xf32> -> vector<2x8x1xf32>
    %72 = vector.broadcast %71 : vector<2x8x1xf32> to vector<2x8x8xf32>
    %73 = arith.mulf %68, %72 : vector<2x8x8xf32>
    %74 = arith.truncf %73 : vector<2x8x8xf32> to vector<2x8x8xbf16>
    %75 = vector.extract_strided_slice %25 {offsets = [0, 0, 16], sizes = [2, 8, 8], strides = [1, 1, 1]} : vector<2x8x32xbf16> to vector<2x8x8xbf16>
    "tpu.trace_start"() <{level = 10 : i32, message = "bts,bsd->btd"}> : () -> ()
    %cst_28 = arith.constant dense<0.000000e+00> : vector<2x8x8xf32>
    %76 = tpu.matmul %74, %75, %cst_28 {dimension_numbers = #tpu.dot_dimension_numbers<[2], [1], [1], [2], [0, 0, 0, 1, 1, 2], [0], [0]>} : vector<2x8x8xbf16>, vector<2x8x8xbf16>, vector<2x8x8xf32> -> vector<2x8x8xf32>
    "tpu.trace_stop"() : () -> ()
    %77 = vector.extract_strided_slice %21 {offsets = [0, 0, 24], sizes = [2, 8, 8], strides = [1, 1, 1]} : vector<2x8x32xbf16> to vector<2x8x8xbf16>
    %78 = vector.extract_strided_slice %23 {offsets = [0, 0, 24], sizes = [2, 8, 8], strides = [1, 1, 1]} : vector<2x8x32xbf16> to vector<2x8x8xbf16>
    "tpu.trace_start"() <{level = 10 : i32, message = "btd,bsd->bts"}> : () -> ()
    %cst_29 = arith.constant dense<0.000000e+00> : vector<2x8x8xf32>
    %79 = tpu.matmul %77, %78, %cst_29 {dimension_numbers = #tpu.dot_dimension_numbers<[2], [2], [1], [1], [0, 0, 0, 1, 1, 1], [0], [0]>} : vector<2x8x8xbf16>, vector<2x8x8xbf16>, vector<2x8x8xf32> -> vector<2x8x8xf32>
    "tpu.trace_stop"() : () -> ()
    %80 = arith.addf %79, %12 : vector<2x8x8xf32>
    %cst_30 = arith.constant dense<0xFF800000> : vector<2x8xf32>
    %81 = vector.multi_reduction <maximumf>, %80, %cst_30 [2] : vector<2x8x8xf32> to vector<2x8xf32>
    %82 = vector.shape_cast %81 : vector<2x8xf32> to vector<2x8x1xf32>
    %83 = vector.broadcast %82 : vector<2x8x1xf32> to vector<2x8x8xf32>
    %84 = arith.subf %80, %83 : vector<2x8x8xf32>
    %85 = math.exp %84 : vector<2x8x8xf32>
    %cst_31 = arith.constant dense<0.000000e+00> : vector<2x8xf32>
    %86 = vector.multi_reduction <add>, %85, %cst_31 [2] : vector<2x8x8xf32> to vector<2x8xf32>
    %87 = vector.shape_cast %86 : vector<2x8xf32> to vector<2x8x1xf32>
    %88 = tpu.reciprocal %87 {approx = true} : vector<2x8x1xf32> -> vector<2x8x1xf32>
    %89 = vector.broadcast %88 : vector<2x8x1xf32> to vector<2x8x8xf32>
    %90 = arith.mulf %85, %89 : vector<2x8x8xf32>
    %91 = arith.truncf %90 : vector<2x8x8xf32> to vector<2x8x8xbf16>
    %92 = vector.extract_strided_slice %25 {offsets = [0, 0, 24], sizes = [2, 8, 8], strides = [1, 1, 1]} : vector<2x8x32xbf16> to vector<2x8x8xbf16>
    "tpu.trace_start"() <{level = 10 : i32, message = "bts,bsd->btd"}> : () -> ()
    %cst_32 = arith.constant dense<0.000000e+00> : vector<2x8x8xf32>
    %93 = tpu.matmul %91, %92, %cst_32 {dimension_numbers = #tpu.dot_dimension_numbers<[2], [1], [1], [2], [0, 0, 0, 1, 1, 2], [0], [0]>} : vector<2x8x8xbf16>, vector<2x8x8xbf16>, vector<2x8x8xf32> -> vector<2x8x8xf32>
    "tpu.trace_stop"() : () -> ()
    %94 = tpu.concatenate %42, %59, %76, %93 in 2 : vector<2x8x8xf32>, vector<2x8x8xf32>, vector<2x8x8xf32>, vector<2x8x8xf32> -> vector<2x8x32xf32>
    %95 = vector.shape_cast %94 : vector<2x8x32xf32> to vector<16x32xf32>
    %96 = arith.truncf %95 : vector<16x32xf32> to vector<16x32xbf16>
    %cst_33 = arith.constant dense<0.000000e+00> : vector<16x32xf32>
    %97 = tpu.matmul %96, %9, %cst_33 {dimension_numbers = #tpu.dot_dimension_numbers<[1], [0], [0], [1], [0, 0, 1, 1], [], []>} : vector<16x32xbf16>, vector<32x32xbf16>, vector<16x32xf32> -> vector<16x32xf32>
    %98 = vector.broadcast %11 : vector<1x32xf32> to vector<16x32xf32>
    %99 = arith.addf %97, %98 : vector<16x32xf32>
    %100 = arith.addf %3, %99 : vector<16x32xf32>
    %c0_34 = arith.constant 0 : index
    %c0_35 = arith.constant 0 : index
    %c0_36 = arith.constant 0 : index
    %101 = vector.load %arg9[%c0_34, %c0_35, %c0_36] : memref<1x1x32xf32, #tpu.memory_space<vmem>>, vector<1x1x32xf32>
    %102 = vector.shape_cast %101 : vector<1x1x32xf32> to vector<1x32xf32>
    %c0_37 = arith.constant 0 : index
    %c0_38 = arith.constant 0 : index
    %c0_39 = arith.constant 0 : index
    %103 = vector.load %arg10[%c0_37, %c0_38, %c0_39] : memref<1x1x32xf32, #tpu.memory_space<vmem>>, vector<1x1x32xf32>
    %104 = vector.shape_cast %103 : vector<1x1x32xf32> to vector<1x32xf32>
    %cst_40 = arith.constant dense<0.000000e+00> : vector<16xf32>
    %105 = vector.multi_reduction <add>, %100, %cst_40 [1] : vector<16x32xf32> to vector<16xf32>
    %106 = vector.shape_cast %105 : vector<16xf32> to vector<16x1xf32>
    %cst_41 = arith.constant 3.200000e+01 : f32
    %107 = vector.broadcast %cst_41 : f32 to vector<16x1xf32>
    %108 = arith.divf %106, %107 : vector<16x1xf32>
    %109 = vector.broadcast %108 : vector<16x1xf32> to vector<16x32xf32>
    %110 = arith.subf %100, %109 : vector<16x32xf32>
    %111 = vector.broadcast %108 : vector<16x1xf32> to vector<16x32xf32>
    %112 = arith.subf %100, %111 : vector<16x32xf32>
    %113 = arith.mulf %110, %112 : vector<16x32xf32>
    %cst_42 = arith.constant dense<0.000000e+00> : vector<16xf32>
    %114 = vector.multi_reduction <add>, %113, %cst_42 [1] : vector<16x32xf32> to vector<16xf32>
    %115 = vector.shape_cast %114 : vector<16xf32> to vector<16x1xf32>
    %cst_43 = arith.constant 3.200000e+01 : f32
    %116 = vector.broadcast %cst_43 : f32 to vector<16x1xf32>
    %117 = arith.divf %115, %116 : vector<16x1xf32>
    %118 = vector.broadcast %108 : vector<16x1xf32> to vector<16x32xf32>
    %119 = arith.subf %100, %118 : vector<16x32xf32>
    %cst_44 = arith.constant 9.99999974E-6 : f32
    %120 = vector.broadcast %cst_44 : f32 to vector<16x1xf32>
    %121 = arith.addf %117, %120 : vector<16x1xf32>
    %122 = math.rsqrt %121 : vector<16x1xf32>
    %123 = vector.broadcast %122 : vector<16x1xf32> to vector<16x32xf32>
    %124 = arith.mulf %119, %123 : vector<16x32xf32>
    %125 = vector.broadcast %102 : vector<1x32xf32> to vector<16x32xf32>
    %126 = arith.mulf %124, %125 : vector<16x32xf32>
    %127 = vector.broadcast %104 : vector<1x32xf32> to vector<16x32xf32>
    %128 = arith.addf %126, %127 : vector<16x32xf32>
    %c0_45 = arith.constant 0 : index
    %c0_46 = arith.constant 0 : index
    %129 = vector.load %arg2[%c0_45, %c0_46] : memref<16x32xf32, #tpu.memory_space<vmem>>, vector<16x32xf32>
    %c0_47 = arith.constant 0 : index
    %c0_48 = arith.constant 0 : index
    %c0_49 = arith.constant 0 : index
    %130 = vector.load %arg11[%c0_47, %c0_48, %c0_49] : memref<1x32x96xbf16, #tpu.memory_space<vmem>>, vector<1x32x96xbf16>
    %131 = vector.shape_cast %130 : vector<1x32x96xbf16> to vector<32x96xbf16>
    %c0_50 = arith.constant 0 : index
    %c0_51 = arith.constant 0 : index
    %c0_52 = arith.constant 0 : index
    %132 = vector.load %arg12[%c0_50, %c0_51, %c0_52] : memref<1x1x96xf32, #tpu.memory_space<vmem>>, vector<1x1x96xf32>
    %133 = vector.shape_cast %132 : vector<1x1x96xf32> to vector<1x96xf32>
    %c0_53 = arith.constant 0 : index
    %c0_54 = arith.constant 0 : index
    %c0_55 = arith.constant 0 : index
    %134 = vector.load %arg13[%c0_53, %c0_54, %c0_55] : memref<1x32x32xbf16, #tpu.memory_space<vmem>>, vector<1x32x32xbf16>
    %135 = vector.shape_cast %134 : vector<1x32x32xbf16> to vector<32x32xbf16>
    %c0_56 = arith.constant 0 : index
    %c0_57 = arith.constant 0 : index
    %c0_58 = arith.constant 0 : index
    %136 = vector.load %arg14[%c0_56, %c0_57, %c0_58] : memref<1x1x32xf32, #tpu.memory_space<vmem>>, vector<1x1x32xf32>
    %137 = vector.shape_cast %136 : vector<1x1x32xf32> to vector<1x32xf32>
    %c0_59 = arith.constant 0 : index
    %c0_60 = arith.constant 0 : index
    %c0_61 = arith.constant 0 : index
    %138 = vector.load %arg4[%c0_59, %c0_60, %c0_61] : memref<2x8x8xf32, #tpu.memory_space<vmem>>, vector<2x8x8xf32>
    %139 = arith.truncf %128 : vector<16x32xf32> to vector<16x32xbf16>
    %140 = arith.truncf %129 : vector<16x32xf32> to vector<16x32xbf16>
    %141 = vector.extract_strided_slice %131 {offsets = [0, 0], sizes = [32, 32], strides = [1, 1]} : vector<32x96xbf16> to vector<32x32xbf16>
    %cst_62 = arith.constant dense<0.000000e+00> : vector<16x32xf32>
    %142 = tpu.matmul %139, %141, %cst_62 {dimension_numbers = #tpu.dot_dimension_numbers<[1], [0], [0], [1], [0, 0, 1, 1], [], []>} : vector<16x32xbf16>, vector<32x32xbf16>, vector<16x32xf32> -> vector<16x32xf32>
    %143 = vector.extract_strided_slice %133 {offsets = [0, 0], sizes = [1, 32], strides = [1, 1]} : vector<1x96xf32> to vector<1x32xf32>
    %144 = vector.broadcast %143 : vector<1x32xf32> to vector<16x32xf32>
    %145 = arith.addf %142, %144 : vector<16x32xf32>
    %146 = vector.extract_strided_slice %131 {offsets = [0, 32], sizes = [32, 64], strides = [1, 1]} : vector<32x96xbf16> to vector<32x64xbf16>
    %cst_63 = arith.constant dense<0.000000e+00> : vector<16x64xf32>
    %147 = tpu.matmul %140, %146, %cst_63 {dimension_numbers = #tpu.dot_dimension_numbers<[1], [0], [0], [1], [0, 0, 1, 1], [], []>} : vector<16x32xbf16>, vector<32x64xbf16>, vector<16x64xf32> -> vector<16x64xf32>
    %148 = vector.extract_strided_slice %133 {offsets = [0, 32], sizes = [1, 64], strides = [1, 1]} : vector<1x96xf32> to vector<1x64xf32>
    %149 = vector.broadcast %148 : vector<1x64xf32> to vector<16x64xf32>
    %150 = arith.addf %147, %149 : vector<16x64xf32>
    %151 = vector.extract_strided_slice %150 {offsets = [0, 0], sizes = [16, 32], strides = [1, 1]} : vector<16x64xf32> to vector<16x32xf32>
    %152 = vector.extract_strided_slice %150 {offsets = [0, 32], sizes = [16, 32], strides = [1, 1]} : vector<16x64xf32> to vector<16x32xf32>
    %153 = arith.truncf %145 : vector<16x32xf32> to vector<16x32xbf16>
    %154 = vector.shape_cast %153 : vector<16x32xbf16> to vector<2x8x32xbf16>
    %155 = arith.truncf %151 : vector<16x32xf32> to vector<16x32xbf16>
    %156 = vector.shape_cast %155 : vector<16x32xbf16> to vector<2x8x32xbf16>
    %157 = arith.truncf %152 : vector<16x32xf32> to vector<16x32xbf16>
    %158 = vector.shape_cast %157 : vector<16x32xbf16> to vector<2x8x32xbf16>
    %159 = vector.extract_strided_slice %154 {offsets = [0, 0, 0], sizes = [2, 8, 8], strides = [1, 1, 1]} : vector<2x8x32xbf16> to vector<2x8x8xbf16>
    %160 = vector.extract_strided_slice %156 {offsets = [0, 0, 0], sizes = [2, 8, 8], strides = [1, 1, 1]} : vector<2x8x32xbf16> to vector<2x8x8xbf16>
    "tpu.trace_start"() <{level = 10 : i32, message = "btd,bsd->bts"}> : () -> ()
    %cst_64 = arith.constant dense<0.000000e+00> : vector<2x8x8xf32>
    %161 = tpu.matmul %159, %160, %cst_64 {dimension_numbers = #tpu.dot_dimension_numbers<[2], [2], [1], [1], [0, 0, 0, 1, 1, 1], [0], [0]>} : vector<2x8x8xbf16>, vector<2x8x8xbf16>, vector<2x8x8xf32> -> vector<2x8x8xf32>
    "tpu.trace_stop"() : () -> ()
    %162 = arith.addf %161, %138 : vector<2x8x8xf32>
    %cst_65 = arith.constant dense<0xFF800000> : vector<2x8xf32>
    %163 = vector.multi_reduction <maximumf>, %162, %cst_65 [2] : vector<2x8x8xf32> to vector<2x8xf32>
    %164 = vector.shape_cast %163 : vector<2x8xf32> to vector<2x8x1xf32>
    %165 = vector.broadcast %164 : vector<2x8x1xf32> to vector<2x8x8xf32>
    %166 = arith.subf %162, %165 : vector<2x8x8xf32>
    %167 = math.exp %166 : vector<2x8x8xf32>
    %cst_66 = arith.constant dense<0.000000e+00> : vector<2x8xf32>
    %168 = vector.multi_reduction <add>, %167, %cst_66 [2] : vector<2x8x8xf32> to vector<2x8xf32>
    %169 = vector.shape_cast %168 : vector<2x8xf32> to vector<2x8x1xf32>
    %170 = tpu.reciprocal %169 {approx = true} : vector<2x8x1xf32> -> vector<2x8x1xf32>
    %171 = vector.broadcast %170 : vector<2x8x1xf32> to vector<2x8x8xf32>
    %172 = arith.mulf %167, %171 : vector<2x8x8xf32>
    %173 = arith.truncf %172 : vector<2x8x8xf32> to vector<2x8x8xbf16>
    %174 = vector.extract_strided_slice %158 {offsets = [0, 0, 0], sizes = [2, 8, 8], strides = [1, 1, 1]} : vector<2x8x32xbf16> to vector<2x8x8xbf16>
    "tpu.trace_start"() <{level = 10 : i32, message = "bts,bsd->btd"}> : () -> ()
    %cst_67 = arith.constant dense<0.000000e+00> : vector<2x8x8xf32>
    %175 = tpu.matmul %173, %174, %cst_67 {dimension_numbers = #tpu.dot_dimension_numbers<[2], [1], [1], [2], [0, 0, 0, 1, 1, 2], [0], [0]>} : vector<2x8x8xbf16>, vector<2x8x8xbf16>, vector<2x8x8xf32> -> vector<2x8x8xf32>
    "tpu.trace_stop"() : () -> ()
    %176 = vector.extract_strided_slice %154 {offsets = [0, 0, 8], sizes = [2, 8, 8], strides = [1, 1, 1]} : vector<2x8x32xbf16> to vector<2x8x8xbf16>
    %177 = vector.extract_strided_slice %156 {offsets = [0, 0, 8], sizes = [2, 8, 8], strides = [1, 1, 1]} : vector<2x8x32xbf16> to vector<2x8x8xbf16>
    "tpu.trace_start"() <{level = 10 : i32, message = "btd,bsd->bts"}> : () -> ()
    %cst_68 = arith.constant dense<0.000000e+00> : vector<2x8x8xf32>
    %178 = tpu.matmul %176, %177, %cst_68 {dimension_numbers = #tpu.dot_dimension_numbers<[2], [2], [1], [1], [0, 0, 0, 1, 1, 1], [0], [0]>} : vector<2x8x8xbf16>, vector<2x8x8xbf16>, vector<2x8x8xf32> -> vector<2x8x8xf32>
    "tpu.trace_stop"() : () -> ()
    %179 = arith.addf %178, %138 : vector<2x8x8xf32>
    %cst_69 = arith.constant dense<0xFF800000> : vector<2x8xf32>
    %180 = vector.multi_reduction <maximumf>, %179, %cst_69 [2] : vector<2x8x8xf32> to vector<2x8xf32>
    %181 = vector.shape_cast %180 : vector<2x8xf32> to vector<2x8x1xf32>
    %182 = vector.broadcast %181 : vector<2x8x1xf32> to vector<2x8x8xf32>
    %183 = arith.subf %179, %182 : vector<2x8x8xf32>
    %184 = math.exp %183 : vector<2x8x8xf32>
    %cst_70 = arith.constant dense<0.000000e+00> : vector<2x8xf32>
    %185 = vector.multi_reduction <add>, %184, %cst_70 [2] : vector<2x8x8xf32> to vector<2x8xf32>
    %186 = vector.shape_cast %185 : vector<2x8xf32> to vector<2x8x1xf32>
    %187 = tpu.reciprocal %186 {approx = true} : vector<2x8x1xf32> -> vector<2x8x1xf32>
    %188 = vector.broadcast %187 : vector<2x8x1xf32> to vector<2x8x8xf32>
    %189 = arith.mulf %184, %188 : vector<2x8x8xf32>
    %190 = arith.truncf %189 : vector<2x8x8xf32> to vector<2x8x8xbf16>
    %191 = vector.extract_strided_slice %158 {offsets = [0, 0, 8], sizes = [2, 8, 8], strides = [1, 1, 1]} : vector<2x8x32xbf16> to vector<2x8x8xbf16>
    "tpu.trace_start"() <{level = 10 : i32, message = "bts,bsd->btd"}> : () -> ()
    %cst_71 = arith.constant dense<0.000000e+00> : vector<2x8x8xf32>
    %192 = tpu.matmul %190, %191, %cst_71 {dimension_numbers = #tpu.dot_dimension_numbers<[2], [1], [1], [2], [0, 0, 0, 1, 1, 2], [0], [0]>} : vector<2x8x8xbf16>, vector<2x8x8xbf16>, vector<2x8x8xf32> -> vector<2x8x8xf32>
    "tpu.trace_stop"() : () -> ()
    %193 = vector.extract_strided_slice %154 {offsets = [0, 0, 16], sizes = [2, 8, 8], strides = [1, 1, 1]} : vector<2x8x32xbf16> to vector<2x8x8xbf16>
    %194 = vector.extract_strided_slice %156 {offsets = [0, 0, 16], sizes = [2, 8, 8], strides = [1, 1, 1]} : vector<2x8x32xbf16> to vector<2x8x8xbf16>
    "tpu.trace_start"() <{level = 10 : i32, message = "btd,bsd->bts"}> : () -> ()
    %cst_72 = arith.constant dense<0.000000e+00> : vector<2x8x8xf32>
    %195 = tpu.matmul %193, %194, %cst_72 {dimension_numbers = #tpu.dot_dimension_numbers<[2], [2], [1], [1], [0, 0, 0, 1, 1, 1], [0], [0]>} : vector<2x8x8xbf16>, vector<2x8x8xbf16>, vector<2x8x8xf32> -> vector<2x8x8xf32>
    "tpu.trace_stop"() : () -> ()
    %196 = arith.addf %195, %138 : vector<2x8x8xf32>
    %cst_73 = arith.constant dense<0xFF800000> : vector<2x8xf32>
    %197 = vector.multi_reduction <maximumf>, %196, %cst_73 [2] : vector<2x8x8xf32> to vector<2x8xf32>
    %198 = vector.shape_cast %197 : vector<2x8xf32> to vector<2x8x1xf32>
    %199 = vector.broadcast %198 : vector<2x8x1xf32> to vector<2x8x8xf32>
    %200 = arith.subf %196, %199 : vector<2x8x8xf32>
    %201 = math.exp %200 : vector<2x8x8xf32>
    %cst_74 = arith.constant dense<0.000000e+00> : vector<2x8xf32>
    %202 = vector.multi_reduction <add>, %201, %cst_74 [2] : vector<2x8x8xf32> to vector<2x8xf32>
    %203 = vector.shape_cast %202 : vector<2x8xf32> to vector<2x8x1xf32>
    %204 = tpu.reciprocal %203 {approx = true} : vector<2x8x1xf32> -> vector<2x8x1xf32>
    %205 = vector.broadcast %204 : vector<2x8x1xf32> to vector<2x8x8xf32>
    %206 = arith.mulf %201, %205 : vector<2x8x8xf32>
    %207 = arith.truncf %206 : vector<2x8x8xf32> to vector<2x8x8xbf16>
    %208 = vector.extract_strided_slice %158 {offsets = [0, 0, 16], sizes = [2, 8, 8], strides = [1, 1, 1]} : vector<2x8x32xbf16> to vector<2x8x8xbf16>
    "tpu.trace_start"() <{level = 10 : i32, message = "bts,bsd->btd"}> : () -> ()
    %cst_75 = arith.constant dense<0.000000e+00> : vector<2x8x8xf32>
    %209 = tpu.matmul %207, %208, %cst_75 {dimension_numbers = #tpu.dot_dimension_numbers<[2], [1], [1], [2], [0, 0, 0, 1, 1, 2], [0], [0]>} : vector<2x8x8xbf16>, vector<2x8x8xbf16>, vector<2x8x8xf32> -> vector<2x8x8xf32>
    "tpu.trace_stop"() : () -> ()
    %210 = vector.extract_strided_slice %154 {offsets = [0, 0, 24], sizes = [2, 8, 8], strides = [1, 1, 1]} : vector<2x8x32xbf16> to vector<2x8x8xbf16>
    %211 = vector.extract_strided_slice %156 {offsets = [0, 0, 24], sizes = [2, 8, 8], strides = [1, 1, 1]} : vector<2x8x32xbf16> to vector<2x8x8xbf16>
    "tpu.trace_start"() <{level = 10 : i32, message = "btd,bsd->bts"}> : () -> ()
    %cst_76 = arith.constant dense<0.000000e+00> : vector<2x8x8xf32>
    %212 = tpu.matmul %210, %211, %cst_76 {dimension_numbers = #tpu.dot_dimension_numbers<[2], [2], [1], [1], [0, 0, 0, 1, 1, 1], [0], [0]>} : vector<2x8x8xbf16>, vector<2x8x8xbf16>, vector<2x8x8xf32> -> vector<2x8x8xf32>
    "tpu.trace_stop"() : () -> ()
    %213 = arith.addf %212, %138 : vector<2x8x8xf32>
    %cst_77 = arith.constant dense<0xFF800000> : vector<2x8xf32>
    %214 = vector.multi_reduction <maximumf>, %213, %cst_77 [2] : vector<2x8x8xf32> to vector<2x8xf32>
    %215 = vector.shape_cast %214 : vector<2x8xf32> to vector<2x8x1xf32>
    %216 = vector.broadcast %215 : vector<2x8x1xf32> to vector<2x8x8xf32>
    %217 = arith.subf %213, %216 : vector<2x8x8xf32>
    %218 = math.exp %217 : vector<2x8x8xf32>
    %cst_78 = arith.constant dense<0.000000e+00> : vector<2x8xf32>
    %219 = vector.multi_reduction <add>, %218, %cst_78 [2] : vector<2x8x8xf32> to vector<2x8xf32>
    %220 = vector.shape_cast %219 : vector<2x8xf32> to vector<2x8x1xf32>
    %221 = tpu.reciprocal %220 {approx = true} : vector<2x8x1xf32> -> vector<2x8x1xf32>
    %222 = vector.broadcast %221 : vector<2x8x1xf32> to vector<2x8x8xf32>
    %223 = arith.mulf %218, %222 : vector<2x8x8xf32>
    %224 = arith.truncf %223 : vector<2x8x8xf32> to vector<2x8x8xbf16>
    %225 = vector.extract_strided_slice %158 {offsets = [0, 0, 24], sizes = [2, 8, 8], strides = [1, 1, 1]} : vector<2x8x32xbf16> to vector<2x8x8xbf16>
    "tpu.trace_start"() <{level = 10 : i32, message = "bts,bsd->btd"}> : () -> ()
    %cst_79 = arith.constant dense<0.000000e+00> : vector<2x8x8xf32>
    %226 = tpu.matmul %224, %225, %cst_79 {dimension_numbers = #tpu.dot_dimension_numbers<[2], [1], [1], [2], [0, 0, 0, 1, 1, 2], [0], [0]>} : vector<2x8x8xbf16>, vector<2x8x8xbf16>, vector<2x8x8xf32> -> vector<2x8x8xf32>
    "tpu.trace_stop"() : () -> ()
    %227 = tpu.concatenate %175, %192, %209, %226 in 2 : vector<2x8x8xf32>, vector<2x8x8xf32>, vector<2x8x8xf32>, vector<2x8x8xf32> -> vector<2x8x32xf32>
    %228 = vector.shape_cast %227 : vector<2x8x32xf32> to vector<16x32xf32>
    %229 = arith.truncf %228 : vector<16x32xf32> to vector<16x32xbf16>
    %cst_80 = arith.constant dense<0.000000e+00> : vector<16x32xf32>
    %230 = tpu.matmul %229, %135, %cst_80 {dimension_numbers = #tpu.dot_dimension_numbers<[1], [0], [0], [1], [0, 0, 1, 1], [], []>} : vector<16x32xbf16>, vector<32x32xbf16>, vector<16x32xf32> -> vector<16x32xf32>
    %231 = vector.broadcast %137 : vector<1x32xf32> to vector<16x32xf32>
    %232 = arith.addf %230, %231 : vector<16x32xf32>
    %233 = arith.addf %128, %232 : vector<16x32xf32>
    %c0_81 = arith.constant 0 : index
    %c0_82 = arith.constant 0 : index
    %c0_83 = arith.constant 0 : index
    %234 = vector.load %arg15[%c0_81, %c0_82, %c0_83] : memref<1x1x32xf32, #tpu.memory_space<vmem>>, vector<1x1x32xf32>
    %235 = vector.shape_cast %234 : vector<1x1x32xf32> to vector<1x32xf32>
    %c0_84 = arith.constant 0 : index
    %c0_85 = arith.constant 0 : index
    %c0_86 = arith.constant 0 : index
    %236 = vector.load %arg16[%c0_84, %c0_85, %c0_86] : memref<1x1x32xf32, #tpu.memory_space<vmem>>, vector<1x1x32xf32>
    %237 = vector.shape_cast %236 : vector<1x1x32xf32> to vector<1x32xf32>
    %cst_87 = arith.constant dense<0.000000e+00> : vector<16xf32>
    %238 = vector.multi_reduction <add>, %233, %cst_87 [1] : vector<16x32xf32> to vector<16xf32>
    %239 = vector.shape_cast %238 : vector<16xf32> to vector<16x1xf32>
    %cst_88 = arith.constant 3.200000e+01 : f32
    %240 = vector.broadcast %cst_88 : f32 to vector<16x1xf32>
    %241 = arith.divf %239, %240 : vector<16x1xf32>
    %242 = vector.broadcast %241 : vector<16x1xf32> to vector<16x32xf32>
    %243 = arith.subf %233, %242 : vector<16x32xf32>
    %244 = vector.broadcast %241 : vector<16x1xf32> to vector<16x32xf32>
    %245 = arith.subf %233, %244 : vector<16x32xf32>
    %246 = arith.mulf %243, %245 : vector<16x32xf32>
    %cst_89 = arith.constant dense<0.000000e+00> : vector<16xf32>
    %247 = vector.multi_reduction <add>, %246, %cst_89 [1] : vector<16x32xf32> to vector<16xf32>
    %248 = vector.shape_cast %247 : vector<16xf32> to vector<16x1xf32>
    %cst_90 = arith.constant 3.200000e+01 : f32
    %249 = vector.broadcast %cst_90 : f32 to vector<16x1xf32>
    %250 = arith.divf %248, %249 : vector<16x1xf32>
    %251 = vector.broadcast %241 : vector<16x1xf32> to vector<16x32xf32>
    %252 = arith.subf %233, %251 : vector<16x32xf32>
    %cst_91 = arith.constant 9.99999974E-6 : f32
    %253 = vector.broadcast %cst_91 : f32 to vector<16x1xf32>
    %254 = arith.addf %250, %253 : vector<16x1xf32>
    %255 = math.rsqrt %254 : vector<16x1xf32>
    %256 = vector.broadcast %255 : vector<16x1xf32> to vector<16x32xf32>
    %257 = arith.mulf %252, %256 : vector<16x32xf32>
    %258 = vector.broadcast %235 : vector<1x32xf32> to vector<16x32xf32>
    %259 = arith.mulf %257, %258 : vector<16x32xf32>
    %260 = vector.broadcast %237 : vector<1x32xf32> to vector<16x32xf32>
    %261 = arith.addf %259, %260 : vector<16x32xf32>
    %c0_92 = arith.constant 0 : index
    %c0_93 = arith.constant 0 : index
    %c0_94 = arith.constant 0 : index
    %262 = vector.load %arg17[%c0_92, %c0_93, %c0_94] : memref<1x32x64xbf16, #tpu.memory_space<vmem>>, vector<1x32x64xbf16>
    %263 = vector.shape_cast %262 : vector<1x32x64xbf16> to vector<32x64xbf16>
    %c0_95 = arith.constant 0 : index
    %c0_96 = arith.constant 0 : index
    %c0_97 = arith.constant 0 : index
    %264 = vector.load %arg18[%c0_95, %c0_96, %c0_97] : memref<1x1x64xf32, #tpu.memory_space<vmem>>, vector<1x1x64xf32>
    %265 = vector.shape_cast %264 : vector<1x1x64xf32> to vector<1x64xf32>
    %c0_98 = arith.constant 0 : index
    %c0_99 = arith.constant 0 : index
    %c0_100 = arith.constant 0 : index
    %266 = vector.load %arg19[%c0_98, %c0_99, %c0_100] : memref<1x64x32xbf16, #tpu.memory_space<vmem>>, vector<1x64x32xbf16>
    %267 = vector.shape_cast %266 : vector<1x64x32xbf16> to vector<64x32xbf16>
    %c0_101 = arith.constant 0 : index
    %c0_102 = arith.constant 0 : index
    %c0_103 = arith.constant 0 : index
    %268 = vector.load %arg20[%c0_101, %c0_102, %c0_103] : memref<1x1x32xf32, #tpu.memory_space<vmem>>, vector<1x1x32xf32>
    %269 = vector.shape_cast %268 : vector<1x1x32xf32> to vector<1x32xf32>
    %270 = arith.truncf %261 : vector<16x32xf32> to vector<16x32xbf16>
    %cst_104 = arith.constant dense<0.000000e+00> : vector<16x64xf32>
    %271 = tpu.matmul %270, %263, %cst_104 {dimension_numbers = #tpu.dot_dimension_numbers<[1], [0], [0], [1], [0, 0, 1, 1], [], []>} : vector<16x32xbf16>, vector<32x64xbf16>, vector<16x64xf32> -> vector<16x64xf32>
    %272 = vector.broadcast %265 : vector<1x64xf32> to vector<16x64xf32>
    %273 = arith.addf %271, %272 : vector<16x64xf32>
    %cst_105 = arith.constant 0.000000e+00 : f32
    %274 = vector.broadcast %cst_105 : f32 to vector<16x64xf32>
    %275 = arith.maximumf %273, %274 : vector<16x64xf32>
    %276 = arith.truncf %275 : vector<16x64xf32> to vector<16x64xbf16>
    %cst_106 = arith.constant dense<0.000000e+00> : vector<16x32xf32>
    %277 = tpu.matmul %276, %267, %cst_106 {dimension_numbers = #tpu.dot_dimension_numbers<[1], [0], [0], [1], [0, 0, 1, 1], [], []>} : vector<16x64xbf16>, vector<64x32xbf16>, vector<16x32xf32> -> vector<16x32xf32>
    %278 = arith.addf %261, %277 : vector<16x32xf32>
    %279 = vector.broadcast %269 : vector<1x32xf32> to vector<16x32xf32>
    %280 = arith.addf %278, %279 : vector<16x32xf32>
    %c0_107 = arith.constant 0 : index
    %c0_108 = arith.constant 0 : index
    %c0_109 = arith.constant 0 : index
    %281 = vector.load %arg21[%c0_107, %c0_108, %c0_109] : memref<1x1x32xf32, #tpu.memory_space<vmem>>, vector<1x1x32xf32>
    %282 = vector.shape_cast %281 : vector<1x1x32xf32> to vector<1x32xf32>
    %c0_110 = arith.constant 0 : index
    %c0_111 = arith.constant 0 : index
    %c0_112 = arith.constant 0 : index
    %283 = vector.load %arg22[%c0_110, %c0_111, %c0_112] : memref<1x1x32xf32, #tpu.memory_space<vmem>>, vector<1x1x32xf32>
    %284 = vector.shape_cast %283 : vector<1x1x32xf32> to vector<1x32xf32>
    %cst_113 = arith.constant dense<0.000000e+00> : vector<16xf32>
    %285 = vector.multi_reduction <add>, %280, %cst_113 [1] : vector<16x32xf32> to vector<16xf32>
    %286 = vector.shape_cast %285 : vector<16xf32> to vector<16x1xf32>
    %cst_114 = arith.constant 3.200000e+01 : f32
    %287 = vector.broadcast %cst_114 : f32 to vector<16x1xf32>
    %288 = arith.divf %286, %287 : vector<16x1xf32>
    %289 = vector.broadcast %288 : vector<16x1xf32> to vector<16x32xf32>
    %290 = arith.subf %280, %289 : vector<16x32xf32>
    %291 = vector.broadcast %288 : vector<16x1xf32> to vector<16x32xf32>
    %292 = arith.subf %280, %291 : vector<16x32xf32>
    %293 = arith.mulf %290, %292 : vector<16x32xf32>
    %cst_115 = arith.constant dense<0.000000e+00> : vector<16xf32>
    %294 = vector.multi_reduction <add>, %293, %cst_115 [1] : vector<16x32xf32> to vector<16xf32>
    %295 = vector.shape_cast %294 : vector<16xf32> to vector<16x1xf32>
    %cst_116 = arith.constant 3.200000e+01 : f32
    %296 = vector.broadcast %cst_116 : f32 to vector<16x1xf32>
    %297 = arith.divf %295, %296 : vector<16x1xf32>
    %298 = vector.broadcast %288 : vector<16x1xf32> to vector<16x32xf32>
    %299 = arith.subf %280, %298 : vector<16x32xf32>
    %cst_117 = arith.constant 9.99999974E-6 : f32
    %300 = vector.broadcast %cst_117 : f32 to vector<16x1xf32>
    %301 = arith.addf %297, %300 : vector<16x1xf32>
    %302 = math.rsqrt %301 : vector<16x1xf32>
    %303 = vector.broadcast %302 : vector<16x1xf32> to vector<16x32xf32>
    %304 = arith.mulf %299, %303 : vector<16x32xf32>
    %305 = vector.broadcast %282 : vector<1x32xf32> to vector<16x32xf32>
    %306 = arith.mulf %304, %305 : vector<16x32xf32>
    %307 = vector.broadcast %284 : vector<1x32xf32> to vector<16x32xf32>
    %308 = arith.addf %306, %307 : vector<16x32xf32>
    %c0_118 = arith.constant 0 : index
    %c0_119 = arith.constant 0 : index
    %309 = vector.load %arg28[%c0_118, %c0_119] : memref<16x32xf32, #tpu.memory_space<vmem>>, vector<16x32xf32>
    tpu.vector_store %arg28[%c0_118, %c0_119], %308 {strides = array<i32>} : memref<16x32xf32, #tpu.memory_space<vmem>>, vector<16x32xf32>,
    %c1_i32 = arith.constant 1 : i32
    %310 = arith.cmpi eq, %arg0, %c1_i32 : i32
    %311 = arith.extui %310 : i1 to i32
    %c0_i32_120 = arith.constant 0 : i32
    %312 = arith.cmpi ne, %311, %c0_i32_120 : i32
    scf.if %312 {
      %c0_121 = arith.constant 0 : index
      %c0_122 = arith.constant 0 : index
      %313 = vector.load %arg23[%c0_121, %c0_122] : memref<1x32xf32, #tpu.memory_space<vmem>>, vector<1x32xf32>
      %c0_123 = arith.constant 0 : index
      %c0_124 = arith.constant 0 : index
      %314 = vector.load %arg24[%c0_123, %c0_124] : memref<1x32xf32, #tpu.memory_space<vmem>>, vector<1x32xf32>
      %cst_125 = arith.constant dense<0.000000e+00> : vector<16xf32>
      %315 = vector.multi_reduction <add>, %308, %cst_125 [1] : vector<16x32xf32> to vector<16xf32>
      %316 = vector.shape_cast %315 : vector<16xf32> to vector<16x1xf32>
      %cst_126 = arith.constant 3.200000e+01 : f32
      %317 = vector.broadcast %cst_126 : f32 to vector<16x1xf32>
      %318 = arith.divf %316, %317 : vector<16x1xf32>
      %319 = vector.broadcast %318 : vector<16x1xf32> to vector<16x32xf32>
      %320 = arith.subf %308, %319 : vector<16x32xf32>
      %321 = vector.broadcast %318 : vector<16x1xf32> to vector<16x32xf32>
      %322 = arith.subf %308, %321 : vector<16x32xf32>
      %323 = arith.mulf %320, %322 : vector<16x32xf32>
      %cst_127 = arith.constant dense<0.000000e+00> : vector<16xf32>
      %324 = vector.multi_reduction <add>, %323, %cst_127 [1] : vector<16x32xf32> to vector<16xf32>
      %325 = vector.shape_cast %324 : vector<16xf32> to vector<16x1xf32>
      %cst_128 = arith.constant 3.200000e+01 : f32
      %326 = vector.broadcast %cst_128 : f32 to vector<16x1xf32>
      %327 = arith.divf %325, %326 : vector<16x1xf32>
      %328 = vector.broadcast %318 : vector<16x1xf32> to vector<16x32xf32>
      %329 = arith.subf %308, %328 : vector<16x32xf32>
      %cst_129 = arith.constant 9.99999974E-6 : f32
      %330 = vector.broadcast %cst_129 : f32 to vector<16x1xf32>
      %331 = arith.addf %327, %330 : vector<16x1xf32>
      %332 = math.rsqrt %331 : vector<16x1xf32>
      %333 = vector.broadcast %332 : vector<16x1xf32> to vector<16x32xf32>
      %334 = arith.mulf %329, %333 : vector<16x32xf32>
      %335 = vector.broadcast %313 : vector<1x32xf32> to vector<16x32xf32>
      %336 = arith.mulf %334, %335 : vector<16x32xf32>
      %337 = vector.broadcast %314 : vector<1x32xf32> to vector<16x32xf32>
      %338 = arith.addf %336, %337 : vector<16x32xf32>
      %339 = arith.truncf %338 : vector<16x32xf32> to vector<16x32xbf16>
      %c0_130 = arith.constant 0 : index
      %c0_131 = arith.constant 0 : index
      %340 = vector.load %arg25[%c0_130, %c0_131] : memref<32x256xbf16, #tpu.memory_space<vmem>>, vector<32x256xbf16>
      %cst_132 = arith.constant dense<0.000000e+00> : vector<16x256xf32>
      %341 = tpu.matmul %339, %340, %cst_132 {dimension_numbers = #tpu.dot_dimension_numbers<[1], [0], [0], [1], [0, 0, 1, 1], [], []>} : vector<16x32xbf16>, vector<32x256xbf16>, vector<16x256xf32> -> vector<16x256xf32>
      %c0_133 = arith.constant 0 : index
      %c0_134 = arith.constant 0 : index
      %342 = vector.load %arg26[%c0_133, %c0_134] : memref<1x256xf32, #tpu.memory_space<vmem>>, vector<1x256xf32>
      %343 = vector.broadcast %342 : vector<1x256xf32> to vector<16x256xf32>
      %344 = arith.addf %341, %343 : vector<16x256xf32>
      %c0_135 = arith.constant 0 : index
      %c0_136 = arith.constant 0 : index
      %345 = vector.load %arg27[%c0_135, %c0_136] : memref<16x256xf32, #tpu.memory_space<vmem>>, vector<16x256xf32>
      tpu.vector_store %arg27[%c0_135, %c0_136], %344 {strides = array<i32>} : memref<16x256xf32, #tpu.memory_space<vmem>>, vector<16x256xf32>,
    } else {
    }
    return
  }
  func.func @transform_0(%arg0: i32) -> (i32, i32) {
    %c0_i32 = arith.constant 0 : i32
    %c0_i32_0 = arith.constant 0 : i32
    %c0_i32_1 = arith.constant 0 : i32
    return %c0_i32, %c0_i32_0 : i32, i32
  }
  func.func @transform_1(%arg0: i32) -> (i32, i32) {
    %c0_i32 = arith.constant 0 : i32
    %c0_i32_0 = arith.constant 0 : i32
    %c0_i32_1 = arith.constant 0 : i32
    return %c0_i32, %c0_i32_0 : i32, i32
  }
  func.func @transform_2(%arg0: i32) -> (i32, i32, i32) {
    %c0_i32 = arith.constant 0 : i32
    %c0_i32_0 = arith.constant 0 : i32
    %c0_i32_1 = arith.constant 0 : i32
    %c0_i32_2 = arith.constant 0 : i32
    return %c0_i32, %c0_i32_0, %c0_i32_1 : i32, i32, i32
  }
  func.func @transform_3(%arg0: i32) -> (i32, i32, i32) {
    %c0_i32 = arith.constant 0 : i32
    %c0_i32_0 = arith.constant 0 : i32
    %c0_i32_1 = arith.constant 0 : i32
    %c0_i32_2 = arith.constant 0 : i32
    return %c0_i32, %c0_i32_0, %c0_i32_1 : i32, i32, i32
  }
  func.func @transform_4(%arg0: i32) -> (i32, i32, i32) {
    %c0_i32 = arith.constant 0 : i32
    %c0_i32_0 = arith.constant 0 : i32
    %c0_i32_1 = arith.constant 0 : i32
    return %arg0, %c0_i32, %c0_i32_0 : i32, i32, i32
  }
  func.func @transform_5(%arg0: i32) -> (i32, i32, i32) {
    %c0_i32 = arith.constant 0 : i32
    %c0_i32_0 = arith.constant 0 : i32
    %c0_i32_1 = arith.constant 0 : i32
    return %arg0, %c0_i32, %c0_i32_0 : i32, i32, i32
  }
  func.func @transform_6(%arg0: i32) -> (i32, i32, i32) {
    %c0_i32 = arith.constant 0 : i32
    %c0_i32_0 = arith.constant 0 : i32
    %c0_i32_1 = arith.constant 0 : i32
    return %arg0, %c0_i32, %c0_i32_0 : i32, i32, i32
  }
  func.func @transform_7(%arg0: i32) -> (i32, i32, i32) {
    %c0_i32 = arith.constant 0 : i32
    %c0_i32_0 = arith.constant 0 : i32
    %c0_i32_1 = arith.constant 0 : i32
    return %arg0, %c0_i32, %c0_i32_0 : i32, i32, i32
  }
  func.func @transform_8(%arg0: i32) -> (i32, i32, i32) {
    %c0_i32 = arith.constant 0 : i32
    %c0_i32_0 = arith.constant 0 : i32
    %c0_i32_1 = arith.constant 0 : i32
    return %arg0, %c0_i32, %c0_i32_0 : i32, i32, i32
  }
  func.func @transform_9(%arg0: i32) -> (i32, i32, i32) {
    %c0_i32 = arith.constant 0 : i32
    %c0_i32_0 = arith.constant 0 : i32
    %c0_i32_1 = arith.constant 0 : i32
    return %arg0, %c0_i32, %c0_i32_0 : i32, i32, i32
  }
  func.func @transform_10(%arg0: i32) -> (i32, i32, i32) {
    %c0_i32 = arith.constant 0 : i32
    %c0_i32_0 = arith.constant 0 : i32
    %c0_i32_1 = arith.constant 0 : i32
    return %arg0, %c0_i32, %c0_i32_0 : i32, i32, i32
  }
  func.func @transform_11(%arg0: i32) -> (i32, i32, i32) {
    %c0_i32 = arith.constant 0 : i32
    %c0_i32_0 = arith.constant 0 : i32
    %c0_i32_1 = arith.constant 0 : i32
    return %arg0, %c0_i32, %c0_i32_0 : i32, i32, i32
  }
  func.func @transform_12(%arg0: i32) -> (i32, i32, i32) {
    %c0_i32 = arith.constant 0 : i32
    %c0_i32_0 = arith.constant 0 : i32
    %c0_i32_1 = arith.constant 0 : i32
    return %arg0, %c0_i32, %c0_i32_0 : i32, i32, i32
  }
  func.func @transform_13(%arg0: i32) -> (i32, i32, i32) {
    %c0_i32 = arith.constant 0 : i32
    %c0_i32_0 = arith.constant 0 : i32
    %c0_i32_1 = arith.constant 0 : i32
    return %arg0, %c0_i32, %c0_i32_0 : i32, i32, i32
  }
  func.func @transform_14(%arg0: i32) -> (i32, i32, i32) {
    %c0_i32 = arith.constant 0 : i32
    %c0_i32_0 = arith.constant 0 : i32
    %c0_i32_1 = arith.constant 0 : i32
    return %arg0, %c0_i32, %c0_i32_0 : i32, i32, i32
  }
  func.func @transform_15(%arg0: i32) -> (i32, i32, i32) {
    %c0_i32 = arith.constant 0 : i32
    %c0_i32_0 = arith.constant 0 : i32
    %c0_i32_1 = arith.constant 0 : i32
    return %arg0, %c0_i32, %c0_i32_0 : i32, i32, i32
  }
  func.func @transform_16(%arg0: i32) -> (i32, i32, i32) {
    %c0_i32 = arith.constant 0 : i32
    %c0_i32_0 = arith.constant 0 : i32
    %c0_i32_1 = arith.constant 0 : i32
    return %arg0, %c0_i32, %c0_i32_0 : i32, i32, i32
  }
  func.func @transform_17(%arg0: i32) -> (i32, i32, i32) {
    %c0_i32 = arith.constant 0 : i32
    %c0_i32_0 = arith.constant 0 : i32
    %c0_i32_1 = arith.constant 0 : i32
    return %arg0, %c0_i32, %c0_i32_0 : i32, i32, i32
  }
  func.func @transform_18(%arg0: i32) -> (i32, i32, i32) {
    %c0_i32 = arith.constant 0 : i32
    %c0_i32_0 = arith.constant 0 : i32
    %c0_i32_1 = arith.constant 0 : i32
    return %arg0, %c0_i32, %c0_i32_0 : i32, i32, i32
  }
  func.func @transform_19(%arg0: i32) -> (i32, i32, i32) {
    %c0_i32 = arith.constant 0 : i32
    %c0_i32_0 = arith.constant 0 : i32
    %c0_i32_1 = arith.constant 0 : i32
    return %arg0, %c0_i32, %c0_i32_0 : i32, i32, i32
  }
  func.func @transform_20(%arg0: i32) -> (i32, i32, i32) {
    %c0_i32 = arith.constant 0 : i32
    %c0_i32_0 = arith.constant 0 : i32
    %c0_i32_1 = arith.constant 0 : i32
    return %arg0, %c0_i32, %c0_i32_0 : i32, i32, i32
  }
  func.func @transform_21(%arg0: i32) -> (i32, i32, i32) {
    %c0_i32 = arith.constant 0 : i32
    %c0_i32_0 = arith.constant 0 : i32
    %c0_i32_1 = arith.constant 0 : i32
    return %arg0, %c0_i32, %c0_i32_0 : i32, i32, i32
  }
  func.func @transform_22(%arg0: i32) -> (i32, i32) {
    %c0_i32 = arith.constant 0 : i32
    %c0_i32_0 = arith.constant 0 : i32
    %c0_i32_1 = arith.constant 0 : i32
    return %c0_i32, %c0_i32_0 : i32, i32
  }
  func.func @transform_23(%arg0: i32) -> (i32, i32) {
    %c0_i32 = arith.constant 0 : i32
    %c0_i32_0 = arith.constant 0 : i32
    %c0_i32_1 = arith.constant 0 : i32
    return %c0_i32, %c0_i32_0 : i32, i32
  }
  func.func @transform_24(%arg0: i32) -> (i32, i32) {
    %c0_i32 = arith.constant 0 : i32
    %c0_i32_0 = arith.constant 0 : i32
    %c0_i32_1 = arith.constant 0 : i32
    return %c0_i32, %c0_i32_0 : i32, i32
  }
  func.func @transform_25(%arg0: i32) -> (i32, i32) {
    %c0_i32 = arith.constant 0 : i32
    %c0_i32_0 = arith.constant 0 : i32
    %c0_i32_1 = arith.constant 0 : i32
    return %c0_i32, %c0_i32_0 : i32, i32
  }
  func.func @transform_26(%arg0: i32) -> (i32, i32) {
    %c0_i32 = arith.constant 0 : i32
    %c0_i32_0 = arith.constant 0 : i32
    %c0_i32_1 = arith.constant 0 : i32
    return %c0_i32, %c0_i32_0 : i32, i32
  }
}

</mosaic_0001>

<llo_original>
// kernel: _lambda_.2
$region0: #{_lambda_.2}
  #allocation0 [shape = 'u32[]', space=smem, size = 0x4, offset = 0x4, fixed_abs, tag = 'smem constant byte address 0x4 - core index']
  #allocation1 [shape = 'u32[144,128]{1,0:T(1,128)}', space=vmem, size = 0x12000, scoped, tag = 'internal scratch']
  #allocation2 [shape = 'f32[16,32]{1,0:T(8,128)}', space=vmem, size = 0x2000, scoped, tag = 'scratch operand']
  %s0 = inlined_call_operand.vmem [shape: f32[16,32], index: 0, kind: input, shape index: {}]
  %s1 = inlined_call_operand.vmem [shape: f32[2,8,8], index: 1, kind: input, shape index: {}]
  %s2 = inlined_call_operand.vmem [shape: bf16[2,32,96], index: 2, kind: input, shape index: {}]
  %s3 = inlined_call_operand.vmem [shape: f32[2,1,96], index: 3, kind: input, shape index: {}]
  %s4 = inlined_call_operand.vmem [shape: bf16[2,32,32], index: 4, kind: input, shape index: {}]
  %s5 = inlined_call_operand.vmem [shape: f32[2,1,32], index: 5, kind: input, shape index: {}]
  %s6 = inlined_call_operand.vmem [shape: f32[2,1,32], index: 6, kind: input, shape index: {}]
  %s7 = inlined_call_operand.vmem [shape: f32[2,1,32], index: 7, kind: input, shape index: {}]
  %s8 = inlined_call_operand.vmem [shape: bf16[2,32,64], index: 8, kind: input, shape index: {}]
  %s9 = inlined_call_operand.vmem [shape: f32[2,1,64], index: 9, kind: input, shape index: {}]
  %s10 = inlined_call_operand.vmem [shape: bf16[2,64,32], index: 10, kind: input, shape index: {}]
  %s11 = inlined_call_operand.vmem [shape: f32[2,1,32], index: 11, kind: input, shape index: {}]
  %s12 = inlined_call_operand.vmem [shape: f32[2,1,32], index: 12, kind: input, shape index: {}]
  %s13 = inlined_call_operand.vmem [shape: f32[2,1,32], index: 13, kind: input, shape index: {}]
  %s14 = inlined_call_operand.vmem [shape: f32[1,32], index: 14, kind: input, shape index: {}]
  %s15 = inlined_call_operand.vmem [shape: f32[1,32], index: 15, kind: input, shape index: {}]
  %s16 = inlined_call_operand.vmem [shape: f32[16,32], index: 16, kind: output, shape index: {}]
  %s17 = sld [smem:[#allocation0]]
  $region105: #{_lambda_.2} parent=0
    _
  %s19 = ssub.s32 1, %s17
  %s20 = scalar_select 0, %s19, %s17
  loop: start=0, step=1, limit=4
  $region2: #{_lambda_.2} parent=0 // loop_pre_header
    _
  $region3: #{_lambda_.2} parent=0 // loop_header
    %s22 = sphi 0, %s26
    %p23 = scmp.ge.s32.totalorder %s22, 4
    %s30 = sphi 0, %s30
    %s32 = sphi 0, %s30
    %s33 = sphi 0, %s32
    %s47 = sphi 0, %s33
    %s51 = sphi 0, %s51
    %s53 = sphi 0, %s51
    %s54 = sphi 0, %s53
    %s68 = sphi 0, %s54
    %s74 = sphi 0, %s76
    %s77 = sphi 0, %s74
    %s78 = sphi 0, %s77
    %s94 = sphi 0, %s78
    %s100 = sphi 0, %s102
    %s103 = sphi 0, %s100
    %s104 = sphi 0, %s103
    %s120 = sphi 0, %s104
    %s126 = sphi 0, %s128
    %s129 = sphi 0, %s126
    %s130 = sphi 0, %s129
    %s146 = sphi 0, %s130
    %s152 = sphi 0, %s154
    %s155 = sphi 0, %s152
    %s156 = sphi 0, %s155
    %s172 = sphi 0, %s156
    %s178 = sphi 0, %s180
    %s181 = sphi 0, %s178
    %s182 = sphi 0, %s181
    %s198 = sphi 0, %s182
    %s204 = sphi 0, %s206
    %s207 = sphi 0, %s204
    %s208 = sphi 0, %s207
    %s224 = sphi 0, %s208
    %s230 = sphi 0, %s232
    %s233 = sphi 0, %s230
    %s234 = sphi 0, %s233
    %s250 = sphi 0, %s234
    %s256 = sphi 0, %s258
    %s259 = sphi 0, %s256
    %s260 = sphi 0, %s259
    %s276 = sphi 0, %s260
    %s282 = sphi 0, %s284
    %s285 = sphi 0, %s282
    %s286 = sphi 0, %s285
    %s302 = sphi 0, %s286
    %s308 = sphi 0, %s310
    %s311 = sphi 0, %s308
    %s312 = sphi 0, %s311
    %s328 = sphi 0, %s312
    %s334 = sphi 0, %s336
    %s337 = sphi 0, %s334
    %s338 = sphi 0, %s337
    %s354 = sphi 0, %s338
    %s360 = sphi 0, %s362
    %s363 = sphi 0, %s360
    %s364 = sphi 0, %s363
    %s380 = sphi 0, %s364
    %s384 = sphi 0, %s384
    %s386 = sphi 0, %s384
    %s387 = sphi 0, %s386
    %s401 = sphi 0, %s387
    %s405 = sphi 0, %s405
    %s407 = sphi 0, %s405
    %s408 = sphi 0, %s407
    %s422 = sphi 0, %s408
    %s426 = sphi 0, %s426
    %s428 = sphi 0, %s426
    %s429 = sphi 0, %s428
    %s443 = sphi 0, %s429
  $region4: #{_lambda_.2} parent=0 // loop_header_branch
    %25 = sbr.rel (%p23) target = $region8
  $region5: #{_lambda_.2} parent=0 // loop_body
    %s27 = ssub.s32 %s22, 1
    %s28 = ssub.s32 %s22, 2
    %s29 = sadd.s32 %s22, 1
    %s31 = sadd.s32 %s30, 1
    %p34 = scmp.eq.s32.totalorder %s22, 1
    %p35 = scmp.ne.s32.totalorder %s30, %s32
    %p36 = scmp.eq.s32.totalorder %s22, 0
    %p37 = por %p35, %p36
    %p38 = scmp.ne.s32.totalorder %s30, %s32
    %p39 = scmp.eq.s32.totalorder %s27, 1
    %p40 = por %p38, %p39
    %p41 = scmp.ne.s32.totalorder %s32, %s33
    %p42 = scmp.eq.s32.totalorder %s27, 0
    %p43 = por %p41, %p42
    %p44 = scmp.ne.s32.totalorder %s32, %s33
    %p45 = scmp.eq.s32.totalorder %s28, 1
    %p46 = por %p44, %p45
    %p48 = scmp.ne.s32.totalorder %s33, %s47
    %p49 = scmp.eq.s32.totalorder %s28, 0
    %p50 = por %p48, %p49
    %s52 = sadd.s32 %s51, 1
    %p55 = scmp.eq.s32.totalorder %s22, 1
    %p56 = scmp.ne.s32.totalorder %s51, %s53
    %p57 = scmp.eq.s32.totalorder %s22, 0
    %p58 = por %p56, %p57
    %p59 = scmp.ne.s32.totalorder %s51, %s53
    %p60 = scmp.eq.s32.totalorder %s27, 1
    %p61 = por %p59, %p60
    %p62 = scmp.ne.s32.totalorder %s53, %s54
    %p63 = scmp.eq.s32.totalorder %s27, 0
    %p64 = por %p62, %p63
    %p65 = scmp.ne.s32.totalorder %s53, %s54
    %p66 = scmp.eq.s32.totalorder %s28, 1
    %p67 = por %p65, %p66
    %p69 = scmp.ne.s32.totalorder %s54, %s68
    %p70 = scmp.eq.s32.totalorder %s28, 0
    %p71 = por %p69, %p70
    %s72 = ssub.s32 %s22, %s29
    %p73 = scmp.eq.s32.totalorder %s72, 0
    %s75 = sadd.s32 %s74, 1
    %s76 = scalar_select %p73, %s74, %s75
    %p79 = pneg %p73
    %p80 = scmp.eq.s32.totalorder %s22, 1
    %p81 = por %p79, %p80
    %p82 = scmp.ne.s32.totalorder %s74, %s77
    %p83 = scmp.eq.s32.totalorder %s22, 0
    %p84 = por %p82, %p83
    %p85 = scmp.ne.s32.totalorder %s74, %s77
    %p86 = scmp.eq.s32.totalorder %s27, 1
    %p87 = por %p85, %p86
    %p88 = scmp.ne.s32.totalorder %s77, %s78
    %p89 = scmp.eq.s32.totalorder %s27, 0
    %p90 = por %p88, %p89
    %p91 = scmp.ne.s32.totalorder %s77, %s78
    %p92 = scmp.eq.s32.totalorder %s28, 1
    %p93 = por %p91, %p92
    %p95 = scmp.ne.s32.totalorder %s78, %s94
    %p96 = scmp.eq.s32.totalorder %s28, 0
    %p97 = por %p95, %p96
    %s98 = ssub.s32 %s22, %s29
    %p99 = scmp.eq.s32.totalorder %s98, 0
    %s101 = sadd.s32 %s100, 1
    %s102 = scalar_select %p99, %s100, %s101
    %p105 = pneg %p99
    %p106 = scmp.eq.s32.totalorder %s22, 1
    %p107 = por %p105, %p106
    %p108 = scmp.ne.s32.totalorder %s100, %s103
    %p109 = scmp.eq.s32.totalorder %s22, 0
    %p110 = por %p108, %p109
    %p111 = scmp.ne.s32.totalorder %s100, %s103
    %p112 = scmp.eq.s32.totalorder %s27, 1
    %p113 = por %p111, %p112
    %p114 = scmp.ne.s32.totalorder %s103, %s104
    %p115 = scmp.eq.s32.totalorder %s27, 0
    %p116 = por %p114, %p115
    %p117 = scmp.ne.s32.totalorder %s103, %s104
    %p118 = scmp.eq.s32.totalorder %s28, 1
    %p119 = por %p117, %p118
    %p121 = scmp.ne.s32.totalorder %s104, %s120
    %p122 = scmp.eq.s32.totalorder %s28, 0
    %p123 = por %p121, %p122
    %s124 = ssub.s32 %s22, %s29
    %p125 = scmp.eq.s32.totalorder %s124, 0
    %s127 = sadd.s32 %s126, 1
    %s128 = scalar_select %p125, %s126, %s127
    %p131 = pneg %p125
    %p132 = scmp.eq.s32.totalorder %s22, 1
    %p133 = por %p131, %p132
    %p134 = scmp.ne.s32.totalorder %s126, %s129
    %p135 = scmp.eq.s32.totalorder %s22, 0
    %p136 = por %p134, %p135
    %p137 = scmp.ne.s32.totalorder %s126, %s129
    %p138 = scmp.eq.s32.totalorder %s27, 1
    %p139 = por %p137, %p138
    %p140 = scmp.ne.s32.totalorder %s129, %s130
    %p141 = scmp.eq.s32.totalorder %s27, 0
    %p142 = por %p140, %p141
    %p143 = scmp.ne.s32.totalorder %s129, %s130
    %p144 = scmp.eq.s32.totalorder %s28, 1
    %p145 = por %p143, %p144
    %p147 = scmp.ne.s32.totalorder %s130, %s146
    %p148 = scmp.eq.s32.totalorder %s28, 0
    %p149 = por %p147, %p148
    %s150 = ssub.s32 %s22, %s29
    %p151 = scmp.eq.s32.totalorder %s150, 0
    %s153 = sadd.s32 %s152, 1
    %s154 = scalar_select %p151, %s152, %s153
    %p157 = pneg %p151
    %p158 = scmp.eq.s32.totalorder %s22, 1
    %p159 = por %p157, %p158
    %p160 = scmp.ne.s32.totalorder %s152, %s155
    %p161 = scmp.eq.s32.totalorder %s22, 0
    %p162 = por %p160, %p161
    %p163 = scmp.ne.s32.totalorder %s152, %s155
    %p164 = scmp.eq.s32.totalorder %s27, 1
    %p165 = por %p163, %p164
    %p166 = scmp.ne.s32.totalorder %s155, %s156
    %p167 = scmp.eq.s32.totalorder %s27, 0
    %p168 = por %p166, %p167
    %p169 = scmp.ne.s32.totalorder %s155, %s156
    %p170 = scmp.eq.s32.totalorder %s28, 1
    %p171 = por %p169, %p170
    %p173 = scmp.ne.s32.totalorder %s156, %s172
    %p174 = scmp.eq.s32.totalorder %s28, 0
    %p175 = por %p173, %p174
    %s176 = ssub.s32 %s22, %s29
    %p177 = scmp.eq.s32.totalorder %s176, 0
    %s179 = sadd.s32 %s178, 1
    %s180 = scalar_select %p177, %s178, %s179
    %p183 = pneg %p177
    %p184 = scmp.eq.s32.totalorder %s22, 1
    %p185 = por %p183, %p184
    %p186 = scmp.ne.s32.totalorder %s178, %s181
    %p187 = scmp.eq.s32.totalorder %s22, 0
    %p188 = por %p186, %p187
    %p189 = scmp.ne.s32.totalorder %s178, %s181
    %p190 = scmp.eq.s32.totalorder %s27, 1
    %p191 = por %p189, %p190
    %p192 = scmp.ne.s32.totalorder %s181, %s182
    %p193 = scmp.eq.s32.totalorder %s27, 0
    %p194 = por %p192, %p193
    %p195 = scmp.ne.s32.totalorder %s181, %s182
    %p196 = scmp.eq.s32.totalorder %s28, 1
    %p197 = por %p195, %p196
    %p199 = scmp.ne.s32.totalorder %s182, %s198
    %p200 = scmp.eq.s32.totalorder %s28, 0
    %p201 = por %p199, %p200
    %s202 = ssub.s32 %s22, %s29
    %p203 = scmp.eq.s32.totalorder %s202, 0
    %s205 = sadd.s32 %s204, 1
    %s206 = scalar_select %p203, %s204, %s205
    %p209 = pneg %p203
    %p210 = scmp.eq.s32.totalorder %s22, 1
    %p211 = por %p209, %p210
    %p212 = scmp.ne.s32.totalorder %s204, %s207
    %p213 = scmp.eq.s32.totalorder %s22, 0
    %p214 = por %p212, %p213
    %p215 = scmp.ne.s32.totalorder %s204, %s207
    %p216 = scmp.eq.s32.totalorder %s27, 1
    %p217 = por %p215, %p216
    %p218 = scmp.ne.s32.totalorder %s207, %s208
    %p219 = scmp.eq.s32.totalorder %s27, 0
    %p220 = por %p218, %p219
    %p221 = scmp.ne.s32.totalorder %s207, %s208
    %p222 = scmp.eq.s32.totalorder %s28, 1
    %p223 = por %p221, %p222
    %p225 = scmp.ne.s32.totalorder %s208, %s224
    %p226 = scmp.eq.s32.totalorder %s28, 0
    %p227 = por %p225, %p226
    %s228 = ssub.s32 %s22, %s29
    %p229 = scmp.eq.s32.totalorder %s228, 0
    %s231 = sadd.s32 %s230, 1
    %s232 = scalar_select %p229, %s230, %s231
    %p235 = pneg %p229
    %p236 = scmp.eq.s32.totalorder %s22, 1
    %p237 = por %p235, %p236
    %p238 = scmp.ne.s32.totalorder %s230, %s233
    %p239 = scmp.eq.s32.totalorder %s22, 0
    %p240 = por %p238, %p239
    %p241 = scmp.ne.s32.totalorder %s230, %s233
    %p242 = scmp.eq.s32.totalorder %s27, 1
    %p243 = por %p241, %p242
    %p244 = scmp.ne.s32.totalorder %s233, %s234
    %p245 = scmp.eq.s32.totalorder %s27, 0
    %p246 = por %p244, %p245
    %p247 = scmp.ne.s32.totalorder %s233, %s234
    %p248 = scmp.eq.s32.totalorder %s28, 1
    %p249 = por %p247, %p248
    %p251 = scmp.ne.s32.totalorder %s234, %s250
    %p252 = scmp.eq.s32.totalorder %s28, 0
    %p253 = por %p251, %p252
    %s254 = ssub.s32 %s22, %s29
    %p255 = scmp.eq.s32.totalorder %s254, 0
    %s257 = sadd.s32 %s256, 1
    %s258 = scalar_select %p255, %s256, %s257
    %p261 = pneg %p255
    %p262 = scmp.eq.s32.totalorder %s22, 1
    %p263 = por %p261, %p262
    %p264 = scmp.ne.s32.totalorder %s256, %s259
    %p265 = scmp.eq.s32.totalorder %s22, 0
    %p266 = por %p264, %p265
    %p267 = scmp.ne.s32.totalorder %s256, %s259
    %p268 = scmp.eq.s32.totalorder %s27, 1
    %p269 = por %p267, %p268
    %p270 = scmp.ne.s32.totalorder %s259, %s260
    %p271 = scmp.eq.s32.totalorder %s27, 0
    %p272 = por %p270, %p271
    %p273 = scmp.ne.s32.totalorder %s259, %s260
    %p274 = scmp.eq.s32.totalorder %s28, 1
    %p275 = por %p273, %p274
    %p277 = scmp.ne.s32.totalorder %s260, %s276
    %p278 = scmp.eq.s32.totalorder %s28, 0
    %p279 = por %p277, %p278
    %s280 = ssub.s32 %s22, %s29
    %p281 = scmp.eq.s32.totalorder %s280, 0
    %s283 = sadd.s32 %s282, 1
    %s284 = scalar_select %p281, %s282, %s283
    %p287 = pneg %p281
    %p288 = scmp.eq.s32.totalorder %s22, 1
    %p289 = por %p287, %p288
    %p290 = scmp.ne.s32.totalorder %s282, %s285
    %p291 = scmp.eq.s32.totalorder %s22, 0
    %p292 = por %p290, %p291
    %p293 = scmp.ne.s32.totalorder %s282, %s285
    %p294 = scmp.eq.s32.totalorder %s27, 1
    %p295 = por %p293, %p294
    %p296 = scmp.ne.s32.totalorder %s285, %s286
    %p297 = scmp.eq.s32.totalorder %s27, 0
    %p298 = por %p296, %p297
    %p299 = scmp.ne.s32.totalorder %s285, %s286
    %p300 = scmp.eq.s32.totalorder %s28, 1
    %p301 = por %p299, %p300
    %p303 = scmp.ne.s32.totalorder %s286, %s302
    %p304 = scmp.eq.s32.totalorder %s28, 0
    %p305 = por %p303, %p304
    %s306 = ssub.s32 %s22, %s29
    %p307 = scmp.eq.s32.totalorder %s306, 0
    %s309 = sadd.s32 %s308, 1
    %s310 = scalar_select %p307, %s308, %s309
    %p313 = pneg %p307
    %p314 = scmp.eq.s32.totalorder %s22, 1
    %p315 = por %p313, %p314
    %p316 = scmp.ne.s32.totalorder %s308, %s311
    %p317 = scmp.eq.s32.totalorder %s22, 0
    %p318 = por %p316, %p317
    %p319 = scmp.ne.s32.totalorder %s308, %s311
    %p320 = scmp.eq.s32.totalorder %s27, 1
    %p321 = por %p319, %p320
    %p322 = scmp.ne.s32.totalorder %s311, %s312
    %p323 = scmp.eq.s32.totalorder %s27, 0
    %p324 = por %p322, %p323
    %p325 = scmp.ne.s32.totalorder %s311, %s312
    %p326 = scmp.eq.s32.totalorder %s28, 1
    %p327 = por %p325, %p326
    %p329 = scmp.ne.s32.totalorder %s312, %s328
    %p330 = scmp.eq.s32.totalorder %s28, 0
    %p331 = por %p329, %p330
    %s332 = ssub.s32 %s22, %s29
    %p333 = scmp.eq.s32.totalorder %s332, 0
    %s335 = sadd.s32 %s334, 1
    %s336 = scalar_select %p333, %s334, %s335
    %p339 = pneg %p333
    %p340 = scmp.eq.s32.totalorder %s22, 1
    %p341 = por %p339, %p340
    %p342 = scmp.ne.s32.totalorder %s334, %s337
    %p343 = scmp.eq.s32.totalorder %s22, 0
    %p344 = por %p342, %p343
    %p345 = scmp.ne.s32.totalorder %s334, %s337
    %p346 = scmp.eq.s32.totalorder %s27, 1
    %p347 = por %p345, %p346
    %p348 = scmp.ne.s32.totalorder %s337, %s338
    %p349 = scmp.eq.s32.totalorder %s27, 0
    %p350 = por %p348, %p349
    %p351 = scmp.ne.s32.totalorder %s337, %s338
    %p352 = scmp.eq.s32.totalorder %s28, 1
    %p353 = por %p351, %p352
    %p355 = scmp.ne.s32.totalorder %s338, %s354
    %p356 = scmp.eq.s32.totalorder %s28, 0
    %p357 = por %p355, %p356
    %s358 = ssub.s32 %s22, %s29
    %p359 = scmp.eq.s32.totalorder %s358, 0
    %s361 = sadd.s32 %s360, 1
    %s362 = scalar_select %p359, %s360, %s361
    %p365 = pneg %p359
    %p366 = scmp.eq.s32.totalorder %s22, 1
    %p367 = por %p365, %p366
    %p368 = scmp.ne.s32.totalorder %s360, %s363
    %p369 = scmp.eq.s32.totalorder %s22, 0
    %p370 = por %p368, %p369
    %p371 = scmp.ne.s32.totalorder %s360, %s363
    %p372 = scmp.eq.s32.totalorder %s27, 1
    %p373 = por %p371, %p372
    %p374 = scmp.ne.s32.totalorder %s363, %s364
    %p375 = scmp.eq.s32.totalorder %s27, 0
    %p376 = por %p374, %p375
    %p377 = scmp.ne.s32.totalorder %s363, %s364
    %p378 = scmp.eq.s32.totalorder %s28, 1
    %p379 = por %p377, %p378
    %p381 = scmp.ne.s32.totalorder %s364, %s380
    %p382 = scmp.eq.s32.totalorder %s28, 0
    %p383 = por %p381, %p382
    %s385 = sadd.s32 %s384, 1
    %p388 = scmp.eq.s32.totalorder %s22, 1
    %p389 = scmp.ne.s32.totalorder %s384, %s386
    %p390 = scmp.eq.s32.totalorder %s22, 0
    %p391 = por %p389, %p390
    %p392 = scmp.ne.s32.totalorder %s384, %s386
    %p393 = scmp.eq.s32.totalorder %s27, 1
    %p394 = por %p392, %p393
    %p395 = scmp.ne.s32.totalorder %s386, %s387
    %p396 = scmp.eq.s32.totalorder %s27, 0
    %p397 = por %p395, %p396
    %p398 = scmp.ne.s32.totalorder %s386, %s387
    %p399 = scmp.eq.s32.totalorder %s28, 1
    %p400 = por %p398, %p399
    %p402 = scmp.ne.s32.totalorder %s387, %s401
    %p403 = scmp.eq.s32.totalorder %s28, 0
    %p404 = por %p402, %p403
    %s406 = sadd.s32 %s405, 1
    %p409 = scmp.eq.s32.totalorder %s22, 1
    %p410 = scmp.ne.s32.totalorder %s405, %s407
    %p411 = scmp.eq.s32.totalorder %s22, 0
    %p412 = por %p410, %p411
    %p413 = scmp.ne.s32.totalorder %s405, %s407
    %p414 = scmp.eq.s32.totalorder %s27, 1
    %p415 = por %p413, %p414
    %p416 = scmp.ne.s32.totalorder %s407, %s408
    %p417 = scmp.eq.s32.totalorder %s27, 0
    %p418 = por %p416, %p417
    %p419 = scmp.ne.s32.totalorder %s407, %s408
    %p420 = scmp.eq.s32.totalorder %s28, 1
    %p421 = por %p419, %p420
    %p423 = scmp.ne.s32.totalorder %s408, %s422
    %p424 = scmp.eq.s32.totalorder %s28, 0
    %p425 = por %p423, %p424
    %s427 = sadd.s32 %s426, 1
    %p430 = scmp.eq.s32.totalorder %s22, 1
    %p431 = scmp.ne.s32.totalorder %s426, %s428
    %p432 = scmp.eq.s32.totalorder %s22, 0
    %p433 = por %p431, %p432
    %p434 = scmp.ne.s32.totalorder %s426, %s428
    %p435 = scmp.eq.s32.totalorder %s27, 1
    %p436 = por %p434, %p435
    %p437 = scmp.ne.s32.totalorder %s428, %s429
    %p438 = scmp.eq.s32.totalorder %s27, 0
    %p439 = por %p437, %p438
    %p440 = scmp.ne.s32.totalorder %s428, %s429
    %p441 = scmp.eq.s32.totalorder %s28, 1
    %p442 = por %p440, %p441
    %p444 = scmp.ne.s32.totalorder %s429, %s443
    %p445 = scmp.eq.s32.totalorder %s28, 0
    %p446 = por %p444, %p445
    %p447 = scmp.le.s32.totalorder 1, %s22
    %p448 = scmp.lt.s32.totalorder %s22, 3
    %p449 = pnand %p447, %p448
    %p450 = pneg %p449
    // Predicated region
    $region9: #{_lambda_.2} parent=5 // pred_check
      _
    $region10: #{_lambda_.2} parent=5 // pred_check_branch
      %452 = sbr.rel (%p449) target = $region12
    $region11: #{_lambda_.2} parent=5 // pred_region
      %s453 = ssub.s32 %s22, 1
      // Predicated region
      $region13: #{_lambda_.2} parent=11 // pred_check
        %p454 = pneg %p43
      $region14: #{_lambda_.2} parent=11 // pred_check_branch
        %456 = sbr.rel (%p454) target = $region16
      $region15: #{_lambda_.2} parent=11 // pred_region
        _
      $region16: #{_lambda_.2} parent=11 // pred_fallthru
        _
      // Predicated region
      $region17: #{_lambda_.2} parent=11 // pred_check
        %p457 = pneg %p64
      $region18: #{_lambda_.2} parent=11 // pred_check_branch
        %459 = sbr.rel (%p457) target = $region20
      $region19: #{_lambda_.2} parent=11 // pred_region
        _
      $region20: #{_lambda_.2} parent=11 // pred_fallthru
        _
      // Predicated region
      $region21: #{_lambda_.2} parent=11 // pred_check
        %p460 = pneg %p397
      $region22: #{_lambda_.2} parent=11 // pred_check_branch
        %462 = sbr.rel (%p460) target = $region24
      $region23: #{_lambda_.2} parent=11 // pred_region
        _
      $region24: #{_lambda_.2} parent=11 // pred_fallthru
        _
      // Predicated region
      $region25: #{_lambda_.2} parent=11 // pred_check
        %p463 = pneg %p418
      $region26: #{_lambda_.2} parent=11 // pred_check_branch
        %465 = sbr.rel (%p463) target = $region28
      $region27: #{_lambda_.2} parent=11 // pred_region
        _
      $region28: #{_lambda_.2} parent=11 // pred_fallthru
        _
    $region12: #{_lambda_.2} parent=5 // pred_fallthru
      _
    %p466 = scmp.lt.s32.totalorder %s22, 2
    // Predicated region
    $region29: #{_lambda_.2} parent=5 // pred_check
      %p467 = pneg %p466
    $region30: #{_lambda_.2} parent=5 // pred_check_branch
      %469 = sbr.rel (%p467) target = $region32
    $region31: #{_lambda_.2} parent=5 // pred_region
      // Predicated region
      $region33: #{_lambda_.2} parent=31 // pred_check
        %p470 = pneg %p84
      $region34: #{_lambda_.2} parent=31 // pred_check_branch
        %472 = sbr.rel (%p470) target = $region36
      $region35: #{_lambda_.2} parent=31 // pred_region
        %p473 = scmp.lt.s32.totalorder %s22, 1
        %s474 = scalar_select %p473, %s22, 1
        %s475 = smul.addr %s474, 4
        %s476 = smul.addr %s475, 4
        %s477 = scalar_lea.vmem %s2, %s476
      $region36: #{_lambda_.2} parent=31 // pred_fallthru
        _
      // Predicated region
      $region37: #{_lambda_.2} parent=31 // pred_check
        %p478 = pneg %p110
      $region38: #{_lambda_.2} parent=31 // pred_check_branch
        %480 = sbr.rel (%p478) target = $region40
      $region39: #{_lambda_.2} parent=31 // pred_region
        %p481 = scmp.lt.s32.totalorder %s22, 1
        %s482 = scalar_select %p481, %s22, 1
        %s483 = scalar_lea.vmem %s3, %s482
      $region40: #{_lambda_.2} parent=31 // pred_fallthru
        _
      // Predicated region
      $region41: #{_lambda_.2} parent=31 // pred_check
        %p484 = pneg %p136
      $region42: #{_lambda_.2} parent=31 // pred_check_branch
        %486 = sbr.rel (%p484) target = $region44
      $region43: #{_lambda_.2} parent=31 // pred_region
        %p487 = scmp.lt.s32.totalorder %s22, 1
        %s488 = scalar_select %p487, %s22, 1
        %s489 = smul.addr %s488, 4
        %s490 = smul.addr %s489, 4
        %s491 = scalar_lea.vmem %s4, %s490
      $region44: #{_lambda_.2} parent=31 // pred_fallthru
        _
      // Predicated region
      $region45: #{_lambda_.2} parent=31 // pred_check
        %p492 = pneg %p162
      $region46: #{_lambda_.2} parent=31 // pred_check_branch
        %494 = sbr.rel (%p492) target = $region48
      $region47: #{_lambda_.2} parent=31 // pred_region
        %p495 = scmp.lt.s32.totalorder %s22, 1
        %s496 = scalar_select %p495, %s22, 1
        %s497 = scalar_lea.vmem %s5, %s496
      $region48: #{_lambda_.2} parent=31 // pred_fallthru
        _
      // Predicated region
      $region49: #{_lambda_.2} parent=31 // pred_check
        %p498 = pneg %p188
      $region50: #{_lambda_.2} parent=31 // pred_check_branch
        %500 = sbr.rel (%p498) target = $region52
      $region51: #{_lambda_.2} parent=31 // pred_region
        %p501 = scmp.lt.s32.totalorder %s22, 1
        %s502 = scalar_select %p501, %s22, 1
        %s503 = scalar_lea.vmem %s6, %s502
      $region52: #{_lambda_.2} parent=31 // pred_fallthru
        _
      // Predicated region
      $region53: #{_lambda_.2} parent=31 // pred_check
        %p504 = pneg %p214
      $region54: #{_lambda_.2} parent=31 // pred_check_branch
        %506 = sbr.rel (%p504) target = $region56
      $region55: #{_lambda_.2} parent=31 // pred_region
        %p507 = scmp.lt.s32.totalorder %s22, 1
        %s508 = scalar_select %p507, %s22, 1
        %s509 = scalar_lea.vmem %s7, %s508
      $region56: #{_lambda_.2} parent=31 // pred_fallthru
        _
      // Predicated region
      $region57: #{_lambda_.2} parent=31 // pred_check
        %p510 = pneg %p240
      $region58: #{_lambda_.2} parent=31 // pred_check_branch
        %512 = sbr.rel (%p510) target = $region60
      $region59: #{_lambda_.2} parent=31 // pred_region
        %p513 = scmp.lt.s32.totalorder %s22, 1
        %s514 = scalar_select %p513, %s22, 1
        %s515 = smul.addr %s514, 4
        %s516 = smul.addr %s515, 4
        %s517 = scalar_lea.vmem %s8, %s516
      $region60: #{_lambda_.2} parent=31 // pred_fallthru
        _
      // Predicated region
      $region61: #{_lambda_.2} parent=31 // pred_check
        %p518 = pneg %p266
      $region62: #{_lambda_.2} parent=31 // pred_check_branch
        %520 = sbr.rel (%p518) target = $region64
      $region63: #{_lambda_.2} parent=31 // pred_region
        %p521 = scmp.lt.s32.totalorder %s22, 1
        %s522 = scalar_select %p521, %s22, 1
        %s523 = scalar_lea.vmem %s9, %s522
      $region64: #{_lambda_.2} parent=31 // pred_fallthru
        _
      // Predicated region
      $region65: #{_lambda_.2} parent=31 // pred_check
        %p524 = pneg %p292
      $region66: #{_lambda_.2} parent=31 // pred_check_branch
        %526 = sbr.rel (%p524) target = $region68
      $region67: #{_lambda_.2} parent=31 // pred_region
        %p527 = scmp.lt.s32.totalorder %s22, 1
        %s528 = scalar_select %p527, %s22, 1
        %s529 = smul.addr %s528, 8
        %s530 = smul.addr %s529, 4
        %s531 = scalar_lea.vmem %s10, %s530
      $region68: #{_lambda_.2} parent=31 // pred_fallthru
        _
      // Predicated region
      $region69: #{_lambda_.2} parent=31 // pred_check
        %p532 = pneg %p318
      $region70: #{_lambda_.2} parent=31 // pred_check_branch
        %534 = sbr.rel (%p532) target = $region72
      $region71: #{_lambda_.2} parent=31 // pred_region
        %p535 = scmp.lt.s32.totalorder %s22, 1
        %s536 = scalar_select %p535, %s22, 1
        %s537 = scalar_lea.vmem %s11, %s536
      $region72: #{_lambda_.2} parent=31 // pred_fallthru
        _
      // Predicated region
      $region73: #{_lambda_.2} parent=31 // pred_check
        %p538 = pneg %p344
      $region74: #{_lambda_.2} parent=31 // pred_check_branch
        %540 = sbr.rel (%p538) target = $region76
      $region75: #{_lambda_.2} parent=31 // pred_region
        %p541 = scmp.lt.s32.totalorder %s22, 1
        %s542 = scalar_select %p541, %s22, 1
        %s543 = scalar_lea.vmem %s12, %s542
      $region76: #{_lambda_.2} parent=31 // pred_fallthru
        _
      // Predicated region
      $region77: #{_lambda_.2} parent=31 // pred_check
        %p544 = pneg %p370
      $region78: #{_lambda_.2} parent=31 // pred_check_branch
        %546 = sbr.rel (%p544) target = $region80
      $region79: #{_lambda_.2} parent=31 // pred_region
        %p547 = scmp.lt.s32.totalorder %s22, 1
        %s548 = scalar_select %p547, %s22, 1
        %s549 = scalar_lea.vmem %s13, %s548
      $region80: #{_lambda_.2} parent=31 // pred_fallthru
        _
    $region32: #{_lambda_.2} parent=5 // pred_fallthru
      _
    %p550 = scmp.le.s32.totalorder 1, %s22
    %p551 = scmp.lt.s32.totalorder %s22, 3
    %p552 = pnand %p550, %p551
    %p553 = pneg %p552
    // Predicated region
    $region81: #{_lambda_.2} parent=5 // pred_check
      _
    $region82: #{_lambda_.2} parent=5 // pred_check_branch
      %555 = sbr.rel (%p552) target = $region84
    $region83: #{_lambda_.2} parent=5 // pred_region
      %s556 = ssub.s32 %s22, 1
      %p557 = pneg %p43
      %p558 = pneg %p40
      %p559 = pneg %p64
      %p560 = pneg %p61
      %p561 = scmp.lt.s32.totalorder %s27, 1
      %s562 = scalar_select %p561, %s27, 1
      %s563 = smul.addr %s562, 4
      %s564 = smul.addr %s563, 4
      %s565 = scalar_lea.vmem %s2, %s564
      %p566 = pneg %p90
      %p567 = pneg %p87
      %p568 = scmp.lt.s32.totalorder %s27, 1
      %s569 = scalar_select %p568, %s27, 1
      %s570 = scalar_lea.vmem %s3, %s569
      %p571 = pneg %p116
      %p572 = pneg %p113
      %p573 = scmp.lt.s32.totalorder %s27, 1
      %s574 = scalar_select %p573, %s27, 1
      %s575 = smul.addr %s574, 4
      %s576 = smul.addr %s575, 4
      %s577 = scalar_lea.vmem %s4, %s576
      %p578 = pneg %p142
      %p579 = pneg %p139
      %p580 = scmp.lt.s32.totalorder %s27, 1
      %s581 = scalar_select %p580, %s27, 1
      %s582 = scalar_lea.vmem %s5, %s581
      %p583 = pneg %p168
      %p584 = pneg %p165
      %p585 = scmp.lt.s32.totalorder %s27, 1
      %s586 = scalar_select %p585, %s27, 1
      %s587 = scalar_lea.vmem %s6, %s586
      %p588 = pneg %p194
      %p589 = pneg %p191
      %p590 = scmp.lt.s32.totalorder %s27, 1
      %s591 = scalar_select %p590, %s27, 1
      %s592 = scalar_lea.vmem %s7, %s591
      %p593 = pneg %p220
      %p594 = pneg %p217
      %p595 = scmp.lt.s32.totalorder %s27, 1
      %s596 = scalar_select %p595, %s27, 1
      %s597 = smul.addr %s596, 4
      %s598 = smul.addr %s597, 4
      %s599 = scalar_lea.vmem %s8, %s598
      %p600 = pneg %p246
      %p601 = pneg %p243
      %p602 = scmp.lt.s32.totalorder %s27, 1
      %s603 = scalar_select %p602, %s27, 1
      %s604 = scalar_lea.vmem %s9, %s603
      %p605 = pneg %p272
      %p606 = pneg %p269
      %p607 = scmp.lt.s32.totalorder %s27, 1
      %s608 = scalar_select %p607, %s27, 1
      %s609 = smul.addr %s608, 8
      %s610 = smul.addr %s609, 4
      %s611 = scalar_lea.vmem %s10, %s610
      %p612 = pneg %p298
      %p613 = pneg %p295
      %p614 = scmp.lt.s32.totalorder %s27, 1
      %s615 = scalar_select %p614, %s27, 1
      %s616 = scalar_lea.vmem %s11, %s615
      %p617 = pneg %p324
      %p618 = pneg %p321
      %p619 = scmp.lt.s32.totalorder %s27, 1
      %s620 = scalar_select %p619, %s27, 1
      %s621 = scalar_lea.vmem %s12, %s620
      %p622 = pneg %p350
      %p623 = pneg %p347
      %p624 = scmp.lt.s32.totalorder %s27, 1
      %s625 = scalar_select %p624, %s27, 1
      %s626 = scalar_lea.vmem %s13, %s625
      %p627 = pneg %p376
      %p628 = pneg %p373
      %p629 = pneg %p397
      %p630 = pneg %p394
      %p631 = pneg %p418
      %p632 = pneg %p415
      %p633 = pneg %p439
      %p634 = pneg %p436
      %p635 = scmp.lt.s32.totalorder %s27, 1
      %s636 = scalar_select %p635, %s27, 1
      %s637 = smul.addr %s636, 4
      %s638 = smul.addr %s637, 4
      %s639 = scalar_lea.vmem %s2, %s638
      %p640 = scmp.lt.s32.totalorder %s27, 1
      %s641 = scalar_select %p640, %s27, 1
      %s642 = scalar_lea.vmem %s3, %s641
      %p643 = scmp.lt.s32.totalorder %s27, 1
      %s644 = scalar_select %p643, %s27, 1
      %s645 = smul.addr %s644, 4
      %s646 = smul.addr %s645, 4
      %s647 = scalar_lea.vmem %s4, %s646
      %p648 = scmp.lt.s32.totalorder %s27, 1
      %s649 = scalar_select %p648, %s27, 1
      %s650 = scalar_lea.vmem %s5, %s649
      %p651 = scmp.lt.s32.totalorder %s27, 1
      %s652 = scalar_select %p651, %s27, 1
      %s653 = scalar_lea.vmem %s6, %s652
      %p654 = scmp.lt.s32.totalorder %s27, 1
      %s655 = scalar_select %p654, %s27, 1
      %s656 = scalar_lea.vmem %s7, %s655
      %p657 = scmp.lt.s32.totalorder %s27, 1
      %s658 = scalar_select %p657, %s27, 1
      %s659 = smul.addr %s658, 4
      %s660 = smul.addr %s659, 4
      %s661 = scalar_lea.vmem %s8, %s660
      %p662 = scmp.lt.s32.totalorder %s27, 1
      %s663 = scalar_select %p662, %s27, 1
      %s664 = scalar_lea.vmem %s9, %s663
      %p665 = scmp.lt.s32.totalorder %s27, 1
      %s666 = scalar_select %p665, %s27, 1
      %s667 = smul.addr %s666, 8
      %s668 = smul.addr %s667, 4
      %s669 = scalar_lea.vmem %s10, %s668
      %p670 = scmp.lt.s32.totalorder %s27, 1
      %s671 = scalar_select %p670, %s27, 1
      %s672 = scalar_lea.vmem %s11, %s671
      %p673 = scmp.lt.s32.totalorder %s27, 1
      %s674 = scalar_select %p673, %s27, 1
      %s675 = scalar_lea.vmem %s12, %s674
      %p676 = scmp.lt.s32.totalorder %s27, 1
      %s677 = scalar_select %p676, %s27, 1
      %s678 = scalar_lea.vmem %s13, %s677
      %p680 = scmp.eq.s32.totalorder %s27, 0
      // Predicated region
      $region85: #{_lambda_.2} parent=83 // pred_check
        %p681 = pneg %p680
      $region86: #{_lambda_.2} parent=83 // pred_check_branch
        %683 = sbr.rel (%p681) target = $region88
      $region87: #{_lambda_.2} parent=83 // pred_region
        %v684 = vld [vmem:[%s0] sm:$0xff]
        %v685 = vld [vmem:[%s0 + $0x8] sm:$0xff]
        %vm686 = vcmask 261120
        %687 = vst.msk [vmem:[#allocation2] sm:$0xff] %vm686, %v684
        %688 = vst.msk [vmem:[#allocation2 + $0x8] sm:$0xff] %vm686, %v685
      $region88: #{_lambda_.2} parent=83 // pred_fallthru
        _
      %v689 = vld [vmem:[#allocation2] sm:$0xff]
      %v690 = vld [vmem:[#allocation2 + $0x8] sm:$0xff]
      %v691 = vld [vmem:[%s639] sm:$0xf]
      %v692 = vld [vmem:[%s639 + $0x4] sm:$0xf]
      %v693 = vld [vmem:[%s639 + $0x8] sm:$0xf]
      %v694 = vld [vmem:[%s639 + $0xc] sm:$0xf]
      %v695 = vld [vmem:[%s642] sm:$0x1]
      %v696 = vld [vmem:[%s647] sm:$0xf]
      %v697 = vld [vmem:[%s647 + $0x4] sm:$0xf]
      %v698 = vld [vmem:[%s647 + $0x8] sm:$0xf]
      %v699 = vld [vmem:[%s647 + $0xc] sm:$0xf]
      %v700 = vld [vmem:[%s650] sm:$0x1]
      %v701 = vld [vmem:[%s1] sm:$0xff]
      %v702 = vld [vmem:[%s1 + $0x8] sm:$0xff]
      %v703 = vpack.c.bf16 %v690, %v689
      %v705 = vlaneseq
      %v706 = vshrl.u32 %v705, 7
      %v707 = vsub.s32 0, %v706
      %v708 = vrot.slane %v695, %v707
      %v714 = vunpack.c.l.b16 %v691
      %v715 = vunpack.c.l.b16 %v692
      %v716 = vunpack.c.l.b16 %v693
      %v717 = vunpack.c.l.b16 %v694
      %v718 = vpack.c.b16 %v715, %v714
      %v719 = vpack.c.b16 %v717, %v716
      %vm722 = vcmask 261120
      %v724 = vsel %vm722, %v703, 0
      %726 = vmatprep.subr.bf16.mxu0 0
      %727 = vmatpush1.bf16.msra.mxu0 0
      %728 = vmatprep.subr.bf16.mxu0 0
      %729 = vmatpush1.bf16.msra.mxu0 0
      %730 = vmatprep.subr.bf16.mxu0 0
      %731 = vmatpush1.bf16.msra.mxu0 0
      %732 = vmatprep.subr.bf16.mxu0 0
      %733 = vmatpush1.bf16.msra.mxu0 0
      %734 = vmatprep.subr.bf16.mxu0 0
      %735 = vmatpush1.bf16.msra.mxu0 0
      %736 = vmatprep.subr.bf16.mxu0 0
      %737 = vmatpush1.bf16.msra.mxu0 0
      %738 = vmatprep.subr.bf16.mxu0 0
      %739 = vmatpush1.bf16.msra.mxu0 %v719
      %740 = vmatprep.subr.bf16.mxu0 0
      %741 = vmatpush1.bf16.msra.mxu0 %v718
      %742 = vmatprep.subr.bf16.mxu0 0
      %743 = vmatpush2.bf16.msra.mxu0 0
      %744 = vmatprep.subr.bf16.mxu0 0
      %745 = vmatpush2.bf16.msra.mxu0 0
      %746 = vmatprep.subr.bf16.mxu0 0
      %747 = vmatpush2.bf16.msra.mxu0 0
      %748 = vmatprep.subr.bf16.mxu0 0
      %749 = vmatpush2.bf16.msra.mxu0 0
      %750 = vmatprep.subr.bf16.mxu0 0
      %751 = vmatpush2.bf16.msra.mxu0 0
      %752 = vmatprep.subr.bf16.mxu0 0
      %753 = vmatpush2.bf16.msra.mxu0 0
      %754 = vmatprep.subr.bf16.mxu0 0
      %755 = vmatpush2.bf16.msra.mxu0 0
      %756 = vmatprep.subr.bf16.mxu0 0
      %757 = vmatpush2.bf16.msra.mxu0 0
      %758 = vmatprep.mubr.bf16.mxu0 0
      %759 = vmatmul.mubr.bf16.gmra.mxu0 %v724
      %v760 = vpop.f32.mrf.mxu0
      %v761 = vadd.f32 %v708, %v760
      %v762 = vpop.f32.mrf.mxu0
      %v763 = vpop.f32.mrf.mxu0
      %v764 = vadd.f32 %v708, %v763
      %v765 = vpop.f32.mrf.mxu0
      %766 = vdwg.mxu0
      %v767 = vpack.c.bf16 %v764, %v761
      %v769 = vunpack.c.l.b16 %v767
      %v770 = vunpack.c.h.b16 %v767
      %v771 = vpack.c.b16 %v769, %v769
      %v772 = vpack.c.b16 %v770, %v770
      %773 = vrot.lane.b32.xlu0 %v771, 96
      %v774 = vpop.permute.xlu0 %773
      %vm775 = vcmask 64512
      %v777 = vsel %vm775, %v771, 0
      %v780 = vsel %vm775, %v774, 0
      %782 = vmatprep.subr.bf16.mxu0 0
      %783 = vmatpush1.bf16.xpose.msra.mxu0 0
      %784 = vmatprep.subr.bf16.mxu0 0
      %785 = vmatpush1.bf16.xpose.msra.mxu0 0
      %786 = vmatprep.subr.bf16.mxu0 0
      %787 = vmatpush1.bf16.xpose.msra.mxu0 0
      %788 = vmatprep.subr.bf16.mxu0 0
      %789 = vmatpush1.bf16.xpose.msra.mxu0 0
      %790 = vmatprep.subr.bf16.mxu0 0
      %791 = vmatpush1.bf16.xpose.msra.mxu0 0
      %792 = vmatprep.subr.bf16.mxu0 0
      %793 = vmatpush1.bf16.xpose.msra.mxu0 0
      %794 = vmatprep.subr.bf16.mxu0 0
      %795 = vmatpush1.bf16.xpose.msra.mxu0 0
      %796 = vmatprep.subr.bf16.mxu0 0
      %797 = vmatpush1.bf16.xpose.msra.mxu0 %v780
      %798 = vmatprep.subr.bf16.mxu0 0
      %799 = vmatpush2.bf16.xpose.msra.mxu0 0
      %800 = vmatprep.subr.bf16.mxu0 0
      %801 = vmatpush2.bf16.xpose.msra.mxu0 0
      %802 = vmatprep.subr.bf16.mxu0 0
      %803 = vmatpush2.bf16.xpose.msra.mxu0 0
      %804 = vmatprep.subr.bf16.mxu0 0
      %805 = vmatpush2.bf16.xpose.msra.mxu0 0
      %806 = vmatprep.subr.bf16.mxu0 0
      %807 = vmatpush2.bf16.xpose.msra.mxu0 0
      %808 = vmatprep.subr.bf16.mxu0 0
      %809 = vmatpush2.bf16.xpose.msra.mxu0 0
      %810 = vmatprep.subr.bf16.mxu0 0
      %811 = vmatpush2.bf16.xpose.msra.mxu0 0
      %812 = vmatprep.subr.bf16.mxu0 0
      %813 = vmatpush2.bf16.xpose.msra.mxu0 0
      %814 = vmatprep.mubr.bf16.mxu0 0
      %815 = vmatmul.mubr.bf16.gmra.mxu0 %v777
      %v816 = vpop.f32.mrf.mxu0
      %v817 = vadd.f32 %v701, %v816
      %v818 = vpop.f32.mrf.mxu0
      %v819 = vpop.f32.mrf.mxu0
      %v820 = vpop.f32.mrf.mxu0
      %821 = vdwg.mxu0
      %822 = vrot.lane.b32.xlu0 %v772, 96
      %v823 = vpop.permute.xlu0 %822
      %v825 = vsel %vm775, %v772, 0
      %v828 = vsel %vm775, %v823, 0
      %830 = vmatprep.subr.bf16.mxu0 0
      %831 = vmatpush1.bf16.xpose.msra.mxu0 0
      %832 = vmatprep.subr.bf16.mxu0 0
      %833 = vmatpush1.bf16.xpose.msra.mxu0 0
      %834 = vmatprep.subr.bf16.mxu0 0
      %835 = vmatpush1.bf16.xpose.msra.mxu0 0
      %836 = vmatprep.subr.bf16.mxu0 0
      %837 = vmatpush1.bf16.xpose.msra.mxu0 0
      %838 = vmatprep.subr.bf16.mxu0 0
      %839 = vmatpush1.bf16.xpose.msra.mxu0 0
      %840 = vmatprep.subr.bf16.mxu0 0
      %841 = vmatpush1.bf16.xpose.msra.mxu0 0
      %842 = vmatprep.subr.bf16.mxu0 0
      %843 = vmatpush1.bf16.xpose.msra.mxu0 0
      %844 = vmatprep.subr.bf16.mxu0 0
      %845 = vmatpush1.bf16.xpose.msra.mxu0 %v828
      %846 = vmatprep.subr.bf16.mxu0 0
      %847 = vmatpush2.bf16.xpose.msra.mxu0 0
      %848 = vmatprep.subr.bf16.mxu0 0
      %849 = vmatpush2.bf16.xpose.msra.mxu0 0
      %850 = vmatprep.subr.bf16.mxu0 0
      %851 = vmatpush2.bf16.xpose.msra.mxu0 0
      %852 = vmatprep.subr.bf16.mxu0 0
      %853 = vmatpush2.bf16.xpose.msra.mxu0 0
      %854 = vmatprep.subr.bf16.mxu0 0
      %855 = vmatpush2.bf16.xpose.msra.mxu0 0
      %856 = vmatprep.subr.bf16.mxu0 0
      %857 = vmatpush2.bf16.xpose.msra.mxu0 0
      %858 = vmatprep.subr.bf16.mxu0 0
      %859 = vmatpush2.bf16.xpose.msra.mxu0 0
      %860 = vmatprep.subr.bf16.mxu0 0
      %861 = vmatpush2.bf16.xpose.msra.mxu0 0
      %862 = vmatprep.mubr.bf16.mxu0 0
      %863 = vmatmul.mubr.bf16.gmra.mxu0 %v825
      %v864 = vpop.f32.mrf.mxu0
      %v865 = vadd.f32 %v702, %v864
      %v866 = vpop.f32.mrf.mxu0
      %v867 = vpop.f32.mrf.mxu0
      %v868 = vpop.f32.mrf.mxu0
      %869 = vdwg.mxu0
      %v870 = vsel %vm775, %v817, -inf
      %871 = vmax.xlane.f32.xlu0 %v870
      %v872 = vpop.xlane.xlu0 %871
      %v873 = vsel %vm775, %v865, -inf
      %874 = vmax.xlane.f32.xlu0 %v873
      %v875 = vpop.xlane.xlu0 %874
      %v876 = vsub.f32 %v817, %v872
      %v877 = vsub.f32 %v865, %v875
      %v878 = vmul.f32 %v876, 1.442695
      %v879 = vpow.pop %v878
      %v880 = vmul.f32 %v877, 1.442695
      %v881 = vpow.pop %v880
      %v882 = vsel %vm775, %v879, 0.0
      %883 = vadd.xlane.f32.xlu0 %v882
      %v884 = vpop.xlane.xlu0 %883
      %v885 = vsel %vm775, %v881, 0.0
      %886 = vadd.xlane.f32.xlu0 %v885
      %v887 = vpop.xlane.xlu0 %886
      %v888 = vrcp.pop %v884
      %v889 = vrcp.pop %v887
      %v890 = vmul.f32 %v879, %v888
      %v891 = vmul.f32 %v881, %v889
      %v892 = vpack.c.bf16 %v890, %v890
      %v893 = vpack.c.bf16 %v891, %v891
      %894 = vrot.lane.b32.xlu0 %v771, 64
      %v895 = vpop.permute.xlu0 %894
      %v897 = vsel %vm775, %v892, 0
      %vm899 = vcmask 1043456
      %v901 = vsel %vm899, %v895, 0
      %903 = vmatprep.subr.bf16.mxu0 0
      %904 = vmatpush1.bf16.msra.mxu0 0
      %905 = vmatprep.subr.bf16.mxu0 0
      %906 = vmatpush1.bf16.msra.mxu0 0
      %907 = vmatprep.subr.bf16.mxu0 0
      %908 = vmatpush1.bf16.msra.mxu0 0
      %909 = vmatprep.subr.bf16.mxu0 0
      %910 = vmatpush1.bf16.msra.mxu0 0
      %911 = vmatprep.subr.bf16.mxu0 0
      %912 = vmatpush1.bf16.msra.mxu0 0
      %913 = vmatprep.subr.bf16.mxu0 0
      %914 = vmatpush1.bf16.msra.mxu0 0
      %915 = vmatprep.subr.bf16.mxu0 0
      %916 = vmatpush1.bf16.msra.mxu0 0
      %917 = vmatprep.subr.bf16.mxu0 0
      %918 = vmatpush1.bf16.msra.mxu0 %v901
      %919 = vmatprep.subr.bf16.mxu0 0
      %920 = vmatpush2.bf16.msra.mxu0 0
      %921 = vmatprep.subr.bf16.mxu0 0
      %922 = vmatpush2.bf16.msra.mxu0 0
      %923 = vmatprep.subr.bf16.mxu0 0
      %924 = vmatpush2.bf16.msra.mxu0 0
      %925 = vmatprep.subr.bf16.mxu0 0
      %926 = vmatpush2.bf16.msra.mxu0 0
      %927 = vmatprep.subr.bf16.mxu0 0
      %928 = vmatpush2.bf16.msra.mxu0 0
      %929 = vmatprep.subr.bf16.mxu0 0
      %930 = vmatpush2.bf16.msra.mxu0 0
      %931 = vmatprep.subr.bf16.mxu0 0
      %932 = vmatpush2.bf16.msra.mxu0 0
      %933 = vmatprep.subr.bf16.mxu0 0
      %934 = vmatpush2.bf16.msra.mxu0 0
      %935 = vmatprep.mubr.bf16.mxu0 0
      %936 = vmatmul.mubr.bf16.gmra.mxu0 %v897
      %v937 = vpop.f32.mrf.mxu0
      %v938 = vadd.f32 0.0, %v937
      %v939 = vpop.f32.mrf.mxu0
      %v940 = vpop.f32.mrf.mxu0
      %v941 = vpop.f32.mrf.mxu0
      %942 = vdwg.mxu0
      %943 = vrot.lane.b32.xlu0 %v772, 64
      %v944 = vpop.permute.xlu0 %943
      %v946 = vsel %vm775, %v893, 0
      %v949 = vsel %vm899, %v944, 0
      %951 = vmatprep.subr.bf16.mxu0 0
      %952 = vmatpush1.bf16.msra.mxu0 0
      %953 = vmatprep.subr.bf16.mxu0 0
      %954 = vmatpush1.bf16.msra.mxu0 0
      %955 = vmatprep.subr.bf16.mxu0 0
      %956 = vmatpush1.bf16.msra.mxu0 0
      %957 = vmatprep.subr.bf16.mxu0 0
      %958 = vmatpush1.bf16.msra.mxu0 0
      %959 = vmatprep.subr.bf16.mxu0 0
      %960 = vmatpush1.bf16.msra.mxu0 0
      %961 = vmatprep.subr.bf16.mxu0 0
      %962 = vmatpush1.bf16.msra.mxu0 0
      %963 = vmatprep.subr.bf16.mxu0 0
      %964 = vmatpush1.bf16.msra.mxu0 0
      %965 = vmatprep.subr.bf16.mxu0 0
      %966 = vmatpush1.bf16.msra.mxu0 %v949
      %967 = vmatprep.subr.bf16.mxu0 0
      %968 = vmatpush2.bf16.msra.mxu0 0
      %969 = vmatprep.subr.bf16.mxu0 0
      %970 = vmatpush2.bf16.msra.mxu0 0
      %971 = vmatprep.subr.bf16.mxu0 0
      %972 = vmatpush2.bf16.msra.mxu0 0
      %973 = vmatprep.subr.bf16.mxu0 0
      %974 = vmatpush2.bf16.msra.mxu0 0
      %975 = vmatprep.subr.bf16.mxu0 0
      %976 = vmatpush2.bf16.msra.mxu0 0
      %977 = vmatprep.subr.bf16.mxu0 0
      %978 = vmatpush2.bf16.msra.mxu0 0
      %979 = vmatprep.subr.bf16.mxu0 0
      %980 = vmatpush2.bf16.msra.mxu0 0
      %981 = vmatprep.subr.bf16.mxu0 0
      %982 = vmatpush2.bf16.msra.mxu0 0
      %983 = vmatprep.mubr.bf16.mxu0 0
      %984 = vmatmul.mubr.bf16.gmra.mxu0 %v946
      %v985 = vpop.f32.mrf.mxu0
      %v986 = vadd.f32 0.0, %v985
      %v987 = vpop.f32.mrf.mxu0
      %v988 = vpop.f32.mrf.mxu0
      %v989 = vpop.f32.mrf.mxu0
      %990 = vdwg.mxu0
      %991 = vrot.lane.b32.xlu0 %v771, 120
      %v992 = vpop.permute.xlu0 %991
      %993 = vrot.lane.b32.xlu0 %v771, 88
      %v994 = vpop.permute.xlu0 %993
      %v996 = vsel %vm775, %v992, 0
      %v999 = vsel %vm775, %v994, 0
      %1001 = vmatprep.subr.bf16.mxu0 0
      %1002 = vmatpush1.bf16.xpose.msra.mxu0 0
      %1003 = vmatprep.subr.bf16.mxu0 0
      %1004 = vmatpush1.bf16.xpose.msra.mxu0 0
      %1005 = vmatprep.subr.bf16.mxu0 0
      %1006 = vmatpush1.bf16.xpose.msra.mxu0 0
      %1007 = vmatprep.subr.bf16.mxu0 0
      %1008 = vmatpush1.bf16.xpose.msra.mxu0 0
      %1009 = vmatprep.subr.bf16.mxu0 0
      %1010 = vmatpush1.bf16.xpose.msra.mxu0 0
      %1011 = vmatprep.subr.bf16.mxu0 0
      %1012 = vmatpush1.bf16.xpose.msra.mxu0 0
      %1013 = vmatprep.subr.bf16.mxu0 0
      %1014 = vmatpush1.bf16.xpose.msra.mxu0 0
      %1015 = vmatprep.subr.bf16.mxu0 0
      %1016 = vmatpush1.bf16.xpose.msra.mxu0 %v999
      %1017 = vmatprep.subr.bf16.mxu0 0
      %1018 = vmatpush2.bf16.xpose.msra.mxu0 0
      %1019 = vmatprep.subr.bf16.mxu0 0
      %1020 = vmatpush2.bf16.xpose.msra.mxu0 0
      %1021 = vmatprep.subr.bf16.mxu0 0
      %1022 = vmatpush2.bf16.xpose.msra.mxu0 0
      %1023 = vmatprep.subr.bf16.mxu0 0
      %1024 = vmatpush2.bf16.xpose.msra.mxu0 0
      %1025 = vmatprep.subr.bf16.mxu0 0
      %1026 = vmatpush2.bf16.xpose.msra.mxu0 0
      %1027 = vmatprep.subr.bf16.mxu0 0
      %1028 = vmatpush2.bf16.xpose.msra.mxu0 0
      %1029 = vmatprep.subr.bf16.mxu0 0
      %1030 = vmatpush2.bf16.xpose.msra.mxu0 0
      %1031 = vmatprep.subr.bf16.mxu0 0
      %1032 = vmatpush2.bf16.xpose.msra.mxu0 0
      %1033 = vmatprep.mubr.bf16.mxu0 0
      %1034 = vmatmul.mubr.bf16.gmra.mxu0 %v996
      %v1035 = vpop.f32.mrf.mxu0
      %v1036 = vadd.f32 %v701, %v1035
      %v1037 = vpop.f32.mrf.mxu0
      %v1038 = vpop.f32.mrf.mxu0
      %v1039 = vpop.f32.mrf.mxu0
      %1040 = vdwg.mxu0
      %1041 = vrot.lane.b32.xlu0 %v772, 120
      %v1042 = vpop.permute.xlu0 %1041
      %1043 = vrot.lane.b32.xlu0 %v772, 88
      %v1044 = vpop.permute.xlu0 %1043
      %v1046 = vsel %vm775, %v1042, 0
      %v1049 = vsel %vm775, %v1044, 0
      %1051 = vmatprep.subr.bf16.mxu0 0
      %1052 = vmatpush1.bf16.xpose.msra.mxu0 0
      %1053 = vmatprep.subr.bf16.mxu0 0
      %1054 = vmatpush1.bf16.xpose.msra.mxu0 0
      %1055 = vmatprep.subr.bf16.mxu0 0
      %1056 = vmatpush1.bf16.xpose.msra.mxu0 0
      %1057 = vmatprep.subr.bf16.mxu0 0
      %1058 = vmatpush1.bf16.xpose.msra.mxu0 0
      %1059 = vmatprep.subr.bf16.mxu0 0
      %1060 = vmatpush1.bf16.xpose.msra.mxu0 0
      %1061 = vmatprep.subr.bf16.mxu0 0
      %1062 = vmatpush1.bf16.xpose.msra.mxu0 0
      %1063 = vmatprep.subr.bf16.mxu0 0
      %1064 = vmatpush1.bf16.xpose.msra.mxu0 0
      %1065 = vmatprep.subr.bf16.mxu0 0
      %1066 = vmatpush1.bf16.xpose.msra.mxu0 %v1049
      %1067 = vmatprep.subr.bf16.mxu0 0
      %1068 = vmatpush2.bf16.xpose.msra.mxu0 0
      %1069 = vmatprep.subr.bf16.mxu0 0
      %1070 = vmatpush2.bf16.xpose.msra.mxu0 0
      %1071 = vmatprep.subr.bf16.mxu0 0
      %1072 = vmatpush2.bf16.xpose.msra.mxu0 0
      %1073 = vmatprep.subr.bf16.mxu0 0
      %1074 = vmatpush2.bf16.xpose.msra.mxu0 0
      %1075 = vmatprep.subr.bf16.mxu0 0
      %1076 = vmatpush2.bf16.xpose.msra.mxu0 0
      %1077 = vmatprep.subr.bf16.mxu0 0
      %1078 = vmatpush2.bf16.xpose.msra.mxu0 0
      %1079 = vmatprep.subr.bf16.mxu0 0
      %1080 = vmatpush2.bf16.xpose.msra.mxu0 0
      %1081 = vmatprep.subr.bf16.mxu0 0
      %1082 = vmatpush2.bf16.xpose.msra.mxu0 0
      %1083 = vmatprep.mubr.bf16.mxu0 0
      %1084 = vmatmul.mubr.bf16.gmra.mxu0 %v1046
      %v1085 = vpop.f32.mrf.mxu0
      %v1086 = vadd.f32 %v702, %v1085
      %v1087 = vpop.f32.mrf.mxu0
      %v1088 = vpop.f32.mrf.mxu0
      %v1089 = vpop.f32.mrf.mxu0
      %1090 = vdwg.mxu0
      %v1091 = vsel %vm775, %v1036, -inf
      %1092 = vmax.xlane.f32.xlu0 %v1091
      %v1093 = vpop.xlane.xlu0 %1092
      %v1094 = vsel %vm775, %v1086, -inf
      %1095 = vmax.xlane.f32.xlu0 %v1094
      %v1096 = vpop.xlane.xlu0 %1095
      %v1097 = vsub.f32 %v1036, %v1093
      %v1098 = vsub.f32 %v1086, %v1096
      %v1099 = vmul.f32 %v1097, 1.442695
      %v1100 = vpow.pop %v1099
      %v1101 = vmul.f32 %v1098, 1.442695
      %v1102 = vpow.pop %v1101
      %v1103 = vsel %vm775, %v1100, 0.0
      %1104 = vadd.xlane.f32.xlu0 %v1103
      %v1105 = vpop.xlane.xlu0 %1104
      %v1106 = vsel %vm775, %v1102, 0.0
      %1107 = vadd.xlane.f32.xlu0 %v1106
      %v1108 = vpop.xlane.xlu0 %1107
      %v1109 = vrcp.pop %v1105
      %v1110 = vrcp.pop %v1108
      %v1111 = vmul.f32 %v1100, %v1109
      %v1112 = vmul.f32 %v1102, %v1110
      %v1113 = vpack.c.bf16 %v1111, %v1111
      %v1114 = vpack.c.bf16 %v1112, %v1112
      %1115 = vrot.lane.b32.xlu0 %v771, 56
      %v1116 = vpop.permute.xlu0 %1115
      %v1118 = vsel %vm775, %v1113, 0
      %v1121 = vsel %vm899, %v1116, 0
      %1123 = vmatprep.subr.bf16.mxu0 0
      %1124 = vmatpush1.bf16.msra.mxu0 0
      %1125 = vmatprep.subr.bf16.mxu0 0
      %1126 = vmatpush1.bf16.msra.mxu0 0
      %1127 = vmatprep.subr.bf16.mxu0 0
      %1128 = vmatpush1.bf16.msra.mxu0 0
      %1129 = vmatprep.subr.bf16.mxu0 0
      %1130 = vmatpush1.bf16.msra.mxu0 0
      %1131 = vmatprep.subr.bf16.mxu0 0
      %1132 = vmatpush1.bf16.msra.mxu0 0
      %1133 = vmatprep.subr.bf16.mxu0 0
      %1134 = vmatpush1.bf16.msra.mxu0 0
      %1135 = vmatprep.subr.bf16.mxu0 0
      %1136 = vmatpush1.bf16.msra.mxu0 0
      %1137 = vmatprep.subr.bf16.mxu0 0
      %1138 = vmatpush1.bf16.msra.mxu0 %v1121
      %1139 = vmatprep.subr.bf16.mxu0 0
      %1140 = vmatpush2.bf16.msra.mxu0 0
      %1141 = vmatprep.subr.bf16.mxu0 0
      %1142 = vmatpush2.bf16.msra.mxu0 0
      %1143 = vmatprep.subr.bf16.mxu0 0
      %1144 = vmatpush2.bf16.msra.mxu0 0
      %1145 = vmatprep.subr.bf16.mxu0 0
      %1146 = vmatpush2.bf16.msra.mxu0 0
      %1147 = vmatprep.subr.bf16.mxu0 0
      %1148 = vmatpush2.bf16.msra.mxu0 0
      %1149 = vmatprep.subr.bf16.mxu0 0
      %1150 = vmatpush2.bf16.msra.mxu0 0
      %1151 = vmatprep.subr.bf16.mxu0 0
      %1152 = vmatpush2.bf16.msra.mxu0 0
      %1153 = vmatprep.subr.bf16.mxu0 0
      %1154 = vmatpush2.bf16.msra.mxu0 0
      %1155 = vmatprep.mubr.bf16.mxu0 0
      %1156 = vmatmul.mubr.bf16.gmra.mxu0 %v1118
      %v1157 = vpop.f32.mrf.mxu0
      %v1158 = vadd.f32 0.0, %v1157
      %v1159 = vpop.f32.mrf.mxu0
      %v1160 = vpop.f32.mrf.mxu0
      %v1161 = vpop.f32.mrf.mxu0
      %1162 = vdwg.mxu0
      %1163 = vrot.lane.b32.xlu0 %v772, 56
      %v1164 = vpop.permute.xlu0 %1163
      %v1166 = vsel %vm775, %v1114, 0
      %v1169 = vsel %vm899, %v1164, 0
      %1171 = vmatprep.subr.bf16.mxu0 0
      %1172 = vmatpush1.bf16.msra.mxu0 0
      %1173 = vmatprep.subr.bf16.mxu0 0
      %1174 = vmatpush1.bf16.msra.mxu0 0
      %1175 = vmatprep.subr.bf16.mxu0 0
      %1176 = vmatpush1.bf16.msra.mxu0 0
      %1177 = vmatprep.subr.bf16.mxu0 0
      %1178 = vmatpush1.bf16.msra.mxu0 0
      %1179 = vmatprep.subr.bf16.mxu0 0
      %1180 = vmatpush1.bf16.msra.mxu0 0
      %1181 = vmatprep.subr.bf16.mxu0 0
      %1182 = vmatpush1.bf16.msra.mxu0 0
      %1183 = vmatprep.subr.bf16.mxu0 0
      %1184 = vmatpush1.bf16.msra.mxu0 0
      %1185 = vmatprep.subr.bf16.mxu0 0
      %1186 = vmatpush1.bf16.msra.mxu0 %v1169
      %1187 = vmatprep.subr.bf16.mxu0 0
      %1188 = vmatpush2.bf16.msra.mxu0 0
      %1189 = vmatprep.subr.bf16.mxu0 0
      %1190 = vmatpush2.bf16.msra.mxu0 0
      %1191 = vmatprep.subr.bf16.mxu0 0
      %1192 = vmatpush2.bf16.msra.mxu0 0
      %1193 = vmatprep.subr.bf16.mxu0 0
      %1194 = vmatpush2.bf16.msra.mxu0 0
      %1195 = vmatprep.subr.bf16.mxu0 0
      %1196 = vmatpush2.bf16.msra.mxu0 0
      %1197 = vmatprep.subr.bf16.mxu0 0
      %1198 = vmatpush2.bf16.msra.mxu0 0
      %1199 = vmatprep.subr.bf16.mxu0 0
      %1200 = vmatpush2.bf16.msra.mxu0 0
      %1201 = vmatprep.subr.bf16.mxu0 0
      %1202 = vmatpush2.bf16.msra.mxu0 0
      %1203 = vmatprep.mubr.bf16.mxu0 0
      %1204 = vmatmul.mubr.bf16.gmra.mxu0 %v1166
      %v1205 = vpop.f32.mrf.mxu0
      %v1206 = vadd.f32 0.0, %v1205
      %v1207 = vpop.f32.mrf.mxu0
      %v1208 = vpop.f32.mrf.mxu0
      %v1209 = vpop.f32.mrf.mxu0
      %1210 = vdwg.mxu0
      %1211 = vrot.lane.b32.xlu0 %v771, 112
      %v1212 = vpop.permute.xlu0 %1211
      %1213 = vrot.lane.b32.xlu0 %v771, 80
      %v1214 = vpop.permute.xlu0 %1213
      %v1216 = vsel %vm775, %v1212, 0
      %v1219 = vsel %vm775, %v1214, 0
      %1221 = vmatprep.subr.bf16.mxu0 0
      %1222 = vmatpush1.bf16.xpose.msra.mxu0 0
      %1223 = vmatprep.subr.bf16.mxu0 0
      %1224 = vmatpush1.bf16.xpose.msra.mxu0 0
      %1225 = vmatprep.subr.bf16.mxu0 0
      %1226 = vmatpush1.bf16.xpose.msra.mxu0 0
      %1227 = vmatprep.subr.bf16.mxu0 0
      %1228 = vmatpush1.bf16.xpose.msra.mxu0 0
      %1229 = vmatprep.subr.bf16.mxu0 0
      %1230 = vmatpush1.bf16.xpose.msra.mxu0 0
      %1231 = vmatprep.subr.bf16.mxu0 0
      %1232 = vmatpush1.bf16.xpose.msra.mxu0 0
      %1233 = vmatprep.subr.bf16.mxu0 0
      %1234 = vmatpush1.bf16.xpose.msra.mxu0 0
      %1235 = vmatprep.subr.bf16.mxu0 0
      %1236 = vmatpush1.bf16.xpose.msra.mxu0 %v1219
      %1237 = vmatprep.subr.bf16.mxu0 0
      %1238 = vmatpush2.bf16.xpose.msra.mxu0 0
      %1239 = vmatprep.subr.bf16.mxu0 0
      %1240 = vmatpush2.bf16.xpose.msra.mxu0 0
      %1241 = vmatprep.subr.bf16.mxu0 0
      %1242 = vmatpush2.bf16.xpose.msra.mxu0 0
      %1243 = vmatprep.subr.bf16.mxu0 0
      %1244 = vmatpush2.bf16.xpose.msra.mxu0 0
      %1245 = vmatprep.subr.bf16.mxu0 0
      %1246 = vmatpush2.bf16.xpose.msra.mxu0 0
      %1247 = vmatprep.subr.bf16.mxu0 0
      %1248 = vmatpush2.bf16.xpose.msra.mxu0 0
      %1249 = vmatprep.subr.bf16.mxu0 0
      %1250 = vmatpush2.bf16.xpose.msra.mxu0 0
      %1251 = vmatprep.subr.bf16.mxu0 0
      %1252 = vmatpush2.bf16.xpose.msra.mxu0 0
      %1253 = vmatprep.mubr.bf16.mxu0 0
      %1254 = vmatmul.mubr.bf16.gmra.mxu0 %v1216
      %v1255 = vpop.f32.mrf.mxu0
      %v1256 = vadd.f32 %v701, %v1255
      %v1257 = vpop.f32.mrf.mxu0
      %v1258 = vpop.f32.mrf.mxu0
      %v1259 = vpop.f32.mrf.mxu0
      %1260 = vdwg.mxu0
      %1261 = vrot.lane.b32.xlu0 %v772, 112
      %v1262 = vpop.permute.xlu0 %1261
      %1263 = vrot.lane.b32.xlu0 %v772, 80
      %v1264 = vpop.permute.xlu0 %1263
      %v1266 = vsel %vm775, %v1262, 0
      %v1269 = vsel %vm775, %v1264, 0
      %1271 = vmatprep.subr.bf16.mxu0 0
      %1272 = vmatpush1.bf16.xpose.msra.mxu0 0
      %1273 = vmatprep.subr.bf16.mxu0 0
      %1274 = vmatpush1.bf16.xpose.msra.mxu0 0
      %1275 = vmatprep.subr.bf16.mxu0 0
      %1276 = vmatpush1.bf16.xpose.msra.mxu0 0
      %1277 = vmatprep.subr.bf16.mxu0 0
      %1278 = vmatpush1.bf16.xpose.msra.mxu0 0
      %1279 = vmatprep.subr.bf16.mxu0 0
      %1280 = vmatpush1.bf16.xpose.msra.mxu0 0
      %1281 = vmatprep.subr.bf16.mxu0 0
      %1282 = vmatpush1.bf16.xpose.msra.mxu0 0
      %1283 = vmatprep.subr.bf16.mxu0 0
      %1284 = vmatpush1.bf16.xpose.msra.mxu0 0
      %1285 = vmatprep.subr.bf16.mxu0 0
      %1286 = vmatpush1.bf16.xpose.msra.mxu0 %v1269
      %1287 = vmatprep.subr.bf16.mxu0 0
      %1288 = vmatpush2.bf16.xpose.msra.mxu0 0
      %1289 = vmatprep.subr.bf16.mxu0 0
      %1290 = vmatpush2.bf16.xpose.msra.mxu0 0
      %1291 = vmatprep.subr.bf16.mxu0 0
      %1292 = vmatpush2.bf16.xpose.msra.mxu0 0
      %1293 = vmatprep.subr.bf16.mxu0 0
      %1294 = vmatpush2.bf16.xpose.msra.mxu0 0
      %1295 = vmatprep.subr.bf16.mxu0 0
      %1296 = vmatpush2.bf16.xpose.msra.mxu0 0
      %1297 = vmatprep.subr.bf16.mxu0 0
      %1298 = vmatpush2.bf16.xpose.msra.mxu0 0
      %1299 = vmatprep.subr.bf16.mxu0 0
      %1300 = vmatpush2.bf16.xpose.msra.mxu0 0
      %1301 = vmatprep.subr.bf16.mxu0 0
      %1302 = vmatpush2.bf16.xpose.msra.mxu0 0
      %1303 = vmatprep.mubr.bf16.mxu0 0
      %1304 = vmatmul.mubr.bf16.gmra.mxu0 %v1266
      %v1305 = vpop.f32.mrf.mxu0
      %v1306 = vadd.f32 %v702, %v1305
      %v1307 = vpop.f32.mrf.mxu0
      %v1308 = vpop.f32.mrf.mxu0
      %v1309 = vpop.f32.mrf.mxu0
      %1310 = vdwg.mxu0
      %v1311 = vsel %vm775, %v1256, -inf
      %1312 = vmax.xlane.f32.xlu0 %v1311
      %v1313 = vpop.xlane.xlu0 %1312
      %v1314 = vsel %vm775, %v1306, -inf
      %1315 = vmax.xlane.f32.xlu0 %v1314
      %v1316 = vpop.xlane.xlu0 %1315
      %v1317 = vsub.f32 %v1256, %v1313
      %v1318 = vsub.f32 %v1306, %v1316
      %v1319 = vmul.f32 %v1317, 1.442695
      %v1320 = vpow.pop %v1319
      %v1321 = vmul.f32 %v1318, 1.442695
      %v1322 = vpow.pop %v1321
      %v1323 = vsel %vm775, %v1320, 0.0
      %1324 = vadd.xlane.f32.xlu0 %v1323
      %v1325 = vpop.xlane.xlu0 %1324
      %v1326 = vsel %vm775, %v1322, 0.0
      %1327 = vadd.xlane.f32.xlu0 %v1326
      %v1328 = vpop.xlane.xlu0 %1327
      %v1329 = vrcp.pop %v1325
      %v1330 = vrcp.pop %v1328
      %v1331 = vmul.f32 %v1320, %v1329
      %v1332 = vmul.f32 %v1322, %v1330
      %v1333 = vpack.c.bf16 %v1331, %v1331
      %v1334 = vpack.c.bf16 %v1332, %v1332
      %1335 = vrot.lane.b32.xlu0 %v771, 48
      %v1336 = vpop.permute.xlu0 %1335
      %v1338 = vsel %vm775, %v1333, 0
      %v1341 = vsel %vm899, %v1336, 0
      %1343 = vmatprep.subr.bf16.mxu0 0
      %1344 = vmatpush1.bf16.msra.mxu0 0
      %1345 = vmatprep.subr.bf16.mxu0 0
      %1346 = vmatpush1.bf16.msra.mxu0 0
      %1347 = vmatprep.subr.bf16.mxu0 0
      %1348 = vmatpush1.bf16.msra.mxu0 0
      %1349 = vmatprep.subr.bf16.mxu0 0
      %1350 = vmatpush1.bf16.msra.mxu0 0
      %1351 = vmatprep.subr.bf16.mxu0 0
      %1352 = vmatpush1.bf16.msra.mxu0 0
      %1353 = vmatprep.subr.bf16.mxu0 0
      %1354 = vmatpush1.bf16.msra.mxu0 0
      %1355 = vmatprep.subr.bf16.mxu0 0
      %1356 = vmatpush1.bf16.msra.mxu0 0
      %1357 = vmatprep.subr.bf16.mxu0 0
      %1358 = vmatpush1.bf16.msra.mxu0 %v1341
      %1359 = vmatprep.subr.bf16.mxu0 0
      %1360 = vmatpush2.bf16.msra.mxu0 0
      %1361 = vmatprep.subr.bf16.mxu0 0
      %1362 = vmatpush2.bf16.msra.mxu0 0
      %1363 = vmatprep.subr.bf16.mxu0 0
      %1364 = vmatpush2.bf16.msra.mxu0 0
      %1365 = vmatprep.subr.bf16.mxu0 0
      %1366 = vmatpush2.bf16.msra.mxu0 0
      %1367 = vmatprep.subr.bf16.mxu0 0
      %1368 = vmatpush2.bf16.msra.mxu0 0
      %1369 = vmatprep.subr.bf16.mxu0 0
      %1370 = vmatpush2.bf16.msra.mxu0 0
      %1371 = vmatprep.subr.bf16.mxu0 0
      %1372 = vmatpush2.bf16.msra.mxu0 0
      %1373 = vmatprep.subr.bf16.mxu0 0
      %1374 = vmatpush2.bf16.msra.mxu0 0
      %1375 = vmatprep.mubr.bf16.mxu0 0
      %1376 = vmatmul.mubr.bf16.gmra.mxu0 %v1338
      %v1377 = vpop.f32.mrf.mxu0
      %v1378 = vadd.f32 0.0, %v1377
      %v1379 = vpop.f32.mrf.mxu0
      %v1380 = vpop.f32.mrf.mxu0
      %v1381 = vpop.f32.mrf.mxu0
      %1382 = vdwg.mxu0
      %1383 = vrot.lane.b32.xlu0 %v772, 48
      %v1384 = vpop.permute.xlu0 %1383
      %v1386 = vsel %vm775, %v1334, 0
      %v1389 = vsel %vm899, %v1384, 0
      %1391 = vmatprep.subr.bf16.mxu0 0
      %1392 = vmatpush1.bf16.msra.mxu0 0
      %1393 = vmatprep.subr.bf16.mxu0 0
      %1394 = vmatpush1.bf16.msra.mxu0 0
      %1395 = vmatprep.subr.bf16.mxu0 0
      %1396 = vmatpush1.bf16.msra.mxu0 0
      %1397 = vmatprep.subr.bf16.mxu0 0
      %1398 = vmatpush1.bf16.msra.mxu0 0
      %1399 = vmatprep.subr.bf16.mxu0 0
      %1400 = vmatpush1.bf16.msra.mxu0 0
      %1401 = vmatprep.subr.bf16.mxu0 0
      %1402 = vmatpush1.bf16.msra.mxu0 0
      %1403 = vmatprep.subr.bf16.mxu0 0
      %1404 = vmatpush1.bf16.msra.mxu0 0
      %1405 = vmatprep.subr.bf16.mxu0 0
      %1406 = vmatpush1.bf16.msra.mxu0 %v1389
      %1407 = vmatprep.subr.bf16.mxu0 0
      %1408 = vmatpush2.bf16.msra.mxu0 0
      %1409 = vmatprep.subr.bf16.mxu0 0
      %1410 = vmatpush2.bf16.msra.mxu0 0
      %1411 = vmatprep.subr.bf16.mxu0 0
      %1412 = vmatpush2.bf16.msra.mxu0 0
      %1413 = vmatprep.subr.bf16.mxu0 0
      %1414 = vmatpush2.bf16.msra.mxu0 0
      %1415 = vmatprep.subr.bf16.mxu0 0
      %1416 = vmatpush2.bf16.msra.mxu0 0
      %1417 = vmatprep.subr.bf16.mxu0 0
      %1418 = vmatpush2.bf16.msra.mxu0 0
      %1419 = vmatprep.subr.bf16.mxu0 0
      %1420 = vmatpush2.bf16.msra.mxu0 0
      %1421 = vmatprep.subr.bf16.mxu0 0
      %1422 = vmatpush2.bf16.msra.mxu0 0
      %1423 = vmatprep.mubr.bf16.mxu0 0
      %1424 = vmatmul.mubr.bf16.gmra.mxu0 %v1386
      %v1425 = vpop.f32.mrf.mxu0
      %v1426 = vadd.f32 0.0, %v1425
      %v1427 = vpop.f32.mrf.mxu0
      %v1428 = vpop.f32.mrf.mxu0
      %v1429 = vpop.f32.mrf.mxu0
      %1430 = vdwg.mxu0
      %1431 = vrot.lane.b32.xlu0 %v771, 104
      %v1432 = vpop.permute.xlu0 %1431
      %1433 = vrot.lane.b32.xlu0 %v771, 72
      %v1434 = vpop.permute.xlu0 %1433
      %v1436 = vsel %vm775, %v1432, 0
      %v1439 = vsel %vm775, %v1434, 0
      %1441 = vmatprep.subr.bf16.mxu0 0
      %1442 = vmatpush1.bf16.xpose.msra.mxu0 0
      %1443 = vmatprep.subr.bf16.mxu0 0
      %1444 = vmatpush1.bf16.xpose.msra.mxu0 0
      %1445 = vmatprep.subr.bf16.mxu0 0
      %1446 = vmatpush1.bf16.xpose.msra.mxu0 0
      %1447 = vmatprep.subr.bf16.mxu0 0
      %1448 = vmatpush1.bf16.xpose.msra.mxu0 0
      %1449 = vmatprep.subr.bf16.mxu0 0
      %1450 = vmatpush1.bf16.xpose.msra.mxu0 0
      %1451 = vmatprep.subr.bf16.mxu0 0
      %1452 = vmatpush1.bf16.xpose.msra.mxu0 0
      %1453 = vmatprep.subr.bf16.mxu0 0
      %1454 = vmatpush1.bf16.xpose.msra.mxu0 0
      %1455 = vmatprep.subr.bf16.mxu0 0
      %1456 = vmatpush1.bf16.xpose.msra.mxu0 %v1439
      %1457 = vmatprep.subr.bf16.mxu0 0
      %1458 = vmatpush2.bf16.xpose.msra.mxu0 0
      %1459 = vmatprep.subr.bf16.mxu0 0
      %1460 = vmatpush2.bf16.xpose.msra.mxu0 0
      %1461 = vmatprep.subr.bf16.mxu0 0
      %1462 = vmatpush2.bf16.xpose.msra.mxu0 0
      %1463 = vmatprep.subr.bf16.mxu0 0
      %1464 = vmatpush2.bf16.xpose.msra.mxu0 0
      %1465 = vmatprep.subr.bf16.mxu0 0
      %1466 = vmatpush2.bf16.xpose.msra.mxu0 0
      %1467 = vmatprep.subr.bf16.mxu0 0
      %1468 = vmatpush2.bf16.xpose.msra.mxu0 0
      %1469 = vmatprep.subr.bf16.mxu0 0
      %1470 = vmatpush2.bf16.xpose.msra.mxu0 0
      %1471 = vmatprep.subr.bf16.mxu0 0
      %1472 = vmatpush2.bf16.xpose.msra.mxu0 0
      %1473 = vmatprep.mubr.bf16.mxu0 0
      %1474 = vmatmul.mubr.bf16.gmra.mxu0 %v1436
      %v1475 = vpop.f32.mrf.mxu0
      %v1476 = vadd.f32 %v701, %v1475
      %v1477 = vpop.f32.mrf.mxu0
      %v1478 = vpop.f32.mrf.mxu0
      %v1479 = vpop.f32.mrf.mxu0
      %1480 = vdwg.mxu0
      %1481 = vrot.lane.b32.xlu0 %v772, 104
      %v1482 = vpop.permute.xlu0 %1481
      %1483 = vrot.lane.b32.xlu0 %v772, 72
      %v1484 = vpop.permute.xlu0 %1483
      %v1486 = vsel %vm775, %v1482, 0
      %v1489 = vsel %vm775, %v1484, 0
      %1491 = vmatprep.subr.bf16.mxu0 0
      %1492 = vmatpush1.bf16.xpose.msra.mxu0 0
      %1493 = vmatprep.subr.bf16.mxu0 0
      %1494 = vmatpush1.bf16.xpose.msra.mxu0 0
      %1495 = vmatprep.subr.bf16.mxu0 0
      %1496 = vmatpush1.bf16.xpose.msra.mxu0 0
      %1497 = vmatprep.subr.bf16.mxu0 0
      %1498 = vmatpush1.bf16.xpose.msra.mxu0 0
      %1499 = vmatprep.subr.bf16.mxu0 0
      %1500 = vmatpush1.bf16.xpose.msra.mxu0 0
      %1501 = vmatprep.subr.bf16.mxu0 0
      %1502 = vmatpush1.bf16.xpose.msra.mxu0 0
      %1503 = vmatprep.subr.bf16.mxu0 0
      %1504 = vmatpush1.bf16.xpose.msra.mxu0 0
      %1505 = vmatprep.subr.bf16.mxu0 0
      %1506 = vmatpush1.bf16.xpose.msra.mxu0 %v1489
      %1507 = vmatprep.subr.bf16.mxu0 0
      %1508 = vmatpush2.bf16.xpose.msra.mxu0 0
      %1509 = vmatprep.subr.bf16.mxu0 0
      %1510 = vmatpush2.bf16.xpose.msra.mxu0 0
      %1511 = vmatprep.subr.bf16.mxu0 0
      %1512 = vmatpush2.bf16.xpose.msra.mxu0 0
      %1513 = vmatprep.subr.bf16.mxu0 0
      %1514 = vmatpush2.bf16.xpose.msra.mxu0 0
      %1515 = vmatprep.subr.bf16.mxu0 0
      %1516 = vmatpush2.bf16.xpose.msra.mxu0 0
      %1517 = vmatprep.subr.bf16.mxu0 0
      %1518 = vmatpush2.bf16.xpose.msra.mxu0 0
      %1519 = vmatprep.subr.bf16.mxu0 0
      %1520 = vmatpush2.bf16.xpose.msra.mxu0 0
      %1521 = vmatprep.subr.bf16.mxu0 0
      %1522 = vmatpush2.bf16.xpose.msra.mxu0 0
      %1523 = vmatprep.mubr.bf16.mxu0 0
      %1524 = vmatmul.mubr.bf16.gmra.mxu0 %v1486
      %v1525 = vpop.f32.mrf.mxu0
      %v1526 = vadd.f32 %v702, %v1525
      %v1527 = vpop.f32.mrf.mxu0
      %v1528 = vpop.f32.mrf.mxu0
      %v1529 = vpop.f32.mrf.mxu0
      %1530 = vdwg.mxu0
      %v1531 = vsel %vm775, %v1476, -inf
      %1532 = vmax.xlane.f32.xlu0 %v1531
      %v1533 = vpop.xlane.xlu0 %1532
      %v1534 = vsel %vm775, %v1526, -inf
      %1535 = vmax.xlane.f32.xlu0 %v1534
      %v1536 = vpop.xlane.xlu0 %1535
      %v1537 = vsub.f32 %v1476, %v1533
      %v1538 = vsub.f32 %v1526, %v1536
      %v1539 = vmul.f32 %v1537, 1.442695
      %v1540 = vpow.pop %v1539
      %v1541 = vmul.f32 %v1538, 1.442695
      %v1542 = vpow.pop %v1541
      %v1543 = vsel %vm775, %v1540, 0.0
      %1544 = vadd.xlane.f32.xlu0 %v1543
      %v1545 = vpop.xlane.xlu0 %1544
      %v1546 = vsel %vm775, %v1542, 0.0
      %1547 = vadd.xlane.f32.xlu0 %v1546
      %v1548 = vpop.xlane.xlu0 %1547
      %v1549 = vrcp.pop %v1545
      %v1550 = vrcp.pop %v1548
      %v1551 = vmul.f32 %v1540, %v1549
      %v1552 = vmul.f32 %v1542, %v1550
      %v1553 = vpack.c.bf16 %v1551, %v1551
      %v1554 = vpack.c.bf16 %v1552, %v1552
      %1555 = vrot.lane.b32.xlu0 %v771, 40
      %v1556 = vpop.permute.xlu0 %1555
      %v1558 = vsel %vm775, %v1553, 0
      %v1561 = vsel %vm899, %v1556, 0
      %1563 = vmatprep.subr.bf16.mxu0 0
      %1564 = vmatpush1.bf16.msra.mxu0 0
      %1565 = vmatprep.subr.bf16.mxu0 0
      %1566 = vmatpush1.bf16.msra.mxu0 0
      %1567 = vmatprep.subr.bf16.mxu0 0
      %1568 = vmatpush1.bf16.msra.mxu0 0
      %1569 = vmatprep.subr.bf16.mxu0 0
      %1570 = vmatpush1.bf16.msra.mxu0 0
      %1571 = vmatprep.subr.bf16.mxu0 0
      %1572 = vmatpush1.bf16.msra.mxu0 0
      %1573 = vmatprep.subr.bf16.mxu0 0
      %1574 = vmatpush1.bf16.msra.mxu0 0
      %1575 = vmatprep.subr.bf16.mxu0 0
      %1576 = vmatpush1.bf16.msra.mxu0 0
      %1577 = vmatprep.subr.bf16.mxu0 0
      %1578 = vmatpush1.bf16.msra.mxu0 %v1561
      %1579 = vmatprep.subr.bf16.mxu0 0
      %1580 = vmatpush2.bf16.msra.mxu0 0
      %1581 = vmatprep.subr.bf16.mxu0 0
      %1582 = vmatpush2.bf16.msra.mxu0 0
      %1583 = vmatprep.subr.bf16.mxu0 0
      %1584 = vmatpush2.bf16.msra.mxu0 0
      %1585 = vmatprep.subr.bf16.mxu0 0
      %1586 = vmatpush2.bf16.msra.mxu0 0
      %1587 = vmatprep.subr.bf16.mxu0 0
      %1588 = vmatpush2.bf16.msra.mxu0 0
      %1589 = vmatprep.subr.bf16.mxu0 0
      %1590 = vmatpush2.bf16.msra.mxu0 0
      %1591 = vmatprep.subr.bf16.mxu0 0
      %1592 = vmatpush2.bf16.msra.mxu0 0
      %1593 = vmatprep.subr.bf16.mxu0 0
      %1594 = vmatpush2.bf16.msra.mxu0 0
      %1595 = vmatprep.mubr.bf16.mxu0 0
      %1596 = vmatmul.mubr.bf16.gmra.mxu0 %v1558
      %v1597 = vpop.f32.mrf.mxu0
      %v1598 = vadd.f32 0.0, %v1597
      %v1599 = vpop.f32.mrf.mxu0
      %v1600 = vpop.f32.mrf.mxu0
      %v1601 = vpop.f32.mrf.mxu0
      %1602 = vdwg.mxu0
      %1603 = vrot.lane.b32.xlu0 %v772, 40
      %v1604 = vpop.permute.xlu0 %1603
      %v1606 = vsel %vm775, %v1554, 0
      %v1609 = vsel %vm899, %v1604, 0
      %1611 = vmatprep.subr.bf16.mxu0 0
      %1612 = vmatpush1.bf16.msra.mxu0 0
      %1613 = vmatprep.subr.bf16.mxu0 0
      %1614 = vmatpush1.bf16.msra.mxu0 0
      %1615 = vmatprep.subr.bf16.mxu0 0
      %1616 = vmatpush1.bf16.msra.mxu0 0
      %1617 = vmatprep.subr.bf16.mxu0 0
      %1618 = vmatpush1.bf16.msra.mxu0 0
      %1619 = vmatprep.subr.bf16.mxu0 0
      %1620 = vmatpush1.bf16.msra.mxu0 0
      %1621 = vmatprep.subr.bf16.mxu0 0
      %1622 = vmatpush1.bf16.msra.mxu0 0
      %1623 = vmatprep.subr.bf16.mxu0 0
      %1624 = vmatpush1.bf16.msra.mxu0 0
      %1625 = vmatprep.subr.bf16.mxu0 0
      %1626 = vmatpush1.bf16.msra.mxu0 %v1609
      %1627 = vmatprep.subr.bf16.mxu0 0
      %1628 = vmatpush2.bf16.msra.mxu0 0
      %1629 = vmatprep.subr.bf16.mxu0 0
      %1630 = vmatpush2.bf16.msra.mxu0 0
      %1631 = vmatprep.subr.bf16.mxu0 0
      %1632 = vmatpush2.bf16.msra.mxu0 0
      %1633 = vmatprep.subr.bf16.mxu0 0
      %1634 = vmatpush2.bf16.msra.mxu0 0
      %1635 = vmatprep.subr.bf16.mxu0 0
      %1636 = vmatpush2.bf16.msra.mxu0 0
      %1637 = vmatprep.subr.bf16.mxu0 0
      %1638 = vmatpush2.bf16.msra.mxu0 0
      %1639 = vmatprep.subr.bf16.mxu0 0
      %1640 = vmatpush2.bf16.msra.mxu0 0
      %1641 = vmatprep.subr.bf16.mxu0 0
      %1642 = vmatpush2.bf16.msra.mxu0 0
      %1643 = vmatprep.mubr.bf16.mxu0 0
      %1644 = vmatmul.mubr.bf16.gmra.mxu0 %v1606
      %v1645 = vpop.f32.mrf.mxu0
      %v1646 = vadd.f32 0.0, %v1645
      %v1647 = vpop.f32.mrf.mxu0
      %v1648 = vpop.f32.mrf.mxu0
      %v1649 = vpop.f32.mrf.mxu0
      %1650 = vdwg.mxu0
      %1653 = vrot.lane.b32.xlu0 %v1158, 8
      %v1654 = vpop.permute.xlu0 %1653
      %1655 = vrot.lane.b32.xlu0 %v1206, 8
      %v1656 = vpop.permute.xlu0 %1655
      %1661 = vrot.lane.b32.xlu0 %v1378, 16
      %v1662 = vpop.permute.xlu0 %1661
      %1663 = vrot.lane.b32.xlu0 %v1426, 16
      %v1664 = vpop.permute.xlu0 %1663
      %1669 = vrot.lane.b32.xlu0 %v1598, 24
      %v1670 = vpop.permute.xlu0 %1669
      %1671 = vrot.lane.b32.xlu0 %v1646, 24
      %v1672 = vpop.permute.xlu0 %1671
      %v1675 = vsel %vm775, %v938, %v1654
      %v1676 = vsel %vm775, %v986, %v1656
      %vm1677 = vcmask 130048
      %v1678 = vsel %vm1677, %v1675, %v1662
      %v1679 = vsel %vm1677, %v1676, %v1664
      %vm1680 = vcmask 195584
      %v1681 = vsel %vm1680, %v1678, %v1670
      %v1682 = vsel %vm1680, %v1679, %v1672
      %v1683 = vpack.c.bf16 %v1682, %v1681
      %v1685 = vlaneseq
      %v1686 = vshrl.u32 %v1685, 7
      %v1687 = vsub.s32 0, %v1686
      %v1688 = vrot.slane %v700, %v1687
      %v1694 = vunpack.c.l.b16 %v696
      %v1695 = vunpack.c.l.b16 %v697
      %v1696 = vunpack.c.l.b16 %v698
      %v1697 = vunpack.c.l.b16 %v699
      %v1698 = vpack.c.b16 %v1695, %v1694
      %v1699 = vpack.c.b16 %v1697, %v1696
      %v1703 = vsel %vm722, %v1683, 0
      %1705 = vmatprep.subr.bf16.mxu0 0
      %1706 = vmatpush1.bf16.msra.mxu0 0
      %1707 = vmatprep.subr.bf16.mxu0 0
      %1708 = vmatpush1.bf16.msra.mxu0 0
      %1709 = vmatprep.subr.bf16.mxu0 0
      %1710 = vmatpush1.bf16.msra.mxu0 0
      %1711 = vmatprep.subr.bf16.mxu0 0
      %1712 = vmatpush1.bf16.msra.mxu0 0
      %1713 = vmatprep.subr.bf16.mxu0 0
      %1714 = vmatpush1.bf16.msra.mxu0 0
      %1715 = vmatprep.subr.bf16.mxu0 0
      %1716 = vmatpush1.bf16.msra.mxu0 0
      %1717 = vmatprep.subr.bf16.mxu0 0
      %1718 = vmatpush1.bf16.msra.mxu0 %v1699
      %1719 = vmatprep.subr.bf16.mxu0 0
      %1720 = vmatpush1.bf16.msra.mxu0 %v1698
      %1721 = vmatprep.subr.bf16.mxu0 0
      %1722 = vmatpush2.bf16.msra.mxu0 0
      %1723 = vmatprep.subr.bf16.mxu0 0
      %1724 = vmatpush2.bf16.msra.mxu0 0
      %1725 = vmatprep.subr.bf16.mxu0 0
      %1726 = vmatpush2.bf16.msra.mxu0 0
      %1727 = vmatprep.subr.bf16.mxu0 0
      %1728 = vmatpush2.bf16.msra.mxu0 0
      %1729 = vmatprep.subr.bf16.mxu0 0
      %1730 = vmatpush2.bf16.msra.mxu0 0
      %1731 = vmatprep.subr.bf16.mxu0 0
      %1732 = vmatpush2.bf16.msra.mxu0 0
      %1733 = vmatprep.subr.bf16.mxu0 0
      %1734 = vmatpush2.bf16.msra.mxu0 0
      %1735 = vmatprep.subr.bf16.mxu0 0
      %1736 = vmatpush2.bf16.msra.mxu0 0
      %1737 = vmatprep.mubr.bf16.mxu0 0
      %1738 = vmatmul.mubr.bf16.gmra.mxu0 %v1703
      %v1739 = vpop.f32.mrf.mxu0
      %v1740 = vadd.f32 %v1688, %v1739
      %v1741 = vpop.f32.mrf.mxu0
      %v1742 = vpop.f32.mrf.mxu0
      %v1743 = vadd.f32 %v1688, %v1742
      %v1744 = vpop.f32.mrf.mxu0
      %1745 = vdwg.mxu0
      %v1746 = vadd.f32 %v689, %v1740
      %v1747 = vadd.f32 %v690, %v1743
      %v1748 = vld [vmem:[%s653] sm:$0x1]
      %v1749 = vld [vmem:[%s656] sm:$0x1]
      %v1750 = vsel %vm722, %v1746, 0.0
      %1751 = vadd.xlane.f32.xlu0 %v1750
      %v1752 = vpop.xlane.xlu0 %1751
      %v1753 = vsel %vm722, %v1747, 0.0
      %1754 = vadd.xlane.f32.xlu0 %v1753
      %v1755 = vpop.xlane.xlu0 %1754
      %v1756 = vrcp.pop 32.0
      %v1757 = vmul.f32 %v1752, %v1756
      %v1758 = vmul.f32 %v1755, %v1756
      %v1759 = vsub.f32 %v1746, %v1757
      %v1760 = vsub.f32 %v1747, %v1758
      %v1761 = vmul.f32 %v1759, %v1759
      %v1762 = vmul.f32 %v1760, %v1760
      %v1763 = vsel %vm722, %v1761, 0.0
      %1764 = vadd.xlane.f32.xlu0 %v1763
      %v1765 = vpop.xlane.xlu0 %1764
      %v1766 = vsel %vm722, %v1762, 0.0
      %1767 = vadd.xlane.f32.xlu0 %v1766
      %v1768 = vpop.xlane.xlu0 %1767
      %v1769 = vmul.f32 %v1765, %v1756
      %v1770 = vmul.f32 %v1768, %v1756
      %v1771 = vadd.f32 %v1769, 1e-05
      %v1772 = vadd.f32 %v1770, 1e-05
      %v1773 = vrsqrt.pop %v1771
      %v1774 = vrsqrt.pop %v1772
      %v1775 = vmul.f32 %v1759, %v1773
      %v1776 = vmul.f32 %v1760, %v1774
      %v1778 = vlaneseq
      %v1779 = vshrl.u32 %v1778, 7
      %v1780 = vsub.s32 0, %v1779
      %v1781 = vrot.slane %v1748, %v1780
      %v1783 = vmul.f32 %v1775, %v1781
      %v1784 = vmul.f32 %v1776, %v1781
      %v1786 = vlaneseq
      %v1787 = vshrl.u32 %v1786, 7
      %v1788 = vsub.s32 0, %v1787
      %v1789 = vrot.slane %v1749, %v1788
      %v1791 = vadd.f32 %v1783, %v1789
      %v1792 = vadd.f32 %v1784, %v1789
      %v1793 = vld [vmem:[%s661] sm:$0xf]
      %v1794 = vld [vmem:[%s661 + $0x4] sm:$0xf]
      %v1795 = vld [vmem:[%s661 + $0x8] sm:$0xf]
      %v1796 = vld [vmem:[%s661 + $0xc] sm:$0xf]
      %v1797 = vld [vmem:[%s664] sm:$0x1]
      %v1798 = vld [vmem:[%s669] sm:$0xf]
      %v1799 = vld [vmem:[%s669 + $0x4] sm:$0xf]
      %v1800 = vld [vmem:[%s669 + $0x8] sm:$0xf]
      %v1801 = vld [vmem:[%s669 + $0xc] sm:$0xf]
      %v1802 = vld [vmem:[%s669 + $0x10] sm:$0xf]
      %v1803 = vld [vmem:[%s669 + $0x14] sm:$0xf]
      %v1804 = vld [vmem:[%s669 + $0x18] sm:$0xf]
      %v1805 = vld [vmem:[%s669 + $0x1c] sm:$0xf]
      %v1806 = vld [vmem:[%s672] sm:$0x1]
      %v1807 = vpack.c.bf16 %v1792, %v1791
      %v1809 = vlaneseq
      %v1810 = vshrl.u32 %v1809, 7
      %v1811 = vsub.s32 0, %v1810
      %v1812 = vrot.slane %v1797, %v1811
      %v1818 = vunpack.c.l.b16 %v1793
      %v1819 = vunpack.c.l.b16 %v1794
      %v1820 = vunpack.c.l.b16 %v1795
      %v1821 = vunpack.c.l.b16 %v1796
      %v1822 = vpack.c.b16 %v1819, %v1818
      %v1823 = vpack.c.b16 %v1821, %v1820
      %v1827 = vsel %vm722, %v1807, 0
      %1829 = vmatprep.subr.bf16.mxu0 0
      %1830 = vmatpush1.bf16.msra.mxu0 0
      %1831 = vmatprep.subr.bf16.mxu0 0
      %1832 = vmatpush1.bf16.msra.mxu0 0
      %1833 = vmatprep.subr.bf16.mxu0 0
      %1834 = vmatpush1.bf16.msra.mxu0 0
      %1835 = vmatprep.subr.bf16.mxu0 0
      %1836 = vmatpush1.bf16.msra.mxu0 0
      %1837 = vmatprep.subr.bf16.mxu0 0
      %1838 = vmatpush1.bf16.msra.mxu0 0
      %1839 = vmatprep.subr.bf16.mxu0 0
      %1840 = vmatpush1.bf16.msra.mxu0 0
      %1841 = vmatprep.subr.bf16.mxu0 0
      %1842 = vmatpush1.bf16.msra.mxu0 %v1823
      %1843 = vmatprep.subr.bf16.mxu0 0
      %1844 = vmatpush1.bf16.msra.mxu0 %v1822
      %1845 = vmatprep.subr.bf16.mxu0 0
      %1846 = vmatpush2.bf16.msra.mxu0 0
      %1847 = vmatprep.subr.bf16.mxu0 0
      %1848 = vmatpush2.bf16.msra.mxu0 0
      %1849 = vmatprep.subr.bf16.mxu0 0
      %1850 = vmatpush2.bf16.msra.mxu0 0
      %1851 = vmatprep.subr.bf16.mxu0 0
      %1852 = vmatpush2.bf16.msra.mxu0 0
      %1853 = vmatprep.subr.bf16.mxu0 0
      %1854 = vmatpush2.bf16.msra.mxu0 0
      %1855 = vmatprep.subr.bf16.mxu0 0
      %1856 = vmatpush2.bf16.msra.mxu0 0
      %1857 = vmatprep.subr.bf16.mxu0 0
      %1858 = vmatpush2.bf16.msra.mxu0 0
      %1859 = vmatprep.subr.bf16.mxu0 0
      %1860 = vmatpush2.bf16.msra.mxu0 0
      %1861 = vmatprep.mubr.bf16.mxu0 0
      %1862 = vmatmul.mubr.bf16.gmra.mxu0 %v1827
      %v1863 = vpop.f32.mrf.mxu0
      %v1864 = vadd.f32 %v1812, %v1863
      %v1865 = vpop.f32.mrf.mxu0
      %v1866 = vpop.f32.mrf.mxu0
      %v1867 = vadd.f32 %v1812, %v1866
      %v1868 = vpop.f32.mrf.mxu0
      %1869 = vdwg.mxu0
      %v1870 = vmax.f32 %v1864, 0.0
      %v1871 = vmax.f32 %v1867, 0.0
      %v1872 = vpack.c.bf16 %v1871, %v1870
      %v1881 = vunpack.c.l.b16 %v1798
      %v1882 = vunpack.c.l.b16 %v1799
      %v1883 = vunpack.c.l.b16 %v1800
      %v1884 = vunpack.c.l.b16 %v1801
      %v1885 = vunpack.c.l.b16 %v1802
      %v1886 = vunpack.c.l.b16 %v1803
      %v1887 = vunpack.c.l.b16 %v1804
      %v1888 = vunpack.c.l.b16 %v1805
      %v1889 = vpack.c.b16 %v1882, %v1881
      %v1890 = vpack.c.b16 %v1884, %v1883
      %v1891 = vpack.c.b16 %v1886, %v1885
      %v1892 = vpack.c.b16 %v1888, %v1887
      %vm1897 = vcmask 523264
      %v1899 = vsel %vm1897, %v1872, 0
      %1901 = vmatprep.subr.bf16.mxu0 0
      %1902 = vmatpush1.bf16.msra.mxu0 0
      %1903 = vmatprep.subr.bf16.mxu0 0
      %1904 = vmatpush1.bf16.msra.mxu0 0
      %1905 = vmatprep.subr.bf16.mxu0 0
      %1906 = vmatpush1.bf16.msra.mxu0 0
      %1907 = vmatprep.subr.bf16.mxu0 0
      %1908 = vmatpush1.bf16.msra.mxu0 0
      %1909 = vmatprep.subr.bf16.mxu0 0
      %1910 = vmatpush1.bf16.msra.mxu0 %v1892
      %1911 = vmatprep.subr.bf16.mxu0 0
      %1912 = vmatpush1.bf16.msra.mxu0 %v1891
      %1913 = vmatprep.subr.bf16.mxu0 0
      %1914 = vmatpush1.bf16.msra.mxu0 %v1890
      %1915 = vmatprep.subr.bf16.mxu0 0
      %1916 = vmatpush1.bf16.msra.mxu0 %v1889
      %1917 = vmatprep.subr.bf16.mxu0 0
      %1918 = vmatpush2.bf16.msra.mxu0 0
      %1919 = vmatprep.subr.bf16.mxu0 0
      %1920 = vmatpush2.bf16.msra.mxu0 0
      %1921 = vmatprep.subr.bf16.mxu0 0
      %1922 = vmatpush2.bf16.msra.mxu0 0
      %1923 = vmatprep.subr.bf16.mxu0 0
      %1924 = vmatpush2.bf16.msra.mxu0 0
      %1925 = vmatprep.subr.bf16.mxu0 0
      %1926 = vmatpush2.bf16.msra.mxu0 0
      %1927 = vmatprep.subr.bf16.mxu0 0
      %1928 = vmatpush2.bf16.msra.mxu0 0
      %1929 = vmatprep.subr.bf16.mxu0 0
      %1930 = vmatpush2.bf16.msra.mxu0 0
      %1931 = vmatprep.subr.bf16.mxu0 0
      %1932 = vmatpush2.bf16.msra.mxu0 0
      %1933 = vmatprep.mubr.bf16.mxu0 0
      %1934 = vmatmul.mubr.bf16.gmra.mxu0 %v1899
      %v1935 = vpop.f32.mrf.mxu0
      %v1936 = vadd.f32 0.0, %v1935
      %v1937 = vpop.f32.mrf.mxu0
      %v1938 = vpop.f32.mrf.mxu0
      %v1939 = vadd.f32 0.0, %v1938
      %v1940 = vpop.f32.mrf.mxu0
      %1941 = vdwg.mxu0
      %v1942 = vadd.f32 %v1791, %v1936
      %v1943 = vadd.f32 %v1792, %v1939
      %v1945 = vlaneseq
      %v1946 = vshrl.u32 %v1945, 7
      %v1947 = vsub.s32 0, %v1946
      %v1948 = vrot.slane %v1806, %v1947
      %v1950 = vadd.f32 %v1942, %v1948
      %v1951 = vadd.f32 %v1943, %v1948
      %v1952 = vld [vmem:[%s675] sm:$0x1]
      %v1953 = vld [vmem:[%s678] sm:$0x1]
      %v1954 = vsel %vm722, %v1950, 0.0
      %1955 = vadd.xlane.f32.xlu0 %v1954
      %v1956 = vpop.xlane.xlu0 %1955
      %v1957 = vsel %vm722, %v1951, 0.0
      %1958 = vadd.xlane.f32.xlu0 %v1957
      %v1959 = vpop.xlane.xlu0 %1958
      %v1960 = vmul.f32 %v1956, %v1756
      %v1961 = vmul.f32 %v1959, %v1756
      %v1962 = vsub.f32 %v1950, %v1960
      %v1963 = vsub.f32 %v1951, %v1961
      %v1964 = vmul.f32 %v1962, %v1962
      %v1965 = vmul.f32 %v1963, %v1963
      %v1966 = vsel %vm722, %v1964, 0.0
      %1967 = vadd.xlane.f32.xlu0 %v1966
      %v1968 = vpop.xlane.xlu0 %1967
      %v1969 = vsel %vm722, %v1965, 0.0
      %1970 = vadd.xlane.f32.xlu0 %v1969
      %v1971 = vpop.xlane.xlu0 %1970
      %v1972 = vmul.f32 %v1968, %v1756
      %v1973 = vmul.f32 %v1971, %v1756
      %v1974 = vadd.f32 %v1972, 1e-05
      %v1975 = vadd.f32 %v1973, 1e-05
      %v1976 = vrsqrt.pop %v1974
      %v1977 = vrsqrt.pop %v1975
      %v1978 = vmul.f32 %v1962, %v1976
      %v1979 = vmul.f32 %v1963, %v1977
      %v1981 = vlaneseq
      %v1982 = vshrl.u32 %v1981, 7
      %v1983 = vsub.s32 0, %v1982
      %v1984 = vrot.slane %v1952, %v1983
      %v1986 = vmul.f32 %v1978, %v1984
      %v1987 = vmul.f32 %v1979, %v1984
      %v1989 = vlaneseq
      %v1990 = vshrl.u32 %v1989, 7
      %v1991 = vsub.s32 0, %v1990
      %v1992 = vrot.slane %v1953, %v1991
      %v1994 = vadd.f32 %v1986, %v1992
      %v1995 = vadd.f32 %v1987, %v1992
      %1996 = vst.msk [vmem:[#allocation2] sm:$0xff] %vm722, %v1994
      %1997 = vst.msk [vmem:[#allocation2 + $0x8] sm:$0xff] %vm722, %v1995
      %p1998 = scmp.eq.s32.totalorder %s27, 1
      // Predicated region
      $region89: #{_lambda_.2} parent=83 // pred_check
        %p1999 = pneg %p1998
      $region90: #{_lambda_.2} parent=83 // pred_check_branch
        %2001 = sbr.rel (%p1999) target = $region92
      $region91: #{_lambda_.2} parent=83 // pred_region
        %v2002 = vld [vmem:[%s14] sm:$0x1]
        %v2003 = vld [vmem:[%s15] sm:$0x1]
        %v2004 = vsel %vm722, %v1994, 0.0
        %2005 = vadd.xlane.f32.xlu0 %v2004
        %v2006 = vpop.xlane.xlu0 %2005
        %v2007 = vsel %vm722, %v1995, 0.0
        %2008 = vadd.xlane.f32.xlu0 %v2007
        %v2009 = vpop.xlane.xlu0 %2008
        %v2010 = vmul.f32 %v2006, %v1756
        %v2011 = vmul.f32 %v2009, %v1756
        %v2012 = vsub.f32 %v1994, %v2010
        %v2013 = vsub.f32 %v1995, %v2011
        %v2014 = vmul.f32 %v2012, %v2012
        %v2015 = vmul.f32 %v2013, %v2013
        %v2016 = vsel %vm722, %v2014, 0.0
        %2017 = vadd.xlane.f32.xlu0 %v2016
        %v2018 = vpop.xlane.xlu0 %2017
        %v2019 = vsel %vm722, %v2015, 0.0
        %2020 = vadd.xlane.f32.xlu0 %v2019
        %v2021 = vpop.xlane.xlu0 %2020
        %v2022 = vmul.f32 %v2018, %v1756
        %v2023 = vmul.f32 %v2021, %v1756
        %v2024 = vadd.f32 %v2022, 1e-05
        %v2025 = vadd.f32 %v2023, 1e-05
        %v2026 = vrsqrt.pop %v2024
        %v2027 = vrsqrt.pop %v2025
        %v2028 = vmul.f32 %v2012, %v2026
        %v2029 = vmul.f32 %v2013, %v2027
        %v2031 = vlaneseq
        %v2032 = vshrl.u32 %v2031, 7
        %v2033 = vsub.s32 0, %v2032
        %v2034 = vrot.slane %v2002, %v2033
        %v2036 = vmul.f32 %v2028, %v2034
        %v2037 = vmul.f32 %v2029, %v2034
        %v2039 = vlaneseq
        %v2040 = vshrl.u32 %v2039, 7
        %v2041 = vsub.s32 0, %v2040
        %v2042 = vrot.slane %v2003, %v2041
        %v2044 = vadd.f32 %v2036, %v2042
        %v2045 = vadd.f32 %v2037, %v2042
        %2046 = vst.msk [vmem:[%s16] sm:$0xff] %vm722, %v2044
        %2047 = vst.msk [vmem:[%s16 + $0x8] sm:$0xff] %vm722, %v2045
      $region92: #{_lambda_.2} parent=83 // pred_fallthru
        _
      // Predicated region
      $region93: #{_lambda_.2} parent=83 // pred_check
        %p2048 = pneg %p436
      $region94: #{_lambda_.2} parent=83 // pred_check_branch
        %2050 = sbr.rel (%p2048) target = $region96
      $region95: #{_lambda_.2} parent=83 // pred_region
        _
      $region96: #{_lambda_.2} parent=83 // pred_fallthru
        _
      // Predicated region
      $region97: #{_lambda_.2} parent=83 // pred_check
        %p2051 = pneg %p436
      $region98: #{_lambda_.2} parent=83 // pred_check_branch
        %2053 = sbr.rel (%p2051) target = $region100
      $region99: #{_lambda_.2} parent=83 // pred_region
        _
      $region100: #{_lambda_.2} parent=83 // pred_fallthru
        _
    $region84: #{_lambda_.2} parent=5 // pred_fallthru
      _
    %p2054 = scmp.le.s32.totalorder 2, %s22
    // Predicated region
    $region101: #{_lambda_.2} parent=5 // pred_check
      %p2055 = pneg %p2054
    $region102: #{_lambda_.2} parent=5 // pred_check_branch
      %2057 = sbr.rel (%p2055) target = $region104
    $region103: #{_lambda_.2} parent=5 // pred_region
      %s2058 = ssub.s32 %s22, 2
    $region104: #{_lambda_.2} parent=5 // pred_fallthru
      _
  $region6: #{_lambda_.2} parent=0 // loop_footer
    %s26 = sadd.s32 1, %s22
  $region7: #{_lambda_.2} parent=0 // loop_footer_branch
    %21 = sbr.rel target = $region3
  $region8: #{_lambda_.2} parent=0 // loop_exit
    _

// kernel: _lambda_.3
$region0: #{_lambda_.3}
  #allocation0 [shape = 'u32[]', space=smem, size = 0x4, offset = 0x4, fixed_abs, tag = 'smem constant byte address 0x4 - core index']
  #allocation1 [shape = 'u32[144,128]{1,0:T(1,128)}', space=vmem, size = 0x12000, scoped, tag = 'internal scratch']
  #allocation2 [shape = 'f32[16,32]{1,0:T(8,128)}', space=vmem, size = 0x2000, scoped, tag = 'scratch operand']
  %s0 = inlined_call_operand.vmem [shape: f32[16,32], index: 0, kind: input, shape index: {}]
  %s1 = inlined_call_operand.vmem [shape: f32[16,32], index: 1, kind: input, shape index: {}]
  %s2 = inlined_call_operand.vmem [shape: f32[2,8,8], index: 2, kind: input, shape index: {}]
  %s3 = inlined_call_operand.vmem [shape: f32[2,8,8], index: 3, kind: input, shape index: {}]
  %s4 = inlined_call_operand.vmem [shape: bf16[2,32,96], index: 4, kind: input, shape index: {}]
  %s5 = inlined_call_operand.vmem [shape: f32[2,1,96], index: 5, kind: input, shape index: {}]
  %s6 = inlined_call_operand.vmem [shape: bf16[2,32,32], index: 6, kind: input, shape index: {}]
  %s7 = inlined_call_operand.vmem [shape: f32[2,1,32], index: 7, kind: input, shape index: {}]
  %s8 = inlined_call_operand.vmem [shape: f32[2,1,32], index: 8, kind: input, shape index: {}]
  %s9 = inlined_call_operand.vmem [shape: f32[2,1,32], index: 9, kind: input, shape index: {}]
  %s10 = inlined_call_operand.vmem [shape: bf16[2,32,96], index: 10, kind: input, shape index: {}]
  %s11 = inlined_call_operand.vmem [shape: f32[2,1,96], index: 11, kind: input, shape index: {}]
  %s12 = inlined_call_operand.vmem [shape: bf16[2,32,32], index: 12, kind: input, shape index: {}]
  %s13 = inlined_call_operand.vmem [shape: f32[2,1,32], index: 13, kind: input, shape index: {}]
  %s14 = inlined_call_operand.vmem [shape: f32[2,1,32], index: 14, kind: input, shape index: {}]
  %s15 = inlined_call_operand.vmem [shape: f32[2,1,32], index: 15, kind: input, shape index: {}]
  %s16 = inlined_call_operand.vmem [shape: bf16[2,32,64], index: 16, kind: input, shape index: {}]
  %s17 = inlined_call_operand.vmem [shape: f32[2,1,64], index: 17, kind: input, shape index: {}]
  %s18 = inlined_call_operand.vmem [shape: bf16[2,64,32], index: 18, kind: input, shape index: {}]
  %s19 = inlined_call_operand.vmem [shape: f32[2,1,32], index: 19, kind: input, shape index: {}]
  %s20 = inlined_call_operand.vmem [shape: f32[2,1,32], index: 20, kind: input, shape index: {}]
  %s21 = inlined_call_operand.vmem [shape: f32[2,1,32], index: 21, kind: input, shape index: {}]
  %s22 = inlined_call_operand.vmem [shape: f32[1,32], index: 22, kind: input, shape index: {}]
  %s23 = inlined_call_operand.vmem [shape: f32[1,32], index: 23, kind: input, shape index: {}]
  %s24 = inlined_call_operand.vmem [shape: bf16[32,256], index: 24, kind: input, shape index: {}]
  %s25 = inlined_call_operand.vmem [shape: f32[1,256], index: 25, kind: input, shape index: {}]
  %s26 = inlined_call_operand.vmem [shape: f32[16,256], index: 26, kind: output, shape index: {}]
  %s27 = sld [smem:[#allocation0]]
  $region145: #{_lambda_.3} parent=0
    _
  %s29 = ssub.s32 1, %s27
  %s30 = scalar_select 0, %s29, %s27
  loop: start=0, step=1, limit=4
  $region2: #{_lambda_.3} parent=0 // loop_pre_header
    _
  $region3: #{_lambda_.3} parent=0 // loop_header
    %s32 = sphi 0, %s36
    %p33 = scmp.ge.s32.totalorder %s32, 4
    %s40 = sphi 0, %s40
    %s42 = sphi 0, %s40
    %s43 = sphi 0, %s42
    %s57 = sphi 0, %s43
    %s61 = sphi 0, %s61
    %s63 = sphi 0, %s61
    %s64 = sphi 0, %s63
    %s78 = sphi 0, %s64
    %s82 = sphi 0, %s82
    %s84 = sphi 0, %s82
    %s85 = sphi 0, %s84
    %s99 = sphi 0, %s85
    %s103 = sphi 0, %s103
    %s105 = sphi 0, %s103
    %s106 = sphi 0, %s105
    %s120 = sphi 0, %s106
    %s126 = sphi 0, %s128
    %s129 = sphi 0, %s126
    %s130 = sphi 0, %s129
    %s146 = sphi 0, %s130
    %s152 = sphi 0, %s154
    %s155 = sphi 0, %s152
    %s156 = sphi 0, %s155
    %s172 = sphi 0, %s156
    %s178 = sphi 0, %s180
    %s181 = sphi 0, %s178
    %s182 = sphi 0, %s181
    %s198 = sphi 0, %s182
    %s204 = sphi 0, %s206
    %s207 = sphi 0, %s204
    %s208 = sphi 0, %s207
    %s224 = sphi 0, %s208
    %s230 = sphi 0, %s232
    %s233 = sphi 0, %s230
    %s234 = sphi 0, %s233
    %s250 = sphi 0, %s234
    %s256 = sphi 0, %s258
    %s259 = sphi 0, %s256
    %s260 = sphi 0, %s259
    %s276 = sphi 0, %s260
    %s282 = sphi 0, %s284
    %s285 = sphi 0, %s282
    %s286 = sphi 0, %s285
    %s302 = sphi 0, %s286
    %s308 = sphi 0, %s310
    %s311 = sphi 0, %s308
    %s312 = sphi 0, %s311
    %s328 = sphi 0, %s312
    %s334 = sphi 0, %s336
    %s337 = sphi 0, %s334
    %s338 = sphi 0, %s337
    %s354 = sphi 0, %s338
    %s360 = sphi 0, %s362
    %s363 = sphi 0, %s360
    %s364 = sphi 0, %s363
    %s380 = sphi 0, %s364
    %s386 = sphi 0, %s388
    %s389 = sphi 0, %s386
    %s390 = sphi 0, %s389
    %s406 = sphi 0, %s390
    %s412 = sphi 0, %s414
    %s415 = sphi 0, %s412
    %s416 = sphi 0, %s415
    %s432 = sphi 0, %s416
    %s438 = sphi 0, %s440
    %s441 = sphi 0, %s438
    %s442 = sphi 0, %s441
    %s458 = sphi 0, %s442
    %s464 = sphi 0, %s466
    %s467 = sphi 0, %s464
    %s468 = sphi 0, %s467
    %s484 = sphi 0, %s468
    %s490 = sphi 0, %s492
    %s493 = sphi 0, %s490
    %s494 = sphi 0, %s493
    %s510 = sphi 0, %s494
    %s516 = sphi 0, %s518
    %s519 = sphi 0, %s516
    %s520 = sphi 0, %s519
    %s536 = sphi 0, %s520
    %s542 = sphi 0, %s544
    %s545 = sphi 0, %s542
    %s546 = sphi 0, %s545
    %s562 = sphi 0, %s546
    %s568 = sphi 0, %s570
    %s571 = sphi 0, %s568
    %s572 = sphi 0, %s571
    %s588 = sphi 0, %s572
    %s592 = sphi 0, %s592
    %s594 = sphi 0, %s592
    %s595 = sphi 0, %s594
    %s609 = sphi 0, %s595
    %s613 = sphi 0, %s613
    %s615 = sphi 0, %s613
    %s616 = sphi 0, %s615
    %s630 = sphi 0, %s616
    %s634 = sphi 0, %s634
    %s636 = sphi 0, %s634
    %s637 = sphi 0, %s636
    %s651 = sphi 0, %s637
    %s655 = sphi 0, %s655
    %s657 = sphi 0, %s655
    %s658 = sphi 0, %s657
    %s672 = sphi 0, %s658
    %s676 = sphi 0, %s676
    %s678 = sphi 0, %s676
    %s679 = sphi 0, %s678
    %s693 = sphi 0, %s679
  $region4: #{_lambda_.3} parent=0 // loop_header_branch
    %35 = sbr.rel (%p33) target = $region8
  $region5: #{_lambda_.3} parent=0 // loop_body
    %s37 = ssub.s32 %s32, 1
    %s38 = ssub.s32 %s32, 2
    %s39 = sadd.s32 %s32, 1
    %s41 = sadd.s32 %s40, 1
    %p44 = scmp.eq.s32.totalorder %s32, 1
    %p45 = scmp.ne.s32.totalorder %s40, %s42
    %p46 = scmp.eq.s32.totalorder %s32, 0
    %p47 = por %p45, %p46
    %p48 = scmp.ne.s32.totalorder %s40, %s42
    %p49 = scmp.eq.s32.totalorder %s37, 1
    %p50 = por %p48, %p49
    %p51 = scmp.ne.s32.totalorder %s42, %s43
    %p52 = scmp.eq.s32.totalorder %s37, 0
    %p53 = por %p51, %p52
    %p54 = scmp.ne.s32.totalorder %s42, %s43
    %p55 = scmp.eq.s32.totalorder %s38, 1
    %p56 = por %p54, %p55
    %p58 = scmp.ne.s32.totalorder %s43, %s57
    %p59 = scmp.eq.s32.totalorder %s38, 0
    %p60 = por %p58, %p59
    %s62 = sadd.s32 %s61, 1
    %p65 = scmp.eq.s32.totalorder %s32, 1
    %p66 = scmp.ne.s32.totalorder %s61, %s63
    %p67 = scmp.eq.s32.totalorder %s32, 0
    %p68 = por %p66, %p67
    %p69 = scmp.ne.s32.totalorder %s61, %s63
    %p70 = scmp.eq.s32.totalorder %s37, 1
    %p71 = por %p69, %p70
    %p72 = scmp.ne.s32.totalorder %s63, %s64
    %p73 = scmp.eq.s32.totalorder %s37, 0
    %p74 = por %p72, %p73
    %p75 = scmp.ne.s32.totalorder %s63, %s64
    %p76 = scmp.eq.s32.totalorder %s38, 1
    %p77 = por %p75, %p76
    %p79 = scmp.ne.s32.totalorder %s64, %s78
    %p80 = scmp.eq.s32.totalorder %s38, 0
    %p81 = por %p79, %p80
    %s83 = sadd.s32 %s82, 1
    %p86 = scmp.eq.s32.totalorder %s32, 1
    %p87 = scmp.ne.s32.totalorder %s82, %s84
    %p88 = scmp.eq.s32.totalorder %s32, 0
    %p89 = por %p87, %p88
    %p90 = scmp.ne.s32.totalorder %s82, %s84
    %p91 = scmp.eq.s32.totalorder %s37, 1
    %p92 = por %p90, %p91
    %p93 = scmp.ne.s32.totalorder %s84, %s85
    %p94 = scmp.eq.s32.totalorder %s37, 0
    %p95 = por %p93, %p94
    %p96 = scmp.ne.s32.totalorder %s84, %s85
    %p97 = scmp.eq.s32.totalorder %s38, 1
    %p98 = por %p96, %p97
    %p100 = scmp.ne.s32.totalorder %s85, %s99
    %p101 = scmp.eq.s32.totalorder %s38, 0
    %p102 = por %p100, %p101
    %s104 = sadd.s32 %s103, 1
    %p107 = scmp.eq.s32.totalorder %s32, 1
    %p108 = scmp.ne.s32.totalorder %s103, %s105
    %p109 = scmp.eq.s32.totalorder %s32, 0
    %p110 = por %p108, %p109
    %p111 = scmp.ne.s32.totalorder %s103, %s105
    %p112 = scmp.eq.s32.totalorder %s37, 1
    %p113 = por %p111, %p112
    %p114 = scmp.ne.s32.totalorder %s105, %s106
    %p115 = scmp.eq.s32.totalorder %s37, 0
    %p116 = por %p114, %p115
    %p117 = scmp.ne.s32.totalorder %s105, %s106
    %p118 = scmp.eq.s32.totalorder %s38, 1
    %p119 = por %p117, %p118
    %p121 = scmp.ne.s32.totalorder %s106, %s120
    %p122 = scmp.eq.s32.totalorder %s38, 0
    %p123 = por %p121, %p122
    %s124 = ssub.s32 %s32, %s39
    %p125 = scmp.eq.s32.totalorder %s124, 0
    %s127 = sadd.s32 %s126, 1
    %s128 = scalar_select %p125, %s126, %s127
    %p131 = pneg %p125
    %p132 = scmp.eq.s32.totalorder %s32, 1
    %p133 = por %p131, %p132
    %p134 = scmp.ne.s32.totalorder %s126, %s129
    %p135 = scmp.eq.s32.totalorder %s32, 0
    %p136 = por %p134, %p135
    %p137 = scmp.ne.s32.totalorder %s126, %s129
    %p138 = scmp.eq.s32.totalorder %s37, 1
    %p139 = por %p137, %p138
    %p140 = scmp.ne.s32.totalorder %s129, %s130
    %p141 = scmp.eq.s32.totalorder %s37, 0
    %p142 = por %p140, %p141
    %p143 = scmp.ne.s32.totalorder %s129, %s130
    %p144 = scmp.eq.s32.totalorder %s38, 1
    %p145 = por %p143, %p144
    %p147 = scmp.ne.s32.totalorder %s130, %s146
    %p148 = scmp.eq.s32.totalorder %s38, 0
    %p149 = por %p147, %p148
    %s150 = ssub.s32 %s32, %s39
    %p151 = scmp.eq.s32.totalorder %s150, 0
    %s153 = sadd.s32 %s152, 1
    %s154 = scalar_select %p151, %s152, %s153
    %p157 = pneg %p151
    %p158 = scmp.eq.s32.totalorder %s32, 1
    %p159 = por %p157, %p158
    %p160 = scmp.ne.s32.totalorder %s152, %s155
    %p161 = scmp.eq.s32.totalorder %s32, 0
    %p162 = por %p160, %p161
    %p163 = scmp.ne.s32.totalorder %s152, %s155
    %p164 = scmp.eq.s32.totalorder %s37, 1
    %p165 = por %p163, %p164
    %p166 = scmp.ne.s32.totalorder %s155, %s156
    %p167 = scmp.eq.s32.totalorder %s37, 0
    %p168 = por %p166, %p167
    %p169 = scmp.ne.s32.totalorder %s155, %s156
    %p170 = scmp.eq.s32.totalorder %s38, 1
    %p171 = por %p169, %p170
    %p173 = scmp.ne.s32.totalorder %s156, %s172
    %p174 = scmp.eq.s32.totalorder %s38, 0
    %p175 = por %p173, %p174
    %s176 = ssub.s32 %s32, %s39
    %p177 = scmp.eq.s32.totalorder %s176, 0
    %s179 = sadd.s32 %s178, 1
    %s180 = scalar_select %p177, %s178, %s179
    %p183 = pneg %p177
    %p184 = scmp.eq.s32.totalorder %s32, 1
    %p185 = por %p183, %p184
    %p186 = scmp.ne.s32.totalorder %s178, %s181
    %p187 = scmp.eq.s32.totalorder %s32, 0
    %p188 = por %p186, %p187
    %p189 = scmp.ne.s32.totalorder %s178, %s181
    %p190 = scmp.eq.s32.totalorder %s37, 1
    %p191 = por %p189, %p190
    %p192 = scmp.ne.s32.totalorder %s181, %s182
    %p193 = scmp.eq.s32.totalorder %s37, 0
    %p194 = por %p192, %p193
    %p195 = scmp.ne.s32.totalorder %s181, %s182
    %p196 = scmp.eq.s32.totalorder %s38, 1
    %p197 = por %p195, %p196
    %p199 = scmp.ne.s32.totalorder %s182, %s198
    %p200 = scmp.eq.s32.totalorder %s38, 0
    %p201 = por %p199, %p200
    %s202 = ssub.s32 %s32, %s39
    %p203 = scmp.eq.s32.totalorder %s202, 0
    %s205 = sadd.s32 %s204, 1
    %s206 = scalar_select %p203, %s204, %s205
    %p209 = pneg %p203
    %p210 = scmp.eq.s32.totalorder %s32, 1
    %p211 = por %p209, %p210
    %p212 = scmp.ne.s32.totalorder %s204, %s207
    %p213 = scmp.eq.s32.totalorder %s32, 0
    %p214 = por %p212, %p213
    %p215 = scmp.ne.s32.totalorder %s204, %s207
    %p216 = scmp.eq.s32.totalorder %s37, 1
    %p217 = por %p215, %p216
    %p218 = scmp.ne.s32.totalorder %s207, %s208
    %p219 = scmp.eq.s32.totalorder %s37, 0
    %p220 = por %p218, %p219
    %p221 = scmp.ne.s32.totalorder %s207, %s208
    %p222 = scmp.eq.s32.totalorder %s38, 1
    %p223 = por %p221, %p222
    %p225 = scmp.ne.s32.totalorder %s208, %s224
    %p226 = scmp.eq.s32.totalorder %s38, 0
    %p227 = por %p225, %p226
    %s228 = ssub.s32 %s32, %s39
    %p229 = scmp.eq.s32.totalorder %s228, 0
    %s231 = sadd.s32 %s230, 1
    %s232 = scalar_select %p229, %s230, %s231
    %p235 = pneg %p229
    %p236 = scmp.eq.s32.totalorder %s32, 1
    %p237 = por %p235, %p236
    %p238 = scmp.ne.s32.totalorder %s230, %s233
    %p239 = scmp.eq.s32.totalorder %s32, 0
    %p240 = por %p238, %p239
    %p241 = scmp.ne.s32.totalorder %s230, %s233
    %p242 = scmp.eq.s32.totalorder %s37, 1
    %p243 = por %p241, %p242
    %p244 = scmp.ne.s32.totalorder %s233, %s234
    %p245 = scmp.eq.s32.totalorder %s37, 0
    %p246 = por %p244, %p245
    %p247 = scmp.ne.s32.totalorder %s233, %s234
    %p248 = scmp.eq.s32.totalorder %s38, 1
    %p249 = por %p247, %p248
    %p251 = scmp.ne.s32.totalorder %s234, %s250
    %p252 = scmp.eq.s32.totalorder %s38, 0
    %p253 = por %p251, %p252
    %s254 = ssub.s32 %s32, %s39
    %p255 = scmp.eq.s32.totalorder %s254, 0
    %s257 = sadd.s32 %s256, 1
    %s258 = scalar_select %p255, %s256, %s257
    %p261 = pneg %p255
    %p262 = scmp.eq.s32.totalorder %s32, 1
    %p263 = por %p261, %p262
    %p264 = scmp.ne.s32.totalorder %s256, %s259
    %p265 = scmp.eq.s32.totalorder %s32, 0
    %p266 = por %p264, %p265
    %p267 = scmp.ne.s32.totalorder %s256, %s259
    %p268 = scmp.eq.s32.totalorder %s37, 1
    %p269 = por %p267, %p268
    %p270 = scmp.ne.s32.totalorder %s259, %s260
    %p271 = scmp.eq.s32.totalorder %s37, 0
    %p272 = por %p270, %p271
    %p273 = scmp.ne.s32.totalorder %s259, %s260
    %p274 = scmp.eq.s32.totalorder %s38, 1
    %p275 = por %p273, %p274
    %p277 = scmp.ne.s32.totalorder %s260, %s276
    %p278 = scmp.eq.s32.totalorder %s38, 0
    %p279 = por %p277, %p278
    %s280 = ssub.s32 %s32, %s39
    %p281 = scmp.eq.s32.totalorder %s280, 0
    %s283 = sadd.s32 %s282, 1
    %s284 = scalar_select %p281, %s282, %s283
    %p287 = pneg %p281
    %p288 = scmp.eq.s32.totalorder %s32, 1
    %p289 = por %p287, %p288
    %p290 = scmp.ne.s32.totalorder %s282, %s285
    %p291 = scmp.eq.s32.totalorder %s32, 0
    %p292 = por %p290, %p291
    %p293 = scmp.ne.s32.totalorder %s282, %s285
    %p294 = scmp.eq.s32.totalorder %s37, 1
    %p295 = por %p293, %p294
    %p296 = scmp.ne.s32.totalorder %s285, %s286
    %p297 = scmp.eq.s32.totalorder %s37, 0
    %p298 = por %p296, %p297
    %p299 = scmp.ne.s32.totalorder %s285, %s286
    %p300 = scmp.eq.s32.totalorder %s38, 1
    %p301 = por %p299, %p300
    %p303 = scmp.ne.s32.totalorder %s286, %s302
    %p304 = scmp.eq.s32.totalorder %s38, 0
    %p305 = por %p303, %p304
    %s306 = ssub.s32 %s32, %s39
    %p307 = scmp.eq.s32.totalorder %s306, 0
    %s309 = sadd.s32 %s308, 1
    %s310 = scalar_select %p307, %s308, %s309
    %p313 = pneg %p307
    %p314 = scmp.eq.s32.totalorder %s32, 1
    %p315 = por %p313, %p314
    %p316 = scmp.ne.s32.totalorder %s308, %s311
    %p317 = scmp.eq.s32.totalorder %s32, 0
    %p318 = por %p316, %p317
    %p319 = scmp.ne.s32.totalorder %s308, %s311
    %p320 = scmp.eq.s32.totalorder %s37, 1
    %p321 = por %p319, %p320
    %p322 = scmp.ne.s32.totalorder %s311, %s312
    %p323 = scmp.eq.s32.totalorder %s37, 0
    %p324 = por %p322, %p323
    %p325 = scmp.ne.s32.totalorder %s311, %s312
    %p326 = scmp.eq.s32.totalorder %s38, 1
    %p327 = por %p325, %p326
    %p329 = scmp.ne.s32.totalorder %s312, %s328
    %p330 = scmp.eq.s32.totalorder %s38, 0
    %p331 = por %p329, %p330
    %s332 = ssub.s32 %s32, %s39
    %p333 = scmp.eq.s32.totalorder %s332, 0
    %s335 = sadd.s32 %s334, 1
    %s336 = scalar_select %p333, %s334, %s335
    %p339 = pneg %p333
    %p340 = scmp.eq.s32.totalorder %s32, 1
    %p341 = por %p339, %p340
    %p342 = scmp.ne.s32.totalorder %s334, %s337
    %p343 = scmp.eq.s32.totalorder %s32, 0
    %p344 = por %p342, %p343
    %p345 = scmp.ne.s32.totalorder %s334, %s337
    %p346 = scmp.eq.s32.totalorder %s37, 1
    %p347 = por %p345, %p346
    %p348 = scmp.ne.s32.totalorder %s337, %s338
    %p349 = scmp.eq.s32.totalorder %s37, 0
    %p350 = por %p348, %p349
    %p351 = scmp.ne.s32.totalorder %s337, %s338
    %p352 = scmp.eq.s32.totalorder %s38, 1
    %p353 = por %p351, %p352
    %p355 = scmp.ne.s32.totalorder %s338, %s354
    %p356 = scmp.eq.s32.totalorder %s38, 0
    %p357 = por %p355, %p356
    %s358 = ssub.s32 %s32, %s39
    %p359 = scmp.eq.s32.totalorder %s358, 0
    %s361 = sadd.s32 %s360, 1
    %s362 = scalar_select %p359, %s360, %s361
    %p365 = pneg %p359
    %p366 = scmp.eq.s32.totalorder %s32, 1
    %p367 = por %p365, %p366
    %p368 = scmp.ne.s32.totalorder %s360, %s363
    %p369 = scmp.eq.s32.totalorder %s32, 0
    %p370 = por %p368, %p369
    %p371 = scmp.ne.s32.totalorder %s360, %s363
    %p372 = scmp.eq.s32.totalorder %s37, 1
    %p373 = por %p371, %p372
    %p374 = scmp.ne.s32.totalorder %s363, %s364
    %p375 = scmp.eq.s32.totalorder %s37, 0
    %p376 = por %p374, %p375
    %p377 = scmp.ne.s32.totalorder %s363, %s364
    %p378 = scmp.eq.s32.totalorder %s38, 1
    %p379 = por %p377, %p378
    %p381 = scmp.ne.s32.totalorder %s364, %s380
    %p382 = scmp.eq.s32.totalorder %s38, 0
    %p383 = por %p381, %p382
    %s384 = ssub.s32 %s32, %s39
    %p385 = scmp.eq.s32.totalorder %s384, 0
    %s387 = sadd.s32 %s386, 1
    %s388 = scalar_select %p385, %s386, %s387
    %p391 = pneg %p385
    %p392 = scmp.eq.s32.totalorder %s32, 1
    %p393 = por %p391, %p392
    %p394 = scmp.ne.s32.totalorder %s386, %s389
    %p395 = scmp.eq.s32.totalorder %s32, 0
    %p396 = por %p394, %p395
    %p397 = scmp.ne.s32.totalorder %s386, %s389
    %p398 = scmp.eq.s32.totalorder %s37, 1
    %p399 = por %p397, %p398
    %p400 = scmp.ne.s32.totalorder %s389, %s390
    %p401 = scmp.eq.s32.totalorder %s37, 0
    %p402 = por %p400, %p401
    %p403 = scmp.ne.s32.totalorder %s389, %s390
    %p404 = scmp.eq.s32.totalorder %s38, 1
    %p405 = por %p403, %p404
    %p407 = scmp.ne.s32.totalorder %s390, %s406
    %p408 = scmp.eq.s32.totalorder %s38, 0
    %p409 = por %p407, %p408
    %s410 = ssub.s32 %s32, %s39
    %p411 = scmp.eq.s32.totalorder %s410, 0
    %s413 = sadd.s32 %s412, 1
    %s414 = scalar_select %p411, %s412, %s413
    %p417 = pneg %p411
    %p418 = scmp.eq.s32.totalorder %s32, 1
    %p419 = por %p417, %p418
    %p420 = scmp.ne.s32.totalorder %s412, %s415
    %p421 = scmp.eq.s32.totalorder %s32, 0
    %p422 = por %p420, %p421
    %p423 = scmp.ne.s32.totalorder %s412, %s415
    %p424 = scmp.eq.s32.totalorder %s37, 1
    %p425 = por %p423, %p424
    %p426 = scmp.ne.s32.totalorder %s415, %s416
    %p427 = scmp.eq.s32.totalorder %s37, 0
    %p428 = por %p426, %p427
    %p429 = scmp.ne.s32.totalorder %s415, %s416
    %p430 = scmp.eq.s32.totalorder %s38, 1
    %p431 = por %p429, %p430
    %p433 = scmp.ne.s32.totalorder %s416, %s432
    %p434 = scmp.eq.s32.totalorder %s38, 0
    %p435 = por %p433, %p434
    %s436 = ssub.s32 %s32, %s39
    %p437 = scmp.eq.s32.totalorder %s436, 0
    %s439 = sadd.s32 %s438, 1
    %s440 = scalar_select %p437, %s438, %s439
    %p443 = pneg %p437
    %p444 = scmp.eq.s32.totalorder %s32, 1
    %p445 = por %p443, %p444
    %p446 = scmp.ne.s32.totalorder %s438, %s441
    %p447 = scmp.eq.s32.totalorder %s32, 0
    %p448 = por %p446, %p447
    %p449 = scmp.ne.s32.totalorder %s438, %s441
    %p450 = scmp.eq.s32.totalorder %s37, 1
    %p451 = por %p449, %p450
    %p452 = scmp.ne.s32.totalorder %s441, %s442
    %p453 = scmp.eq.s32.totalorder %s37, 0
    %p454 = por %p452, %p453
    %p455 = scmp.ne.s32.totalorder %s441, %s442
    %p456 = scmp.eq.s32.totalorder %s38, 1
    %p457 = por %p455, %p456
    %p459 = scmp.ne.s32.totalorder %s442, %s458
    %p460 = scmp.eq.s32.totalorder %s38, 0
    %p461 = por %p459, %p460
    %s462 = ssub.s32 %s32, %s39
    %p463 = scmp.eq.s32.totalorder %s462, 0
    %s465 = sadd.s32 %s464, 1
    %s466 = scalar_select %p463, %s464, %s465
    %p469 = pneg %p463
    %p470 = scmp.eq.s32.totalorder %s32, 1
    %p471 = por %p469, %p470
    %p472 = scmp.ne.s32.totalorder %s464, %s467
    %p473 = scmp.eq.s32.totalorder %s32, 0
    %p474 = por %p472, %p473
    %p475 = scmp.ne.s32.totalorder %s464, %s467
    %p476 = scmp.eq.s32.totalorder %s37, 1
    %p477 = por %p475, %p476
    %p478 = scmp.ne.s32.totalorder %s467, %s468
    %p479 = scmp.eq.s32.totalorder %s37, 0
    %p480 = por %p478, %p479
    %p481 = scmp.ne.s32.totalorder %s467, %s468
    %p482 = scmp.eq.s32.totalorder %s38, 1
    %p483 = por %p481, %p482
    %p485 = scmp.ne.s32.totalorder %s468, %s484
    %p486 = scmp.eq.s32.totalorder %s38, 0
    %p487 = por %p485, %p486
    %s488 = ssub.s32 %s32, %s39
    %p489 = scmp.eq.s32.totalorder %s488, 0
    %s491 = sadd.s32 %s490, 1
    %s492 = scalar_select %p489, %s490, %s491
    %p495 = pneg %p489
    %p496 = scmp.eq.s32.totalorder %s32, 1
    %p497 = por %p495, %p496
    %p498 = scmp.ne.s32.totalorder %s490, %s493
    %p499 = scmp.eq.s32.totalorder %s32, 0
    %p500 = por %p498, %p499
    %p501 = scmp.ne.s32.totalorder %s490, %s493
    %p502 = scmp.eq.s32.totalorder %s37, 1
    %p503 = por %p501, %p502
    %p504 = scmp.ne.s32.totalorder %s493, %s494
    %p505 = scmp.eq.s32.totalorder %s37, 0
    %p506 = por %p504, %p505
    %p507 = scmp.ne.s32.totalorder %s493, %s494
    %p508 = scmp.eq.s32.totalorder %s38, 1
    %p509 = por %p507, %p508
    %p511 = scmp.ne.s32.totalorder %s494, %s510
    %p512 = scmp.eq.s32.totalorder %s38, 0
    %p513 = por %p511, %p512
    %s514 = ssub.s32 %s32, %s39
    %p515 = scmp.eq.s32.totalorder %s514, 0
    %s517 = sadd.s32 %s516, 1
    %s518 = scalar_select %p515, %s516, %s517
    %p521 = pneg %p515
    %p522 = scmp.eq.s32.totalorder %s32, 1
    %p523 = por %p521, %p522
    %p524 = scmp.ne.s32.totalorder %s516, %s519
    %p525 = scmp.eq.s32.totalorder %s32, 0
    %p526 = por %p524, %p525
    %p527 = scmp.ne.s32.totalorder %s516, %s519
    %p528 = scmp.eq.s32.totalorder %s37, 1
    %p529 = por %p527, %p528
    %p530 = scmp.ne.s32.totalorder %s519, %s520
    %p531 = scmp.eq.s32.totalorder %s37, 0
    %p532 = por %p530, %p531
    %p533 = scmp.ne.s32.totalorder %s519, %s520
    %p534 = scmp.eq.s32.totalorder %s38, 1
    %p535 = por %p533, %p534
    %p537 = scmp.ne.s32.totalorder %s520, %s536
    %p538 = scmp.eq.s32.totalorder %s38, 0
    %p539 = por %p537, %p538
    %s540 = ssub.s32 %s32, %s39
    %p541 = scmp.eq.s32.totalorder %s540, 0
    %s543 = sadd.s32 %s542, 1
    %s544 = scalar_select %p541, %s542, %s543
    %p547 = pneg %p541
    %p548 = scmp.eq.s32.totalorder %s32, 1
    %p549 = por %p547, %p548
    %p550 = scmp.ne.s32.totalorder %s542, %s545
    %p551 = scmp.eq.s32.totalorder %s32, 0
    %p552 = por %p550, %p551
    %p553 = scmp.ne.s32.totalorder %s542, %s545
    %p554 = scmp.eq.s32.totalorder %s37, 1
    %p555 = por %p553, %p554
    %p556 = scmp.ne.s32.totalorder %s545, %s546
    %p557 = scmp.eq.s32.totalorder %s37, 0
    %p558 = por %p556, %p557
    %p559 = scmp.ne.s32.totalorder %s545, %s546
    %p560 = scmp.eq.s32.totalorder %s38, 1
    %p561 = por %p559, %p560
    %p563 = scmp.ne.s32.totalorder %s546, %s562
    %p564 = scmp.eq.s32.totalorder %s38, 0
    %p565 = por %p563, %p564
    %s566 = ssub.s32 %s32, %s39
    %p567 = scmp.eq.s32.totalorder %s566, 0
    %s569 = sadd.s32 %s568, 1
    %s570 = scalar_select %p567, %s568, %s569
    %p573 = pneg %p567
    %p574 = scmp.eq.s32.totalorder %s32, 1
    %p575 = por %p573, %p574
    %p576 = scmp.ne.s32.totalorder %s568, %s571
    %p577 = scmp.eq.s32.totalorder %s32, 0
    %p578 = por %p576, %p577
    %p579 = scmp.ne.s32.totalorder %s568, %s571
    %p580 = scmp.eq.s32.totalorder %s37, 1
    %p581 = por %p579, %p580
    %p582 = scmp.ne.s32.totalorder %s571, %s572
    %p583 = scmp.eq.s32.totalorder %s37, 0
    %p584 = por %p582, %p583
    %p585 = scmp.ne.s32.totalorder %s571, %s572
    %p586 = scmp.eq.s32.totalorder %s38, 1
    %p587 = por %p585, %p586
    %p589 = scmp.ne.s32.totalorder %s572, %s588
    %p590 = scmp.eq.s32.totalorder %s38, 0
    %p591 = por %p589, %p590
    %s593 = sadd.s32 %s592, 1
    %p596 = scmp.eq.s32.totalorder %s32, 1
    %p597 = scmp.ne.s32.totalorder %s592, %s594
    %p598 = scmp.eq.s32.totalorder %s32, 0
    %p599 = por %p597, %p598
    %p600 = scmp.ne.s32.totalorder %s592, %s594
    %p601 = scmp.eq.s32.totalorder %s37, 1
    %p602 = por %p600, %p601
    %p603 = scmp.ne.s32.totalorder %s594, %s595
    %p604 = scmp.eq.s32.totalorder %s37, 0
    %p605 = por %p603, %p604
    %p606 = scmp.ne.s32.totalorder %s594, %s595
    %p607 = scmp.eq.s32.totalorder %s38, 1
    %p608 = por %p606, %p607
    %p610 = scmp.ne.s32.totalorder %s595, %s609
    %p611 = scmp.eq.s32.totalorder %s38, 0
    %p612 = por %p610, %p611
    %s614 = sadd.s32 %s613, 1
    %p617 = scmp.eq.s32.totalorder %s32, 1
    %p618 = scmp.ne.s32.totalorder %s613, %s615
    %p619 = scmp.eq.s32.totalorder %s32, 0
    %p620 = por %p618, %p619
    %p621 = scmp.ne.s32.totalorder %s613, %s615
    %p622 = scmp.eq.s32.totalorder %s37, 1
    %p623 = por %p621, %p622
    %p624 = scmp.ne.s32.totalorder %s615, %s616
    %p625 = scmp.eq.s32.totalorder %s37, 0
    %p626 = por %p624, %p625
    %p627 = scmp.ne.s32.totalorder %s615, %s616
    %p628 = scmp.eq.s32.totalorder %s38, 1
    %p629 = por %p627, %p628
    %p631 = scmp.ne.s32.totalorder %s616, %s630
    %p632 = scmp.eq.s32.totalorder %s38, 0
    %p633 = por %p631, %p632
    %s635 = sadd.s32 %s634, 1
    %p638 = scmp.eq.s32.totalorder %s32, 1
    %p639 = scmp.ne.s32.totalorder %s634, %s636
    %p640 = scmp.eq.s32.totalorder %s32, 0
    %p641 = por %p639, %p640
    %p642 = scmp.ne.s32.totalorder %s634, %s636
    %p643 = scmp.eq.s32.totalorder %s37, 1
    %p644 = por %p642, %p643
    %p645 = scmp.ne.s32.totalorder %s636, %s637
    %p646 = scmp.eq.s32.totalorder %s37, 0
    %p647 = por %p645, %p646
    %p648 = scmp.ne.s32.totalorder %s636, %s637
    %p649 = scmp.eq.s32.totalorder %s38, 1
    %p650 = por %p648, %p649
    %p652 = scmp.ne.s32.totalorder %s637, %s651
    %p653 = scmp.eq.s32.totalorder %s38, 0
    %p654 = por %p652, %p653
    %s656 = sadd.s32 %s655, 1
    %p659 = scmp.eq.s32.totalorder %s32, 1
    %p660 = scmp.ne.s32.totalorder %s655, %s657
    %p661 = scmp.eq.s32.totalorder %s32, 0
    %p662 = por %p660, %p661
    %p663 = scmp.ne.s32.totalorder %s655, %s657
    %p664 = scmp.eq.s32.totalorder %s37, 1
    %p665 = por %p663, %p664
    %p666 = scmp.ne.s32.totalorder %s657, %s658
    %p667 = scmp.eq.s32.totalorder %s37, 0
    %p668 = por %p666, %p667
    %p669 = scmp.ne.s32.totalorder %s657, %s658
    %p670 = scmp.eq.s32.totalorder %s38, 1
    %p671 = por %p669, %p670
    %p673 = scmp.ne.s32.totalorder %s658, %s672
    %p674 = scmp.eq.s32.totalorder %s38, 0
    %p675 = por %p673, %p674
    %s677 = sadd.s32 %s676, 1
    %p680 = scmp.eq.s32.totalorder %s32, 1
    %p681 = scmp.ne.s32.totalorder %s676, %s678
    %p682 = scmp.eq.s32.totalorder %s32, 0
    %p683 = por %p681, %p682
    %p684 = scmp.ne.s32.totalorder %s676, %s678
    %p685 = scmp.eq.s32.totalorder %s37, 1
    %p686 = por %p684, %p685
    %p687 = scmp.ne.s32.totalorder %s678, %s679
    %p688 = scmp.eq.s32.totalorder %s37, 0
    %p689 = por %p687, %p688
    %p690 = scmp.ne.s32.totalorder %s678, %s679
    %p691 = scmp.eq.s32.totalorder %s38, 1
    %p692 = por %p690, %p691
    %p694 = scmp.ne.s32.totalorder %s679, %s693
    %p695 = scmp.eq.s32.totalorder %s38, 0
    %p696 = por %p694, %p695
    %p697 = scmp.le.s32.totalorder 1, %s32
    %p698 = scmp.lt.s32.totalorder %s32, 3
    %p699 = pnand %p697, %p698
    %p700 = pneg %p699
    // Predicated region
    $region9: #{_lambda_.3} parent=5 // pred_check
      _
    $region10: #{_lambda_.3} parent=5 // pred_check_branch
      %702 = sbr.rel (%p699) target = $region12
    $region11: #{_lambda_.3} parent=5 // pred_region
      %s703 = ssub.s32 %s32, 1
      // Predicated region
      $region13: #{_lambda_.3} parent=11 // pred_check
        %p704 = pneg %p53
      $region14: #{_lambda_.3} parent=11 // pred_check_branch
        %706 = sbr.rel (%p704) target = $region16
      $region15: #{_lambda_.3} parent=11 // pred_region
        _
      $region16: #{_lambda_.3} parent=11 // pred_fallthru
        _
      // Predicated region
      $region17: #{_lambda_.3} parent=11 // pred_check
        %p707 = pneg %p74
      $region18: #{_lambda_.3} parent=11 // pred_check_branch
        %709 = sbr.rel (%p707) target = $region20
      $region19: #{_lambda_.3} parent=11 // pred_region
        _
      $region20: #{_lambda_.3} parent=11 // pred_fallthru
        _
      // Predicated region
      $region21: #{_lambda_.3} parent=11 // pred_check
        %p710 = pneg %p95
      $region22: #{_lambda_.3} parent=11 // pred_check_branch
        %712 = sbr.rel (%p710) target = $region24
      $region23: #{_lambda_.3} parent=11 // pred_region
        _
      $region24: #{_lambda_.3} parent=11 // pred_fallthru
        _
      // Predicated region
      $region25: #{_lambda_.3} parent=11 // pred_check
        %p713 = pneg %p116
      $region26: #{_lambda_.3} parent=11 // pred_check_branch
        %715 = sbr.rel (%p713) target = $region28
      $region27: #{_lambda_.3} parent=11 // pred_region
        _
      $region28: #{_lambda_.3} parent=11 // pred_fallthru
        _
      // Predicated region
      $region29: #{_lambda_.3} parent=11 // pred_check
        %p716 = pneg %p605
      $region30: #{_lambda_.3} parent=11 // pred_check_branch
        %718 = sbr.rel (%p716) target = $region32
      $region31: #{_lambda_.3} parent=11 // pred_region
        _
      $region32: #{_lambda_.3} parent=11 // pred_fallthru
        _
      // Predicated region
      $region33: #{_lambda_.3} parent=11 // pred_check
        %p719 = pneg %p626
      $region34: #{_lambda_.3} parent=11 // pred_check_branch
        %721 = sbr.rel (%p719) target = $region36
      $region35: #{_lambda_.3} parent=11 // pred_region
        _
      $region36: #{_lambda_.3} parent=11 // pred_fallthru
        _
      // Predicated region
      $region37: #{_lambda_.3} parent=11 // pred_check
        %p722 = pneg %p647
      $region38: #{_lambda_.3} parent=11 // pred_check_branch
        %724 = sbr.rel (%p722) target = $region40
      $region39: #{_lambda_.3} parent=11 // pred_region
        _
      $region40: #{_lambda_.3} parent=11 // pred_fallthru
        _
      // Predicated region
      $region41: #{_lambda_.3} parent=11 // pred_check
        %p725 = pneg %p668
      $region42: #{_lambda_.3} parent=11 // pred_check_branch
        %727 = sbr.rel (%p725) target = $region44
      $region43: #{_lambda_.3} parent=11 // pred_region
        _
      $region44: #{_lambda_.3} parent=11 // pred_fallthru
        _
    $region12: #{_lambda_.3} parent=5 // pred_fallthru
      _
    %p728 = scmp.lt.s32.totalorder %s32, 2
    // Predicated region
    $region45: #{_lambda_.3} parent=5 // pred_check
      %p729 = pneg %p728
    $region46: #{_lambda_.3} parent=5 // pred_check_branch
      %731 = sbr.rel (%p729) target = $region48
    $region47: #{_lambda_.3} parent=5 // pred_region
      // Predicated region
      $region49: #{_lambda_.3} parent=47 // pred_check
        %p732 = pneg %p136
      $region50: #{_lambda_.3} parent=47 // pred_check_branch
        %734 = sbr.rel (%p732) target = $region52
      $region51: #{_lambda_.3} parent=47 // pred_region
        %p735 = scmp.lt.s32.totalorder %s32, 1
        %s736 = scalar_select %p735, %s32, 1
        %s737 = smul.addr %s736, 4
        %s738 = smul.addr %s737, 4
        %s739 = scalar_lea.vmem %s4, %s738
      $region52: #{_lambda_.3} parent=47 // pred_fallthru
        _
      // Predicated region
      $region53: #{_lambda_.3} parent=47 // pred_check
        %p740 = pneg %p162
      $region54: #{_lambda_.3} parent=47 // pred_check_branch
        %742 = sbr.rel (%p740) target = $region56
      $region55: #{_lambda_.3} parent=47 // pred_region
        %p743 = scmp.lt.s32.totalorder %s32, 1
        %s744 = scalar_select %p743, %s32, 1
        %s745 = scalar_lea.vmem %s5, %s744
      $region56: #{_lambda_.3} parent=47 // pred_fallthru
        _
      // Predicated region
      $region57: #{_lambda_.3} parent=47 // pred_check
        %p746 = pneg %p188
      $region58: #{_lambda_.3} parent=47 // pred_check_branch
        %748 = sbr.rel (%p746) target = $region60
      $region59: #{_lambda_.3} parent=47 // pred_region
        %p749 = scmp.lt.s32.totalorder %s32, 1
        %s750 = scalar_select %p749, %s32, 1
        %s751 = smul.addr %s750, 4
        %s752 = smul.addr %s751, 4
        %s753 = scalar_lea.vmem %s6, %s752
      $region60: #{_lambda_.3} parent=47 // pred_fallthru
        _
      // Predicated region
      $region61: #{_lambda_.3} parent=47 // pred_check
        %p754 = pneg %p214
      $region62: #{_lambda_.3} parent=47 // pred_check_branch
        %756 = sbr.rel (%p754) target = $region64
      $region63: #{_lambda_.3} parent=47 // pred_region
        %p757 = scmp.lt.s32.totalorder %s32, 1
        %s758 = scalar_select %p757, %s32, 1
        %s759 = scalar_lea.vmem %s7, %s758
      $region64: #{_lambda_.3} parent=47 // pred_fallthru
        _
      // Predicated region
      $region65: #{_lambda_.3} parent=47 // pred_check
        %p760 = pneg %p240
      $region66: #{_lambda_.3} parent=47 // pred_check_branch
        %762 = sbr.rel (%p760) target = $region68
      $region67: #{_lambda_.3} parent=47 // pred_region
        %p763 = scmp.lt.s32.totalorder %s32, 1
        %s764 = scalar_select %p763, %s32, 1
        %s765 = scalar_lea.vmem %s8, %s764
      $region68: #{_lambda_.3} parent=47 // pred_fallthru
        _
      // Predicated region
      $region69: #{_lambda_.3} parent=47 // pred_check
        %p766 = pneg %p266
      $region70: #{_lambda_.3} parent=47 // pred_check_branch
        %768 = sbr.rel (%p766) target = $region72
      $region71: #{_lambda_.3} parent=47 // pred_region
        %p769 = scmp.lt.s32.totalorder %s32, 1
        %s770 = scalar_select %p769, %s32, 1
        %s771 = scalar_lea.vmem %s9, %s770
      $region72: #{_lambda_.3} parent=47 // pred_fallthru
        _
      // Predicated region
      $region73: #{_lambda_.3} parent=47 // pred_check
        %p772 = pneg %p292
      $region74: #{_lambda_.3} parent=47 // pred_check_branch
        %774 = sbr.rel (%p772) target = $region76
      $region75: #{_lambda_.3} parent=47 // pred_region
        %p775 = scmp.lt.s32.totalorder %s32, 1
        %s776 = scalar_select %p775, %s32, 1
        %s777 = smul.addr %s776, 4
        %s778 = smul.addr %s777, 4
        %s779 = scalar_lea.vmem %s10, %s778
      $region76: #{_lambda_.3} parent=47 // pred_fallthru
        _
      // Predicated region
      $region77: #{_lambda_.3} parent=47 // pred_check
        %p780 = pneg %p318
      $region78: #{_lambda_.3} parent=47 // pred_check_branch
        %782 = sbr.rel (%p780) target = $region80
      $region79: #{_lambda_.3} parent=47 // pred_region
        %p783 = scmp.lt.s32.totalorder %s32, 1
        %s784 = scalar_select %p783, %s32, 1
        %s785 = scalar_lea.vmem %s11, %s784
      $region80: #{_lambda_.3} parent=47 // pred_fallthru
        _
      // Predicated region
      $region81: #{_lambda_.3} parent=47 // pred_check
        %p786 = pneg %p344
      $region82: #{_lambda_.3} parent=47 // pred_check_branch
        %788 = sbr.rel (%p786) target = $region84
      $region83: #{_lambda_.3} parent=47 // pred_region
        %p789 = scmp.lt.s32.totalorder %s32, 1
        %s790 = scalar_select %p789, %s32, 1
        %s791 = smul.addr %s790, 4
        %s792 = smul.addr %s791, 4
        %s793 = scalar_lea.vmem %s12, %s792
      $region84: #{_lambda_.3} parent=47 // pred_fallthru
        _
      // Predicated region
      $region85: #{_lambda_.3} parent=47 // pred_check
        %p794 = pneg %p370
      $region86: #{_lambda_.3} parent=47 // pred_check_branch
        %796 = sbr.rel (%p794) target = $region88
      $region87: #{_lambda_.3} parent=47 // pred_region
        %p797 = scmp.lt.s32.totalorder %s32, 1
        %s798 = scalar_select %p797, %s32, 1
        %s799 = scalar_lea.vmem %s13, %s798
      $region88: #{_lambda_.3} parent=47 // pred_fallthru
        _
      // Predicated region
      $region89: #{_lambda_.3} parent=47 // pred_check
        %p800 = pneg %p396
      $region90: #{_lambda_.3} parent=47 // pred_check_branch
        %802 = sbr.rel (%p800) target = $region92
      $region91: #{_lambda_.3} parent=47 // pred_region
        %p803 = scmp.lt.s32.totalorder %s32, 1
        %s804 = scalar_select %p803, %s32, 1
        %s805 = scalar_lea.vmem %s14, %s804
      $region92: #{_lambda_.3} parent=47 // pred_fallthru
        _
      // Predicated region
      $region93: #{_lambda_.3} parent=47 // pred_check
        %p806 = pneg %p422
      $region94: #{_lambda_.3} parent=47 // pred_check_branch
        %808 = sbr.rel (%p806) target = $region96
      $region95: #{_lambda_.3} parent=47 // pred_region
        %p809 = scmp.lt.s32.totalorder %s32, 1
        %s810 = scalar_select %p809, %s32, 1
        %s811 = scalar_lea.vmem %s15, %s810
      $region96: #{_lambda_.3} parent=47 // pred_fallthru
        _
      // Predicated region
      $region97: #{_lambda_.3} parent=47 // pred_check
        %p812 = pneg %p448
      $region98: #{_lambda_.3} parent=47 // pred_check_branch
        %814 = sbr.rel (%p812) target = $region100
      $region99: #{_lambda_.3} parent=47 // pred_region
        %p815 = scmp.lt.s32.totalorder %s32, 1
        %s816 = scalar_select %p815, %s32, 1
        %s817 = smul.addr %s816, 4
        %s818 = smul.addr %s817, 4
        %s819 = scalar_lea.vmem %s16, %s818
      $region100: #{_lambda_.3} parent=47 // pred_fallthru
        _
      // Predicated region
      $region101: #{_lambda_.3} parent=47 // pred_check
        %p820 = pneg %p474
      $region102: #{_lambda_.3} parent=47 // pred_check_branch
        %822 = sbr.rel (%p820) target = $region104
      $region103: #{_lambda_.3} parent=47 // pred_region
        %p823 = scmp.lt.s32.totalorder %s32, 1
        %s824 = scalar_select %p823, %s32, 1
        %s825 = scalar_lea.vmem %s17, %s824
      $region104: #{_lambda_.3} parent=47 // pred_fallthru
        _
      // Predicated region
      $region105: #{_lambda_.3} parent=47 // pred_check
        %p826 = pneg %p500
      $region106: #{_lambda_.3} parent=47 // pred_check_branch
        %828 = sbr.rel (%p826) target = $region108
      $region107: #{_lambda_.3} parent=47 // pred_region
        %p829 = scmp.lt.s32.totalorder %s32, 1
        %s830 = scalar_select %p829, %s32, 1
        %s831 = smul.addr %s830, 8
        %s832 = smul.addr %s831, 4
        %s833 = scalar_lea.vmem %s18, %s832
      $region108: #{_lambda_.3} parent=47 // pred_fallthru
        _
      // Predicated region
      $region109: #{_lambda_.3} parent=47 // pred_check
        %p834 = pneg %p526
      $region110: #{_lambda_.3} parent=47 // pred_check_branch
        %836 = sbr.rel (%p834) target = $region112
      $region111: #{_lambda_.3} parent=47 // pred_region
        %p837 = scmp.lt.s32.totalorder %s32, 1
        %s838 = scalar_select %p837, %s32, 1
        %s839 = scalar_lea.vmem %s19, %s838
      $region112: #{_lambda_.3} parent=47 // pred_fallthru
        _
      // Predicated region
      $region113: #{_lambda_.3} parent=47 // pred_check
        %p840 = pneg %p552
      $region114: #{_lambda_.3} parent=47 // pred_check_branch
        %842 = sbr.rel (%p840) target = $region116
      $region115: #{_lambda_.3} parent=47 // pred_region
        %p843 = scmp.lt.s32.totalorder %s32, 1
        %s844 = scalar_select %p843, %s32, 1
        %s845 = scalar_lea.vmem %s20, %s844
      $region116: #{_lambda_.3} parent=47 // pred_fallthru
        _
      // Predicated region
      $region117: #{_lambda_.3} parent=47 // pred_check
        %p846 = pneg %p578
      $region118: #{_lambda_.3} parent=47 // pred_check_branch
        %848 = sbr.rel (%p846) target = $region120
      $region119: #{_lambda_.3} parent=47 // pred_region
        %p849 = scmp.lt.s32.totalorder %s32, 1
        %s850 = scalar_select %p849, %s32, 1
        %s851 = scalar_lea.vmem %s21, %s850
      $region120: #{_lambda_.3} parent=47 // pred_fallthru
        _
    $region48: #{_lambda_.3} parent=5 // pred_fallthru
      _
    %p852 = scmp.le.s32.totalorder 1, %s32
    %p853 = scmp.lt.s32.totalorder %s32, 3
    %p854 = pnand %p852, %p853
    %p855 = pneg %p854
    // Predicated region
    $region121: #{_lambda_.3} parent=5 // pred_check
      _
    $region122: #{_lambda_.3} parent=5 // pred_check_branch
      %857 = sbr.rel (%p854) target = $region124
    $region123: #{_lambda_.3} parent=5 // pred_region
      %s858 = ssub.s32 %s32, 1
      %p859 = pneg %p53
      %p860 = pneg %p50
      %p861 = pneg %p74
      %p862 = pneg %p71
      %p863 = pneg %p95
      %p864 = pneg %p92
      %p865 = pneg %p116
      %p866 = pneg %p113
      %p867 = scmp.lt.s32.totalorder %s37, 1
      %s868 = scalar_select %p867, %s37, 1
      %s869 = smul.addr %s868, 4
      %s870 = smul.addr %s869, 4
      %s871 = scalar_lea.vmem %s4, %s870
      %p872 = pneg %p142
      %p873 = pneg %p139
      %p874 = scmp.lt.s32.totalorder %s37, 1
      %s875 = scalar_select %p874, %s37, 1
      %s876 = scalar_lea.vmem %s5, %s875
      %p877 = pneg %p168
      %p878 = pneg %p165
      %p879 = scmp.lt.s32.totalorder %s37, 1
      %s880 = scalar_select %p879, %s37, 1
      %s881 = smul.addr %s880, 4
      %s882 = smul.addr %s881, 4
      %s883 = scalar_lea.vmem %s6, %s882
      %p884 = pneg %p194
      %p885 = pneg %p191
      %p886 = scmp.lt.s32.totalorder %s37, 1
      %s887 = scalar_select %p886, %s37, 1
      %s888 = scalar_lea.vmem %s7, %s887
      %p889 = pneg %p220
      %p890 = pneg %p217
      %p891 = scmp.lt.s32.totalorder %s37, 1
      %s892 = scalar_select %p891, %s37, 1
      %s893 = scalar_lea.vmem %s8, %s892
      %p894 = pneg %p246
      %p895 = pneg %p243
      %p896 = scmp.lt.s32.totalorder %s37, 1
      %s897 = scalar_select %p896, %s37, 1
      %s898 = scalar_lea.vmem %s9, %s897
      %p899 = pneg %p272
      %p900 = pneg %p269
      %p901 = scmp.lt.s32.totalorder %s37, 1
      %s902 = scalar_select %p901, %s37, 1
      %s903 = smul.addr %s902, 4
      %s904 = smul.addr %s903, 4
      %s905 = scalar_lea.vmem %s10, %s904
      %p906 = pneg %p298
      %p907 = pneg %p295
      %p908 = scmp.lt.s32.totalorder %s37, 1
      %s909 = scalar_select %p908, %s37, 1
      %s910 = scalar_lea.vmem %s11, %s909
      %p911 = pneg %p324
      %p912 = pneg %p321
      %p913 = scmp.lt.s32.totalorder %s37, 1
      %s914 = scalar_select %p913, %s37, 1
      %s915 = smul.addr %s914, 4
      %s916 = smul.addr %s915, 4
      %s917 = scalar_lea.vmem %s12, %s916
      %p918 = pneg %p350
      %p919 = pneg %p347
      %p920 = scmp.lt.s32.totalorder %s37, 1
      %s921 = scalar_select %p920, %s37, 1
      %s922 = scalar_lea.vmem %s13, %s921
      %p923 = pneg %p376
      %p924 = pneg %p373
      %p925 = scmp.lt.s32.totalorder %s37, 1
      %s926 = scalar_select %p925, %s37, 1
      %s927 = scalar_lea.vmem %s14, %s926
      %p928 = pneg %p402
      %p929 = pneg %p399
      %p930 = scmp.lt.s32.totalorder %s37, 1
      %s931 = scalar_select %p930, %s37, 1
      %s932 = scalar_lea.vmem %s15, %s931
      %p933 = pneg %p428
      %p934 = pneg %p425
      %p935 = scmp.lt.s32.totalorder %s37, 1
      %s936 = scalar_select %p935, %s37, 1
      %s937 = smul.addr %s936, 4
      %s938 = smul.addr %s937, 4
      %s939 = scalar_lea.vmem %s16, %s938
      %p940 = pneg %p454
      %p941 = pneg %p451
      %p942 = scmp.lt.s32.totalorder %s37, 1
      %s943 = scalar_select %p942, %s37, 1
      %s944 = scalar_lea.vmem %s17, %s943
      %p945 = pneg %p480
      %p946 = pneg %p477
      %p947 = scmp.lt.s32.totalorder %s37, 1
      %s948 = scalar_select %p947, %s37, 1
      %s949 = smul.addr %s948, 8
      %s950 = smul.addr %s949, 4
      %s951 = scalar_lea.vmem %s18, %s950
      %p952 = pneg %p506
      %p953 = pneg %p503
      %p954 = scmp.lt.s32.totalorder %s37, 1
      %s955 = scalar_select %p954, %s37, 1
      %s956 = scalar_lea.vmem %s19, %s955
      %p957 = pneg %p532
      %p958 = pneg %p529
      %p959 = scmp.lt.s32.totalorder %s37, 1
      %s960 = scalar_select %p959, %s37, 1
      %s961 = scalar_lea.vmem %s20, %s960
      %p962 = pneg %p558
      %p963 = pneg %p555
      %p964 = scmp.lt.s32.totalorder %s37, 1
      %s965 = scalar_select %p964, %s37, 1
      %s966 = scalar_lea.vmem %s21, %s965
      %p967 = pneg %p584
      %p968 = pneg %p581
      %p969 = pneg %p605
      %p970 = pneg %p602
      %p971 = pneg %p626
      %p972 = pneg %p623
      %p973 = pneg %p647
      %p974 = pneg %p644
      %p975 = pneg %p668
      %p976 = pneg %p665
      %p977 = pneg %p689
      %p978 = pneg %p686
      %p979 = scmp.lt.s32.totalorder %s37, 1
      %s980 = scalar_select %p979, %s37, 1
      %s981 = smul.addr %s980, 4
      %s982 = smul.addr %s981, 4
      %s983 = scalar_lea.vmem %s4, %s982
      %p984 = scmp.lt.s32.totalorder %s37, 1
      %s985 = scalar_select %p984, %s37, 1
      %s986 = scalar_lea.vmem %s5, %s985
      %p987 = scmp.lt.s32.totalorder %s37, 1
      %s988 = scalar_select %p987, %s37, 1
      %s989 = smul.addr %s988, 4
      %s990 = smul.addr %s989, 4
      %s991 = scalar_lea.vmem %s6, %s990
      %p992 = scmp.lt.s32.totalorder %s37, 1
      %s993 = scalar_select %p992, %s37, 1
      %s994 = scalar_lea.vmem %s7, %s993
      %p995 = scmp.lt.s32.totalorder %s37, 1
      %s996 = scalar_select %p995, %s37, 1
      %s997 = scalar_lea.vmem %s8, %s996
      %p998 = scmp.lt.s32.totalorder %s37, 1
      %s999 = scalar_select %p998, %s37, 1
      %s1000 = scalar_lea.vmem %s9, %s999
      %p1001 = scmp.lt.s32.totalorder %s37, 1
      %s1002 = scalar_select %p1001, %s37, 1
      %s1003 = smul.addr %s1002, 4
      %s1004 = smul.addr %s1003, 4
      %s1005 = scalar_lea.vmem %s10, %s1004
      %p1006 = scmp.lt.s32.totalorder %s37, 1
      %s1007 = scalar_select %p1006, %s37, 1
      %s1008 = scalar_lea.vmem %s11, %s1007
      %p1009 = scmp.lt.s32.totalorder %s37, 1
      %s1010 = scalar_select %p1009, %s37, 1
      %s1011 = smul.addr %s1010, 4
      %s1012 = smul.addr %s1011, 4
      %s1013 = scalar_lea.vmem %s12, %s1012
      %p1014 = scmp.lt.s32.totalorder %s37, 1
      %s1015 = scalar_select %p1014, %s37, 1
      %s1016 = scalar_lea.vmem %s13, %s1015
      %p1017 = scmp.lt.s32.totalorder %s37, 1
      %s1018 = scalar_select %p1017, %s37, 1
      %s1019 = scalar_lea.vmem %s14, %s1018
      %p1020 = scmp.lt.s32.totalorder %s37, 1
      %s1021 = scalar_select %p1020, %s37, 1
      %s1022 = scalar_lea.vmem %s15, %s1021
      %p1023 = scmp.lt.s32.totalorder %s37, 1
      %s1024 = scalar_select %p1023, %s37, 1
      %s1025 = smul.addr %s1024, 4
      %s1026 = smul.addr %s1025, 4
      %s1027 = scalar_lea.vmem %s16, %s1026
      %p1028 = scmp.lt.s32.totalorder %s37, 1
      %s1029 = scalar_select %p1028, %s37, 1
      %s1030 = scalar_lea.vmem %s17, %s1029
      %p1031 = scmp.lt.s32.totalorder %s37, 1
      %s1032 = scalar_select %p1031, %s37, 1
      %s1033 = smul.addr %s1032, 8
      %s1034 = smul.addr %s1033, 4
      %s1035 = scalar_lea.vmem %s18, %s1034
      %p1036 = scmp.lt.s32.totalorder %s37, 1
      %s1037 = scalar_select %p1036, %s37, 1
      %s1038 = scalar_lea.vmem %s19, %s1037
      %p1039 = scmp.lt.s32.totalorder %s37, 1
      %s1040 = scalar_select %p1039, %s37, 1
      %s1041 = scalar_lea.vmem %s20, %s1040
      %p1042 = scmp.lt.s32.totalorder %s37, 1
      %s1043 = scalar_select %p1042, %s37, 1
      %s1044 = scalar_lea.vmem %s21, %s1043
      %p1046 = scmp.eq.s32.totalorder %s37, 0
      // Predicated region
      $region125: #{_lambda_.3} parent=123 // pred_check
        %p1047 = pneg %p1046
      $region126: #{_lambda_.3} parent=123 // pred_check_branch
        %1049 = sbr.rel (%p1047) target = $region128
      $region127: #{_lambda_.3} parent=123 // pred_region
        %v1050 = vld [vmem:[%s0] sm:$0xff]
        %v1051 = vld [vmem:[%s0 + $0x8] sm:$0xff]
        %vm1052 = vcmask 261120
        %1053 = vst.msk [vmem:[#allocation2] sm:$0xff] %vm1052, %v1050
        %1054 = vst.msk [vmem:[#allocation2 + $0x8] sm:$0xff] %vm1052, %v1051
      $region128: #{_lambda_.3} parent=123 // pred_fallthru
        _
      %v1055 = vld [vmem:[#allocation2] sm:$0xff]
      %v1056 = vld [vmem:[#allocation2 + $0x8] sm:$0xff]
      %v1057 = vld [vmem:[%s983] sm:$0xf]
      %v1058 = vld [vmem:[%s983 + $0x4] sm:$0xf]
      %v1059 = vld [vmem:[%s983 + $0x8] sm:$0xf]
      %v1060 = vld [vmem:[%s983 + $0xc] sm:$0xf]
      %v1061 = vld [vmem:[%s986] sm:$0x1]
      %v1062 = vld [vmem:[%s991] sm:$0xf]
      %v1063 = vld [vmem:[%s991 + $0x4] sm:$0xf]
      %v1064 = vld [vmem:[%s991 + $0x8] sm:$0xf]
      %v1065 = vld [vmem:[%s991 + $0xc] sm:$0xf]
      %v1066 = vld [vmem:[%s994] sm:$0x1]
      %v1067 = vld [vmem:[%s2] sm:$0xff]
      %v1068 = vld [vmem:[%s2 + $0x8] sm:$0xff]
      %v1069 = vpack.c.bf16 %v1056, %v1055
      %v1071 = vlaneseq
      %v1072 = vshrl.u32 %v1071, 7
      %v1073 = vsub.s32 0, %v1072
      %v1074 = vrot.slane %v1061, %v1073
      %v1080 = vunpack.c.l.b16 %v1057
      %v1081 = vunpack.c.l.b16 %v1058
      %v1082 = vunpack.c.l.b16 %v1059
      %v1083 = vunpack.c.l.b16 %v1060
      %v1084 = vpack.c.b16 %v1081, %v1080
      %v1085 = vpack.c.b16 %v1083, %v1082
      %vm1088 = vcmask 261120
      %v1090 = vsel %vm1088, %v1069, 0
      %1092 = vmatprep.subr.bf16.mxu0 0
      %1093 = vmatpush1.bf16.msra.mxu0 0
      %1094 = vmatprep.subr.bf16.mxu0 0
      %1095 = vmatpush1.bf16.msra.mxu0 0
      %1096 = vmatprep.subr.bf16.mxu0 0
      %1097 = vmatpush1.bf16.msra.mxu0 0
      %1098 = vmatprep.subr.bf16.mxu0 0
      %1099 = vmatpush1.bf16.msra.mxu0 0
      %1100 = vmatprep.subr.bf16.mxu0 0
      %1101 = vmatpush1.bf16.msra.mxu0 0
      %1102 = vmatprep.subr.bf16.mxu0 0
      %1103 = vmatpush1.bf16.msra.mxu0 0
      %1104 = vmatprep.subr.bf16.mxu0 0
      %1105 = vmatpush1.bf16.msra.mxu0 %v1085
      %1106 = vmatprep.subr.bf16.mxu0 0
      %1107 = vmatpush1.bf16.msra.mxu0 %v1084
      %1108 = vmatprep.subr.bf16.mxu0 0
      %1109 = vmatpush2.bf16.msra.mxu0 0
      %1110 = vmatprep.subr.bf16.mxu0 0
      %1111 = vmatpush2.bf16.msra.mxu0 0
      %1112 = vmatprep.subr.bf16.mxu0 0
      %1113 = vmatpush2.bf16.msra.mxu0 0
      %1114 = vmatprep.subr.bf16.mxu0 0
      %1115 = vmatpush2.bf16.msra.mxu0 0
      %1116 = vmatprep.subr.bf16.mxu0 0
      %1117 = vmatpush2.bf16.msra.mxu0 0
      %1118 = vmatprep.subr.bf16.mxu0 0
      %1119 = vmatpush2.bf16.msra.mxu0 0
      %1120 = vmatprep.subr.bf16.mxu0 0
      %1121 = vmatpush2.bf16.msra.mxu0 0
      %1122 = vmatprep.subr.bf16.mxu0 0
      %1123 = vmatpush2.bf16.msra.mxu0 0
      %1124 = vmatprep.mubr.bf16.mxu0 0
      %1125 = vmatmul.mubr.bf16.gmra.mxu0 %v1090
      %v1126 = vpop.f32.mrf.mxu0
      %v1127 = vadd.f32 %v1074, %v1126
      %v1128 = vpop.f32.mrf.mxu0
      %v1129 = vpop.f32.mrf.mxu0
      %v1130 = vadd.f32 %v1074, %v1129
      %v1131 = vpop.f32.mrf.mxu0
      %1132 = vdwg.mxu0
      %v1133 = vpack.c.bf16 %v1130, %v1127
      %v1135 = vunpack.c.l.b16 %v1133
      %v1136 = vunpack.c.h.b16 %v1133
      %v1137 = vpack.c.b16 %v1135, %v1135
      %v1138 = vpack.c.b16 %v1136, %v1136
      %1139 = vrot.lane.b32.xlu0 %v1137, 96
      %v1140 = vpop.permute.xlu0 %1139
      %vm1141 = vcmask 64512
      %v1143 = vsel %vm1141, %v1137, 0
      %v1146 = vsel %vm1141, %v1140, 0
      %1148 = vmatprep.subr.bf16.mxu0 0
      %1149 = vmatpush1.bf16.xpose.msra.mxu0 0
      %1150 = vmatprep.subr.bf16.mxu0 0
      %1151 = vmatpush1.bf16.xpose.msra.mxu0 0
      %1152 = vmatprep.subr.bf16.mxu0 0
      %1153 = vmatpush1.bf16.xpose.msra.mxu0 0
      %1154 = vmatprep.subr.bf16.mxu0 0
      %1155 = vmatpush1.bf16.xpose.msra.mxu0 0
      %1156 = vmatprep.subr.bf16.mxu0 0
      %1157 = vmatpush1.bf16.xpose.msra.mxu0 0
      %1158 = vmatprep.subr.bf16.mxu0 0
      %1159 = vmatpush1.bf16.xpose.msra.mxu0 0
      %1160 = vmatprep.subr.bf16.mxu0 0
      %1161 = vmatpush1.bf16.xpose.msra.mxu0 0
      %1162 = vmatprep.subr.bf16.mxu0 0
      %1163 = vmatpush1.bf16.xpose.msra.mxu0 %v1146
      %1164 = vmatprep.subr.bf16.mxu0 0
      %1165 = vmatpush2.bf16.xpose.msra.mxu0 0
      %1166 = vmatprep.subr.bf16.mxu0 0
      %1167 = vmatpush2.bf16.xpose.msra.mxu0 0
      %1168 = vmatprep.subr.bf16.mxu0 0
      %1169 = vmatpush2.bf16.xpose.msra.mxu0 0
      %1170 = vmatprep.subr.bf16.mxu0 0
      %1171 = vmatpush2.bf16.xpose.msra.mxu0 0
      %1172 = vmatprep.subr.bf16.mxu0 0
      %1173 = vmatpush2.bf16.xpose.msra.mxu0 0
      %1174 = vmatprep.subr.bf16.mxu0 0
      %1175 = vmatpush2.bf16.xpose.msra.mxu0 0
      %1176 = vmatprep.subr.bf16.mxu0 0
      %1177 = vmatpush2.bf16.xpose.msra.mxu0 0
      %1178 = vmatprep.subr.bf16.mxu0 0
      %1179 = vmatpush2.bf16.xpose.msra.mxu0 0
      %1180 = vmatprep.mubr.bf16.mxu0 0
      %1181 = vmatmul.mubr.bf16.gmra.mxu0 %v1143
      %v1182 = vpop.f32.mrf.mxu0
      %v1183 = vadd.f32 %v1067, %v1182
      %v1184 = vpop.f32.mrf.mxu0
      %v1185 = vpop.f32.mrf.mxu0
      %v1186 = vpop.f32.mrf.mxu0
      %1187 = vdwg.mxu0
      %1188 = vrot.lane.b32.xlu0 %v1138, 96
      %v1189 = vpop.permute.xlu0 %1188
      %v1191 = vsel %vm1141, %v1138, 0
      %v1194 = vsel %vm1141, %v1189, 0
      %1196 = vmatprep.subr.bf16.mxu0 0
      %1197 = vmatpush1.bf16.xpose.msra.mxu0 0
      %1198 = vmatprep.subr.bf16.mxu0 0
      %1199 = vmatpush1.bf16.xpose.msra.mxu0 0
      %1200 = vmatprep.subr.bf16.mxu0 0
      %1201 = vmatpush1.bf16.xpose.msra.mxu0 0
      %1202 = vmatprep.subr.bf16.mxu0 0
      %1203 = vmatpush1.bf16.xpose.msra.mxu0 0
      %1204 = vmatprep.subr.bf16.mxu0 0
      %1205 = vmatpush1.bf16.xpose.msra.mxu0 0
      %1206 = vmatprep.subr.bf16.mxu0 0
      %1207 = vmatpush1.bf16.xpose.msra.mxu0 0
      %1208 = vmatprep.subr.bf16.mxu0 0
      %1209 = vmatpush1.bf16.xpose.msra.mxu0 0
      %1210 = vmatprep.subr.bf16.mxu0 0
      %1211 = vmatpush1.bf16.xpose.msra.mxu0 %v1194
      %1212 = vmatprep.subr.bf16.mxu0 0
      %1213 = vmatpush2.bf16.xpose.msra.mxu0 0
      %1214 = vmatprep.subr.bf16.mxu0 0
      %1215 = vmatpush2.bf16.xpose.msra.mxu0 0
      %1216 = vmatprep.subr.bf16.mxu0 0
      %1217 = vmatpush2.bf16.xpose.msra.mxu0 0
      %1218 = vmatprep.subr.bf16.mxu0 0
      %1219 = vmatpush2.bf16.xpose.msra.mxu0 0
      %1220 = vmatprep.subr.bf16.mxu0 0
      %1221 = vmatpush2.bf16.xpose.msra.mxu0 0
      %1222 = vmatprep.subr.bf16.mxu0 0
      %1223 = vmatpush2.bf16.xpose.msra.mxu0 0
      %1224 = vmatprep.subr.bf16.mxu0 0
      %1225 = vmatpush2.bf16.xpose.msra.mxu0 0
      %1226 = vmatprep.subr.bf16.mxu0 0
      %1227 = vmatpush2.bf16.xpose.msra.mxu0 0
      %1228 = vmatprep.mubr.bf16.mxu0 0
      %1229 = vmatmul.mubr.bf16.gmra.mxu0 %v1191
      %v1230 = vpop.f32.mrf.mxu0
      %v1231 = vadd.f32 %v1068, %v1230
      %v1232 = vpop.f32.mrf.mxu0
      %v1233 = vpop.f32.mrf.mxu0
      %v1234 = vpop.f32.mrf.mxu0
      %1235 = vdwg.mxu0
      %v1236 = vsel %vm1141, %v1183, -inf
      %1237 = vmax.xlane.f32.xlu0 %v1236
      %v1238 = vpop.xlane.xlu0 %1237
      %v1239 = vsel %vm1141, %v1231, -inf
      %1240 = vmax.xlane.f32.xlu0 %v1239
      %v1241 = vpop.xlane.xlu0 %1240
      %v1242 = vsub.f32 %v1183, %v1238
      %v1243 = vsub.f32 %v1231, %v1241
      %v1244 = vmul.f32 %v1242, 1.442695
      %v1245 = vpow.pop %v1244
      %v1246 = vmul.f32 %v1243, 1.442695
      %v1247 = vpow.pop %v1246
      %v1248 = vsel %vm1141, %v1245, 0.0
      %1249 = vadd.xlane.f32.xlu0 %v1248
      %v1250 = vpop.xlane.xlu0 %1249
      %v1251 = vsel %vm1141, %v1247, 0.0
      %1252 = vadd.xlane.f32.xlu0 %v1251
      %v1253 = vpop.xlane.xlu0 %1252
      %v1254 = vrcp.pop %v1250
      %v1255 = vrcp.pop %v1253
      %v1256 = vmul.f32 %v1245, %v1254
      %v1257 = vmul.f32 %v1247, %v1255
      %v1258 = vpack.c.bf16 %v1256, %v1256
      %v1259 = vpack.c.bf16 %v1257, %v1257
      %1260 = vrot.lane.b32.xlu0 %v1137, 64
      %v1261 = vpop.permute.xlu0 %1260
      %v1263 = vsel %vm1141, %v1258, 0
      %vm1265 = vcmask 1043456
      %v1267 = vsel %vm1265, %v1261, 0
      %1269 = vmatprep.subr.bf16.mxu0 0
      %1270 = vmatpush1.bf16.msra.mxu0 0
      %1271 = vmatprep.subr.bf16.mxu0 0
      %1272 = vmatpush1.bf16.msra.mxu0 0
      %1273 = vmatprep.subr.bf16.mxu0 0
      %1274 = vmatpush1.bf16.msra.mxu0 0
      %1275 = vmatprep.subr.bf16.mxu0 0
      %1276 = vmatpush1.bf16.msra.mxu0 0
      %1277 = vmatprep.subr.bf16.mxu0 0
      %1278 = vmatpush1.bf16.msra.mxu0 0
      %1279 = vmatprep.subr.bf16.mxu0 0
      %1280 = vmatpush1.bf16.msra.mxu0 0
      %1281 = vmatprep.subr.bf16.mxu0 0
      %1282 = vmatpush1.bf16.msra.mxu0 0
      %1283 = vmatprep.subr.bf16.mxu0 0
      %1284 = vmatpush1.bf16.msra.mxu0 %v1267
      %1285 = vmatprep.subr.bf16.mxu0 0
      %1286 = vmatpush2.bf16.msra.mxu0 0
      %1287 = vmatprep.subr.bf16.mxu0 0
      %1288 = vmatpush2.bf16.msra.mxu0 0
      %1289 = vmatprep.subr.bf16.mxu0 0
      %1290 = vmatpush2.bf16.msra.mxu0 0
      %1291 = vmatprep.subr.bf16.mxu0 0
      %1292 = vmatpush2.bf16.msra.mxu0 0
      %1293 = vmatprep.subr.bf16.mxu0 0
      %1294 = vmatpush2.bf16.msra.mxu0 0
      %1295 = vmatprep.subr.bf16.mxu0 0
      %1296 = vmatpush2.bf16.msra.mxu0 0
      %1297 = vmatprep.subr.bf16.mxu0 0
      %1298 = vmatpush2.bf16.msra.mxu0 0
      %1299 = vmatprep.subr.bf16.mxu0 0
      %1300 = vmatpush2.bf16.msra.mxu0 0
      %1301 = vmatprep.mubr.bf16.mxu0 0
      %1302 = vmatmul.mubr.bf16.gmra.mxu0 %v1263
      %v1303 = vpop.f32.mrf.mxu0
      %v1304 = vadd.f32 0.0, %v1303
      %v1305 = vpop.f32.mrf.mxu0
      %v1306 = vpop.f32.mrf.mxu0
      %v1307 = vpop.f32.mrf.mxu0
      %1308 = vdwg.mxu0
      %1309 = vrot.lane.b32.xlu0 %v1138, 64
      %v1310 = vpop.permute.xlu0 %1309
      %v1312 = vsel %vm1141, %v1259, 0
      %v1315 = vsel %vm1265, %v1310, 0
      %1317 = vmatprep.subr.bf16.mxu0 0
      %1318 = vmatpush1.bf16.msra.mxu0 0
      %1319 = vmatprep.subr.bf16.mxu0 0
      %1320 = vmatpush1.bf16.msra.mxu0 0
      %1321 = vmatprep.subr.bf16.mxu0 0
      %1322 = vmatpush1.bf16.msra.mxu0 0
      %1323 = vmatprep.subr.bf16.mxu0 0
      %1324 = vmatpush1.bf16.msra.mxu0 0
      %1325 = vmatprep.subr.bf16.mxu0 0
      %1326 = vmatpush1.bf16.msra.mxu0 0
      %1327 = vmatprep.subr.bf16.mxu0 0
      %1328 = vmatpush1.bf16.msra.mxu0 0
      %1329 = vmatprep.subr.bf16.mxu0 0
      %1330 = vmatpush1.bf16.msra.mxu0 0
      %1331 = vmatprep.subr.bf16.mxu0 0
      %1332 = vmatpush1.bf16.msra.mxu0 %v1315
      %1333 = vmatprep.subr.bf16.mxu0 0
      %1334 = vmatpush2.bf16.msra.mxu0 0
      %1335 = vmatprep.subr.bf16.mxu0 0
      %1336 = vmatpush2.bf16.msra.mxu0 0
      %1337 = vmatprep.subr.bf16.mxu0 0
      %1338 = vmatpush2.bf16.msra.mxu0 0
      %1339 = vmatprep.subr.bf16.mxu0 0
      %1340 = vmatpush2.bf16.msra.mxu0 0
      %1341 = vmatprep.subr.bf16.mxu0 0
      %1342 = vmatpush2.bf16.msra.mxu0 0
      %1343 = vmatprep.subr.bf16.mxu0 0
      %1344 = vmatpush2.bf16.msra.mxu0 0
      %1345 = vmatprep.subr.bf16.mxu0 0
      %1346 = vmatpush2.bf16.msra.mxu0 0
      %1347 = vmatprep.subr.bf16.mxu0 0
      %1348 = vmatpush2.bf16.msra.mxu0 0
      %1349 = vmatprep.mubr.bf16.mxu0 0
      %1350 = vmatmul.mubr.bf16.gmra.mxu0 %v1312
      %v1351 = vpop.f32.mrf.mxu0
      %v1352 = vadd.f32 0.0, %v1351
      %v1353 = vpop.f32.mrf.mxu0
      %v1354 = vpop.f32.mrf.mxu0
      %v1355 = vpop.f32.mrf.mxu0
      %1356 = vdwg.mxu0
      %1357 = vrot.lane.b32.xlu0 %v1137, 120
      %v1358 = vpop.permute.xlu0 %1357
      %1359 = vrot.lane.b32.xlu0 %v1137, 88
      %v1360 = vpop.permute.xlu0 %1359
      %v1362 = vsel %vm1141, %v1358, 0
      %v1365 = vsel %vm1141, %v1360, 0
      %1367 = vmatprep.subr.bf16.mxu0 0
      %1368 = vmatpush1.bf16.xpose.msra.mxu0 0
      %1369 = vmatprep.subr.bf16.mxu0 0
      %1370 = vmatpush1.bf16.xpose.msra.mxu0 0
      %1371 = vmatprep.subr.bf16.mxu0 0
      %1372 = vmatpush1.bf16.xpose.msra.mxu0 0
      %1373 = vmatprep.subr.bf16.mxu0 0
      %1374 = vmatpush1.bf16.xpose.msra.mxu0 0
      %1375 = vmatprep.subr.bf16.mxu0 0
      %1376 = vmatpush1.bf16.xpose.msra.mxu0 0
      %1377 = vmatprep.subr.bf16.mxu0 0
      %1378 = vmatpush1.bf16.xpose.msra.mxu0 0
      %1379 = vmatprep.subr.bf16.mxu0 0
      %1380 = vmatpush1.bf16.xpose.msra.mxu0 0
      %1381 = vmatprep.subr.bf16.mxu0 0
      %1382 = vmatpush1.bf16.xpose.msra.mxu0 %v1365
      %1383 = vmatprep.subr.bf16.mxu0 0
      %1384 = vmatpush2.bf16.xpose.msra.mxu0 0
      %1385 = vmatprep.subr.bf16.mxu0 0
      %1386 = vmatpush2.bf16.xpose.msra.mxu0 0
      %1387 = vmatprep.subr.bf16.mxu0 0
      %1388 = vmatpush2.bf16.xpose.msra.mxu0 0
      %1389 = vmatprep.subr.bf16.mxu0 0
      %1390 = vmatpush2.bf16.xpose.msra.mxu0 0
      %1391 = vmatprep.subr.bf16.mxu0 0
      %1392 = vmatpush2.bf16.xpose.msra.mxu0 0
      %1393 = vmatprep.subr.bf16.mxu0 0
      %1394 = vmatpush2.bf16.xpose.msra.mxu0 0
      %1395 = vmatprep.subr.bf16.mxu0 0
      %1396 = vmatpush2.bf16.xpose.msra.mxu0 0
      %1397 = vmatprep.subr.bf16.mxu0 0
      %1398 = vmatpush2.bf16.xpose.msra.mxu0 0
      %1399 = vmatprep.mubr.bf16.mxu0 0
      %1400 = vmatmul.mubr.bf16.gmra.mxu0 %v1362
      %v1401 = vpop.f32.mrf.mxu0
      %v1402 = vadd.f32 %v1067, %v1401
      %v1403 = vpop.f32.mrf.mxu0
      %v1404 = vpop.f32.mrf.mxu0
      %v1405 = vpop.f32.mrf.mxu0
      %1406 = vdwg.mxu0
      %1407 = vrot.lane.b32.xlu0 %v1138, 120
      %v1408 = vpop.permute.xlu0 %1407
      %1409 = vrot.lane.b32.xlu0 %v1138, 88
      %v1410 = vpop.permute.xlu0 %1409
      %v1412 = vsel %vm1141, %v1408, 0
      %v1415 = vsel %vm1141, %v1410, 0
      %1417 = vmatprep.subr.bf16.mxu0 0
      %1418 = vmatpush1.bf16.xpose.msra.mxu0 0
      %1419 = vmatprep.subr.bf16.mxu0 0
      %1420 = vmatpush1.bf16.xpose.msra.mxu0 0
      %1421 = vmatprep.subr.bf16.mxu0 0
      %1422 = vmatpush1.bf16.xpose.msra.mxu0 0
      %1423 = vmatprep.subr.bf16.mxu0 0
      %1424 = vmatpush1.bf16.xpose.msra.mxu0 0
      %1425 = vmatprep.subr.bf16.mxu0 0
      %1426 = vmatpush1.bf16.xpose.msra.mxu0 0
      %1427 = vmatprep.subr.bf16.mxu0 0
      %1428 = vmatpush1.bf16.xpose.msra.mxu0 0
      %1429 = vmatprep.subr.bf16.mxu0 0
      %1430 = vmatpush1.bf16.xpose.msra.mxu0 0
      %1431 = vmatprep.subr.bf16.mxu0 0
      %1432 = vmatpush1.bf16.xpose.msra.mxu0 %v1415
      %1433 = vmatprep.subr.bf16.mxu0 0
      %1434 = vmatpush2.bf16.xpose.msra.mxu0 0
      %1435 = vmatprep.subr.bf16.mxu0 0
      %1436 = vmatpush2.bf16.xpose.msra.mxu0 0
      %1437 = vmatprep.subr.bf16.mxu0 0
      %1438 = vmatpush2.bf16.xpose.msra.mxu0 0
      %1439 = vmatprep.subr.bf16.mxu0 0
      %1440 = vmatpush2.bf16.xpose.msra.mxu0 0
      %1441 = vmatprep.subr.bf16.mxu0 0
      %1442 = vmatpush2.bf16.xpose.msra.mxu0 0
      %1443 = vmatprep.subr.bf16.mxu0 0
      %1444 = vmatpush2.bf16.xpose.msra.mxu0 0
      %1445 = vmatprep.subr.bf16.mxu0 0
      %1446 = vmatpush2.bf16.xpose.msra.mxu0 0
      %1447 = vmatprep.subr.bf16.mxu0 0
      %1448 = vmatpush2.bf16.xpose.msra.mxu0 0
      %1449 = vmatprep.mubr.bf16.mxu0 0
      %1450 = vmatmul.mubr.bf16.gmra.mxu0 %v1412
      %v1451 = vpop.f32.mrf.mxu0
      %v1452 = vadd.f32 %v1068, %v1451
      %v1453 = vpop.f32.mrf.mxu0
      %v1454 = vpop.f32.mrf.mxu0
      %v1455 = vpop.f32.mrf.mxu0
      %1456 = vdwg.mxu0
      %v1457 = vsel %vm1141, %v1402, -inf
      %1458 = vmax.xlane.f32.xlu0 %v1457
      %v1459 = vpop.xlane.xlu0 %1458
      %v1460 = vsel %vm1141, %v1452, -inf
      %1461 = vmax.xlane.f32.xlu0 %v1460
      %v1462 = vpop.xlane.xlu0 %1461
      %v1463 = vsub.f32 %v1402, %v1459
      %v1464 = vsub.f32 %v1452, %v1462
      %v1465 = vmul.f32 %v1463, 1.442695
      %v1466 = vpow.pop %v1465
      %v1467 = vmul.f32 %v1464, 1.442695
      %v1468 = vpow.pop %v1467
      %v1469 = vsel %vm1141, %v1466, 0.0
      %1470 = vadd.xlane.f32.xlu0 %v1469
      %v1471 = vpop.xlane.xlu0 %1470
      %v1472 = vsel %vm1141, %v1468, 0.0
      %1473 = vadd.xlane.f32.xlu0 %v1472
      %v1474 = vpop.xlane.xlu0 %1473
      %v1475 = vrcp.pop %v1471
      %v1476 = vrcp.pop %v1474
      %v1477 = vmul.f32 %v1466, %v1475
      %v1478 = vmul.f32 %v1468, %v1476
      %v1479 = vpack.c.bf16 %v1477, %v1477
      %v1480 = vpack.c.bf16 %v1478, %v1478
      %1481 = vrot.lane.b32.xlu0 %v1137, 56
      %v1482 = vpop.permute.xlu0 %1481
      %v1484 = vsel %vm1141, %v1479, 0
      %v1487 = vsel %vm1265, %v1482, 0
      %1489 = vmatprep.subr.bf16.mxu0 0
      %1490 = vmatpush1.bf16.msra.mxu0 0
      %1491 = vmatprep.subr.bf16.mxu0 0
      %1492 = vmatpush1.bf16.msra.mxu0 0
      %1493 = vmatprep.subr.bf16.mxu0 0
      %1494 = vmatpush1.bf16.msra.mxu0 0
      %1495 = vmatprep.subr.bf16.mxu0 0
      %1496 = vmatpush1.bf16.msra.mxu0 0
      %1497 = vmatprep.subr.bf16.mxu0 0
      %1498 = vmatpush1.bf16.msra.mxu0 0
      %1499 = vmatprep.subr.bf16.mxu0 0
      %1500 = vmatpush1.bf16.msra.mxu0 0
      %1501 = vmatprep.subr.bf16.mxu0 0
      %1502 = vmatpush1.bf16.msra.mxu0 0
      %1503 = vmatprep.subr.bf16.mxu0 0
      %1504 = vmatpush1.bf16.msra.mxu0 %v1487
      %1505 = vmatprep.subr.bf16.mxu0 0
      %1506 = vmatpush2.bf16.msra.mxu0 0
      %1507 = vmatprep.subr.bf16.mxu0 0
      %1508 = vmatpush2.bf16.msra.mxu0 0
      %1509 = vmatprep.subr.bf16.mxu0 0
      %1510 = vmatpush2.bf16.msra.mxu0 0
      %1511 = vmatprep.subr.bf16.mxu0 0
      %1512 = vmatpush2.bf16.msra.mxu0 0
      %1513 = vmatprep.subr.bf16.mxu0 0
      %1514 = vmatpush2.bf16.msra.mxu0 0
      %1515 = vmatprep.subr.bf16.mxu0 0
      %1516 = vmatpush2.bf16.msra.mxu0 0
      %1517 = vmatprep.subr.bf16.mxu0 0
      %1518 = vmatpush2.bf16.msra.mxu0 0
      %1519 = vmatprep.subr.bf16.mxu0 0
      %1520 = vmatpush2.bf16.msra.mxu0 0
      %1521 = vmatprep.mubr.bf16.mxu0 0
      %1522 = vmatmul.mubr.bf16.gmra.mxu0 %v1484
      %v1523 = vpop.f32.mrf.mxu0
      %v1524 = vadd.f32 0.0, %v1523
      %v1525 = vpop.f32.mrf.mxu0
      %v1526 = vpop.f32.mrf.mxu0
      %v1527 = vpop.f32.mrf.mxu0
      %1528 = vdwg.mxu0
      %1529 = vrot.lane.b32.xlu0 %v1138, 56
      %v1530 = vpop.permute.xlu0 %1529
      %v1532 = vsel %vm1141, %v1480, 0
      %v1535 = vsel %vm1265, %v1530, 0
      %1537 = vmatprep.subr.bf16.mxu0 0
      %1538 = vmatpush1.bf16.msra.mxu0 0
      %1539 = vmatprep.subr.bf16.mxu0 0
      %1540 = vmatpush1.bf16.msra.mxu0 0
      %1541 = vmatprep.subr.bf16.mxu0 0
      %1542 = vmatpush1.bf16.msra.mxu0 0
      %1543 = vmatprep.subr.bf16.mxu0 0
      %1544 = vmatpush1.bf16.msra.mxu0 0
      %1545 = vmatprep.subr.bf16.mxu0 0
      %1546 = vmatpush1.bf16.msra.mxu0 0
      %1547 = vmatprep.subr.bf16.mxu0 0
      %1548 = vmatpush1.bf16.msra.mxu0 0
      %1549 = vmatprep.subr.bf16.mxu0 0
      %1550 = vmatpush1.bf16.msra.mxu0 0
      %1551 = vmatprep.subr.bf16.mxu0 0
      %1552 = vmatpush1.bf16.msra.mxu0 %v1535
      %1553 = vmatprep.subr.bf16.mxu0 0
      %1554 = vmatpush2.bf16.msra.mxu0 0
      %1555 = vmatprep.subr.bf16.mxu0 0
      %1556 = vmatpush2.bf16.msra.mxu0 0
      %1557 = vmatprep.subr.bf16.mxu0 0
      %1558 = vmatpush2.bf16.msra.mxu0 0
      %1559 = vmatprep.subr.bf16.mxu0 0
      %1560 = vmatpush2.bf16.msra.mxu0 0
      %1561 = vmatprep.subr.bf16.mxu0 0
      %1562 = vmatpush2.bf16.msra.mxu0 0
      %1563 = vmatprep.subr.bf16.mxu0 0
      %1564 = vmatpush2.bf16.msra.mxu0 0
      %1565 = vmatprep.subr.bf16.mxu0 0
      %1566 = vmatpush2.bf16.msra.mxu0 0
      %1567 = vmatprep.subr.bf16.mxu0 0
      %1568 = vmatpush2.bf16.msra.mxu0 0
      %1569 = vmatprep.mubr.bf16.mxu0 0
      %1570 = vmatmul.mubr.bf16.gmra.mxu0 %v1532
      %v1571 = vpop.f32.mrf.mxu0
      %v1572 = vadd.f32 0.0, %v1571
      %v1573 = vpop.f32.mrf.mxu0
      %v1574 = vpop.f32.mrf.mxu0
      %v1575 = vpop.f32.mrf.mxu0
      %1576 = vdwg.mxu0
      %1577 = vrot.lane.b32.xlu0 %v1137, 112
      %v1578 = vpop.permute.xlu0 %1577
      %1579 = vrot.lane.b32.xlu0 %v1137, 80
      %v1580 = vpop.permute.xlu0 %1579
      %v1582 = vsel %vm1141, %v1578, 0
      %v1585 = vsel %vm1141, %v1580, 0
      %1587 = vmatprep.subr.bf16.mxu0 0
      %1588 = vmatpush1.bf16.xpose.msra.mxu0 0
      %1589 = vmatprep.subr.bf16.mxu0 0
      %1590 = vmatpush1.bf16.xpose.msra.mxu0 0
      %1591 = vmatprep.subr.bf16.mxu0 0
      %1592 = vmatpush1.bf16.xpose.msra.mxu0 0
      %1593 = vmatprep.subr.bf16.mxu0 0
      %1594 = vmatpush1.bf16.xpose.msra.mxu0 0
      %1595 = vmatprep.subr.bf16.mxu0 0
      %1596 = vmatpush1.bf16.xpose.msra.mxu0 0
      %1597 = vmatprep.subr.bf16.mxu0 0
      %1598 = vmatpush1.bf16.xpose.msra.mxu0 0
      %1599 = vmatprep.subr.bf16.mxu0 0
      %1600 = vmatpush1.bf16.xpose.msra.mxu0 0
      %1601 = vmatprep.subr.bf16.mxu0 0
      %1602 = vmatpush1.bf16.xpose.msra.mxu0 %v1585
      %1603 = vmatprep.subr.bf16.mxu0 0
      %1604 = vmatpush2.bf16.xpose.msra.mxu0 0
      %1605 = vmatprep.subr.bf16.mxu0 0
      %1606 = vmatpush2.bf16.xpose.msra.mxu0 0
      %1607 = vmatprep.subr.bf16.mxu0 0
      %1608 = vmatpush2.bf16.xpose.msra.mxu0 0
      %1609 = vmatprep.subr.bf16.mxu0 0
      %1610 = vmatpush2.bf16.xpose.msra.mxu0 0
      %1611 = vmatprep.subr.bf16.mxu0 0
      %1612 = vmatpush2.bf16.xpose.msra.mxu0 0
      %1613 = vmatprep.subr.bf16.mxu0 0
      %1614 = vmatpush2.bf16.xpose.msra.mxu0 0
      %1615 = vmatprep.subr.bf16.mxu0 0
      %1616 = vmatpush2.bf16.xpose.msra.mxu0 0
      %1617 = vmatprep.subr.bf16.mxu0 0
      %1618 = vmatpush2.bf16.xpose.msra.mxu0 0
      %1619 = vmatprep.mubr.bf16.mxu0 0
      %1620 = vmatmul.mubr.bf16.gmra.mxu0 %v1582
      %v1621 = vpop.f32.mrf.mxu0
      %v1622 = vadd.f32 %v1067, %v1621
      %v1623 = vpop.f32.mrf.mxu0
      %v1624 = vpop.f32.mrf.mxu0
      %v1625 = vpop.f32.mrf.mxu0
      %1626 = vdwg.mxu0
      %1627 = vrot.lane.b32.xlu0 %v1138, 112
      %v1628 = vpop.permute.xlu0 %1627
      %1629 = vrot.lane.b32.xlu0 %v1138, 80
      %v1630 = vpop.permute.xlu0 %1629
      %v1632 = vsel %vm1141, %v1628, 0
      %v1635 = vsel %vm1141, %v1630, 0
      %1637 = vmatprep.subr.bf16.mxu0 0
      %1638 = vmatpush1.bf16.xpose.msra.mxu0 0
      %1639 = vmatprep.subr.bf16.mxu0 0
      %1640 = vmatpush1.bf16.xpose.msra.mxu0 0
      %1641 = vmatprep.subr.bf16.mxu0 0
      %1642 = vmatpush1.bf16.xpose.msra.mxu0 0
      %1643 = vmatprep.subr.bf16.mxu0 0
      %1644 = vmatpush1.bf16.xpose.msra.mxu0 0
      %1645 = vmatprep.subr.bf16.mxu0 0
      %1646 = vmatpush1.bf16.xpose.msra.mxu0 0
      %1647 = vmatprep.subr.bf16.mxu0 0
      %1648 = vmatpush1.bf16.xpose.msra.mxu0 0
      %1649 = vmatprep.subr.bf16.mxu0 0
      %1650 = vmatpush1.bf16.xpose.msra.mxu0 0
      %1651 = vmatprep.subr.bf16.mxu0 0
      %1652 = vmatpush1.bf16.xpose.msra.mxu0 %v1635
      %1653 = vmatprep.subr.bf16.mxu0 0
      %1654 = vmatpush2.bf16.xpose.msra.mxu0 0
      %1655 = vmatprep.subr.bf16.mxu0 0
      %1656 = vmatpush2.bf16.xpose.msra.mxu0 0
      %1657 = vmatprep.subr.bf16.mxu0 0
      %1658 = vmatpush2.bf16.xpose.msra.mxu0 0
      %1659 = vmatprep.subr.bf16.mxu0 0
      %1660 = vmatpush2.bf16.xpose.msra.mxu0 0
      %1661 = vmatprep.subr.bf16.mxu0 0
      %1662 = vmatpush2.bf16.xpose.msra.mxu0 0
      %1663 = vmatprep.subr.bf16.mxu0 0
      %1664 = vmatpush2.bf16.xpose.msra.mxu0 0
      %1665 = vmatprep.subr.bf16.mxu0 0
      %1666 = vmatpush2.bf16.xpose.msra.mxu0 0
      %1667 = vmatprep.subr.bf16.mxu0 0
      %1668 = vmatpush2.bf16.xpose.msra.mxu0 0
      %1669 = vmatprep.mubr.bf16.mxu0 0
      %1670 = vmatmul.mubr.bf16.gmra.mxu0 %v1632
      %v1671 = vpop.f32.mrf.mxu0
      %v1672 = vadd.f32 %v1068, %v1671
      %v1673 = vpop.f32.mrf.mxu0
      %v1674 = vpop.f32.mrf.mxu0
      %v1675 = vpop.f32.mrf.mxu0
      %1676 = vdwg.mxu0
      %v1677 = vsel %vm1141, %v1622, -inf
      %1678 = vmax.xlane.f32.xlu0 %v1677
      %v1679 = vpop.xlane.xlu0 %1678
      %v1680 = vsel %vm1141, %v1672, -inf
      %1681 = vmax.xlane.f32.xlu0 %v1680
      %v1682 = vpop.xlane.xlu0 %1681
      %v1683 = vsub.f32 %v1622, %v1679
      %v1684 = vsub.f32 %v1672, %v1682
      %v1685 = vmul.f32 %v1683, 1.442695
      %v1686 = vpow.pop %v1685
      %v1687 = vmul.f32 %v1684, 1.442695
      %v1688 = vpow.pop %v1687
      %v1689 = vsel %vm1141, %v1686, 0.0
      %1690 = vadd.xlane.f32.xlu0 %v1689
      %v1691 = vpop.xlane.xlu0 %1690
      %v1692 = vsel %vm1141, %v1688, 0.0
      %1693 = vadd.xlane.f32.xlu0 %v1692
      %v1694 = vpop.xlane.xlu0 %1693
      %v1695 = vrcp.pop %v1691
      %v1696 = vrcp.pop %v1694
      %v1697 = vmul.f32 %v1686, %v1695
      %v1698 = vmul.f32 %v1688, %v1696
      %v1699 = vpack.c.bf16 %v1697, %v1697
      %v1700 = vpack.c.bf16 %v1698, %v1698
      %1701 = vrot.lane.b32.xlu0 %v1137, 48
      %v1702 = vpop.permute.xlu0 %1701
      %v1704 = vsel %vm1141, %v1699, 0
      %v1707 = vsel %vm1265, %v1702, 0
      %1709 = vmatprep.subr.bf16.mxu0 0
      %1710 = vmatpush1.bf16.msra.mxu0 0
      %1711 = vmatprep.subr.bf16.mxu0 0
      %1712 = vmatpush1.bf16.msra.mxu0 0
      %1713 = vmatprep.subr.bf16.mxu0 0
      %1714 = vmatpush1.bf16.msra.mxu0 0
      %1715 = vmatprep.subr.bf16.mxu0 0
      %1716 = vmatpush1.bf16.msra.mxu0 0
      %1717 = vmatprep.subr.bf16.mxu0 0
      %1718 = vmatpush1.bf16.msra.mxu0 0
      %1719 = vmatprep.subr.bf16.mxu0 0
      %1720 = vmatpush1.bf16.msra.mxu0 0
      %1721 = vmatprep.subr.bf16.mxu0 0
      %1722 = vmatpush1.bf16.msra.mxu0 0
      %1723 = vmatprep.subr.bf16.mxu0 0
      %1724 = vmatpush1.bf16.msra.mxu0 %v1707
      %1725 = vmatprep.subr.bf16.mxu0 0
      %1726 = vmatpush2.bf16.msra.mxu0 0
      %1727 = vmatprep.subr.bf16.mxu0 0
      %1728 = vmatpush2.bf16.msra.mxu0 0
      %1729 = vmatprep.subr.bf16.mxu0 0
      %1730 = vmatpush2.bf16.msra.mxu0 0
      %1731 = vmatprep.subr.bf16.mxu0 0
      %1732 = vmatpush2.bf16.msra.mxu0 0
      %1733 = vmatprep.subr.bf16.mxu0 0
      %1734 = vmatpush2.bf16.msra.mxu0 0
      %1735 = vmatprep.subr.bf16.mxu0 0
      %1736 = vmatpush2.bf16.msra.mxu0 0
      %1737 = vmatprep.subr.bf16.mxu0 0
      %1738 = vmatpush2.bf16.msra.mxu0 0
      %1739 = vmatprep.subr.bf16.mxu0 0
      %1740 = vmatpush2.bf16.msra.mxu0 0
      %1741 = vmatprep.mubr.bf16.mxu0 0
      %1742 = vmatmul.mubr.bf16.gmra.mxu0 %v1704
      %v1743 = vpop.f32.mrf.mxu0
      %v1744 = vadd.f32 0.0, %v1743
      %v1745 = vpop.f32.mrf.mxu0
      %v1746 = vpop.f32.mrf.mxu0
      %v1747 = vpop.f32.mrf.mxu0
      %1748 = vdwg.mxu0
      %1749 = vrot.lane.b32.xlu0 %v1138, 48
      %v1750 = vpop.permute.xlu0 %1749
      %v1752 = vsel %vm1141, %v1700, 0
      %v1755 = vsel %vm1265, %v1750, 0
      %1757 = vmatprep.subr.bf16.mxu0 0
      %1758 = vmatpush1.bf16.msra.mxu0 0
      %1759 = vmatprep.subr.bf16.mxu0 0
      %1760 = vmatpush1.bf16.msra.mxu0 0
      %1761 = vmatprep.subr.bf16.mxu0 0
      %1762 = vmatpush1.bf16.msra.mxu0 0
      %1763 = vmatprep.subr.bf16.mxu0 0
      %1764 = vmatpush1.bf16.msra.mxu0 0
      %1765 = vmatprep.subr.bf16.mxu0 0
      %1766 = vmatpush1.bf16.msra.mxu0 0
      %1767 = vmatprep.subr.bf16.mxu0 0
      %1768 = vmatpush1.bf16.msra.mxu0 0
      %1769 = vmatprep.subr.bf16.mxu0 0
      %1770 = vmatpush1.bf16.msra.mxu0 0
      %1771 = vmatprep.subr.bf16.mxu0 0
      %1772 = vmatpush1.bf16.msra.mxu0 %v1755
      %1773 = vmatprep.subr.bf16.mxu0 0
      %1774 = vmatpush2.bf16.msra.mxu0 0
      %1775 = vmatprep.subr.bf16.mxu0 0
      %1776 = vmatpush2.bf16.msra.mxu0 0
      %1777 = vmatprep.subr.bf16.mxu0 0
      %1778 = vmatpush2.bf16.msra.mxu0 0
      %1779 = vmatprep.subr.bf16.mxu0 0
      %1780 = vmatpush2.bf16.msra.mxu0 0
      %1781 = vmatprep.subr.bf16.mxu0 0
      %1782 = vmatpush2.bf16.msra.mxu0 0
      %1783 = vmatprep.subr.bf16.mxu0 0
      %1784 = vmatpush2.bf16.msra.mxu0 0
      %1785 = vmatprep.subr.bf16.mxu0 0
      %1786 = vmatpush2.bf16.msra.mxu0 0
      %1787 = vmatprep.subr.bf16.mxu0 0
      %1788 = vmatpush2.bf16.msra.mxu0 0
      %1789 = vmatprep.mubr.bf16.mxu0 0
      %1790 = vmatmul.mubr.bf16.gmra.mxu0 %v1752
      %v1791 = vpop.f32.mrf.mxu0
      %v1792 = vadd.f32 0.0, %v1791
      %v1793 = vpop.f32.mrf.mxu0
      %v1794 = vpop.f32.mrf.mxu0
      %v1795 = vpop.f32.mrf.mxu0
      %1796 = vdwg.mxu0
      %1797 = vrot.lane.b32.xlu0 %v1137, 104
      %v1798 = vpop.permute.xlu0 %1797
      %1799 = vrot.lane.b32.xlu0 %v1137, 72
      %v1800 = vpop.permute.xlu0 %1799
      %v1802 = vsel %vm1141, %v1798, 0
      %v1805 = vsel %vm1141, %v1800, 0
      %1807 = vmatprep.subr.bf16.mxu0 0
      %1808 = vmatpush1.bf16.xpose.msra.mxu0 0
      %1809 = vmatprep.subr.bf16.mxu0 0
      %1810 = vmatpush1.bf16.xpose.msra.mxu0 0
      %1811 = vmatprep.subr.bf16.mxu0 0
      %1812 = vmatpush1.bf16.xpose.msra.mxu0 0
      %1813 = vmatprep.subr.bf16.mxu0 0
      %1814 = vmatpush1.bf16.xpose.msra.mxu0 0
      %1815 = vmatprep.subr.bf16.mxu0 0
      %1816 = vmatpush1.bf16.xpose.msra.mxu0 0
      %1817 = vmatprep.subr.bf16.mxu0 0
      %1818 = vmatpush1.bf16.xpose.msra.mxu0 0
      %1819 = vmatprep.subr.bf16.mxu0 0
      %1820 = vmatpush1.bf16.xpose.msra.mxu0 0
      %1821 = vmatprep.subr.bf16.mxu0 0
      %1822 = vmatpush1.bf16.xpose.msra.mxu0 %v1805
      %1823 = vmatprep.subr.bf16.mxu0 0
      %1824 = vmatpush2.bf16.xpose.msra.mxu0 0
      %1825 = vmatprep.subr.bf16.mxu0 0
      %1826 = vmatpush2.bf16.xpose.msra.mxu0 0
      %1827 = vmatprep.subr.bf16.mxu0 0
      %1828 = vmatpush2.bf16.xpose.msra.mxu0 0
      %1829 = vmatprep.subr.bf16.mxu0 0
      %1830 = vmatpush2.bf16.xpose.msra.mxu0 0
      %1831 = vmatprep.subr.bf16.mxu0 0
      %1832 = vmatpush2.bf16.xpose.msra.mxu0 0
      %1833 = vmatprep.subr.bf16.mxu0 0
      %1834 = vmatpush2.bf16.xpose.msra.mxu0 0
      %1835 = vmatprep.subr.bf16.mxu0 0
      %1836 = vmatpush2.bf16.xpose.msra.mxu0 0
      %1837 = vmatprep.subr.bf16.mxu0 0
      %1838 = vmatpush2.bf16.xpose.msra.mxu0 0
      %1839 = vmatprep.mubr.bf16.mxu0 0
      %1840 = vmatmul.mubr.bf16.gmra.mxu0 %v1802
      %v1841 = vpop.f32.mrf.mxu0
      %v1842 = vadd.f32 %v1067, %v1841
      %v1843 = vpop.f32.mrf.mxu0
      %v1844 = vpop.f32.mrf.mxu0
      %v1845 = vpop.f32.mrf.mxu0
      %1846 = vdwg.mxu0
      %1847 = vrot.lane.b32.xlu0 %v1138, 104
      %v1848 = vpop.permute.xlu0 %1847
      %1849 = vrot.lane.b32.xlu0 %v1138, 72
      %v1850 = vpop.permute.xlu0 %1849
      %v1852 = vsel %vm1141, %v1848, 0
      %v1855 = vsel %vm1141, %v1850, 0
      %1857 = vmatprep.subr.bf16.mxu0 0
      %1858 = vmatpush1.bf16.xpose.msra.mxu0 0
      %1859 = vmatprep.subr.bf16.mxu0 0
      %1860 = vmatpush1.bf16.xpose.msra.mxu0 0
      %1861 = vmatprep.subr.bf16.mxu0 0
      %1862 = vmatpush1.bf16.xpose.msra.mxu0 0
      %1863 = vmatprep.subr.bf16.mxu0 0
      %1864 = vmatpush1.bf16.xpose.msra.mxu0 0
      %1865 = vmatprep.subr.bf16.mxu0 0
      %1866 = vmatpush1.bf16.xpose.msra.mxu0 0
      %1867 = vmatprep.subr.bf16.mxu0 0
      %1868 = vmatpush1.bf16.xpose.msra.mxu0 0
      %1869 = vmatprep.subr.bf16.mxu0 0
      %1870 = vmatpush1.bf16.xpose.msra.mxu0 0
      %1871 = vmatprep.subr.bf16.mxu0 0
      %1872 = vmatpush1.bf16.xpose.msra.mxu0 %v1855
      %1873 = vmatprep.subr.bf16.mxu0 0
      %1874 = vmatpush2.bf16.xpose.msra.mxu0 0
      %1875 = vmatprep.subr.bf16.mxu0 0
      %1876 = vmatpush2.bf16.xpose.msra.mxu0 0
      %1877 = vmatprep.subr.bf16.mxu0 0
      %1878 = vmatpush2.bf16.xpose.msra.mxu0 0
      %1879 = vmatprep.subr.bf16.mxu0 0
      %1880 = vmatpush2.bf16.xpose.msra.mxu0 0
      %1881 = vmatprep.subr.bf16.mxu0 0
      %1882 = vmatpush2.bf16.xpose.msra.mxu0 0
      %1883 = vmatprep.subr.bf16.mxu0 0
      %1884 = vmatpush2.bf16.xpose.msra.mxu0 0
      %1885 = vmatprep.subr.bf16.mxu0 0
      %1886 = vmatpush2.bf16.xpose.msra.mxu0 0
      %1887 = vmatprep.subr.bf16.mxu0 0
      %1888 = vmatpush2.bf16.xpose.msra.mxu0 0
      %1889 = vmatprep.mubr.bf16.mxu0 0
      %1890 = vmatmul.mubr.bf16.gmra.mxu0 %v1852
      %v1891 = vpop.f32.mrf.mxu0
      %v1892 = vadd.f32 %v1068, %v1891
      %v1893 = vpop.f32.mrf.mxu0
      %v1894 = vpop.f32.mrf.mxu0
      %v1895 = vpop.f32.mrf.mxu0
      %1896 = vdwg.mxu0
      %v1897 = vsel %vm1141, %v1842, -inf
      %1898 = vmax.xlane.f32.xlu0 %v1897
      %v1899 = vpop.xlane.xlu0 %1898
      %v1900 = vsel %vm1141, %v1892, -inf
      %1901 = vmax.xlane.f32.xlu0 %v1900
      %v1902 = vpop.xlane.xlu0 %1901
      %v1903 = vsub.f32 %v1842, %v1899
      %v1904 = vsub.f32 %v1892, %v1902
      %v1905 = vmul.f32 %v1903, 1.442695
      %v1906 = vpow.pop %v1905
      %v1907 = vmul.f32 %v1904, 1.442695
      %v1908 = vpow.pop %v1907
      %v1909 = vsel %vm1141, %v1906, 0.0
      %1910 = vadd.xlane.f32.xlu0 %v1909
      %v1911 = vpop.xlane.xlu0 %1910
      %v1912 = vsel %vm1141, %v1908, 0.0
      %1913 = vadd.xlane.f32.xlu0 %v1912
      %v1914 = vpop.xlane.xlu0 %1913
      %v1915 = vrcp.pop %v1911
      %v1916 = vrcp.pop %v1914
      %v1917 = vmul.f32 %v1906, %v1915
      %v1918 = vmul.f32 %v1908, %v1916
      %v1919 = vpack.c.bf16 %v1917, %v1917
      %v1920 = vpack.c.bf16 %v1918, %v1918
      %1921 = vrot.lane.b32.xlu0 %v1137, 40
      %v1922 = vpop.permute.xlu0 %1921
      %v1924 = vsel %vm1141, %v1919, 0
      %v1927 = vsel %vm1265, %v1922, 0
      %1929 = vmatprep.subr.bf16.mxu0 0
      %1930 = vmatpush1.bf16.msra.mxu0 0
      %1931 = vmatprep.subr.bf16.mxu0 0
      %1932 = vmatpush1.bf16.msra.mxu0 0
      %1933 = vmatprep.subr.bf16.mxu0 0
      %1934 = vmatpush1.bf16.msra.mxu0 0
      %1935 = vmatprep.subr.bf16.mxu0 0
      %1936 = vmatpush1.bf16.msra.mxu0 0
      %1937 = vmatprep.subr.bf16.mxu0 0
      %1938 = vmatpush1.bf16.msra.mxu0 0
      %1939 = vmatprep.subr.bf16.mxu0 0
      %1940 = vmatpush1.bf16.msra.mxu0 0
      %1941 = vmatprep.subr.bf16.mxu0 0
      %1942 = vmatpush1.bf16.msra.mxu0 0
      %1943 = vmatprep.subr.bf16.mxu0 0
      %1944 = vmatpush1.bf16.msra.mxu0 %v1927
      %1945 = vmatprep.subr.bf16.mxu0 0
      %1946 = vmatpush2.bf16.msra.mxu0 0
      %1947 = vmatprep.subr.bf16.mxu0 0
      %1948 = vmatpush2.bf16.msra.mxu0 0
      %1949 = vmatprep.subr.bf16.mxu0 0
      %1950 = vmatpush2.bf16.msra.mxu0 0
      %1951 = vmatprep.subr.bf16.mxu0 0
      %1952 = vmatpush2.bf16.msra.mxu0 0
      %1953 = vmatprep.subr.bf16.mxu0 0
      %1954 = vmatpush2.bf16.msra.mxu0 0
      %1955 = vmatprep.subr.bf16.mxu0 0
      %1956 = vmatpush2.bf16.msra.mxu0 0
      %1957 = vmatprep.subr.bf16.mxu0 0
      %1958 = vmatpush2.bf16.msra.mxu0 0
      %1959 = vmatprep.subr.bf16.mxu0 0
      %1960 = vmatpush2.bf16.msra.mxu0 0
      %1961 = vmatprep.mubr.bf16.mxu0 0
      %1962 = vmatmul.mubr.bf16.gmra.mxu0 %v1924
      %v1963 = vpop.f32.mrf.mxu0
      %v1964 = vadd.f32 0.0, %v1963
      %v1965 = vpop.f32.mrf.mxu0
      %v1966 = vpop.f32.mrf.mxu0
      %v1967 = vpop.f32.mrf.mxu0
      %1968 = vdwg.mxu0
      %1969 = vrot.lane.b32.xlu0 %v1138, 40
      %v1970 = vpop.permute.xlu0 %1969
      %v1972 = vsel %vm1141, %v1920, 0
      %v1975 = vsel %vm1265, %v1970, 0
      %1977 = vmatprep.subr.bf16.mxu0 0
      %1978 = vmatpush1.bf16.msra.mxu0 0
      %1979 = vmatprep.subr.bf16.mxu0 0
      %1980 = vmatpush1.bf16.msra.mxu0 0
      %1981 = vmatprep.subr.bf16.mxu0 0
      %1982 = vmatpush1.bf16.msra.mxu0 0
      %1983 = vmatprep.subr.bf16.mxu0 0
      %1984 = vmatpush1.bf16.msra.mxu0 0
      %1985 = vmatprep.subr.bf16.mxu0 0
      %1986 = vmatpush1.bf16.msra.mxu0 0
      %1987 = vmatprep.subr.bf16.mxu0 0
      %1988 = vmatpush1.bf16.msra.mxu0 0
      %1989 = vmatprep.subr.bf16.mxu0 0
      %1990 = vmatpush1.bf16.msra.mxu0 0
      %1991 = vmatprep.subr.bf16.mxu0 0
      %1992 = vmatpush1.bf16.msra.mxu0 %v1975
      %1993 = vmatprep.subr.bf16.mxu0 0
      %1994 = vmatpush2.bf16.msra.mxu0 0
      %1995 = vmatprep.subr.bf16.mxu0 0
      %1996 = vmatpush2.bf16.msra.mxu0 0
      %1997 = vmatprep.subr.bf16.mxu0 0
      %1998 = vmatpush2.bf16.msra.mxu0 0
      %1999 = vmatprep.subr.bf16.mxu0 0
      %2000 = vmatpush2.bf16.msra.mxu0 0
      %2001 = vmatprep.subr.bf16.mxu0 0
      %2002 = vmatpush2.bf16.msra.mxu0 0
      %2003 = vmatprep.subr.bf16.mxu0 0
      %2004 = vmatpush2.bf16.msra.mxu0 0
      %2005 = vmatprep.subr.bf16.mxu0 0
      %2006 = vmatpush2.bf16.msra.mxu0 0
      %2007 = vmatprep.subr.bf16.mxu0 0
      %2008 = vmatpush2.bf16.msra.mxu0 0
      %2009 = vmatprep.mubr.bf16.mxu0 0
      %2010 = vmatmul.mubr.bf16.gmra.mxu0 %v1972
      %v2011 = vpop.f32.mrf.mxu0
      %v2012 = vadd.f32 0.0, %v2011
      %v2013 = vpop.f32.mrf.mxu0
      %v2014 = vpop.f32.mrf.mxu0
      %v2015 = vpop.f32.mrf.mxu0
      %2016 = vdwg.mxu0
      %2019 = vrot.lane.b32.xlu0 %v1524, 8
      %v2020 = vpop.permute.xlu0 %2019
      %2021 = vrot.lane.b32.xlu0 %v1572, 8
      %v2022 = vpop.permute.xlu0 %2021
      %2027 = vrot.lane.b32.xlu0 %v1744, 16
      %v2028 = vpop.permute.xlu0 %2027
      %2029 = vrot.lane.b32.xlu0 %v1792, 16
      %v2030 = vpop.permute.xlu0 %2029
      %2035 = vrot.lane.b32.xlu0 %v1964, 24
      %v2036 = vpop.permute.xlu0 %2035
      %2037 = vrot.lane.b32.xlu0 %v2012, 24
      %v2038 = vpop.permute.xlu0 %2037
      %v2041 = vsel %vm1141, %v1304, %v2020
      %v2042 = vsel %vm1141, %v1352, %v2022
      %vm2043 = vcmask 130048
      %v2044 = vsel %vm2043, %v2041, %v2028
      %v2045 = vsel %vm2043, %v2042, %v2030
      %vm2046 = vcmask 195584
      %v2047 = vsel %vm2046, %v2044, %v2036
      %v2048 = vsel %vm2046, %v2045, %v2038
      %v2049 = vpack.c.bf16 %v2048, %v2047
      %v2051 = vlaneseq
      %v2052 = vshrl.u32 %v2051, 7
      %v2053 = vsub.s32 0, %v2052
      %v2054 = vrot.slane %v1066, %v2053
      %v2060 = vunpack.c.l.b16 %v1062
      %v2061 = vunpack.c.l.b16 %v1063
      %v2062 = vunpack.c.l.b16 %v1064
      %v2063 = vunpack.c.l.b16 %v1065
      %v2064 = vpack.c.b16 %v2061, %v2060
      %v2065 = vpack.c.b16 %v2063, %v2062
      %v2069 = vsel %vm1088, %v2049, 0
      %2071 = vmatprep.subr.bf16.mxu0 0
      %2072 = vmatpush1.bf16.msra.mxu0 0
      %2073 = vmatprep.subr.bf16.mxu0 0
      %2074 = vmatpush1.bf16.msra.mxu0 0
      %2075 = vmatprep.subr.bf16.mxu0 0
      %2076 = vmatpush1.bf16.msra.mxu0 0
      %2077 = vmatprep.subr.bf16.mxu0 0
      %2078 = vmatpush1.bf16.msra.mxu0 0
      %2079 = vmatprep.subr.bf16.mxu0 0
      %2080 = vmatpush1.bf16.msra.mxu0 0
      %2081 = vmatprep.subr.bf16.mxu0 0
      %2082 = vmatpush1.bf16.msra.mxu0 0
      %2083 = vmatprep.subr.bf16.mxu0 0
      %2084 = vmatpush1.bf16.msra.mxu0 %v2065
      %2085 = vmatprep.subr.bf16.mxu0 0
      %2086 = vmatpush1.bf16.msra.mxu0 %v2064
      %2087 = vmatprep.subr.bf16.mxu0 0
      %2088 = vmatpush2.bf16.msra.mxu0 0
      %2089 = vmatprep.subr.bf16.mxu0 0
      %2090 = vmatpush2.bf16.msra.mxu0 0
      %2091 = vmatprep.subr.bf16.mxu0 0
      %2092 = vmatpush2.bf16.msra.mxu0 0
      %2093 = vmatprep.subr.bf16.mxu0 0
      %2094 = vmatpush2.bf16.msra.mxu0 0
      %2095 = vmatprep.subr.bf16.mxu0 0
      %2096 = vmatpush2.bf16.msra.mxu0 0
      %2097 = vmatprep.subr.bf16.mxu0 0
      %2098 = vmatpush2.bf16.msra.mxu0 0
      %2099 = vmatprep.subr.bf16.mxu0 0
      %2100 = vmatpush2.bf16.msra.mxu0 0
      %2101 = vmatprep.subr.bf16.mxu0 0
      %2102 = vmatpush2.bf16.msra.mxu0 0
      %2103 = vmatprep.mubr.bf16.mxu0 0
      %2104 = vmatmul.mubr.bf16.gmra.mxu0 %v2069
      %v2105 = vpop.f32.mrf.mxu0
      %v2106 = vadd.f32 %v2054, %v2105
      %v2107 = vpop.f32.mrf.mxu0
      %v2108 = vpop.f32.mrf.mxu0
      %v2109 = vadd.f32 %v2054, %v2108
      %v2110 = vpop.f32.mrf.mxu0
      %2111 = vdwg.mxu0
      %v2112 = vadd.f32 %v1055, %v2106
      %v2113 = vadd.f32 %v1056, %v2109
      %v2114 = vld [vmem:[%s997] sm:$0x1]
      %v2115 = vld [vmem:[%s1000] sm:$0x1]
      %v2116 = vsel %vm1088, %v2112, 0.0
      %2117 = vadd.xlane.f32.xlu0 %v2116
      %v2118 = vpop.xlane.xlu0 %2117
      %v2119 = vsel %vm1088, %v2113, 0.0
      %2120 = vadd.xlane.f32.xlu0 %v2119
      %v2121 = vpop.xlane.xlu0 %2120
      %v2122 = vrcp.pop 32.0
      %v2123 = vmul.f32 %v2118, %v2122
      %v2124 = vmul.f32 %v2121, %v2122
      %v2125 = vsub.f32 %v2112, %v2123
      %v2126 = vsub.f32 %v2113, %v2124
      %v2127 = vmul.f32 %v2125, %v2125
      %v2128 = vmul.f32 %v2126, %v2126
      %v2129 = vsel %vm1088, %v2127, 0.0
      %2130 = vadd.xlane.f32.xlu0 %v2129
      %v2131 = vpop.xlane.xlu0 %2130
      %v2132 = vsel %vm1088, %v2128, 0.0
      %2133 = vadd.xlane.f32.xlu0 %v2132
      %v2134 = vpop.xlane.xlu0 %2133
      %v2135 = vmul.f32 %v2131, %v2122
      %v2136 = vmul.f32 %v2134, %v2122
      %v2137 = vadd.f32 %v2135, 1e-05
      %v2138 = vadd.f32 %v2136, 1e-05
      %v2139 = vrsqrt.pop %v2137
      %v2140 = vrsqrt.pop %v2138
      %v2141 = vmul.f32 %v2125, %v2139
      %v2142 = vmul.f32 %v2126, %v2140
      %v2144 = vlaneseq
      %v2145 = vshrl.u32 %v2144, 7
      %v2146 = vsub.s32 0, %v2145
      %v2147 = vrot.slane %v2114, %v2146
      %v2149 = vmul.f32 %v2141, %v2147
      %v2150 = vmul.f32 %v2142, %v2147
      %v2152 = vlaneseq
      %v2153 = vshrl.u32 %v2152, 7
      %v2154 = vsub.s32 0, %v2153
      %v2155 = vrot.slane %v2115, %v2154
      %v2157 = vadd.f32 %v2149, %v2155
      %v2158 = vadd.f32 %v2150, %v2155
      %v2159 = vld [vmem:[%s1] sm:$0xff]
      %v2160 = vld [vmem:[%s1 + $0x8] sm:$0xff]
      %v2161 = vld [vmem:[%s1005] sm:$0xf]
      %v2162 = vld [vmem:[%s1005 + $0x4] sm:$0xf]
      %v2163 = vld [vmem:[%s1005 + $0x8] sm:$0xf]
      %v2164 = vld [vmem:[%s1005 + $0xc] sm:$0xf]
      %v2165 = vld [vmem:[%s1008] sm:$0x1]
      %v2166 = vld [vmem:[%s1013] sm:$0xf]
      %v2167 = vld [vmem:[%s1013 + $0x4] sm:$0xf]
      %v2168 = vld [vmem:[%s1013 + $0x8] sm:$0xf]
      %v2169 = vld [vmem:[%s1013 + $0xc] sm:$0xf]
      %v2170 = vld [vmem:[%s1016] sm:$0x1]
      %v2171 = vld [vmem:[%s3] sm:$0xff]
      %v2172 = vld [vmem:[%s3 + $0x8] sm:$0xff]
      %v2173 = vpack.c.bf16 %v2158, %v2157
      %v2174 = vpack.c.bf16 %v2160, %v2159
      %v2176 = vlaneseq
      %v2177 = vshrl.u32 %v2176, 7
      %v2178 = vsub.s32 0, %v2177
      %v2179 = vrot.slane %v2165, %v2178
      %v2185 = vunpack.c.l.b16 %v2161
      %v2186 = vunpack.c.l.b16 %v2162
      %v2187 = vunpack.c.l.b16 %v2163
      %v2188 = vunpack.c.l.b16 %v2164
      %v2189 = vpack.c.b16 %v2186, %v2185
      %v2190 = vpack.c.b16 %v2188, %v2187
      %v2194 = vsel %vm1088, %v2173, 0
      %2196 = vmatprep.subr.bf16.mxu0 0
      %2197 = vmatpush1.bf16.msra.mxu0 0
      %2198 = vmatprep.subr.bf16.mxu0 0
      %2199 = vmatpush1.bf16.msra.mxu0 0
      %2200 = vmatprep.subr.bf16.mxu0 0
      %2201 = vmatpush1.bf16.msra.mxu0 0
      %2202 = vmatprep.subr.bf16.mxu0 0
      %2203 = vmatpush1.bf16.msra.mxu0 0
      %2204 = vmatprep.subr.bf16.mxu0 0
      %2205 = vmatpush1.bf16.msra.mxu0 0
      %2206 = vmatprep.subr.bf16.mxu0 0
      %2207 = vmatpush1.bf16.msra.mxu0 0
      %2208 = vmatprep.subr.bf16.mxu0 0
      %2209 = vmatpush1.bf16.msra.mxu0 %v2190
      %2210 = vmatprep.subr.bf16.mxu0 0
      %2211 = vmatpush1.bf16.msra.mxu0 %v2189
      %2212 = vmatprep.subr.bf16.mxu0 0
      %2213 = vmatpush2.bf16.msra.mxu0 0
      %2214 = vmatprep.subr.bf16.mxu0 0
      %2215 = vmatpush2.bf16.msra.mxu0 0
      %2216 = vmatprep.subr.bf16.mxu0 0
      %2217 = vmatpush2.bf16.msra.mxu0 0
      %2218 = vmatprep.subr.bf16.mxu0 0
      %2219 = vmatpush2.bf16.msra.mxu0 0
      %2220 = vmatprep.subr.bf16.mxu0 0
      %2221 = vmatpush2.bf16.msra.mxu0 0
      %2222 = vmatprep.subr.bf16.mxu0 0
      %2223 = vmatpush2.bf16.msra.mxu0 0
      %2224 = vmatprep.subr.bf16.mxu0 0
      %2225 = vmatpush2.bf16.msra.mxu0 0
      %2226 = vmatprep.subr.bf16.mxu0 0
      %2227 = vmatpush2.bf16.msra.mxu0 0
      %2228 = vmatprep.mubr.bf16.mxu0 0
      %2229 = vmatmul.mubr.bf16.gmra.mxu0 %v2194
      %v2230 = vpop.f32.mrf.mxu0
      %v2231 = vadd.f32 %v2179, %v2230
      %v2232 = vpop.f32.mrf.mxu0
      %v2233 = vpop.f32.mrf.mxu0
      %v2234 = vadd.f32 %v2179, %v2233
      %v2235 = vpop.f32.mrf.mxu0
      %2236 = vdwg.mxu0
      %2237 = vrot.lane.b32.xlu0 %v2189, 96
      %v2238 = vpop.permute.xlu0 %2237
      %2239 = vrot.lane.b32.xlu0 %v2190, 96
      %v2240 = vpop.permute.xlu0 %2239
      %2243 = vrot.lane.b32.xlu0 %v2179, 96
      %v2244 = vpop.permute.xlu0 %2243
      %v2247 = vsel %vm1088, %v2174, 0
      %2249 = vmatprep.subr.bf16.mxu0 0
      %2250 = vmatpush1.bf16.msra.mxu0 0
      %2251 = vmatprep.subr.bf16.mxu0 0
      %2252 = vmatpush1.bf16.msra.mxu0 0
      %2253 = vmatprep.subr.bf16.mxu0 0
      %2254 = vmatpush1.bf16.msra.mxu0 0
      %2255 = vmatprep.subr.bf16.mxu0 0
      %2256 = vmatpush1.bf16.msra.mxu0 0
      %2257 = vmatprep.subr.bf16.mxu0 0
      %2258 = vmatpush1.bf16.msra.mxu0 0
      %2259 = vmatprep.subr.bf16.mxu0 0
      %2260 = vmatpush1.bf16.msra.mxu0 0
      %2261 = vmatprep.subr.bf16.mxu0 0
      %2262 = vmatpush1.bf16.msra.mxu0 %v2240
      %2263 = vmatprep.subr.bf16.mxu0 0
      %2264 = vmatpush1.bf16.msra.mxu0 %v2238
      %2265 = vmatprep.subr.bf16.mxu0 0
      %2266 = vmatpush2.bf16.msra.mxu0 0
      %2267 = vmatprep.subr.bf16.mxu0 0
      %2268 = vmatpush2.bf16.msra.mxu0 0
      %2269 = vmatprep.subr.bf16.mxu0 0
      %2270 = vmatpush2.bf16.msra.mxu0 0
      %2271 = vmatprep.subr.bf16.mxu0 0
      %2272 = vmatpush2.bf16.msra.mxu0 0
      %2273 = vmatprep.subr.bf16.mxu0 0
      %2274 = vmatpush2.bf16.msra.mxu0 0
      %2275 = vmatprep.subr.bf16.mxu0 0
      %2276 = vmatpush2.bf16.msra.mxu0 0
      %2277 = vmatprep.subr.bf16.mxu0 0
      %2278 = vmatpush2.bf16.msra.mxu0 0
      %2279 = vmatprep.subr.bf16.mxu0 0
      %2280 = vmatpush2.bf16.msra.mxu0 0
      %2281 = vmatprep.mubr.bf16.mxu0 0
      %2282 = vmatmul.mubr.bf16.gmra.mxu0 %v2247
      %v2283 = vpop.f32.mrf.mxu0
      %v2284 = vadd.f32 %v2244, %v2283
      %v2285 = vpop.f32.mrf.mxu0
      %v2286 = vpop.f32.mrf.mxu0
      %v2287 = vadd.f32 %v2244, %v2286
      %v2288 = vpop.f32.mrf.mxu0
      %2289 = vdwg.mxu0
      %v2290 = vpack.c.bf16 %v2234, %v2231
      %v2292 = vunpack.c.l.b16 %v2290
      %v2293 = vunpack.c.h.b16 %v2290
      %v2294 = vpack.c.b16 %v2292, %v2292
      %v2295 = vpack.c.b16 %v2293, %v2293
      %v2296 = vpack.c.bf16 %v2287, %v2284
      %v2298 = vunpack.c.l.b16 %v2296
      %v2299 = vunpack.c.h.b16 %v2296
      %v2300 = vpack.c.b16 %v2298, %v2298
      %v2301 = vpack.c.b16 %v2299, %v2299
      %v2303 = vsel %vm1141, %v2294, 0
      %v2306 = vsel %vm1141, %v2300, 0
      %2308 = vmatprep.subr.bf16.mxu0 0
      %2309 = vmatpush1.bf16.xpose.msra.mxu0 0
      %2310 = vmatprep.subr.bf16.mxu0 0
      %2311 = vmatpush1.bf16.xpose.msra.mxu0 0
      %2312 = vmatprep.subr.bf16.mxu0 0
      %2313 = vmatpush1.bf16.xpose.msra.mxu0 0
      %2314 = vmatprep.subr.bf16.mxu0 0
      %2315 = vmatpush1.bf16.xpose.msra.mxu0 0
      %2316 = vmatprep.subr.bf16.mxu0 0
      %2317 = vmatpush1.bf16.xpose.msra.mxu0 0
      %2318 = vmatprep.subr.bf16.mxu0 0
      %2319 = vmatpush1.bf16.xpose.msra.mxu0 0
      %2320 = vmatprep.subr.bf16.mxu0 0
      %2321 = vmatpush1.bf16.xpose.msra.mxu0 0
      %2322 = vmatprep.subr.bf16.mxu0 0
      %2323 = vmatpush1.bf16.xpose.msra.mxu0 %v2306
      %2324 = vmatprep.subr.bf16.mxu0 0
      %2325 = vmatpush2.bf16.xpose.msra.mxu0 0
      %2326 = vmatprep.subr.bf16.mxu0 0
      %2327 = vmatpush2.bf16.xpose.msra.mxu0 0
      %2328 = vmatprep.subr.bf16.mxu0 0
      %2329 = vmatpush2.bf16.xpose.msra.mxu0 0
      %2330 = vmatprep.subr.bf16.mxu0 0
      %2331 = vmatpush2.bf16.xpose.msra.mxu0 0
      %2332 = vmatprep.subr.bf16.mxu0 0
      %2333 = vmatpush2.bf16.xpose.msra.mxu0 0
      %2334 = vmatprep.subr.bf16.mxu0 0
      %2335 = vmatpush2.bf16.xpose.msra.mxu0 0
      %2336 = vmatprep.subr.bf16.mxu0 0
      %2337 = vmatpush2.bf16.xpose.msra.mxu0 0
      %2338 = vmatprep.subr.bf16.mxu0 0
      %2339 = vmatpush2.bf16.xpose.msra.mxu0 0
      %2340 = vmatprep.mubr.bf16.mxu0 0
      %2341 = vmatmul.mubr.bf16.gmra.mxu0 %v2303
      %v2342 = vpop.f32.mrf.mxu0
      %v2343 = vadd.f32 %v2171, %v2342
      %v2344 = vpop.f32.mrf.mxu0
      %v2345 = vpop.f32.mrf.mxu0
      %v2346 = vpop.f32.mrf.mxu0
      %2347 = vdwg.mxu0
      %v2349 = vsel %vm1141, %v2295, 0
      %v2352 = vsel %vm1141, %v2301, 0
      %2354 = vmatprep.subr.bf16.mxu0 0
      %2355 = vmatpush1.bf16.xpose.msra.mxu0 0
      %2356 = vmatprep.subr.bf16.mxu0 0
      %2357 = vmatpush1.bf16.xpose.msra.mxu0 0
      %2358 = vmatprep.subr.bf16.mxu0 0
      %2359 = vmatpush1.bf16.xpose.msra.mxu0 0
      %2360 = vmatprep.subr.bf16.mxu0 0
      %2361 = vmatpush1.bf16.xpose.msra.mxu0 0
      %2362 = vmatprep.subr.bf16.mxu0 0
      %2363 = vmatpush1.bf16.xpose.msra.mxu0 0
      %2364 = vmatprep.subr.bf16.mxu0 0
      %2365 = vmatpush1.bf16.xpose.msra.mxu0 0
      %2366 = vmatprep.subr.bf16.mxu0 0
      %2367 = vmatpush1.bf16.xpose.msra.mxu0 0
      %2368 = vmatprep.subr.bf16.mxu0 0
      %2369 = vmatpush1.bf16.xpose.msra.mxu0 %v2352
      %2370 = vmatprep.subr.bf16.mxu0 0
      %2371 = vmatpush2.bf16.xpose.msra.mxu0 0
      %2372 = vmatprep.subr.bf16.mxu0 0
      %2373 = vmatpush2.bf16.xpose.msra.mxu0 0
      %2374 = vmatprep.subr.bf16.mxu0 0
      %2375 = vmatpush2.bf16.xpose.msra.mxu0 0
      %2376 = vmatprep.subr.bf16.mxu0 0
      %2377 = vmatpush2.bf16.xpose.msra.mxu0 0
      %2378 = vmatprep.subr.bf16.mxu0 0
      %2379 = vmatpush2.bf16.xpose.msra.mxu0 0
      %2380 = vmatprep.subr.bf16.mxu0 0
      %2381 = vmatpush2.bf16.xpose.msra.mxu0 0
      %2382 = vmatprep.subr.bf16.mxu0 0
      %2383 = vmatpush2.bf16.xpose.msra.mxu0 0
      %2384 = vmatprep.subr.bf16.mxu0 0
      %2385 = vmatpush2.bf16.xpose.msra.mxu0 0
      %2386 = vmatprep.mubr.bf16.mxu0 0
      %2387 = vmatmul.mubr.bf16.gmra.mxu0 %v2349
      %v2388 = vpop.f32.mrf.mxu0
      %v2389 = vadd.f32 %v2172, %v2388
      %v2390 = vpop.f32.mrf.mxu0
      %v2391 = vpop.f32.mrf.mxu0
      %v2392 = vpop.f32.mrf.mxu0
      %2393 = vdwg.mxu0
      %v2394 = vsel %vm1141, %v2343, -inf
      %2395 = vmax.xlane.f32.xlu0 %v2394
      %v2396 = vpop.xlane.xlu0 %2395
      %v2397 = vsel %vm1141, %v2389, -inf
      %2398 = vmax.xlane.f32.xlu0 %v2397
      %v2399 = vpop.xlane.xlu0 %2398
      %v2400 = vsub.f32 %v2343, %v2396
      %v2401 = vsub.f32 %v2389, %v2399
      %v2402 = vmul.f32 %v2400, 1.442695
      %v2403 = vpow.pop %v2402
      %v2404 = vmul.f32 %v2401, 1.442695
      %v2405 = vpow.pop %v2404
      %v2406 = vsel %vm1141, %v2403, 0.0
      %2407 = vadd.xlane.f32.xlu0 %v2406
      %v2408 = vpop.xlane.xlu0 %2407
      %v2409 = vsel %vm1141, %v2405, 0.0
      %2410 = vadd.xlane.f32.xlu0 %v2409
      %v2411 = vpop.xlane.xlu0 %2410
      %v2412 = vrcp.pop %v2408
      %v2413 = vrcp.pop %v2411
      %v2414 = vmul.f32 %v2403, %v2412
      %v2415 = vmul.f32 %v2405, %v2413
      %v2416 = vpack.c.bf16 %v2414, %v2414
      %v2417 = vpack.c.bf16 %v2415, %v2415
      %2418 = vrot.lane.b32.xlu0 %v2300, 96
      %v2419 = vpop.permute.xlu0 %2418
      %v2421 = vsel %vm1141, %v2416, 0
      %v2424 = vsel %vm1265, %v2419, 0
      %2426 = vmatprep.subr.bf16.mxu0 0
      %2427 = vmatpush1.bf16.msra.mxu0 0
      %2428 = vmatprep.subr.bf16.mxu0 0
      %2429 = vmatpush1.bf16.msra.mxu0 0
      %2430 = vmatprep.subr.bf16.mxu0 0
      %2431 = vmatpush1.bf16.msra.mxu0 0
      %2432 = vmatprep.subr.bf16.mxu0 0
      %2433 = vmatpush1.bf16.msra.mxu0 0
      %2434 = vmatprep.subr.bf16.mxu0 0
      %2435 = vmatpush1.bf16.msra.mxu0 0
      %2436 = vmatprep.subr.bf16.mxu0 0
      %2437 = vmatpush1.bf16.msra.mxu0 0
      %2438 = vmatprep.subr.bf16.mxu0 0
      %2439 = vmatpush1.bf16.msra.mxu0 0
      %2440 = vmatprep.subr.bf16.mxu0 0
      %2441 = vmatpush1.bf16.msra.mxu0 %v2424
      %2442 = vmatprep.subr.bf16.mxu0 0
      %2443 = vmatpush2.bf16.msra.mxu0 0
      %2444 = vmatprep.subr.bf16.mxu0 0
      %2445 = vmatpush2.bf16.msra.mxu0 0
      %2446 = vmatprep.subr.bf16.mxu0 0
      %2447 = vmatpush2.bf16.msra.mxu0 0
      %2448 = vmatprep.subr.bf16.mxu0 0
      %2449 = vmatpush2.bf16.msra.mxu0 0
      %2450 = vmatprep.subr.bf16.mxu0 0
      %2451 = vmatpush2.bf16.msra.mxu0 0
      %2452 = vmatprep.subr.bf16.mxu0 0
      %2453 = vmatpush2.bf16.msra.mxu0 0
      %2454 = vmatprep.subr.bf16.mxu0 0
      %2455 = vmatpush2.bf16.msra.mxu0 0
      %2456 = vmatprep.subr.bf16.mxu0 0
      %2457 = vmatpush2.bf16.msra.mxu0 0
      %2458 = vmatprep.mubr.bf16.mxu0 0
      %2459 = vmatmul.mubr.bf16.gmra.mxu0 %v2421
      %v2460 = vpop.f32.mrf.mxu0
      %v2461 = vadd.f32 0.0, %v2460
      %v2462 = vpop.f32.mrf.mxu0
      %v2463 = vpop.f32.mrf.mxu0
      %v2464 = vpop.f32.mrf.mxu0
      %2465 = vdwg.mxu0
      %2466 = vrot.lane.b32.xlu0 %v2301, 96
      %v2467 = vpop.permute.xlu0 %2466
      %v2469 = vsel %vm1141, %v2417, 0
      %v2472 = vsel %vm1265, %v2467, 0
      %2474 = vmatprep.subr.bf16.mxu0 0
      %2475 = vmatpush1.bf16.msra.mxu0 0
      %2476 = vmatprep.subr.bf16.mxu0 0
      %2477 = vmatpush1.bf16.msra.mxu0 0
      %2478 = vmatprep.subr.bf16.mxu0 0
      %2479 = vmatpush1.bf16.msra.mxu0 0
      %2480 = vmatprep.subr.bf16.mxu0 0
      %2481 = vmatpush1.bf16.msra.mxu0 0
      %2482 = vmatprep.subr.bf16.mxu0 0
      %2483 = vmatpush1.bf16.msra.mxu0 0
      %2484 = vmatprep.subr.bf16.mxu0 0
      %2485 = vmatpush1.bf16.msra.mxu0 0
      %2486 = vmatprep.subr.bf16.mxu0 0
      %2487 = vmatpush1.bf16.msra.mxu0 0
      %2488 = vmatprep.subr.bf16.mxu0 0
      %2489 = vmatpush1.bf16.msra.mxu0 %v2472
      %2490 = vmatprep.subr.bf16.mxu0 0
      %2491 = vmatpush2.bf16.msra.mxu0 0
      %2492 = vmatprep.subr.bf16.mxu0 0
      %2493 = vmatpush2.bf16.msra.mxu0 0
      %2494 = vmatprep.subr.bf16.mxu0 0
      %2495 = vmatpush2.bf16.msra.mxu0 0
      %2496 = vmatprep.subr.bf16.mxu0 0
      %2497 = vmatpush2.bf16.msra.mxu0 0
      %2498 = vmatprep.subr.bf16.mxu0 0
      %2499 = vmatpush2.bf16.msra.mxu0 0
      %2500 = vmatprep.subr.bf16.mxu0 0
      %2501 = vmatpush2.bf16.msra.mxu0 0
      %2502 = vmatprep.subr.bf16.mxu0 0
      %2503 = vmatpush2.bf16.msra.mxu0 0
      %2504 = vmatprep.subr.bf16.mxu0 0
      %2505 = vmatpush2.bf16.msra.mxu0 0
      %2506 = vmatprep.mubr.bf16.mxu0 0
      %2507 = vmatmul.mubr.bf16.gmra.mxu0 %v2469
      %v2508 = vpop.f32.mrf.mxu0
      %v2509 = vadd.f32 0.0, %v2508
      %v2510 = vpop.f32.mrf.mxu0
      %v2511 = vpop.f32.mrf.mxu0
      %v2512 = vpop.f32.mrf.mxu0
      %2513 = vdwg.mxu0
      %2514 = vrot.lane.b32.xlu0 %v2294, 120
      %v2515 = vpop.permute.xlu0 %2514
      %2516 = vrot.lane.b32.xlu0 %v2300, 120
      %v2517 = vpop.permute.xlu0 %2516
      %v2519 = vsel %vm1141, %v2515, 0
      %v2522 = vsel %vm1141, %v2517, 0
      %2524 = vmatprep.subr.bf16.mxu0 0
      %2525 = vmatpush1.bf16.xpose.msra.mxu0 0
      %2526 = vmatprep.subr.bf16.mxu0 0
      %2527 = vmatpush1.bf16.xpose.msra.mxu0 0
      %2528 = vmatprep.subr.bf16.mxu0 0
      %2529 = vmatpush1.bf16.xpose.msra.mxu0 0
      %2530 = vmatprep.subr.bf16.mxu0 0
      %2531 = vmatpush1.bf16.xpose.msra.mxu0 0
      %2532 = vmatprep.subr.bf16.mxu0 0
      %2533 = vmatpush1.bf16.xpose.msra.mxu0 0
      %2534 = vmatprep.subr.bf16.mxu0 0
      %2535 = vmatpush1.bf16.xpose.msra.mxu0 0
      %2536 = vmatprep.subr.bf16.mxu0 0
      %2537 = vmatpush1.bf16.xpose.msra.mxu0 0
      %2538 = vmatprep.subr.bf16.mxu0 0
      %2539 = vmatpush1.bf16.xpose.msra.mxu0 %v2522
      %2540 = vmatprep.subr.bf16.mxu0 0
      %2541 = vmatpush2.bf16.xpose.msra.mxu0 0
      %2542 = vmatprep.subr.bf16.mxu0 0
      %2543 = vmatpush2.bf16.xpose.msra.mxu0 0
      %2544 = vmatprep.subr.bf16.mxu0 0
      %2545 = vmatpush2.bf16.xpose.msra.mxu0 0
      %2546 = vmatprep.subr.bf16.mxu0 0
      %2547 = vmatpush2.bf16.xpose.msra.mxu0 0
      %2548 = vmatprep.subr.bf16.mxu0 0
      %2549 = vmatpush2.bf16.xpose.msra.mxu0 0
      %2550 = vmatprep.subr.bf16.mxu0 0
      %2551 = vmatpush2.bf16.xpose.msra.mxu0 0
      %2552 = vmatprep.subr.bf16.mxu0 0
      %2553 = vmatpush2.bf16.xpose.msra.mxu0 0
      %2554 = vmatprep.subr.bf16.mxu0 0
      %2555 = vmatpush2.bf16.xpose.msra.mxu0 0
      %2556 = vmatprep.mubr.bf16.mxu0 0
      %2557 = vmatmul.mubr.bf16.gmra.mxu0 %v2519
      %v2558 = vpop.f32.mrf.mxu0
      %v2559 = vadd.f32 %v2171, %v2558
      %v2560 = vpop.f32.mrf.mxu0
      %v2561 = vpop.f32.mrf.mxu0
      %v2562 = vpop.f32.mrf.mxu0
      %2563 = vdwg.mxu0
      %2564 = vrot.lane.b32.xlu0 %v2295, 120
      %v2565 = vpop.permute.xlu0 %2564
      %2566 = vrot.lane.b32.xlu0 %v2301, 120
      %v2567 = vpop.permute.xlu0 %2566
      %v2569 = vsel %vm1141, %v2565, 0
      %v2572 = vsel %vm1141, %v2567, 0
      %2574 = vmatprep.subr.bf16.mxu0 0
      %2575 = vmatpush1.bf16.xpose.msra.mxu0 0
      %2576 = vmatprep.subr.bf16.mxu0 0
      %2577 = vmatpush1.bf16.xpose.msra.mxu0 0
      %2578 = vmatprep.subr.bf16.mxu0 0
      %2579 = vmatpush1.bf16.xpose.msra.mxu0 0
      %2580 = vmatprep.subr.bf16.mxu0 0
      %2581 = vmatpush1.bf16.xpose.msra.mxu0 0
      %2582 = vmatprep.subr.bf16.mxu0 0
      %2583 = vmatpush1.bf16.xpose.msra.mxu0 0
      %2584 = vmatprep.subr.bf16.mxu0 0
      %2585 = vmatpush1.bf16.xpose.msra.mxu0 0
      %2586 = vmatprep.subr.bf16.mxu0 0
      %2587 = vmatpush1.bf16.xpose.msra.mxu0 0
      %2588 = vmatprep.subr.bf16.mxu0 0
      %2589 = vmatpush1.bf16.xpose.msra.mxu0 %v2572
      %2590 = vmatprep.subr.bf16.mxu0 0
      %2591 = vmatpush2.bf16.xpose.msra.mxu0 0
      %2592 = vmatprep.subr.bf16.mxu0 0
      %2593 = vmatpush2.bf16.xpose.msra.mxu0 0
      %2594 = vmatprep.subr.bf16.mxu0 0
      %2595 = vmatpush2.bf16.xpose.msra.mxu0 0
      %2596 = vmatprep.subr.bf16.mxu0 0
      %2597 = vmatpush2.bf16.xpose.msra.mxu0 0
      %2598 = vmatprep.subr.bf16.mxu0 0
      %2599 = vmatpush2.bf16.xpose.msra.mxu0 0
      %2600 = vmatprep.subr.bf16.mxu0 0
      %2601 = vmatpush2.bf16.xpose.msra.mxu0 0
      %2602 = vmatprep.subr.bf16.mxu0 0
      %2603 = vmatpush2.bf16.xpose.msra.mxu0 0
      %2604 = vmatprep.subr.bf16.mxu0 0
      %2605 = vmatpush2.bf16.xpose.msra.mxu0 0
      %2606 = vmatprep.mubr.bf16.mxu0 0
      %2607 = vmatmul.mubr.bf16.gmra.mxu0 %v2569
      %v2608 = vpop.f32.mrf.mxu0
      %v2609 = vadd.f32 %v2172, %v2608
      %v2610 = vpop.f32.mrf.mxu0
      %v2611 = vpop.f32.mrf.mxu0
      %v2612 = vpop.f32.mrf.mxu0
      %2613 = vdwg.mxu0
      %v2614 = vsel %vm1141, %v2559, -inf
      %2615 = vmax.xlane.f32.xlu0 %v2614
      %v2616 = vpop.xlane.xlu0 %2615
      %v2617 = vsel %vm1141, %v2609, -inf
      %2618 = vmax.xlane.f32.xlu0 %v2617
      %v2619 = vpop.xlane.xlu0 %2618
      %v2620 = vsub.f32 %v2559, %v2616
      %v2621 = vsub.f32 %v2609, %v2619
      %v2622 = vmul.f32 %v2620, 1.442695
      %v2623 = vpow.pop %v2622
      %v2624 = vmul.f32 %v2621, 1.442695
      %v2625 = vpow.pop %v2624
      %v2626 = vsel %vm1141, %v2623, 0.0
      %2627 = vadd.xlane.f32.xlu0 %v2626
      %v2628 = vpop.xlane.xlu0 %2627
      %v2629 = vsel %vm1141, %v2625, 0.0
      %2630 = vadd.xlane.f32.xlu0 %v2629
      %v2631 = vpop.xlane.xlu0 %2630
      %v2632 = vrcp.pop %v2628
      %v2633 = vrcp.pop %v2631
      %v2634 = vmul.f32 %v2623, %v2632
      %v2635 = vmul.f32 %v2625, %v2633
      %v2636 = vpack.c.bf16 %v2634, %v2634
      %v2637 = vpack.c.bf16 %v2635, %v2635
      %2638 = vrot.lane.b32.xlu0 %v2300, 88
      %v2639 = vpop.permute.xlu0 %2638
      %v2641 = vsel %vm1141, %v2636, 0
      %v2644 = vsel %vm1265, %v2639, 0
      %2646 = vmatprep.subr.bf16.mxu0 0
      %2647 = vmatpush1.bf16.msra.mxu0 0
      %2648 = vmatprep.subr.bf16.mxu0 0
      %2649 = vmatpush1.bf16.msra.mxu0 0
      %2650 = vmatprep.subr.bf16.mxu0 0
      %2651 = vmatpush1.bf16.msra.mxu0 0
      %2652 = vmatprep.subr.bf16.mxu0 0
      %2653 = vmatpush1.bf16.msra.mxu0 0
      %2654 = vmatprep.subr.bf16.mxu0 0
      %2655 = vmatpush1.bf16.msra.mxu0 0
      %2656 = vmatprep.subr.bf16.mxu0 0
      %2657 = vmatpush1.bf16.msra.mxu0 0
      %2658 = vmatprep.subr.bf16.mxu0 0
      %2659 = vmatpush1.bf16.msra.mxu0 0
      %2660 = vmatprep.subr.bf16.mxu0 0
      %2661 = vmatpush1.bf16.msra.mxu0 %v2644
      %2662 = vmatprep.subr.bf16.mxu0 0
      %2663 = vmatpush2.bf16.msra.mxu0 0
      %2664 = vmatprep.subr.bf16.mxu0 0
      %2665 = vmatpush2.bf16.msra.mxu0 0
      %2666 = vmatprep.subr.bf16.mxu0 0
      %2667 = vmatpush2.bf16.msra.mxu0 0
      %2668 = vmatprep.subr.bf16.mxu0 0
      %2669 = vmatpush2.bf16.msra.mxu0 0
      %2670 = vmatprep.subr.bf16.mxu0 0
      %2671 = vmatpush2.bf16.msra.mxu0 0
      %2672 = vmatprep.subr.bf16.mxu0 0
      %2673 = vmatpush2.bf16.msra.mxu0 0
      %2674 = vmatprep.subr.bf16.mxu0 0
      %2675 = vmatpush2.bf16.msra.mxu0 0
      %2676 = vmatprep.subr.bf16.mxu0 0
      %2677 = vmatpush2.bf16.msra.mxu0 0
      %2678 = vmatprep.mubr.bf16.mxu0 0
      %2679 = vmatmul.mubr.bf16.gmra.mxu0 %v2641
      %v2680 = vpop.f32.mrf.mxu0
      %v2681 = vadd.f32 0.0, %v2680
      %v2682 = vpop.f32.mrf.mxu0
      %v2683 = vpop.f32.mrf.mxu0
      %v2684 = vpop.f32.mrf.mxu0
      %2685 = vdwg.mxu0
      %2686 = vrot.lane.b32.xlu0 %v2301, 88
      %v2687 = vpop.permute.xlu0 %2686
      %v2689 = vsel %vm1141, %v2637, 0
      %v2692 = vsel %vm1265, %v2687, 0
      %2694 = vmatprep.subr.bf16.mxu0 0
      %2695 = vmatpush1.bf16.msra.mxu0 0
      %2696 = vmatprep.subr.bf16.mxu0 0
      %2697 = vmatpush1.bf16.msra.mxu0 0
      %2698 = vmatprep.subr.bf16.mxu0 0
      %2699 = vmatpush1.bf16.msra.mxu0 0
      %2700 = vmatprep.subr.bf16.mxu0 0
      %2701 = vmatpush1.bf16.msra.mxu0 0
      %2702 = vmatprep.subr.bf16.mxu0 0
      %2703 = vmatpush1.bf16.msra.mxu0 0
      %2704 = vmatprep.subr.bf16.mxu0 0
      %2705 = vmatpush1.bf16.msra.mxu0 0
      %2706 = vmatprep.subr.bf16.mxu0 0
      %2707 = vmatpush1.bf16.msra.mxu0 0
      %2708 = vmatprep.subr.bf16.mxu0 0
      %2709 = vmatpush1.bf16.msra.mxu0 %v2692
      %2710 = vmatprep.subr.bf16.mxu0 0
      %2711 = vmatpush2.bf16.msra.mxu0 0
      %2712 = vmatprep.subr.bf16.mxu0 0
      %2713 = vmatpush2.bf16.msra.mxu0 0
      %2714 = vmatprep.subr.bf16.mxu0 0
      %2715 = vmatpush2.bf16.msra.mxu0 0
      %2716 = vmatprep.subr.bf16.mxu0 0
      %2717 = vmatpush2.bf16.msra.mxu0 0
      %2718 = vmatprep.subr.bf16.mxu0 0
      %2719 = vmatpush2.bf16.msra.mxu0 0
      %2720 = vmatprep.subr.bf16.mxu0 0
      %2721 = vmatpush2.bf16.msra.mxu0 0
      %2722 = vmatprep.subr.bf16.mxu0 0
      %2723 = vmatpush2.bf16.msra.mxu0 0
      %2724 = vmatprep.subr.bf16.mxu0 0
      %2725 = vmatpush2.bf16.msra.mxu0 0
      %2726 = vmatprep.mubr.bf16.mxu0 0
      %2727 = vmatmul.mubr.bf16.gmra.mxu0 %v2689
      %v2728 = vpop.f32.mrf.mxu0
      %v2729 = vadd.f32 0.0, %v2728
      %v2730 = vpop.f32.mrf.mxu0
      %v2731 = vpop.f32.mrf.mxu0
      %v2732 = vpop.f32.mrf.mxu0
      %2733 = vdwg.mxu0
      %2734 = vrot.lane.b32.xlu0 %v2294, 112
      %v2735 = vpop.permute.xlu0 %2734
      %2736 = vrot.lane.b32.xlu0 %v2300, 112
      %v2737 = vpop.permute.xlu0 %2736
      %v2739 = vsel %vm1141, %v2735, 0
      %v2742 = vsel %vm1141, %v2737, 0
      %2744 = vmatprep.subr.bf16.mxu0 0
      %2745 = vmatpush1.bf16.xpose.msra.mxu0 0
      %2746 = vmatprep.subr.bf16.mxu0 0
      %2747 = vmatpush1.bf16.xpose.msra.mxu0 0
      %2748 = vmatprep.subr.bf16.mxu0 0
      %2749 = vmatpush1.bf16.xpose.msra.mxu0 0
      %2750 = vmatprep.subr.bf16.mxu0 0
      %2751 = vmatpush1.bf16.xpose.msra.mxu0 0
      %2752 = vmatprep.subr.bf16.mxu0 0
      %2753 = vmatpush1.bf16.xpose.msra.mxu0 0
      %2754 = vmatprep.subr.bf16.mxu0 0
      %2755 = vmatpush1.bf16.xpose.msra.mxu0 0
      %2756 = vmatprep.subr.bf16.mxu0 0
      %2757 = vmatpush1.bf16.xpose.msra.mxu0 0
      %2758 = vmatprep.subr.bf16.mxu0 0
      %2759 = vmatpush1.bf16.xpose.msra.mxu0 %v2742
      %2760 = vmatprep.subr.bf16.mxu0 0
      %2761 = vmatpush2.bf16.xpose.msra.mxu0 0
      %2762 = vmatprep.subr.bf16.mxu0 0
      %2763 = vmatpush2.bf16.xpose.msra.mxu0 0
      %2764 = vmatprep.subr.bf16.mxu0 0
      %2765 = vmatpush2.bf16.xpose.msra.mxu0 0
      %2766 = vmatprep.subr.bf16.mxu0 0
      %2767 = vmatpush2.bf16.xpose.msra.mxu0 0
      %2768 = vmatprep.subr.bf16.mxu0 0
      %2769 = vmatpush2.bf16.xpose.msra.mxu0 0
      %2770 = vmatprep.subr.bf16.mxu0 0
      %2771 = vmatpush2.bf16.xpose.msra.mxu0 0
      %2772 = vmatprep.subr.bf16.mxu0 0
      %2773 = vmatpush2.bf16.xpose.msra.mxu0 0
      %2774 = vmatprep.subr.bf16.mxu0 0
      %2775 = vmatpush2.bf16.xpose.msra.mxu0 0
      %2776 = vmatprep.mubr.bf16.mxu0 0
      %2777 = vmatmul.mubr.bf16.gmra.mxu0 %v2739
      %v2778 = vpop.f32.mrf.mxu0
      %v2779 = vadd.f32 %v2171, %v2778
      %v2780 = vpop.f32.mrf.mxu0
      %v2781 = vpop.f32.mrf.mxu0
      %v2782 = vpop.f32.mrf.mxu0
      %2783 = vdwg.mxu0
      %2784 = vrot.lane.b32.xlu0 %v2295, 112
      %v2785 = vpop.permute.xlu0 %2784
      %2786 = vrot.lane.b32.xlu0 %v2301, 112
      %v2787 = vpop.permute.xlu0 %2786
      %v2789 = vsel %vm1141, %v2785, 0
      %v2792 = vsel %vm1141, %v2787, 0
      %2794 = vmatprep.subr.bf16.mxu0 0
      %2795 = vmatpush1.bf16.xpose.msra.mxu0 0
      %2796 = vmatprep.subr.bf16.mxu0 0
      %2797 = vmatpush1.bf16.xpose.msra.mxu0 0
      %2798 = vmatprep.subr.bf16.mxu0 0
      %2799 = vmatpush1.bf16.xpose.msra.mxu0 0
      %2800 = vmatprep.subr.bf16.mxu0 0
      %2801 = vmatpush1.bf16.xpose.msra.mxu0 0
      %2802 = vmatprep.subr.bf16.mxu0 0
      %2803 = vmatpush1.bf16.xpose.msra.mxu0 0
      %2804 = vmatprep.subr.bf16.mxu0 0
      %2805 = vmatpush1.bf16.xpose.msra.mxu0 0
      %2806 = vmatprep.subr.bf16.mxu0 0
      %2807 = vmatpush1.bf16.xpose.msra.mxu0 0
      %2808 = vmatprep.subr.bf16.mxu0 0
      %2809 = vmatpush1.bf16.xpose.msra.mxu0 %v2792
      %2810 = vmatprep.subr.bf16.mxu0 0
      %2811 = vmatpush2.bf16.xpose.msra.mxu0 0
      %2812 = vmatprep.subr.bf16.mxu0 0
      %2813 = vmatpush2.bf16.xpose.msra.mxu0 0
      %2814 = vmatprep.subr.bf16.mxu0 0
      %2815 = vmatpush2.bf16.xpose.msra.mxu0 0
      %2816 = vmatprep.subr.bf16.mxu0 0
      %2817 = vmatpush2.bf16.xpose.msra.mxu0 0
      %2818 = vmatprep.subr.bf16.mxu0 0
      %2819 = vmatpush2.bf16.xpose.msra.mxu0 0
      %2820 = vmatprep.subr.bf16.mxu0 0
      %2821 = vmatpush2.bf16.xpose.msra.mxu0 0
      %2822 = vmatprep.subr.bf16.mxu0 0
      %2823 = vmatpush2.bf16.xpose.msra.mxu0 0
      %2824 = vmatprep.subr.bf16.mxu0 0
      %2825 = vmatpush2.bf16.xpose.msra.mxu0 0
      %2826 = vmatprep.mubr.bf16.mxu0 0
      %2827 = vmatmul.mubr.bf16.gmra.mxu0 %v2789
      %v2828 = vpop.f32.mrf.mxu0
      %v2829 = vadd.f32 %v2172, %v2828
      %v2830 = vpop.f32.mrf.mxu0
      %v2831 = vpop.f32.mrf.mxu0
      %v2832 = vpop.f32.mrf.mxu0
      %2833 = vdwg.mxu0
      %v2834 = vsel %vm1141, %v2779, -inf
      %2835 = vmax.xlane.f32.xlu0 %v2834
      %v2836 = vpop.xlane.xlu0 %2835
      %v2837 = vsel %vm1141, %v2829, -inf
      %2838 = vmax.xlane.f32.xlu0 %v2837
      %v2839 = vpop.xlane.xlu0 %2838
      %v2840 = vsub.f32 %v2779, %v2836
      %v2841 = vsub.f32 %v2829, %v2839
      %v2842 = vmul.f32 %v2840, 1.442695
      %v2843 = vpow.pop %v2842
      %v2844 = vmul.f32 %v2841, 1.442695
      %v2845 = vpow.pop %v2844
      %v2846 = vsel %vm1141, %v2843, 0.0
      %2847 = vadd.xlane.f32.xlu0 %v2846
      %v2848 = vpop.xlane.xlu0 %2847
      %v2849 = vsel %vm1141, %v2845, 0.0
      %2850 = vadd.xlane.f32.xlu0 %v2849
      %v2851 = vpop.xlane.xlu0 %2850
      %v2852 = vrcp.pop %v2848
      %v2853 = vrcp.pop %v2851
      %v2854 = vmul.f32 %v2843, %v2852
      %v2855 = vmul.f32 %v2845, %v2853
      %v2856 = vpack.c.bf16 %v2854, %v2854
      %v2857 = vpack.c.bf16 %v2855, %v2855
      %2858 = vrot.lane.b32.xlu0 %v2300, 80
      %v2859 = vpop.permute.xlu0 %2858
      %v2861 = vsel %vm1141, %v2856, 0
      %v2864 = vsel %vm1265, %v2859, 0
      %2866 = vmatprep.subr.bf16.mxu0 0
      %2867 = vmatpush1.bf16.msra.mxu0 0
      %2868 = vmatprep.subr.bf16.mxu0 0
      %2869 = vmatpush1.bf16.msra.mxu0 0
      %2870 = vmatprep.subr.bf16.mxu0 0
      %2871 = vmatpush1.bf16.msra.mxu0 0
      %2872 = vmatprep.subr.bf16.mxu0 0
      %2873 = vmatpush1.bf16.msra.mxu0 0
      %2874 = vmatprep.subr.bf16.mxu0 0
      %2875 = vmatpush1.bf16.msra.mxu0 0
      %2876 = vmatprep.subr.bf16.mxu0 0
      %2877 = vmatpush1.bf16.msra.mxu0 0
      %2878 = vmatprep.subr.bf16.mxu0 0
      %2879 = vmatpush1.bf16.msra.mxu0 0
      %2880 = vmatprep.subr.bf16.mxu0 0
      %2881 = vmatpush1.bf16.msra.mxu0 %v2864
      %2882 = vmatprep.subr.bf16.mxu0 0
      %2883 = vmatpush2.bf16.msra.mxu0 0
      %2884 = vmatprep.subr.bf16.mxu0 0
      %2885 = vmatpush2.bf16.msra.mxu0 0
      %2886 = vmatprep.subr.bf16.mxu0 0
      %2887 = vmatpush2.bf16.msra.mxu0 0
      %2888 = vmatprep.subr.bf16.mxu0 0
      %2889 = vmatpush2.bf16.msra.mxu0 0
      %2890 = vmatprep.subr.bf16.mxu0 0
      %2891 = vmatpush2.bf16.msra.mxu0 0
      %2892 = vmatprep.subr.bf16.mxu0 0
      %2893 = vmatpush2.bf16.msra.mxu0 0
      %2894 = vmatprep.subr.bf16.mxu0 0
      %2895 = vmatpush2.bf16.msra.mxu0 0
      %2896 = vmatprep.subr.bf16.mxu0 0
      %2897 = vmatpush2.bf16.msra.mxu0 0
      %2898 = vmatprep.mubr.bf16.mxu0 0
      %2899 = vmatmul.mubr.bf16.gmra.mxu0 %v2861
      %v2900 = vpop.f32.mrf.mxu0
      %v2901 = vadd.f32 0.0, %v2900
      %v2902 = vpop.f32.mrf.mxu0
      %v2903 = vpop.f32.mrf.mxu0
      %v2904 = vpop.f32.mrf.mxu0
      %2905 = vdwg.mxu0
      %2906 = vrot.lane.b32.xlu0 %v2301, 80
      %v2907 = vpop.permute.xlu0 %2906
      %v2909 = vsel %vm1141, %v2857, 0
      %v2912 = vsel %vm1265, %v2907, 0
      %2914 = vmatprep.subr.bf16.mxu0 0
      %2915 = vmatpush1.bf16.msra.mxu0 0
      %2916 = vmatprep.subr.bf16.mxu0 0
      %2917 = vmatpush1.bf16.msra.mxu0 0
      %2918 = vmatprep.subr.bf16.mxu0 0
      %2919 = vmatpush1.bf16.msra.mxu0 0
      %2920 = vmatprep.subr.bf16.mxu0 0
      %2921 = vmatpush1.bf16.msra.mxu0 0
      %2922 = vmatprep.subr.bf16.mxu0 0
      %2923 = vmatpush1.bf16.msra.mxu0 0
      %2924 = vmatprep.subr.bf16.mxu0 0
      %2925 = vmatpush1.bf16.msra.mxu0 0
      %2926 = vmatprep.subr.bf16.mxu0 0
      %2927 = vmatpush1.bf16.msra.mxu0 0
      %2928 = vmatprep.subr.bf16.mxu0 0
      %2929 = vmatpush1.bf16.msra.mxu0 %v2912
      %2930 = vmatprep.subr.bf16.mxu0 0
      %2931 = vmatpush2.bf16.msra.mxu0 0
      %2932 = vmatprep.subr.bf16.mxu0 0
      %2933 = vmatpush2.bf16.msra.mxu0 0
      %2934 = vmatprep.subr.bf16.mxu0 0
      %2935 = vmatpush2.bf16.msra.mxu0 0
      %2936 = vmatprep.subr.bf16.mxu0 0
      %2937 = vmatpush2.bf16.msra.mxu0 0
      %2938 = vmatprep.subr.bf16.mxu0 0
      %2939 = vmatpush2.bf16.msra.mxu0 0
      %2940 = vmatprep.subr.bf16.mxu0 0
      %2941 = vmatpush2.bf16.msra.mxu0 0
      %2942 = vmatprep.subr.bf16.mxu0 0
      %2943 = vmatpush2.bf16.msra.mxu0 0
      %2944 = vmatprep.subr.bf16.mxu0 0
      %2945 = vmatpush2.bf16.msra.mxu0 0
      %2946 = vmatprep.mubr.bf16.mxu0 0
      %2947 = vmatmul.mubr.bf16.gmra.mxu0 %v2909
      %v2948 = vpop.f32.mrf.mxu0
      %v2949 = vadd.f32 0.0, %v2948
      %v2950 = vpop.f32.mrf.mxu0
      %v2951 = vpop.f32.mrf.mxu0
      %v2952 = vpop.f32.mrf.mxu0
      %2953 = vdwg.mxu0
      %2954 = vrot.lane.b32.xlu0 %v2294, 104
      %v2955 = vpop.permute.xlu0 %2954
      %2956 = vrot.lane.b32.xlu0 %v2300, 104
      %v2957 = vpop.permute.xlu0 %2956
      %v2959 = vsel %vm1141, %v2955, 0
      %v2962 = vsel %vm1141, %v2957, 0
      %2964 = vmatprep.subr.bf16.mxu0 0
      %2965 = vmatpush1.bf16.xpose.msra.mxu0 0
      %2966 = vmatprep.subr.bf16.mxu0 0
      %2967 = vmatpush1.bf16.xpose.msra.mxu0 0
      %2968 = vmatprep.subr.bf16.mxu0 0
      %2969 = vmatpush1.bf16.xpose.msra.mxu0 0
      %2970 = vmatprep.subr.bf16.mxu0 0
      %2971 = vmatpush1.bf16.xpose.msra.mxu0 0
      %2972 = vmatprep.subr.bf16.mxu0 0
      %2973 = vmatpush1.bf16.xpose.msra.mxu0 0
      %2974 = vmatprep.subr.bf16.mxu0 0
      %2975 = vmatpush1.bf16.xpose.msra.mxu0 0
      %2976 = vmatprep.subr.bf16.mxu0 0
      %2977 = vmatpush1.bf16.xpose.msra.mxu0 0
      %2978 = vmatprep.subr.bf16.mxu0 0
      %2979 = vmatpush1.bf16.xpose.msra.mxu0 %v2962
      %2980 = vmatprep.subr.bf16.mxu0 0
      %2981 = vmatpush2.bf16.xpose.msra.mxu0 0
      %2982 = vmatprep.subr.bf16.mxu0 0
      %2983 = vmatpush2.bf16.xpose.msra.mxu0 0
      %2984 = vmatprep.subr.bf16.mxu0 0
      %2985 = vmatpush2.bf16.xpose.msra.mxu0 0
      %2986 = vmatprep.subr.bf16.mxu0 0
      %2987 = vmatpush2.bf16.xpose.msra.mxu0 0
      %2988 = vmatprep.subr.bf16.mxu0 0
      %2989 = vmatpush2.bf16.xpose.msra.mxu0 0
      %2990 = vmatprep.subr.bf16.mxu0 0
      %2991 = vmatpush2.bf16.xpose.msra.mxu0 0
      %2992 = vmatprep.subr.bf16.mxu0 0
      %2993 = vmatpush2.bf16.xpose.msra.mxu0 0
      %2994 = vmatprep.subr.bf16.mxu0 0
      %2995 = vmatpush2.bf16.xpose.msra.mxu0 0
      %2996 = vmatprep.mubr.bf16.mxu0 0
      %2997 = vmatmul.mubr.bf16.gmra.mxu0 %v2959
      %v2998 = vpop.f32.mrf.mxu0
      %v2999 = vadd.f32 %v2171, %v2998
      %v3000 = vpop.f32.mrf.mxu0
      %v3001 = vpop.f32.mrf.mxu0
      %v3002 = vpop.f32.mrf.mxu0
      %3003 = vdwg.mxu0
      %3004 = vrot.lane.b32.xlu0 %v2295, 104
      %v3005 = vpop.permute.xlu0 %3004
      %3006 = vrot.lane.b32.xlu0 %v2301, 104
      %v3007 = vpop.permute.xlu0 %3006
      %v3009 = vsel %vm1141, %v3005, 0
      %v3012 = vsel %vm1141, %v3007, 0
      %3014 = vmatprep.subr.bf16.mxu0 0
      %3015 = vmatpush1.bf16.xpose.msra.mxu0 0
      %3016 = vmatprep.subr.bf16.mxu0 0
      %3017 = vmatpush1.bf16.xpose.msra.mxu0 0
      %3018 = vmatprep.subr.bf16.mxu0 0
      %3019 = vmatpush1.bf16.xpose.msra.mxu0 0
      %3020 = vmatprep.subr.bf16.mxu0 0
      %3021 = vmatpush1.bf16.xpose.msra.mxu0 0
      %3022 = vmatprep.subr.bf16.mxu0 0
      %3023 = vmatpush1.bf16.xpose.msra.mxu0 0
      %3024 = vmatprep.subr.bf16.mxu0 0
      %3025 = vmatpush1.bf16.xpose.msra.mxu0 0
      %3026 = vmatprep.subr.bf16.mxu0 0
      %3027 = vmatpush1.bf16.xpose.msra.mxu0 0
      %3028 = vmatprep.subr.bf16.mxu0 0
      %3029 = vmatpush1.bf16.xpose.msra.mxu0 %v3012
      %3030 = vmatprep.subr.bf16.mxu0 0
      %3031 = vmatpush2.bf16.xpose.msra.mxu0 0
      %3032 = vmatprep.subr.bf16.mxu0 0
      %3033 = vmatpush2.bf16.xpose.msra.mxu0 0
      %3034 = vmatprep.subr.bf16.mxu0 0
      %3035 = vmatpush2.bf16.xpose.msra.mxu0 0
      %3036 = vmatprep.subr.bf16.mxu0 0
      %3037 = vmatpush2.bf16.xpose.msra.mxu0 0
      %3038 = vmatprep.subr.bf16.mxu0 0
      %3039 = vmatpush2.bf16.xpose.msra.mxu0 0
      %3040 = vmatprep.subr.bf16.mxu0 0
      %3041 = vmatpush2.bf16.xpose.msra.mxu0 0
      %3042 = vmatprep.subr.bf16.mxu0 0
      %3043 = vmatpush2.bf16.xpose.msra.mxu0 0
      %3044 = vmatprep.subr.bf16.mxu0 0
      %3045 = vmatpush2.bf16.xpose.msra.mxu0 0
      %3046 = vmatprep.mubr.bf16.mxu0 0
      %3047 = vmatmul.mubr.bf16.gmra.mxu0 %v3009
      %v3048 = vpop.f32.mrf.mxu0
      %v3049 = vadd.f32 %v2172, %v3048
      %v3050 = vpop.f32.mrf.mxu0
      %v3051 = vpop.f32.mrf.mxu0
      %v3052 = vpop.f32.mrf.mxu0
      %3053 = vdwg.mxu0
      %v3054 = vsel %vm1141, %v2999, -inf
      %3055 = vmax.xlane.f32.xlu0 %v3054
      %v3056 = vpop.xlane.xlu0 %3055
      %v3057 = vsel %vm1141, %v3049, -inf
      %3058 = vmax.xlane.f32.xlu0 %v3057
      %v3059 = vpop.xlane.xlu0 %3058
      %v3060 = vsub.f32 %v2999, %v3056
      %v3061 = vsub.f32 %v3049, %v3059
      %v3062 = vmul.f32 %v3060, 1.442695
      %v3063 = vpow.pop %v3062
      %v3064 = vmul.f32 %v3061, 1.442695
      %v3065 = vpow.pop %v3064
      %v3066 = vsel %vm1141, %v3063, 0.0
      %3067 = vadd.xlane.f32.xlu0 %v3066
      %v3068 = vpop.xlane.xlu0 %3067
      %v3069 = vsel %vm1141, %v3065, 0.0
      %3070 = vadd.xlane.f32.xlu0 %v3069
      %v3071 = vpop.xlane.xlu0 %3070
      %v3072 = vrcp.pop %v3068
      %v3073 = vrcp.pop %v3071
      %v3074 = vmul.f32 %v3063, %v3072
      %v3075 = vmul.f32 %v3065, %v3073
      %v3076 = vpack.c.bf16 %v3074, %v3074
      %v3077 = vpack.c.bf16 %v3075, %v3075
      %3078 = vrot.lane.b32.xlu0 %v2300, 72
      %v3079 = vpop.permute.xlu0 %3078
      %v3081 = vsel %vm1141, %v3076, 0
      %v3084 = vsel %vm1265, %v3079, 0
      %3086 = vmatprep.subr.bf16.mxu0 0
      %3087 = vmatpush1.bf16.msra.mxu0 0
      %3088 = vmatprep.subr.bf16.mxu0 0
      %3089 = vmatpush1.bf16.msra.mxu0 0
      %3090 = vmatprep.subr.bf16.mxu0 0
      %3091 = vmatpush1.bf16.msra.mxu0 0
      %3092 = vmatprep.subr.bf16.mxu0 0
      %3093 = vmatpush1.bf16.msra.mxu0 0
      %3094 = vmatprep.subr.bf16.mxu0 0
      %3095 = vmatpush1.bf16.msra.mxu0 0
      %3096 = vmatprep.subr.bf16.mxu0 0
      %3097 = vmatpush1.bf16.msra.mxu0 0
      %3098 = vmatprep.subr.bf16.mxu0 0
      %3099 = vmatpush1.bf16.msra.mxu0 0
      %3100 = vmatprep.subr.bf16.mxu0 0
      %3101 = vmatpush1.bf16.msra.mxu0 %v3084
      %3102 = vmatprep.subr.bf16.mxu0 0
      %3103 = vmatpush2.bf16.msra.mxu0 0
      %3104 = vmatprep.subr.bf16.mxu0 0
      %3105 = vmatpush2.bf16.msra.mxu0 0
      %3106 = vmatprep.subr.bf16.mxu0 0
      %3107 = vmatpush2.bf16.msra.mxu0 0
      %3108 = vmatprep.subr.bf16.mxu0 0
      %3109 = vmatpush2.bf16.msra.mxu0 0
      %3110 = vmatprep.subr.bf16.mxu0 0
      %3111 = vmatpush2.bf16.msra.mxu0 0
      %3112 = vmatprep.subr.bf16.mxu0 0
      %3113 = vmatpush2.bf16.msra.mxu0 0
      %3114 = vmatprep.subr.bf16.mxu0 0
      %3115 = vmatpush2.bf16.msra.mxu0 0
      %3116 = vmatprep.subr.bf16.mxu0 0
      %3117 = vmatpush2.bf16.msra.mxu0 0
      %3118 = vmatprep.mubr.bf16.mxu0 0
      %3119 = vmatmul.mubr.bf16.gmra.mxu0 %v3081
      %v3120 = vpop.f32.mrf.mxu0
      %v3121 = vadd.f32 0.0, %v3120
      %v3122 = vpop.f32.mrf.mxu0
      %v3123 = vpop.f32.mrf.mxu0
      %v3124 = vpop.f32.mrf.mxu0
      %3125 = vdwg.mxu0
      %3126 = vrot.lane.b32.xlu0 %v2301, 72
      %v3127 = vpop.permute.xlu0 %3126
      %v3129 = vsel %vm1141, %v3077, 0
      %v3132 = vsel %vm1265, %v3127, 0
      %3134 = vmatprep.subr.bf16.mxu0 0
      %3135 = vmatpush1.bf16.msra.mxu0 0
      %3136 = vmatprep.subr.bf16.mxu0 0
      %3137 = vmatpush1.bf16.msra.mxu0 0
      %3138 = vmatprep.subr.bf16.mxu0 0
      %3139 = vmatpush1.bf16.msra.mxu0 0
      %3140 = vmatprep.subr.bf16.mxu0 0
      %3141 = vmatpush1.bf16.msra.mxu0 0
      %3142 = vmatprep.subr.bf16.mxu0 0
      %3143 = vmatpush1.bf16.msra.mxu0 0
      %3144 = vmatprep.subr.bf16.mxu0 0
      %3145 = vmatpush1.bf16.msra.mxu0 0
      %3146 = vmatprep.subr.bf16.mxu0 0
      %3147 = vmatpush1.bf16.msra.mxu0 0
      %3148 = vmatprep.subr.bf16.mxu0 0
      %3149 = vmatpush1.bf16.msra.mxu0 %v3132
      %3150 = vmatprep.subr.bf16.mxu0 0
      %3151 = vmatpush2.bf16.msra.mxu0 0
      %3152 = vmatprep.subr.bf16.mxu0 0
      %3153 = vmatpush2.bf16.msra.mxu0 0
      %3154 = vmatprep.subr.bf16.mxu0 0
      %3155 = vmatpush2.bf16.msra.mxu0 0
      %3156 = vmatprep.subr.bf16.mxu0 0
      %3157 = vmatpush2.bf16.msra.mxu0 0
      %3158 = vmatprep.subr.bf16.mxu0 0
      %3159 = vmatpush2.bf16.msra.mxu0 0
      %3160 = vmatprep.subr.bf16.mxu0 0
      %3161 = vmatpush2.bf16.msra.mxu0 0
      %3162 = vmatprep.subr.bf16.mxu0 0
      %3163 = vmatpush2.bf16.msra.mxu0 0
      %3164 = vmatprep.subr.bf16.mxu0 0
      %3165 = vmatpush2.bf16.msra.mxu0 0
      %3166 = vmatprep.mubr.bf16.mxu0 0
      %3167 = vmatmul.mubr.bf16.gmra.mxu0 %v3129
      %v3168 = vpop.f32.mrf.mxu0
      %v3169 = vadd.f32 0.0, %v3168
      %v3170 = vpop.f32.mrf.mxu0
      %v3171 = vpop.f32.mrf.mxu0
      %v3172 = vpop.f32.mrf.mxu0
      %3173 = vdwg.mxu0
      %3176 = vrot.lane.b32.xlu0 %v2681, 8
      %v3177 = vpop.permute.xlu0 %3176
      %3178 = vrot.lane.b32.xlu0 %v2729, 8
      %v3179 = vpop.permute.xlu0 %3178
      %3184 = vrot.lane.b32.xlu0 %v2901, 16
      %v3185 = vpop.permute.xlu0 %3184
      %3186 = vrot.lane.b32.xlu0 %v2949, 16
      %v3187 = vpop.permute.xlu0 %3186
      %3192 = vrot.lane.b32.xlu0 %v3121, 24
      %v3193 = vpop.permute.xlu0 %3192
      %3194 = vrot.lane.b32.xlu0 %v3169, 24
      %v3195 = vpop.permute.xlu0 %3194
      %v3198 = vsel %vm1141, %v2461, %v3177
      %v3199 = vsel %vm1141, %v2509, %v3179
      %v3200 = vsel %vm2043, %v3198, %v3185
      %v3201 = vsel %vm2043, %v3199, %v3187
      %v3202 = vsel %vm2046, %v3200, %v3193
      %v3203 = vsel %vm2046, %v3201, %v3195
      %v3204 = vpack.c.bf16 %v3203, %v3202
      %v3206 = vlaneseq
      %v3207 = vshrl.u32 %v3206, 7
      %v3208 = vsub.s32 0, %v3207
      %v3209 = vrot.slane %v2170, %v3208
      %v3215 = vunpack.c.l.b16 %v2166
      %v3216 = vunpack.c.l.b16 %v2167
      %v3217 = vunpack.c.l.b16 %v2168
      %v3218 = vunpack.c.l.b16 %v2169
      %v3219 = vpack.c.b16 %v3216, %v3215
      %v3220 = vpack.c.b16 %v3218, %v3217
      %v3224 = vsel %vm1088, %v3204, 0
      %3226 = vmatprep.subr.bf16.mxu0 0
      %3227 = vmatpush1.bf16.msra.mxu0 0
      %3228 = vmatprep.subr.bf16.mxu0 0
      %3229 = vmatpush1.bf16.msra.mxu0 0
      %3230 = vmatprep.subr.bf16.mxu0 0
      %3231 = vmatpush1.bf16.msra.mxu0 0
      %3232 = vmatprep.subr.bf16.mxu0 0
      %3233 = vmatpush1.bf16.msra.mxu0 0
      %3234 = vmatprep.subr.bf16.mxu0 0
      %3235 = vmatpush1.bf16.msra.mxu0 0
      %3236 = vmatprep.subr.bf16.mxu0 0
      %3237 = vmatpush1.bf16.msra.mxu0 0
      %3238 = vmatprep.subr.bf16.mxu0 0
      %3239 = vmatpush1.bf16.msra.mxu0 %v3220
      %3240 = vmatprep.subr.bf16.mxu0 0
      %3241 = vmatpush1.bf16.msra.mxu0 %v3219
      %3242 = vmatprep.subr.bf16.mxu0 0
      %3243 = vmatpush2.bf16.msra.mxu0 0
      %3244 = vmatprep.subr.bf16.mxu0 0
      %3245 = vmatpush2.bf16.msra.mxu0 0
      %3246 = vmatprep.subr.bf16.mxu0 0
      %3247 = vmatpush2.bf16.msra.mxu0 0
      %3248 = vmatprep.subr.bf16.mxu0 0
      %3249 = vmatpush2.bf16.msra.mxu0 0
      %3250 = vmatprep.subr.bf16.mxu0 0
      %3251 = vmatpush2.bf16.msra.mxu0 0
      %3252 = vmatprep.subr.bf16.mxu0 0
      %3253 = vmatpush2.bf16.msra.mxu0 0
      %3254 = vmatprep.subr.bf16.mxu0 0
      %3255 = vmatpush2.bf16.msra.mxu0 0
      %3256 = vmatprep.subr.bf16.mxu0 0
      %3257 = vmatpush2.bf16.msra.mxu0 0
      %3258 = vmatprep.mubr.bf16.mxu0 0
      %3259 = vmatmul.mubr.bf16.gmra.mxu0 %v3224
      %v3260 = vpop.f32.mrf.mxu0
      %v3261 = vadd.f32 %v3209, %v3260
      %v3262 = vpop.f32.mrf.mxu0
      %v3263 = vpop.f32.mrf.mxu0
      %v3264 = vadd.f32 %v3209, %v3263
      %v3265 = vpop.f32.mrf.mxu0
      %3266 = vdwg.mxu0
      %v3267 = vadd.f32 %v2157, %v3261
      %v3268 = vadd.f32 %v2158, %v3264
      %v3269 = vld [vmem:[%s1019] sm:$0x1]
      %v3270 = vld [vmem:[%s1022] sm:$0x1]
      %v3271 = vsel %vm1088, %v3267, 0.0
      %3272 = vadd.xlane.f32.xlu0 %v3271
      %v3273 = vpop.xlane.xlu0 %3272
      %v3274 = vsel %vm1088, %v3268, 0.0
      %3275 = vadd.xlane.f32.xlu0 %v3274
      %v3276 = vpop.xlane.xlu0 %3275
      %v3277 = vmul.f32 %v3273, %v2122
      %v3278 = vmul.f32 %v3276, %v2122
      %v3279 = vsub.f32 %v3267, %v3277
      %v3280 = vsub.f32 %v3268, %v3278
      %v3281 = vmul.f32 %v3279, %v3279
      %v3282 = vmul.f32 %v3280, %v3280
      %v3283 = vsel %vm1088, %v3281, 0.0
      %3284 = vadd.xlane.f32.xlu0 %v3283
      %v3285 = vpop.xlane.xlu0 %3284
      %v3286 = vsel %vm1088, %v3282, 0.0
      %3287 = vadd.xlane.f32.xlu0 %v3286
      %v3288 = vpop.xlane.xlu0 %3287
      %v3289 = vmul.f32 %v3285, %v2122
      %v3290 = vmul.f32 %v3288, %v2122
      %v3291 = vadd.f32 %v3289, 1e-05
      %v3292 = vadd.f32 %v3290, 1e-05
      %v3293 = vrsqrt.pop %v3291
      %v3294 = vrsqrt.pop %v3292
      %v3295 = vmul.f32 %v3279, %v3293
      %v3296 = vmul.f32 %v3280, %v3294
      %v3298 = vlaneseq
      %v3299 = vshrl.u32 %v3298, 7
      %v3300 = vsub.s32 0, %v3299
      %v3301 = vrot.slane %v3269, %v3300
      %v3303 = vmul.f32 %v3295, %v3301
      %v3304 = vmul.f32 %v3296, %v3301
      %v3306 = vlaneseq
      %v3307 = vshrl.u32 %v3306, 7
      %v3308 = vsub.s32 0, %v3307
      %v3309 = vrot.slane %v3270, %v3308
      %v3311 = vadd.f32 %v3303, %v3309
      %v3312 = vadd.f32 %v3304, %v3309
      %v3313 = vld [vmem:[%s1027] sm:$0xf]
      %v3314 = vld [vmem:[%s1027 + $0x4] sm:$0xf]
      %v3315 = vld [vmem:[%s1027 + $0x8] sm:$0xf]
      %v3316 = vld [vmem:[%s1027 + $0xc] sm:$0xf]
      %v3317 = vld [vmem:[%s1030] sm:$0x1]
      %v3318 = vld [vmem:[%s1035] sm:$0xf]
      %v3319 = vld [vmem:[%s1035 + $0x4] sm:$0xf]
      %v3320 = vld [vmem:[%s1035 + $0x8] sm:$0xf]
      %v3321 = vld [vmem:[%s1035 + $0xc] sm:$0xf]
      %v3322 = vld [vmem:[%s1035 + $0x10] sm:$0xf]
      %v3323 = vld [vmem:[%s1035 + $0x14] sm:$0xf]
      %v3324 = vld [vmem:[%s1035 + $0x18] sm:$0xf]
      %v3325 = vld [vmem:[%s1035 + $0x1c] sm:$0xf]
      %v3326 = vld [vmem:[%s1038] sm:$0x1]
      %v3327 = vpack.c.bf16 %v3312, %v3311
      %v3329 = vlaneseq
      %v3330 = vshrl.u32 %v3329, 7
      %v3331 = vsub.s32 0, %v3330
      %v3332 = vrot.slane %v3317, %v3331
      %v3338 = vunpack.c.l.b16 %v3313
      %v3339 = vunpack.c.l.b16 %v3314
      %v3340 = vunpack.c.l.b16 %v3315
      %v3341 = vunpack.c.l.b16 %v3316
      %v3342 = vpack.c.b16 %v3339, %v3338
      %v3343 = vpack.c.b16 %v3341, %v3340
      %v3347 = vsel %vm1088, %v3327, 0
      %3349 = vmatprep.subr.bf16.mxu0 0
      %3350 = vmatpush1.bf16.msra.mxu0 0
      %3351 = vmatprep.subr.bf16.mxu0 0
      %3352 = vmatpush1.bf16.msra.mxu0 0
      %3353 = vmatprep.subr.bf16.mxu0 0
      %3354 = vmatpush1.bf16.msra.mxu0 0
      %3355 = vmatprep.subr.bf16.mxu0 0
      %3356 = vmatpush1.bf16.msra.mxu0 0
      %3357 = vmatprep.subr.bf16.mxu0 0
      %3358 = vmatpush1.bf16.msra.mxu0 0
      %3359 = vmatprep.subr.bf16.mxu0 0
      %3360 = vmatpush1.bf16.msra.mxu0 0
      %3361 = vmatprep.subr.bf16.mxu0 0
      %3362 = vmatpush1.bf16.msra.mxu0 %v3343
      %3363 = vmatprep.subr.bf16.mxu0 0
      %3364 = vmatpush1.bf16.msra.mxu0 %v3342
      %3365 = vmatprep.subr.bf16.mxu0 0
      %3366 = vmatpush2.bf16.msra.mxu0 0
      %3367 = vmatprep.subr.bf16.mxu0 0
      %3368 = vmatpush2.bf16.msra.mxu0 0
      %3369 = vmatprep.subr.bf16.mxu0 0
      %3370 = vmatpush2.bf16.msra.mxu0 0
      %3371 = vmatprep.subr.bf16.mxu0 0
      %3372 = vmatpush2.bf16.msra.mxu0 0
      %3373 = vmatprep.subr.bf16.mxu0 0
      %3374 = vmatpush2.bf16.msra.mxu0 0
      %3375 = vmatprep.subr.bf16.mxu0 0
      %3376 = vmatpush2.bf16.msra.mxu0 0
      %3377 = vmatprep.subr.bf16.mxu0 0
      %3378 = vmatpush2.bf16.msra.mxu0 0
      %3379 = vmatprep.subr.bf16.mxu0 0
      %3380 = vmatpush2.bf16.msra.mxu0 0
      %3381 = vmatprep.mubr.bf16.mxu0 0
      %3382 = vmatmul.mubr.bf16.gmra.mxu0 %v3347
      %v3383 = vpop.f32.mrf.mxu0
      %v3384 = vadd.f32 %v3332, %v3383
      %v3385 = vpop.f32.mrf.mxu0
      %v3386 = vpop.f32.mrf.mxu0
      %v3387 = vadd.f32 %v3332, %v3386
      %v3388 = vpop.f32.mrf.mxu0
      %3389 = vdwg.mxu0
      %v3390 = vmax.f32 %v3384, 0.0
      %v3391 = vmax.f32 %v3387, 0.0
      %v3392 = vpack.c.bf16 %v3391, %v3390
      %v3401 = vunpack.c.l.b16 %v3318
      %v3402 = vunpack.c.l.b16 %v3319
      %v3403 = vunpack.c.l.b16 %v3320
      %v3404 = vunpack.c.l.b16 %v3321
      %v3405 = vunpack.c.l.b16 %v3322
      %v3406 = vunpack.c.l.b16 %v3323
      %v3407 = vunpack.c.l.b16 %v3324
      %v3408 = vunpack.c.l.b16 %v3325
      %v3409 = vpack.c.b16 %v3402, %v3401
      %v3410 = vpack.c.b16 %v3404, %v3403
      %v3411 = vpack.c.b16 %v3406, %v3405
      %v3412 = vpack.c.b16 %v3408, %v3407
      %vm3417 = vcmask 523264
      %v3419 = vsel %vm3417, %v3392, 0
      %3421 = vmatprep.subr.bf16.mxu0 0
      %3422 = vmatpush1.bf16.msra.mxu0 0
      %3423 = vmatprep.subr.bf16.mxu0 0
      %3424 = vmatpush1.bf16.msra.mxu0 0
      %3425 = vmatprep.subr.bf16.mxu0 0
      %3426 = vmatpush1.bf16.msra.mxu0 0
      %3427 = vmatprep.subr.bf16.mxu0 0
      %3428 = vmatpush1.bf16.msra.mxu0 0
      %3429 = vmatprep.subr.bf16.mxu0 0
      %3430 = vmatpush1.bf16.msra.mxu0 %v3412
      %3431 = vmatprep.subr.bf16.mxu0 0
      %3432 = vmatpush1.bf16.msra.mxu0 %v3411
      %3433 = vmatprep.subr.bf16.mxu0 0
      %3434 = vmatpush1.bf16.msra.mxu0 %v3410
      %3435 = vmatprep.subr.bf16.mxu0 0
      %3436 = vmatpush1.bf16.msra.mxu0 %v3409
      %3437 = vmatprep.subr.bf16.mxu0 0
      %3438 = vmatpush2.bf16.msra.mxu0 0
      %3439 = vmatprep.subr.bf16.mxu0 0
      %3440 = vmatpush2.bf16.msra.mxu0 0
      %3441 = vmatprep.subr.bf16.mxu0 0
      %3442 = vmatpush2.bf16.msra.mxu0 0
      %3443 = vmatprep.subr.bf16.mxu0 0
      %3444 = vmatpush2.bf16.msra.mxu0 0
      %3445 = vmatprep.subr.bf16.mxu0 0
      %3446 = vmatpush2.bf16.msra.mxu0 0
      %3447 = vmatprep.subr.bf16.mxu0 0
      %3448 = vmatpush2.bf16.msra.mxu0 0
      %3449 = vmatprep.subr.bf16.mxu0 0
      %3450 = vmatpush2.bf16.msra.mxu0 0
      %3451 = vmatprep.subr.bf16.mxu0 0
      %3452 = vmatpush2.bf16.msra.mxu0 0
      %3453 = vmatprep.mubr.bf16.mxu0 0
      %3454 = vmatmul.mubr.bf16.gmra.mxu0 %v3419
      %v3455 = vpop.f32.mrf.mxu0
      %v3456 = vadd.f32 0.0, %v3455
      %v3457 = vpop.f32.mrf.mxu0
      %v3458 = vpop.f32.mrf.mxu0
      %v3459 = vadd.f32 0.0, %v3458
      %v3460 = vpop.f32.mrf.mxu0
      %3461 = vdwg.mxu0
      %v3462 = vadd.f32 %v3311, %v3456
      %v3463 = vadd.f32 %v3312, %v3459
      %v3465 = vlaneseq
      %v3466 = vshrl.u32 %v3465, 7
      %v3467 = vsub.s32 0, %v3466
      %v3468 = vrot.slane %v3326, %v3467
      %v3470 = vadd.f32 %v3462, %v3468
      %v3471 = vadd.f32 %v3463, %v3468
      %v3472 = vld [vmem:[%s1041] sm:$0x1]
      %v3473 = vld [vmem:[%s1044] sm:$0x1]
      %v3474 = vsel %vm1088, %v3470, 0.0
      %3475 = vadd.xlane.f32.xlu0 %v3474
      %v3476 = vpop.xlane.xlu0 %3475
      %v3477 = vsel %vm1088, %v3471, 0.0
      %3478 = vadd.xlane.f32.xlu0 %v3477
      %v3479 = vpop.xlane.xlu0 %3478
      %v3480 = vmul.f32 %v3476, %v2122
      %v3481 = vmul.f32 %v3479, %v2122
      %v3482 = vsub.f32 %v3470, %v3480
      %v3483 = vsub.f32 %v3471, %v3481
      %v3484 = vmul.f32 %v3482, %v3482
      %v3485 = vmul.f32 %v3483, %v3483
      %v3486 = vsel %vm1088, %v3484, 0.0
      %3487 = vadd.xlane.f32.xlu0 %v3486
      %v3488 = vpop.xlane.xlu0 %3487
      %v3489 = vsel %vm1088, %v3485, 0.0
      %3490 = vadd.xlane.f32.xlu0 %v3489
      %v3491 = vpop.xlane.xlu0 %3490
      %v3492 = vmul.f32 %v3488, %v2122
      %v3493 = vmul.f32 %v3491, %v2122
      %v3494 = vadd.f32 %v3492, 1e-05
      %v3495 = vadd.f32 %v3493, 1e-05
      %v3496 = vrsqrt.pop %v3494
      %v3497 = vrsqrt.pop %v3495
      %v3498 = vmul.f32 %v3482, %v3496
      %v3499 = vmul.f32 %v3483, %v3497
      %v3501 = vlaneseq
      %v3502 = vshrl.u32 %v3501, 7
      %v3503 = vsub.s32 0, %v3502
      %v3504 = vrot.slane %v3472, %v3503
      %v3506 = vmul.f32 %v3498, %v3504
      %v3507 = vmul.f32 %v3499, %v3504
      %v3509 = vlaneseq
      %v3510 = vshrl.u32 %v3509, 7
      %v3511 = vsub.s32 0, %v3510
      %v3512 = vrot.slane %v3473, %v3511
      %v3514 = vadd.f32 %v3506, %v3512
      %v3515 = vadd.f32 %v3507, %v3512
      %3516 = vst.msk [vmem:[#allocation2] sm:$0xff] %vm1088, %v3514
      %3517 = vst.msk [vmem:[#allocation2 + $0x8] sm:$0xff] %vm1088, %v3515
      %p3518 = scmp.eq.s32.totalorder %s37, 1
      // Predicated region
      $region129: #{_lambda_.3} parent=123 // pred_check
        %p3519 = pneg %p3518
      $region130: #{_lambda_.3} parent=123 // pred_check_branch
        %3521 = sbr.rel (%p3519) target = $region132
      $region131: #{_lambda_.3} parent=123 // pred_region
        %v3522 = vld [vmem:[%s22] sm:$0x1]
        %v3523 = vld [vmem:[%s23] sm:$0x1]
        %v3524 = vsel %vm1088, %v3514, 0.0
        %3525 = vadd.xlane.f32.xlu0 %v3524
        %v3526 = vpop.xlane.xlu0 %3525
        %v3527 = vsel %vm1088, %v3515, 0.0
        %3528 = vadd.xlane.f32.xlu0 %v3527
        %v3529 = vpop.xlane.xlu0 %3528
        %v3530 = vmul.f32 %v3526, %v2122
        %v3531 = vmul.f32 %v3529, %v2122
        %v3532 = vsub.f32 %v3514, %v3530
        %v3533 = vsub.f32 %v3515, %v3531
        %v3534 = vmul.f32 %v3532, %v3532
        %v3535 = vmul.f32 %v3533, %v3533
        %v3536 = vsel %vm1088, %v3534, 0.0
        %3537 = vadd.xlane.f32.xlu0 %v3536
        %v3538 = vpop.xlane.xlu0 %3537
        %v3539 = vsel %vm1088, %v3535, 0.0
        %3540 = vadd.xlane.f32.xlu0 %v3539
        %v3541 = vpop.xlane.xlu0 %3540
        %v3542 = vmul.f32 %v3538, %v2122
        %v3543 = vmul.f32 %v3541, %v2122
        %v3544 = vadd.f32 %v3542, 1e-05
        %v3545 = vadd.f32 %v3543, 1e-05
        %v3546 = vrsqrt.pop %v3544
        %v3547 = vrsqrt.pop %v3545
        %v3548 = vmul.f32 %v3532, %v3546
        %v3549 = vmul.f32 %v3533, %v3547
        %v3551 = vlaneseq
        %v3552 = vshrl.u32 %v3551, 7
        %v3553 = vsub.s32 0, %v3552
        %v3554 = vrot.slane %v3522, %v3553
        %v3556 = vmul.f32 %v3548, %v3554
        %v3557 = vmul.f32 %v3549, %v3554
        %v3559 = vlaneseq
        %v3560 = vshrl.u32 %v3559, 7
        %v3561 = vsub.s32 0, %v3560
        %v3562 = vrot.slane %v3523, %v3561
        %v3564 = vadd.f32 %v3556, %v3562
        %v3565 = vadd.f32 %v3557, %v3562
        %v3566 = vpack.c.bf16 %v3565, %v3564
        %v3567 = vld [vmem:[%s24] sm:$0xff]
        %v3568 = vld [vmem:[%s24 + $0x8] sm:$0xff]
        %v3569 = vld [vmem:[%s24 + $0x10] sm:$0xff]
        %v3570 = vld [vmem:[%s24 + $0x18] sm:$0xff]
        %v3571 = vld [vmem:[%s25] sm:$0x3]
        %v3573 = vlaneseq
        %v3574 = vshrl.u32 %v3573, 7
        %v3575 = vsub.s32 0, %v3574
        %v3576 = vrot.slane %v3571, %v3575
        %v3577 = vlaneseq
        %v3578 = vshrl.u32 %v3577, 7
        %v3579 = vsub.s32 1, %v3578
        %v3580 = vrot.slane %v3571, %v3579
        %v3587 = vunpack.c.l.b16 %v3567
        %v3588 = vunpack.c.h.b16 %v3567
        %v3589 = vunpack.c.l.b16 %v3568
        %v3590 = vunpack.c.h.b16 %v3568
        %v3591 = vunpack.c.l.b16 %v3569
        %v3592 = vunpack.c.h.b16 %v3569
        %v3593 = vunpack.c.l.b16 %v3570
        %v3594 = vunpack.c.h.b16 %v3570
        %v3595 = vpack.c.b16 %v3589, %v3587
        %v3596 = vpack.c.b16 %v3590, %v3588
        %v3597 = vpack.c.b16 %v3593, %v3591
        %v3598 = vpack.c.b16 %v3594, %v3592
        %v3604 = vsel %vm1088, %v3566, 0
        %3606 = vmatprep.subr.bf16.mxu0 0
        %3607 = vmatpush1.bf16.msra.mxu0 0
        %3608 = vmatprep.subr.bf16.mxu0 0
        %3609 = vmatpush1.bf16.msra.mxu0 0
        %3610 = vmatprep.subr.bf16.mxu0 0
        %3611 = vmatpush1.bf16.msra.mxu0 0
        %3612 = vmatprep.subr.bf16.mxu0 0
        %3613 = vmatpush1.bf16.msra.mxu0 0
        %3614 = vmatprep.subr.bf16.mxu0 0
        %3615 = vmatpush1.bf16.msra.mxu0 0
        %3616 = vmatprep.subr.bf16.mxu0 0
        %3617 = vmatpush1.bf16.msra.mxu0 0
        %3618 = vmatprep.subr.bf16.mxu0 %v3598
        %3619 = vmatpush1.bf16.msra.mxu0 %v3597
        %3620 = vmatprep.subr.bf16.mxu0 %v3596
        %3621 = vmatpush1.bf16.msra.mxu0 %v3595
        %3622 = vmatprep.subr.bf16.mxu0 0
        %3623 = vmatpush2.bf16.msra.mxu0 0
        %3624 = vmatprep.subr.bf16.mxu0 0
        %3625 = vmatpush2.bf16.msra.mxu0 0
        %3626 = vmatprep.subr.bf16.mxu0 0
        %3627 = vmatpush2.bf16.msra.mxu0 0
        %3628 = vmatprep.subr.bf16.mxu0 0
        %3629 = vmatpush2.bf16.msra.mxu0 0
        %3630 = vmatprep.subr.bf16.mxu0 0
        %3631 = vmatpush2.bf16.msra.mxu0 0
        %3632 = vmatprep.subr.bf16.mxu0 0
        %3633 = vmatpush2.bf16.msra.mxu0 0
        %3634 = vmatprep.subr.bf16.mxu0 0
        %3635 = vmatpush2.bf16.msra.mxu0 0
        %3636 = vmatprep.subr.bf16.mxu0 0
        %3637 = vmatpush2.bf16.msra.mxu0 0
        %3638 = vmatprep.mubr.bf16.mxu0 0
        %3639 = vmatmul.mubr.bf16.gmra.mxu0 %v3604
        %v3640 = vpop.f32.mrf.mxu0
        %v3641 = vadd.f32 %v3576, %v3640
        %v3642 = vpop.f32.mrf.mxu0
        %v3643 = vadd.f32 %v3580, %v3642
        %v3644 = vpop.f32.mrf.mxu0
        %v3645 = vadd.f32 %v3576, %v3644
        %v3646 = vpop.f32.mrf.mxu0
        %v3647 = vadd.f32 %v3580, %v3646
        %3648 = vdwg.mxu0
        %3649 = vst [vmem:[%s26] sm:$0xff] %v3641
        %3650 = vst [vmem:[%s26 + $0x8] sm:$0xff] %v3643
        %3651 = vst [vmem:[%s26 + $0x10] sm:$0xff] %v3645
        %3652 = vst [vmem:[%s26 + $0x18] sm:$0xff] %v3647
      $region132: #{_lambda_.3} parent=123 // pred_fallthru
        _
      // Predicated region
      $region133: #{_lambda_.3} parent=123 // pred_check
        %p3653 = pneg %p686
      $region134: #{_lambda_.3} parent=123 // pred_check_branch
        %3655 = sbr.rel (%p3653) target = $region136
      $region135: #{_lambda_.3} parent=123 // pred_region
        _
      $region136: #{_lambda_.3} parent=123 // pred_fallthru
        _
      // Predicated region
      $region137: #{_lambda_.3} parent=123 // pred_check
        %p3656 = pneg %p686
      $region138: #{_lambda_.3} parent=123 // pred_check_branch
        %3658 = sbr.rel (%p3656) target = $region140
      $region139: #{_lambda_.3} parent=123 // pred_region
        _
      $region140: #{_lambda_.3} parent=123 // pred_fallthru
        _
    $region124: #{_lambda_.3} parent=5 // pred_fallthru
      _
    %p3659 = scmp.le.s32.totalorder 2, %s32
    // Predicated region
    $region141: #{_lambda_.3} parent=5 // pred_check
      %p3660 = pneg %p3659
    $region142: #{_lambda_.3} parent=5 // pred_check_branch
      %3662 = sbr.rel (%p3660) target = $region144
    $region143: #{_lambda_.3} parent=5 // pred_region
      %s3663 = ssub.s32 %s32, 2
    $region144: #{_lambda_.3} parent=5 // pred_fallthru
      _
  $region6: #{_lambda_.3} parent=0 // loop_footer
    %s36 = sadd.s32 1, %s32
  $region7: #{_lambda_.3} parent=0 // loop_footer_branch
    %31 = sbr.rel target = $region3
  $region8: #{_lambda_.3} parent=0 // loop_exit
    _

</llo_original>
